<compile_context>
chip_gen: v5e
topology: v5e:2x2
jax: 0.10.0
libtpu: 0.0.40
codegen_flags: <defaults>
</compile_context>

<pallas_src>
import jax
import jax.numpy as jnp
from jax.experimental import pallas as pl
from jax.experimental.pallas import tpu as pltpu

KSIZES = (3, 6, 12)
NTAPS = max(KSIZES)                                   # merged conv span: 12 taps
MAX_PAD_L, MAX_PAD_R = 5, 6                           # 'same' halo for k=12
OFFSETS = tuple(MAX_PAD_L - (k - 1) // 2 for k in KSIZES)   # (4, 3, 0)
LANE = 128                                            # TPU lane width


def _round_up(n, m):
    return ((n + m - 1) // m) * m


# ---------------------------------------------------------------------------
# Fused Pallas kernel: whole MACNN forward with activations resident in VMEM
# ---------------------------------------------------------------------------
def _make_fused_kernel(n_blocks, pool_after):
    pool_after = frozenset(pool_after)

    def kernel(*refs):
        x_ref = refs[0]
        block_refs = refs[1:1 + 4 * n_blocks]
        fc_w_ref = refs[1 + 4 * n_blocks]
        fc_b_ref = refs[2 + 4 * n_blocks]
        o_ref = refs[3 + 4 * n_blocks]
        batch = x_ref.shape[0]

        results = []
        for b in range(batch):                        # tiny static batch loop
            act = x_ref[b]                            # (L, Cin_pad), lane-dense
            for blk in range(n_blocks):
                w_ref, bias_ref, sw1_ref, sw2_ref = block_refs[4 * blk:4 * blk + 4]
                L, cinp = act.shape
                # in-kernel zero halo shared by the three merged 'same' convs
                xp = jnp.concatenate(
                    [jnp.zeros((MAX_PAD_L, cinp), jnp.float32), act,
                     jnp.zeros((MAX_PAD_R, cinp), jnp.float32)], axis=0)
                # im2col: 12 shifted, lane-aligned slices -> (L, 12*Cin_pad)
                cols = jnp.concatenate(
                    [xp[kk:kk + L, :] for kk in range(NTAPS)], axis=-1)
                # ONE MXU matmul = conv1|conv2|conv3 + channel concat + eval-BN
                out = jnp.dot(cols, w_ref[...],
                              preferred_element_type=jnp.float32) + bias_ref[...]
                out = jnp.maximum(out, 0.0)                       # ReLU
                # SE attention: mean over L -> FC -> ReLU -> FC -> sigmoid
                y = jnp.mean(out, axis=0, keepdims=True)          # (1, C3_pad)
                y = jnp.maximum(
                    jnp.dot(y, sw1_ref[...],
                            preferred_element_type=jnp.float32), 0.0)
                y = jax.nn.sigmoid(
                    jnp.dot(y, sw2_ref[...],
                            preferred_element_type=jnp.float32))
                act = out * y                                     # scale over L
                # fused MaxPool1d(k=3, s=2, p=1); act >= 0 so a zero halo is exact
                if blk in pool_after:
                    assert L % 2 == 0, "maxpool requires an even sequence length"
                    c = act.shape[1]
                    zp = jnp.zeros((1, c), jnp.float32)
                    ap = jnp.concatenate([zp, act, zp], axis=0)   # (L+2, C)
                    full = jnp.maximum(
                        jnp.maximum(ap[0:L, :], ap[1:L + 1, :]), ap[2:L + 2, :])
                    act = full.reshape(L // 2, 2, c)[:, 0, :]     # stride-2 starts
            # head: AdaptiveAvgPool1d(1) + Linear (classes padded to 128 lanes)
            feat = jnp.mean(act, axis=0, keepdims=True)           # (1, C_final_pad)
            results.append(
                jnp.dot(feat, fc_w_ref[...],
                        preferred_element_type=jnp.float32) + fc_b_ref[...])
        o_ref[...] = jnp.concatenate(results, axis=0)             # (B, NC_pad)

    return kernel


# ---------------------------------------------------------------------------
# Wrapper: single pallas_call, no grid, everything in VMEM
# ---------------------------------------------------------------------------
def macnn_forward(kparams, x_ncl):
    """x_ncl: PyTorch-style (B, C, L) input; returns (B, num_classes)."""
    x = jnp.transpose(x_ncl, (0, 2, 1)).astype(jnp.float32)       # -> (B, L, C)
    B, L, cin = x.shape
    assert L % (2 ** len(kparams["pool_after"])) == 0
    cin_pad = kparams["cin0_pad"]
    x = jnp.pad(x, ((0, 0), (0, 0), (0, cin_pad - cin)))          # one-time prep

    blocks = kparams["blocks"]
    n_blocks = len(blocks)
    nc_pad = kparams["fc_w"].shape[1]

    args = [x]
    for bp in blocks:
        args += [bp["w"], bp["bias"], bp["se_w1"], bp["se_w2"]]
    args += [kparams["fc_w"], kparams["fc_b"]]

    out = pl.pallas_call(
        _make_fused_kernel(n_blocks, kparams["pool_after"]),
        out_shape=jax.ShapeDtypeStruct((B, nc_pad), jnp.float32),
        in_specs=[pl.BlockSpec(memory_space=pltpu.MemorySpace.VMEM)
                  for _ in args],
        out_specs=pl.BlockSpec(memory_space=pltpu.MemorySpace.VMEM),
        compiler_params=pltpu.CompilerParams(
            vmem_limit_bytes=32 * 1024 * 1024),
    )(*args)
    return out[:, :kparams["num_classes"]]


# ---------------------------------------------------------------------------
# Deterministic PyTorch-layout parameters + host-side kernel-layout prep
# ---------------------------------------------------------------------------
def init_block_params(key, cin, cout, reduction=16):
    ks = jax.random.split(key, 12)
    c3 = 3 * cout
    hid = c3 // reduction
    n = lambda k, shape, s=0.1: s * jax.random.normal(k, shape, jnp.float32)
    return {
        "conv1_w": n(ks[0], (cout, cin, KSIZES[0])),   # Conv1d (O, Cin, K)
        "conv2_w": n(ks[1], (cout, cin, KSIZES[1])),
        "conv3_w": n(ks[2], (cout, cin, KSIZES[2])),
        "conv1_b": n(ks[3], (cout,)),
        "conv2_b": n(ks[4], (cout,)),
        "conv3_b": n(ks[5], (cout,)),
        "bn_gamma": 1.0 + n(ks[6], (c3,)),
        "bn_beta": n(ks[7], (c3,)),
        "bn_mean": n(ks[8], (c3,)),
        "bn_var": 1.0 + 0.1 * jax.random.uniform(ks[9], (c3,), jnp.float32),
        "se_w1": n(ks[10], (hid, c3)),                 # Linear(c3, hid, bias=False)
        "se_w2": n(ks[11], (c3, hid)),                 # Linear(hid, c3, bias=False)
    }


def init_macnn_params(key, in_channels=3, channels=16, num_classes=7,
                      block_num=(2, 2, 2), reduction=16):
    widths = (channels, channels * 2, channels * 4)
    keys = jax.random.split(key, sum(block_num) + 1)
    layers, cin, ki = [], in_channels, 0
    for n_blocks, ch in zip(block_num, widths):
        layer = []
        for _ in range(n_blocks):
            layer.append(init_block_params(keys[ki], cin, ch, reduction))
            ki += 1
            cin = 3 * ch
        layers.append(layer)
    kw, kb = jax.random.split(keys[-1])
    c_final = 3 * widths[-1]
    return {
        "layers": layers,
        "in_channels": in_channels,
        "fc_w": 0.1 * jax.random.normal(kw, (num_classes, c_final), jnp.float32),
        "fc_b": 0.1 * jax.random.normal(kb, (num_classes,), jnp.float32),
    }


def _prepare_block(p, cin_pad, c3_pad, eps=1e-5):
    """Merge 3 convs + eval-BatchNorm into one folded (12*Cin_pad, C3_pad) weight."""
    cout, cin, _ = p["conv1_w"].shape
    c3 = 3 * cout
    scale = p["bn_gamma"] / jnp.sqrt(p["bn_var"] + eps)           # eval-mode BN

    w = jnp.zeros((NTAPS, cin_pad, c3_pad), jnp.float32)
    biases = []
    for i, (k, off) in enumerate(zip(KSIZES, OFFSETS)):
        wi = jnp.transpose(p[f"conv{i + 1}_w"], (2, 1, 0))        # (K, Cin, O)
        w = w.at[off:off + k, :cin, i * cout:(i + 1) * cout].set(wi)
        biases.append(p[f"conv{i + 1}_b"])
    scale_pad = jnp.zeros((c3_pad,), jnp.float32).at[:c3].set(scale)
    w = w * scale_pad[None, None, :]                              # fold BN scale
    bias = (jnp.concatenate(biases) - p["bn_mean"]) * scale + p["bn_beta"]
    bias_pad = jnp.zeros((1, c3_pad), jnp.float32).at[0, :c3].set(bias)

    hid = p["se_w1"].shape[0]
    se_w1 = jnp.zeros((c3_pad, hid), jnp.float32).at[:c3, :].set(p["se_w1"].T)
    se_w2 = jnp.zeros((hid, c3_pad), jnp.float32).at[:, :c3].set(p["se_w2"].T)
    return {"w": w.reshape(NTAPS * cin_pad, c3_pad), "bias": bias_pad,
            "se_w1": se_w1, "se_w2": se_w2}


def prepare_macnn_params(params):
    blocks_pt = [bp for layer in params["layers"] for bp in layer]
    cin_pad = _round_up(params["in_channels"], LANE)
    cin0_pad = cin_pad
    blocks = []
    for bp in blocks_pt:
        c3_pad = _round_up(3 * bp["conv1_w"].shape[0], LANE)
        blocks.append(_prepare_block(bp, cin_pad, c3_pad))
        cin_pad = c3_pad
    nc, c_final = params["fc_w"].shape
    nc_pad = _round_up(nc, LANE)
    fc_w = jnp.zeros((cin_pad, nc_pad), jnp.float32).at[:c_final, :nc].set(
        params["fc_w"].T)
    fc_b = jnp.zeros((1, nc_pad), jnp.float32).at[0, :nc].set(params["fc_b"])
    # MaxPool1d(3, 2, 1) after every layer except the last (matches MACNN.forward)
    pool_after, idx = [], -1
    for li, layer in enumerate(params["layers"]):
        idx += len(layer)
        if li < len(params["layers"]) - 1:
            pool_after.append(idx)
    return {"blocks": blocks, "fc_w": fc_w, "fc_b": fc_b,
            "cin0_pad": cin0_pad, "pool_after": tuple(pool_after),
            "num_classes": nc}


if __name__ == "__main__":
    key = jax.random.PRNGKey(0)
    kp, kx = jax.random.split(key)
    # small config: in_channels=3, channels=16 (layer widths 48/96/192),
    # num_classes=7, batch=2, sequence length=16 (pooled 16 -> 8 -> 4)
    pt_params = init_macnn_params(kp, in_channels=3, channels=16, num_classes=7)
    kparams = prepare_macnn_params(pt_params)
    x = jax.random.normal(kx, (2, 3, 16), jnp.float32)            # NCL, like PyTorch
    out = macnn_forward(kparams, x)
    jax.block_until_ready(out)
    assert out.shape == (2, 7) and out.dtype == jnp.float32
    print("KERNEL_OK")
</pallas_src>

<mosaic_0001>
module attributes {stable_mosaic.version = 11 : i64} {
  func.func @kernel(%arg0: memref<2x16x128xf32, #tpu.memory_space<vmem>>, %arg1: memref<1536x128xf32, #tpu.memory_space<vmem>>, %arg2: memref<1x128xf32, #tpu.memory_space<vmem>>, %arg3: memref<128x3xf32, #tpu.memory_space<vmem>>, %arg4: memref<3x128xf32, #tpu.memory_space<vmem>>, %arg5: memref<1536x128xf32, #tpu.memory_space<vmem>>, %arg6: memref<1x128xf32, #tpu.memory_space<vmem>>, %arg7: memref<128x3xf32, #tpu.memory_space<vmem>>, %arg8: memref<3x128xf32, #tpu.memory_space<vmem>>, %arg9: memref<1536x128xf32, #tpu.memory_space<vmem>>, %arg10: memref<1x128xf32, #tpu.memory_space<vmem>>, %arg11: memref<128x6xf32, #tpu.memory_space<vmem>>, %arg12: memref<6x128xf32, #tpu.memory_space<vmem>>, %arg13: memref<1536x128xf32, #tpu.memory_space<vmem>>, %arg14: memref<1x128xf32, #tpu.memory_space<vmem>>, %arg15: memref<128x6xf32, #tpu.memory_space<vmem>>, %arg16: memref<6x128xf32, #tpu.memory_space<vmem>>, %arg17: memref<1536x256xf32, #tpu.memory_space<vmem>>, %arg18: memref<1x256xf32, #tpu.memory_space<vmem>>, %arg19: memref<256x12xf32, #tpu.memory_space<vmem>>, %arg20: memref<12x256xf32, #tpu.memory_space<vmem>>, %arg21: memref<3072x256xf32, #tpu.memory_space<vmem>>, %arg22: memref<1x256xf32, #tpu.memory_space<vmem>>, %arg23: memref<256x12xf32, #tpu.memory_space<vmem>>, %arg24: memref<12x256xf32, #tpu.memory_space<vmem>>, %arg25: memref<256x128xf32, #tpu.memory_space<vmem>>, %arg26: memref<1x128xf32, #tpu.memory_space<vmem>>, %arg27: memref<2x128xf32, #tpu.memory_space<vmem>>) attributes {dimension_semantics = [], scalar_prefetch = 0 : i64, scratch_operands = 0 : i64, tpu.core_type = #tpu.core_type<tc>} {
    %c0 = arith.constant 0 : index
    %c0_0 = arith.constant 0 : index
    %c0_1 = arith.constant 0 : index
    %0 = vector.load %arg0[%c0, %c0_0, %c0_1] : memref<2x16x128xf32, #tpu.memory_space<vmem>>, vector<1x16x128xf32>
    %1 = vector.shape_cast %0 : vector<1x16x128xf32> to vector<16x128xf32>
    %cst = arith.constant 0.000000e+00 : f32
    %2 = vector.broadcast %cst : f32 to vector<5x128xf32>
    %cst_2 = arith.constant 0.000000e+00 : f32
    %3 = vector.broadcast %cst_2 : f32 to vector<6x128xf32>
    %4 = tpu.concatenate %2, %1, %3 in 0 : vector<5x128xf32>, vector<16x128xf32>, vector<6x128xf32> -> vector<27x128xf32>
    %5 = vector.extract_strided_slice %4 {offsets = [0, 0], sizes = [16, 128], strides = [1, 1]} : vector<27x128xf32> to vector<16x128xf32>
    %6 = vector.extract_strided_slice %4 {offsets = [1, 0], sizes = [16, 128], strides = [1, 1]} : vector<27x128xf32> to vector<16x128xf32>
    %7 = vector.extract_strided_slice %4 {offsets = [2, 0], sizes = [16, 128], strides = [1, 1]} : vector<27x128xf32> to vector<16x128xf32>
    %8 = vector.extract_strided_slice %4 {offsets = [3, 0], sizes = [16, 128], strides = [1, 1]} : vector<27x128xf32> to vector<16x128xf32>
    %9 = vector.extract_strided_slice %4 {offsets = [4, 0], sizes = [16, 128], strides = [1, 1]} : vector<27x128xf32> to vector<16x128xf32>
    %10 = vector.extract_strided_slice %4 {offsets = [5, 0], sizes = [16, 128], strides = [1, 1]} : vector<27x128xf32> to vector<16x128xf32>
    %11 = vector.extract_strided_slice %4 {offsets = [6, 0], sizes = [16, 128], strides = [1, 1]} : vector<27x128xf32> to vector<16x128xf32>
    %12 = vector.extract_strided_slice %4 {offsets = [7, 0], sizes = [16, 128], strides = [1, 1]} : vector<27x128xf32> to vector<16x128xf32>
    %13 = vector.extract_strided_slice %4 {offsets = [8, 0], sizes = [16, 128], strides = [1, 1]} : vector<27x128xf32> to vector<16x128xf32>
    %14 = vector.extract_strided_slice %4 {offsets = [9, 0], sizes = [16, 128], strides = [1, 1]} : vector<27x128xf32> to vector<16x128xf32>
    %15 = vector.extract_strided_slice %4 {offsets = [10, 0], sizes = [16, 128], strides = [1, 1]} : vector<27x128xf32> to vector<16x128xf32>
    %16 = vector.extract_strided_slice %4 {offsets = [11, 0], sizes = [16, 128], strides = [1, 1]} : vector<27x128xf32> to vector<16x128xf32>
    %17 = tpu.concatenate %5, %6, %7, %8, %9, %10, %11, %12, %13, %14, %15, %16 in 1 : vector<16x128xf32>, vector<16x128xf32>, vector<16x128xf32>, vector<16x128xf32>, vector<16x128xf32>, vector<16x128xf32>, vector<16x128xf32>, vector<16x128xf32>, vector<16x128xf32>, vector<16x128xf32>, vector<16x128xf32>, vector<16x128xf32> -> vector<16x1536xf32>
    %c0_3 = arith.constant 0 : index
    %c0_4 = arith.constant 0 : index
    %18 = vector.load %arg1[%c0_3, %c0_4] : memref<1536x128xf32, #tpu.memory_space<vmem>>, vector<1536x128xf32>
    %cst_5 = arith.constant dense<0.000000e+00> : vector<16x128xf32>
    %19 = tpu.matmul %17, %18, %cst_5 {dimension_numbers = #tpu.dot_dimension_numbers<[1], [0], [0], [1], [0, 0, 1, 1], [], []>} : vector<16x1536xf32>, vector<1536x128xf32>, vector<16x128xf32> -> vector<16x128xf32>
    %c0_6 = arith.constant 0 : index
    %c0_7 = arith.constant 0 : index
    %20 = vector.load %arg2[%c0_6, %c0_7] : memref<1x128xf32, #tpu.memory_space<vmem>>, vector<1x128xf32>
    %21 = vector.broadcast %20 : vector<1x128xf32> to vector<16x128xf32>
    %22 = arith.addf %19, %21 : vector<16x128xf32>
    %cst_8 = arith.constant 0.000000e+00 : f32
    %23 = vector.broadcast %cst_8 : f32 to vector<16x128xf32>
    %24 = arith.maximumf %22, %23 : vector<16x128xf32>
    %cst_9 = arith.constant dense<0.000000e+00> : vector<128xf32>
    %25 = vector.multi_reduction <add>, %24, %cst_9 [0] : vector<16x128xf32> to vector<128xf32>
    %26 = vector.shape_cast %25 : vector<128xf32> to vector<1x128xf32>
    %cst_10 = arith.constant 1.600000e+01 : f32
    %27 = vector.broadcast %cst_10 : f32 to vector<1x128xf32>
    %28 = arith.divf %26, %27 : vector<1x128xf32>
    %c0_11 = arith.constant 0 : index
    %c0_12 = arith.constant 0 : index
    %29 = vector.load %arg3[%c0_11, %c0_12] : memref<128x3xf32, #tpu.memory_space<vmem>>, vector<128x3xf32>
    %cst_13 = arith.constant dense<0.000000e+00> : vector<1x3xf32>
    %30 = tpu.matmul %28, %29, %cst_13 {dimension_numbers = #tpu.dot_dimension_numbers<[1], [0], [0], [1], [0, 0, 1, 1], [], []>} : vector<1x128xf32>, vector<128x3xf32>, vector<1x3xf32> -> vector<1x3xf32>
    %cst_14 = arith.constant 0.000000e+00 : f32
    %31 = vector.broadcast %cst_14 : f32 to vector<1x3xf32>
    %32 = arith.maximumf %30, %31 : vector<1x3xf32>
    %c0_15 = arith.constant 0 : index
    %c0_16 = arith.constant 0 : index
    %33 = vector.load %arg4[%c0_15, %c0_16] : memref<3x128xf32, #tpu.memory_space<vmem>>, vector<3x128xf32>
    %cst_17 = arith.constant dense<0.000000e+00> : vector<1x128xf32>
    %34 = tpu.matmul %32, %33, %cst_17 {dimension_numbers = #tpu.dot_dimension_numbers<[1], [0], [0], [1], [0, 0, 1, 1], [], []>} : vector<1x3xf32>, vector<3x128xf32>, vector<1x128xf32> -> vector<1x128xf32>
    %35 = arith.negf %34 : vector<1x128xf32>
    %36 = math.exp %35 : vector<1x128xf32>
    %cst_18 = arith.constant 1.000000e+00 : f32
    %37 = vector.broadcast %cst_18 : f32 to vector<1x128xf32>
    %38 = arith.addf %37, %36 : vector<1x128xf32>
    %39 = arith.divf %37, %38 : vector<1x128xf32>
    %40 = vector.broadcast %39 : vector<1x128xf32> to vector<16x128xf32>
    %41 = arith.mulf %24, %40 : vector<16x128xf32>
    %cst_19 = arith.constant 0.000000e+00 : f32
    %42 = vector.broadcast %cst_19 : f32 to vector<5x128xf32>
    %cst_20 = arith.constant 0.000000e+00 : f32
    %43 = vector.broadcast %cst_20 : f32 to vector<6x128xf32>
    %44 = tpu.concatenate %42, %41, %43 in 0 : vector<5x128xf32>, vector<16x128xf32>, vector<6x128xf32> -> vector<27x128xf32>
    %45 = vector.extract_strided_slice %44 {offsets = [0, 0], sizes = [16, 128], strides = [1, 1]} : vector<27x128xf32> to vector<16x128xf32>
    %46 = vector.extract_strided_slice %44 {offsets = [1, 0], sizes = [16, 128], strides = [1, 1]} : vector<27x128xf32> to vector<16x128xf32>
    %47 = vector.extract_strided_slice %44 {offsets = [2, 0], sizes = [16, 128], strides = [1, 1]} : vector<27x128xf32> to vector<16x128xf32>
    %48 = vector.extract_strided_slice %44 {offsets = [3, 0], sizes = [16, 128], strides = [1, 1]} : vector<27x128xf32> to vector<16x128xf32>
    %49 = vector.extract_strided_slice %44 {offsets = [4, 0], sizes = [16, 128], strides = [1, 1]} : vector<27x128xf32> to vector<16x128xf32>
    %50 = vector.extract_strided_slice %44 {offsets = [5, 0], sizes = [16, 128], strides = [1, 1]} : vector<27x128xf32> to vector<16x128xf32>
    %51 = vector.extract_strided_slice %44 {offsets = [6, 0], sizes = [16, 128], strides = [1, 1]} : vector<27x128xf32> to vector<16x128xf32>
    %52 = vector.extract_strided_slice %44 {offsets = [7, 0], sizes = [16, 128], strides = [1, 1]} : vector<27x128xf32> to vector<16x128xf32>
    %53 = vector.extract_strided_slice %44 {offsets = [8, 0], sizes = [16, 128], strides = [1, 1]} : vector<27x128xf32> to vector<16x128xf32>
    %54 = vector.extract_strided_slice %44 {offsets = [9, 0], sizes = [16, 128], strides = [1, 1]} : vector<27x128xf32> to vector<16x128xf32>
    %55 = vector.extract_strided_slice %44 {offsets = [10, 0], sizes = [16, 128], strides = [1, 1]} : vector<27x128xf32> to vector<16x128xf32>
    %56 = vector.extract_strided_slice %44 {offsets = [11, 0], sizes = [16, 128], strides = [1, 1]} : vector<27x128xf32> to vector<16x128xf32>
    %57 = tpu.concatenate %45, %46, %47, %48, %49, %50, %51, %52, %53, %54, %55, %56 in 1 : vector<16x128xf32>, vector<16x128xf32>, vector<16x128xf32>, vector<16x128xf32>, vector<16x128xf32>, vector<16x128xf32>, vector<16x128xf32>, vector<16x128xf32>, vector<16x128xf32>, vector<16x128xf32>, vector<16x128xf32>, vector<16x128xf32> -> vector<16x1536xf32>
    %c0_21 = arith.constant 0 : index
    %c0_22 = arith.constant 0 : index
    %58 = vector.load %arg5[%c0_21, %c0_22] : memref<1536x128xf32, #tpu.memory_space<vmem>>, vector<1536x128xf32>
    %cst_23 = arith.constant dense<0.000000e+00> : vector<16x128xf32>
    %59 = tpu.matmul %57, %58, %cst_23 {dimension_numbers = #tpu.dot_dimension_numbers<[1], [0], [0], [1], [0, 0, 1, 1], [], []>} : vector<16x1536xf32>, vector<1536x128xf32>, vector<16x128xf32> -> vector<16x128xf32>
    %c0_24 = arith.constant 0 : index
    %c0_25 = arith.constant 0 : index
    %60 = vector.load %arg6[%c0_24, %c0_25] : memref<1x128xf32, #tpu.memory_space<vmem>>, vector<1x128xf32>
    %61 = vector.broadcast %60 : vector<1x128xf32> to vector<16x128xf32>
    %62 = arith.addf %59, %61 : vector<16x128xf32>
    %cst_26 = arith.constant 0.000000e+00 : f32
    %63 = vector.broadcast %cst_26 : f32 to vector<16x128xf32>
    %64 = arith.maximumf %62, %63 : vector<16x128xf32>
    %cst_27 = arith.constant dense<0.000000e+00> : vector<128xf32>
    %65 = vector.multi_reduction <add>, %64, %cst_27 [0] : vector<16x128xf32> to vector<128xf32>
    %66 = vector.shape_cast %65 : vector<128xf32> to vector<1x128xf32>
    %cst_28 = arith.constant 1.600000e+01 : f32
    %67 = vector.broadcast %cst_28 : f32 to vector<1x128xf32>
    %68 = arith.divf %66, %67 : vector<1x128xf32>
    %c0_29 = arith.constant 0 : index
    %c0_30 = arith.constant 0 : index
    %69 = vector.load %arg7[%c0_29, %c0_30] : memref<128x3xf32, #tpu.memory_space<vmem>>, vector<128x3xf32>
    %cst_31 = arith.constant dense<0.000000e+00> : vector<1x3xf32>
    %70 = tpu.matmul %68, %69, %cst_31 {dimension_numbers = #tpu.dot_dimension_numbers<[1], [0], [0], [1], [0, 0, 1, 1], [], []>} : vector<1x128xf32>, vector<128x3xf32>, vector<1x3xf32> -> vector<1x3xf32>
    %cst_32 = arith.constant 0.000000e+00 : f32
    %71 = vector.broadcast %cst_32 : f32 to vector<1x3xf32>
    %72 = arith.maximumf %70, %71 : vector<1x3xf32>
    %c0_33 = arith.constant 0 : index
    %c0_34 = arith.constant 0 : index
    %73 = vector.load %arg8[%c0_33, %c0_34] : memref<3x128xf32, #tpu.memory_space<vmem>>, vector<3x128xf32>
    %cst_35 = arith.constant dense<0.000000e+00> : vector<1x128xf32>
    %74 = tpu.matmul %72, %73, %cst_35 {dimension_numbers = #tpu.dot_dimension_numbers<[1], [0], [0], [1], [0, 0, 1, 1], [], []>} : vector<1x3xf32>, vector<3x128xf32>, vector<1x128xf32> -> vector<1x128xf32>
    %75 = arith.negf %74 : vector<1x128xf32>
    %76 = math.exp %75 : vector<1x128xf32>
    %cst_36 = arith.constant 1.000000e+00 : f32
    %77 = vector.broadcast %cst_36 : f32 to vector<1x128xf32>
    %78 = arith.addf %77, %76 : vector<1x128xf32>
    %79 = arith.divf %77, %78 : vector<1x128xf32>
    %80 = vector.broadcast %79 : vector<1x128xf32> to vector<16x128xf32>
    %81 = arith.mulf %64, %80 : vector<16x128xf32>
    %cst_37 = arith.constant 0.000000e+00 : f32
    %82 = vector.broadcast %cst_37 : f32 to vector<1x128xf32>
    %83 = tpu.concatenate %82, %81, %82 in 0 : vector<1x128xf32>, vector<16x128xf32>, vector<1x128xf32> -> vector<18x128xf32>
    %84 = vector.extract_strided_slice %83 {offsets = [0, 0], sizes = [16, 128], strides = [1, 1]} : vector<18x128xf32> to vector<16x128xf32>
    %85 = vector.extract_strided_slice %83 {offsets = [1, 0], sizes = [16, 128], strides = [1, 1]} : vector<18x128xf32> to vector<16x128xf32>
    %86 = arith.maximumf %84, %85 : vector<16x128xf32>
    %87 = vector.extract_strided_slice %83 {offsets = [2, 0], sizes = [16, 128], strides = [1, 1]} : vector<18x128xf32> to vector<16x128xf32>
    %88 = arith.maximumf %86, %87 : vector<16x128xf32>
    %89 = vector.shape_cast %88 : vector<16x128xf32> to vector<8x2x128xf32>
    %90 = vector.extract_strided_slice %89 {offsets = [0, 0, 0], sizes = [8, 1, 128], strides = [1, 1, 1]} : vector<8x2x128xf32> to vector<8x1x128xf32>
    %91 = vector.shape_cast %90 : vector<8x1x128xf32> to vector<8x128xf32>
    %cst_38 = arith.constant 0.000000e+00 : f32
    %92 = vector.broadcast %cst_38 : f32 to vector<5x128xf32>
    %cst_39 = arith.constant 0.000000e+00 : f32
    %93 = vector.broadcast %cst_39 : f32 to vector<6x128xf32>
    %94 = tpu.concatenate %92, %91, %93 in 0 : vector<5x128xf32>, vector<8x128xf32>, vector<6x128xf32> -> vector<19x128xf32>
    %95 = vector.extract_strided_slice %94 {offsets = [0, 0], sizes = [8, 128], strides = [1, 1]} : vector<19x128xf32> to vector<8x128xf32>
    %96 = vector.extract_strided_slice %94 {offsets = [1, 0], sizes = [8, 128], strides = [1, 1]} : vector<19x128xf32> to vector<8x128xf32>
    %97 = vector.extract_strided_slice %94 {offsets = [2, 0], sizes = [8, 128], strides = [1, 1]} : vector<19x128xf32> to vector<8x128xf32>
    %98 = vector.extract_strided_slice %94 {offsets = [3, 0], sizes = [8, 128], strides = [1, 1]} : vector<19x128xf32> to vector<8x128xf32>
    %99 = vector.extract_strided_slice %94 {offsets = [4, 0], sizes = [8, 128], strides = [1, 1]} : vector<19x128xf32> to vector<8x128xf32>
    %100 = vector.extract_strided_slice %94 {offsets = [5, 0], sizes = [8, 128], strides = [1, 1]} : vector<19x128xf32> to vector<8x128xf32>
    %101 = vector.extract_strided_slice %94 {offsets = [6, 0], sizes = [8, 128], strides = [1, 1]} : vector<19x128xf32> to vector<8x128xf32>
    %102 = vector.extract_strided_slice %94 {offsets = [7, 0], sizes = [8, 128], strides = [1, 1]} : vector<19x128xf32> to vector<8x128xf32>
    %103 = vector.extract_strided_slice %94 {offsets = [8, 0], sizes = [8, 128], strides = [1, 1]} : vector<19x128xf32> to vector<8x128xf32>
    %104 = vector.extract_strided_slice %94 {offsets = [9, 0], sizes = [8, 128], strides = [1, 1]} : vector<19x128xf32> to vector<8x128xf32>
    %105 = vector.extract_strided_slice %94 {offsets = [10, 0], sizes = [8, 128], strides = [1, 1]} : vector<19x128xf32> to vector<8x128xf32>
    %106 = vector.extract_strided_slice %94 {offsets = [11, 0], sizes = [8, 128], strides = [1, 1]} : vector<19x128xf32> to vector<8x128xf32>
    %107 = tpu.concatenate %95, %96, %97, %98, %99, %100, %101, %102, %103, %104, %105, %106 in 1 : vector<8x128xf32>, vector<8x128xf32>, vector<8x128xf32>, vector<8x128xf32>, vector<8x128xf32>, vector<8x128xf32>, vector<8x128xf32>, vector<8x128xf32>, vector<8x128xf32>, vector<8x128xf32>, vector<8x128xf32>, vector<8x128xf32> -> vector<8x1536xf32>
    %c0_40 = arith.constant 0 : index
    %c0_41 = arith.constant 0 : index
    %108 = vector.load %arg9[%c0_40, %c0_41] : memref<1536x128xf32, #tpu.memory_space<vmem>>, vector<1536x128xf32>
    %cst_42 = arith.constant dense<0.000000e+00> : vector<8x128xf32>
    %109 = tpu.matmul %107, %108, %cst_42 {dimension_numbers = #tpu.dot_dimension_numbers<[1], [0], [0], [1], [0, 0, 1, 1], [], []>} : vector<8x1536xf32>, vector<1536x128xf32>, vector<8x128xf32> -> vector<8x128xf32>
    %c0_43 = arith.constant 0 : index
    %c0_44 = arith.constant 0 : index
    %110 = vector.load %arg10[%c0_43, %c0_44] : memref<1x128xf32, #tpu.memory_space<vmem>>, vector<1x128xf32>
    %111 = vector.broadcast %110 : vector<1x128xf32> to vector<8x128xf32>
    %112 = arith.addf %109, %111 : vector<8x128xf32>
    %cst_45 = arith.constant 0.000000e+00 : f32
    %113 = vector.broadcast %cst_45 : f32 to vector<8x128xf32>
    %114 = arith.maximumf %112, %113 : vector<8x128xf32>
    %cst_46 = arith.constant dense<0.000000e+00> : vector<128xf32>
    %115 = vector.multi_reduction <add>, %114, %cst_46 [0] : vector<8x128xf32> to vector<128xf32>
    %116 = vector.shape_cast %115 : vector<128xf32> to vector<1x128xf32>
    %cst_47 = arith.constant 8.000000e+00 : f32
    %117 = vector.broadcast %cst_47 : f32 to vector<1x128xf32>
    %118 = arith.divf %116, %117 : vector<1x128xf32>
    %c0_48 = arith.constant 0 : index
    %c0_49 = arith.constant 0 : index
    %119 = vector.load %arg11[%c0_48, %c0_49] : memref<128x6xf32, #tpu.memory_space<vmem>>, vector<128x6xf32>
    %cst_50 = arith.constant dense<0.000000e+00> : vector<1x6xf32>
    %120 = tpu.matmul %118, %119, %cst_50 {dimension_numbers = #tpu.dot_dimension_numbers<[1], [0], [0], [1], [0, 0, 1, 1], [], []>} : vector<1x128xf32>, vector<128x6xf32>, vector<1x6xf32> -> vector<1x6xf32>
    %cst_51 = arith.constant 0.000000e+00 : f32
    %121 = vector.broadcast %cst_51 : f32 to vector<1x6xf32>
    %122 = arith.maximumf %120, %121 : vector<1x6xf32>
    %c0_52 = arith.constant 0 : index
    %c0_53 = arith.constant 0 : index
    %123 = vector.load %arg12[%c0_52, %c0_53] : memref<6x128xf32, #tpu.memory_space<vmem>>, vector<6x128xf32>
    %cst_54 = arith.constant dense<0.000000e+00> : vector<1x128xf32>
    %124 = tpu.matmul %122, %123, %cst_54 {dimension_numbers = #tpu.dot_dimension_numbers<[1], [0], [0], [1], [0, 0, 1, 1], [], []>} : vector<1x6xf32>, vector<6x128xf32>, vector<1x128xf32> -> vector<1x128xf32>
    %125 = arith.negf %124 : vector<1x128xf32>
    %126 = math.exp %125 : vector<1x128xf32>
    %cst_55 = arith.constant 1.000000e+00 : f32
    %127 = vector.broadcast %cst_55 : f32 to vector<1x128xf32>
    %128 = arith.addf %127, %126 : vector<1x128xf32>
    %129 = arith.divf %127, %128 : vector<1x128xf32>
    %130 = vector.broadcast %129 : vector<1x128xf32> to vector<8x128xf32>
    %131 = arith.mulf %114, %130 : vector<8x128xf32>
    %cst_56 = arith.constant 0.000000e+00 : f32
    %132 = vector.broadcast %cst_56 : f32 to vector<5x128xf32>
    %cst_57 = arith.constant 0.000000e+00 : f32
    %133 = vector.broadcast %cst_57 : f32 to vector<6x128xf32>
    %134 = tpu.concatenate %132, %131, %133 in 0 : vector<5x128xf32>, vector<8x128xf32>, vector<6x128xf32> -> vector<19x128xf32>
    %135 = vector.extract_strided_slice %134 {offsets = [0, 0], sizes = [8, 128], strides = [1, 1]} : vector<19x128xf32> to vector<8x128xf32>
    %136 = vector.extract_strided_slice %134 {offsets = [1, 0], sizes = [8, 128], strides = [1, 1]} : vector<19x128xf32> to vector<8x128xf32>
    %137 = vector.extract_strided_slice %134 {offsets = [2, 0], sizes = [8, 128], strides = [1, 1]} : vector<19x128xf32> to vector<8x128xf32>
    %138 = vector.extract_strided_slice %134 {offsets = [3, 0], sizes = [8, 128], strides = [1, 1]} : vector<19x128xf32> to vector<8x128xf32>
    %139 = vector.extract_strided_slice %134 {offsets = [4, 0], sizes = [8, 128], strides = [1, 1]} : vector<19x128xf32> to vector<8x128xf32>
    %140 = vector.extract_strided_slice %134 {offsets = [5, 0], sizes = [8, 128], strides = [1, 1]} : vector<19x128xf32> to vector<8x128xf32>
    %141 = vector.extract_strided_slice %134 {offsets = [6, 0], sizes = [8, 128], strides = [1, 1]} : vector<19x128xf32> to vector<8x128xf32>
    %142 = vector.extract_strided_slice %134 {offsets = [7, 0], sizes = [8, 128], strides = [1, 1]} : vector<19x128xf32> to vector<8x128xf32>
    %143 = vector.extract_strided_slice %134 {offsets = [8, 0], sizes = [8, 128], strides = [1, 1]} : vector<19x128xf32> to vector<8x128xf32>
    %144 = vector.extract_strided_slice %134 {offsets = [9, 0], sizes = [8, 128], strides = [1, 1]} : vector<19x128xf32> to vector<8x128xf32>
    %145 = vector.extract_strided_slice %134 {offsets = [10, 0], sizes = [8, 128], strides = [1, 1]} : vector<19x128xf32> to vector<8x128xf32>
    %146 = vector.extract_strided_slice %134 {offsets = [11, 0], sizes = [8, 128], strides = [1, 1]} : vector<19x128xf32> to vector<8x128xf32>
    %147 = tpu.concatenate %135, %136, %137, %138, %139, %140, %141, %142, %143, %144, %145, %146 in 1 : vector<8x128xf32>, vector<8x128xf32>, vector<8x128xf32>, vector<8x128xf32>, vector<8x128xf32>, vector<8x128xf32>, vector<8x128xf32>, vector<8x128xf32>, vector<8x128xf32>, vector<8x128xf32>, vector<8x128xf32>, vector<8x128xf32> -> vector<8x1536xf32>
    %c0_58 = arith.constant 0 : index
    %c0_59 = arith.constant 0 : index
    %148 = vector.load %arg13[%c0_58, %c0_59] : memref<1536x128xf32, #tpu.memory_space<vmem>>, vector<1536x128xf32>
    %cst_60 = arith.constant dense<0.000000e+00> : vector<8x128xf32>
    %149 = tpu.matmul %147, %148, %cst_60 {dimension_numbers = #tpu.dot_dimension_numbers<[1], [0], [0], [1], [0, 0, 1, 1], [], []>} : vector<8x1536xf32>, vector<1536x128xf32>, vector<8x128xf32> -> vector<8x128xf32>
    %c0_61 = arith.constant 0 : index
    %c0_62 = arith.constant 0 : index
    %150 = vector.load %arg14[%c0_61, %c0_62] : memref<1x128xf32, #tpu.memory_space<vmem>>, vector<1x128xf32>
    %151 = vector.broadcast %150 : vector<1x128xf32> to vector<8x128xf32>
    %152 = arith.addf %149, %151 : vector<8x128xf32>
    %cst_63 = arith.constant 0.000000e+00 : f32
    %153 = vector.broadcast %cst_63 : f32 to vector<8x128xf32>
    %154 = arith.maximumf %152, %153 : vector<8x128xf32>
    %cst_64 = arith.constant dense<0.000000e+00> : vector<128xf32>
    %155 = vector.multi_reduction <add>, %154, %cst_64 [0] : vector<8x128xf32> to vector<128xf32>
    %156 = vector.shape_cast %155 : vector<128xf32> to vector<1x128xf32>
    %cst_65 = arith.constant 8.000000e+00 : f32
    %157 = vector.broadcast %cst_65 : f32 to vector<1x128xf32>
    %158 = arith.divf %156, %157 : vector<1x128xf32>
    %c0_66 = arith.constant 0 : index
    %c0_67 = arith.constant 0 : index
    %159 = vector.load %arg15[%c0_66, %c0_67] : memref<128x6xf32, #tpu.memory_space<vmem>>, vector<128x6xf32>
    %cst_68 = arith.constant dense<0.000000e+00> : vector<1x6xf32>
    %160 = tpu.matmul %158, %159, %cst_68 {dimension_numbers = #tpu.dot_dimension_numbers<[1], [0], [0], [1], [0, 0, 1, 1], [], []>} : vector<1x128xf32>, vector<128x6xf32>, vector<1x6xf32> -> vector<1x6xf32>
    %cst_69 = arith.constant 0.000000e+00 : f32
    %161 = vector.broadcast %cst_69 : f32 to vector<1x6xf32>
    %162 = arith.maximumf %160, %161 : vector<1x6xf32>
    %c0_70 = arith.constant 0 : index
    %c0_71 = arith.constant 0 : index
    %163 = vector.load %arg16[%c0_70, %c0_71] : memref<6x128xf32, #tpu.memory_space<vmem>>, vector<6x128xf32>
    %cst_72 = arith.constant dense<0.000000e+00> : vector<1x128xf32>
    %164 = tpu.matmul %162, %163, %cst_72 {dimension_numbers = #tpu.dot_dimension_numbers<[1], [0], [0], [1], [0, 0, 1, 1], [], []>} : vector<1x6xf32>, vector<6x128xf32>, vector<1x128xf32> -> vector<1x128xf32>
    %165 = arith.negf %164 : vector<1x128xf32>
    %166 = math.exp %165 : vector<1x128xf32>
    %cst_73 = arith.constant 1.000000e+00 : f32
    %167 = vector.broadcast %cst_73 : f32 to vector<1x128xf32>
    %168 = arith.addf %167, %166 : vector<1x128xf32>
    %169 = arith.divf %167, %168 : vector<1x128xf32>
    %170 = vector.broadcast %169 : vector<1x128xf32> to vector<8x128xf32>
    %171 = arith.mulf %154, %170 : vector<8x128xf32>
    %cst_74 = arith.constant 0.000000e+00 : f32
    %172 = vector.broadcast %cst_74 : f32 to vector<1x128xf32>
    %173 = tpu.concatenate %172, %171, %172 in 0 : vector<1x128xf32>, vector<8x128xf32>, vector<1x128xf32> -> vector<10x128xf32>
    %174 = vector.extract_strided_slice %173 {offsets = [0, 0], sizes = [8, 128], strides = [1, 1]} : vector<10x128xf32> to vector<8x128xf32>
    %175 = vector.extract_strided_slice %173 {offsets = [1, 0], sizes = [8, 128], strides = [1, 1]} : vector<10x128xf32> to vector<8x128xf32>
    %176 = arith.maximumf %174, %175 : vector<8x128xf32>
    %177 = vector.extract_strided_slice %173 {offsets = [2, 0], sizes = [8, 128], strides = [1, 1]} : vector<10x128xf32> to vector<8x128xf32>
    %178 = arith.maximumf %176, %177 : vector<8x128xf32>
    %179 = vector.shape_cast %178 : vector<8x128xf32> to vector<4x2x128xf32>
    %180 = vector.extract_strided_slice %179 {offsets = [0, 0, 0], sizes = [4, 1, 128], strides = [1, 1, 1]} : vector<4x2x128xf32> to vector<4x1x128xf32>
    %181 = vector.shape_cast %180 : vector<4x1x128xf32> to vector<4x128xf32>
    %cst_75 = arith.constant 0.000000e+00 : f32
    %182 = vector.broadcast %cst_75 : f32 to vector<5x128xf32>
    %cst_76 = arith.constant 0.000000e+00 : f32
    %183 = vector.broadcast %cst_76 : f32 to vector<6x128xf32>
    %184 = tpu.concatenate %182, %181, %183 in 0 : vector<5x128xf32>, vector<4x128xf32>, vector<6x128xf32> -> vector<15x128xf32>
    %185 = vector.extract_strided_slice %184 {offsets = [0, 0], sizes = [4, 128], strides = [1, 1]} : vector<15x128xf32> to vector<4x128xf32>
    %186 = vector.extract_strided_slice %184 {offsets = [1, 0], sizes = [4, 128], strides = [1, 1]} : vector<15x128xf32> to vector<4x128xf32>
    %187 = vector.extract_strided_slice %184 {offsets = [2, 0], sizes = [4, 128], strides = [1, 1]} : vector<15x128xf32> to vector<4x128xf32>
    %188 = vector.extract_strided_slice %184 {offsets = [3, 0], sizes = [4, 128], strides = [1, 1]} : vector<15x128xf32> to vector<4x128xf32>
    %189 = vector.extract_strided_slice %184 {offsets = [4, 0], sizes = [4, 128], strides = [1, 1]} : vector<15x128xf32> to vector<4x128xf32>
    %190 = vector.extract_strided_slice %184 {offsets = [5, 0], sizes = [4, 128], strides = [1, 1]} : vector<15x128xf32> to vector<4x128xf32>
    %191 = vector.extract_strided_slice %184 {offsets = [6, 0], sizes = [4, 128], strides = [1, 1]} : vector<15x128xf32> to vector<4x128xf32>
    %192 = vector.extract_strided_slice %184 {offsets = [7, 0], sizes = [4, 128], strides = [1, 1]} : vector<15x128xf32> to vector<4x128xf32>
    %193 = vector.extract_strided_slice %184 {offsets = [8, 0], sizes = [4, 128], strides = [1, 1]} : vector<15x128xf32> to vector<4x128xf32>
    %194 = vector.extract_strided_slice %184 {offsets = [9, 0], sizes = [4, 128], strides = [1, 1]} : vector<15x128xf32> to vector<4x128xf32>
    %195 = vector.extract_strided_slice %184 {offsets = [10, 0], sizes = [4, 128], strides = [1, 1]} : vector<15x128xf32> to vector<4x128xf32>
    %196 = vector.extract_strided_slice %184 {offsets = [11, 0], sizes = [4, 128], strides = [1, 1]} : vector<15x128xf32> to vector<4x128xf32>
    %197 = tpu.concatenate %185, %186, %187, %188, %189, %190, %191, %192, %193, %194, %195, %196 in 1 : vector<4x128xf32>, vector<4x128xf32>, vector<4x128xf32>, vector<4x128xf32>, vector<4x128xf32>, vector<4x128xf32>, vector<4x128xf32>, vector<4x128xf32>, vector<4x128xf32>, vector<4x128xf32>, vector<4x128xf32>, vector<4x128xf32> -> vector<4x1536xf32>
    %c0_77 = arith.constant 0 : index
    %c0_78 = arith.constant 0 : index
    %198 = vector.load %arg17[%c0_77, %c0_78] : memref<1536x256xf32, #tpu.memory_space<vmem>>, vector<1536x256xf32>
    %cst_79 = arith.constant dense<0.000000e+00> : vector<4x256xf32>
    %199 = tpu.matmul %197, %198, %cst_79 {dimension_numbers = #tpu.dot_dimension_numbers<[1], [0], [0], [1], [0, 0, 1, 1], [], []>} : vector<4x1536xf32>, vector<1536x256xf32>, vector<4x256xf32> -> vector<4x256xf32>
    %c0_80 = arith.constant 0 : index
    %c0_81 = arith.constant 0 : index
    %200 = vector.load %arg18[%c0_80, %c0_81] : memref<1x256xf32, #tpu.memory_space<vmem>>, vector<1x256xf32>
    %201 = vector.broadcast %200 : vector<1x256xf32> to vector<4x256xf32>
    %202 = arith.addf %199, %201 : vector<4x256xf32>
    %cst_82 = arith.constant 0.000000e+00 : f32
    %203 = vector.broadcast %cst_82 : f32 to vector<4x256xf32>
    %204 = arith.maximumf %202, %203 : vector<4x256xf32>
    %cst_83 = arith.constant dense<0.000000e+00> : vector<256xf32>
    %205 = vector.multi_reduction <add>, %204, %cst_83 [0] : vector<4x256xf32> to vector<256xf32>
    %206 = vector.shape_cast %205 : vector<256xf32> to vector<1x256xf32>
    %cst_84 = arith.constant 4.000000e+00 : f32
    %207 = vector.broadcast %cst_84 : f32 to vector<1x256xf32>
    %208 = arith.divf %206, %207 : vector<1x256xf32>
    %c0_85 = arith.constant 0 : index
    %c0_86 = arith.constant 0 : index
    %209 = vector.load %arg19[%c0_85, %c0_86] : memref<256x12xf32, #tpu.memory_space<vmem>>, vector<256x12xf32>
    %cst_87 = arith.constant dense<0.000000e+00> : vector<1x12xf32>
    %210 = tpu.matmul %208, %209, %cst_87 {dimension_numbers = #tpu.dot_dimension_numbers<[1], [0], [0], [1], [0, 0, 1, 1], [], []>} : vector<1x256xf32>, vector<256x12xf32>, vector<1x12xf32> -> vector<1x12xf32>
    %cst_88 = arith.constant 0.000000e+00 : f32
    %211 = vector.broadcast %cst_88 : f32 to vector<1x12xf32>
    %212 = arith.maximumf %210, %211 : vector<1x12xf32>
    %c0_89 = arith.constant 0 : index
    %c0_90 = arith.constant 0 : index
    %213 = vector.load %arg20[%c0_89, %c0_90] : memref<12x256xf32, #tpu.memory_space<vmem>>, vector<12x256xf32>
    %cst_91 = arith.constant dense<0.000000e+00> : vector<1x256xf32>
    %214 = tpu.matmul %212, %213, %cst_91 {dimension_numbers = #tpu.dot_dimension_numbers<[1], [0], [0], [1], [0, 0, 1, 1], [], []>} : vector<1x12xf32>, vector<12x256xf32>, vector<1x256xf32> -> vector<1x256xf32>
    %215 = arith.negf %214 : vector<1x256xf32>
    %216 = math.exp %215 : vector<1x256xf32>
    %cst_92 = arith.constant 1.000000e+00 : f32
    %217 = vector.broadcast %cst_92 : f32 to vector<1x256xf32>
    %218 = arith.addf %217, %216 : vector<1x256xf32>
    %219 = arith.divf %217, %218 : vector<1x256xf32>
    %220 = vector.broadcast %219 : vector<1x256xf32> to vector<4x256xf32>
    %221 = arith.mulf %204, %220 : vector<4x256xf32>
    %cst_93 = arith.constant 0.000000e+00 : f32
    %222 = vector.broadcast %cst_93 : f32 to vector<5x256xf32>
    %cst_94 = arith.constant 0.000000e+00 : f32
    %223 = vector.broadcast %cst_94 : f32 to vector<6x256xf32>
    %224 = tpu.concatenate %222, %221, %223 in 0 : vector<5x256xf32>, vector<4x256xf32>, vector<6x256xf32> -> vector<15x256xf32>
    %225 = vector.extract_strided_slice %224 {offsets = [0, 0], sizes = [4, 256], strides = [1, 1]} : vector<15x256xf32> to vector<4x256xf32>
    %226 = vector.extract_strided_slice %224 {offsets = [1, 0], sizes = [4, 256], strides = [1, 1]} : vector<15x256xf32> to vector<4x256xf32>
    %227 = vector.extract_strided_slice %224 {offsets = [2, 0], sizes = [4, 256], strides = [1, 1]} : vector<15x256xf32> to vector<4x256xf32>
    %228 = vector.extract_strided_slice %224 {offsets = [3, 0], sizes = [4, 256], strides = [1, 1]} : vector<15x256xf32> to vector<4x256xf32>
    %229 = vector.extract_strided_slice %224 {offsets = [4, 0], sizes = [4, 256], strides = [1, 1]} : vector<15x256xf32> to vector<4x256xf32>
    %230 = vector.extract_strided_slice %224 {offsets = [5, 0], sizes = [4, 256], strides = [1, 1]} : vector<15x256xf32> to vector<4x256xf32>
    %231 = vector.extract_strided_slice %224 {offsets = [6, 0], sizes = [4, 256], strides = [1, 1]} : vector<15x256xf32> to vector<4x256xf32>
    %232 = vector.extract_strided_slice %224 {offsets = [7, 0], sizes = [4, 256], strides = [1, 1]} : vector<15x256xf32> to vector<4x256xf32>
    %233 = vector.extract_strided_slice %224 {offsets = [8, 0], sizes = [4, 256], strides = [1, 1]} : vector<15x256xf32> to vector<4x256xf32>
    %234 = vector.extract_strided_slice %224 {offsets = [9, 0], sizes = [4, 256], strides = [1, 1]} : vector<15x256xf32> to vector<4x256xf32>
    %235 = vector.extract_strided_slice %224 {offsets = [10, 0], sizes = [4, 256], strides = [1, 1]} : vector<15x256xf32> to vector<4x256xf32>
    %236 = vector.extract_strided_slice %224 {offsets = [11, 0], sizes = [4, 256], strides = [1, 1]} : vector<15x256xf32> to vector<4x256xf32>
    %237 = tpu.concatenate %225, %226, %227, %228, %229, %230, %231, %232, %233, %234, %235, %236 in 1 : vector<4x256xf32>, vector<4x256xf32>, vector<4x256xf32>, vector<4x256xf32>, vector<4x256xf32>, vector<4x256xf32>, vector<4x256xf32>, vector<4x256xf32>, vector<4x256xf32>, vector<4x256xf32>, vector<4x256xf32>, vector<4x256xf32> -> vector<4x3072xf32>
    %c0_95 = arith.constant 0 : index
    %c0_96 = arith.constant 0 : index
    %238 = vector.load %arg21[%c0_95, %c0_96] : memref<3072x256xf32, #tpu.memory_space<vmem>>, vector<3072x256xf32>
    %cst_97 = arith.constant dense<0.000000e+00> : vector<4x256xf32>
    %239 = tpu.matmul %237, %238, %cst_97 {dimension_numbers = #tpu.dot_dimension_numbers<[1], [0], [0], [1], [0, 0, 1, 1], [], []>} : vector<4x3072xf32>, vector<3072x256xf32>, vector<4x256xf32> -> vector<4x256xf32>
    %c0_98 = arith.constant 0 : index
    %c0_99 = arith.constant 0 : index
    %240 = vector.load %arg22[%c0_98, %c0_99] : memref<1x256xf32, #tpu.memory_space<vmem>>, vector<1x256xf32>
    %241 = vector.broadcast %240 : vector<1x256xf32> to vector<4x256xf32>
    %242 = arith.addf %239, %241 : vector<4x256xf32>
    %cst_100 = arith.constant 0.000000e+00 : f32
    %243 = vector.broadcast %cst_100 : f32 to vector<4x256xf32>
    %244 = arith.maximumf %242, %243 : vector<4x256xf32>
    %cst_101 = arith.constant dense<0.000000e+00> : vector<256xf32>
    %245 = vector.multi_reduction <add>, %244, %cst_101 [0] : vector<4x256xf32> to vector<256xf32>
    %246 = vector.shape_cast %245 : vector<256xf32> to vector<1x256xf32>
    %cst_102 = arith.constant 4.000000e+00 : f32
    %247 = vector.broadcast %cst_102 : f32 to vector<1x256xf32>
    %248 = arith.divf %246, %247 : vector<1x256xf32>
    %c0_103 = arith.constant 0 : index
    %c0_104 = arith.constant 0 : index
    %249 = vector.load %arg23[%c0_103, %c0_104] : memref<256x12xf32, #tpu.memory_space<vmem>>, vector<256x12xf32>
    %cst_105 = arith.constant dense<0.000000e+00> : vector<1x12xf32>
    %250 = tpu.matmul %248, %249, %cst_105 {dimension_numbers = #tpu.dot_dimension_numbers<[1], [0], [0], [1], [0, 0, 1, 1], [], []>} : vector<1x256xf32>, vector<256x12xf32>, vector<1x12xf32> -> vector<1x12xf32>
    %cst_106 = arith.constant 0.000000e+00 : f32
    %251 = vector.broadcast %cst_106 : f32 to vector<1x12xf32>
    %252 = arith.maximumf %250, %251 : vector<1x12xf32>
    %c0_107 = arith.constant 0 : index
    %c0_108 = arith.constant 0 : index
    %253 = vector.load %arg24[%c0_107, %c0_108] : memref<12x256xf32, #tpu.memory_space<vmem>>, vector<12x256xf32>
    %cst_109 = arith.constant dense<0.000000e+00> : vector<1x256xf32>
    %254 = tpu.matmul %252, %253, %cst_109 {dimension_numbers = #tpu.dot_dimension_numbers<[1], [0], [0], [1], [0, 0, 1, 1], [], []>} : vector<1x12xf32>, vector<12x256xf32>, vector<1x256xf32> -> vector<1x256xf32>
    %255 = arith.negf %254 : vector<1x256xf32>
    %256 = math.exp %255 : vector<1x256xf32>
    %cst_110 = arith.constant 1.000000e+00 : f32
    %257 = vector.broadcast %cst_110 : f32 to vector<1x256xf32>
    %258 = arith.addf %257, %256 : vector<1x256xf32>
    %259 = arith.divf %257, %258 : vector<1x256xf32>
    %260 = vector.broadcast %259 : vector<1x256xf32> to vector<4x256xf32>
    %261 = arith.mulf %244, %260 : vector<4x256xf32>
    %cst_111 = arith.constant dense<0.000000e+00> : vector<256xf32>
    %262 = vector.multi_reduction <add>, %261, %cst_111 [0] : vector<4x256xf32> to vector<256xf32>
    %263 = vector.shape_cast %262 : vector<256xf32> to vector<1x256xf32>
    %cst_112 = arith.constant 4.000000e+00 : f32
    %264 = vector.broadcast %cst_112 : f32 to vector<1x256xf32>
    %265 = arith.divf %263, %264 : vector<1x256xf32>
    %c0_113 = arith.constant 0 : index
    %c0_114 = arith.constant 0 : index
    %266 = vector.load %arg25[%c0_113, %c0_114] : memref<256x128xf32, #tpu.memory_space<vmem>>, vector<256x128xf32>
    %cst_115 = arith.constant dense<0.000000e+00> : vector<1x128xf32>
    %267 = tpu.matmul %265, %266, %cst_115 {dimension_numbers = #tpu.dot_dimension_numbers<[1], [0], [0], [1], [0, 0, 1, 1], [], []>} : vector<1x256xf32>, vector<256x128xf32>, vector<1x128xf32> -> vector<1x128xf32>
    %c0_116 = arith.constant 0 : index
    %c0_117 = arith.constant 0 : index
    %268 = vector.load %arg26[%c0_116, %c0_117] : memref<1x128xf32, #tpu.memory_space<vmem>>, vector<1x128xf32>
    %269 = arith.addf %267, %268 : vector<1x128xf32>
    %c1 = arith.constant 1 : index
    %c0_118 = arith.constant 0 : index
    %c0_119 = arith.constant 0 : index
    %270 = vector.load %arg0[%c1, %c0_118, %c0_119] : memref<2x16x128xf32, #tpu.memory_space<vmem>>, vector<1x16x128xf32>
    %271 = vector.shape_cast %270 : vector<1x16x128xf32> to vector<16x128xf32>
    %cst_120 = arith.constant 0.000000e+00 : f32
    %272 = vector.broadcast %cst_120 : f32 to vector<5x128xf32>
    %cst_121 = arith.constant 0.000000e+00 : f32
    %273 = vector.broadcast %cst_121 : f32 to vector<6x128xf32>
    %274 = tpu.concatenate %272, %271, %273 in 0 : vector<5x128xf32>, vector<16x128xf32>, vector<6x128xf32> -> vector<27x128xf32>
    %275 = vector.extract_strided_slice %274 {offsets = [0, 0], sizes = [16, 128], strides = [1, 1]} : vector<27x128xf32> to vector<16x128xf32>
    %276 = vector.extract_strided_slice %274 {offsets = [1, 0], sizes = [16, 128], strides = [1, 1]} : vector<27x128xf32> to vector<16x128xf32>
    %277 = vector.extract_strided_slice %274 {offsets = [2, 0], sizes = [16, 128], strides = [1, 1]} : vector<27x128xf32> to vector<16x128xf32>
    %278 = vector.extract_strided_slice %274 {offsets = [3, 0], sizes = [16, 128], strides = [1, 1]} : vector<27x128xf32> to vector<16x128xf32>
    %279 = vector.extract_strided_slice %274 {offsets = [4, 0], sizes = [16, 128], strides = [1, 1]} : vector<27x128xf32> to vector<16x128xf32>
    %280 = vector.extract_strided_slice %274 {offsets = [5, 0], sizes = [16, 128], strides = [1, 1]} : vector<27x128xf32> to vector<16x128xf32>
    %281 = vector.extract_strided_slice %274 {offsets = [6, 0], sizes = [16, 128], strides = [1, 1]} : vector<27x128xf32> to vector<16x128xf32>
    %282 = vector.extract_strided_slice %274 {offsets = [7, 0], sizes = [16, 128], strides = [1, 1]} : vector<27x128xf32> to vector<16x128xf32>
    %283 = vector.extract_strided_slice %274 {offsets = [8, 0], sizes = [16, 128], strides = [1, 1]} : vector<27x128xf32> to vector<16x128xf32>
    %284 = vector.extract_strided_slice %274 {offsets = [9, 0], sizes = [16, 128], strides = [1, 1]} : vector<27x128xf32> to vector<16x128xf32>
    %285 = vector.extract_strided_slice %274 {offsets = [10, 0], sizes = [16, 128], strides = [1, 1]} : vector<27x128xf32> to vector<16x128xf32>
    %286 = vector.extract_strided_slice %274 {offsets = [11, 0], sizes = [16, 128], strides = [1, 1]} : vector<27x128xf32> to vector<16x128xf32>
    %287 = tpu.concatenate %275, %276, %277, %278, %279, %280, %281, %282, %283, %284, %285, %286 in 1 : vector<16x128xf32>, vector<16x128xf32>, vector<16x128xf32>, vector<16x128xf32>, vector<16x128xf32>, vector<16x128xf32>, vector<16x128xf32>, vector<16x128xf32>, vector<16x128xf32>, vector<16x128xf32>, vector<16x128xf32>, vector<16x128xf32> -> vector<16x1536xf32>
    %c0_122 = arith.constant 0 : index
    %c0_123 = arith.constant 0 : index
    %288 = vector.load %arg1[%c0_122, %c0_123] : memref<1536x128xf32, #tpu.memory_space<vmem>>, vector<1536x128xf32>
    %cst_124 = arith.constant dense<0.000000e+00> : vector<16x128xf32>
    %289 = tpu.matmul %287, %288, %cst_124 {dimension_numbers = #tpu.dot_dimension_numbers<[1], [0], [0], [1], [0, 0, 1, 1], [], []>} : vector<16x1536xf32>, vector<1536x128xf32>, vector<16x128xf32> -> vector<16x128xf32>
    %c0_125 = arith.constant 0 : index
    %c0_126 = arith.constant 0 : index
    %290 = vector.load %arg2[%c0_125, %c0_126] : memref<1x128xf32, #tpu.memory_space<vmem>>, vector<1x128xf32>
    %291 = vector.broadcast %290 : vector<1x128xf32> to vector<16x128xf32>
    %292 = arith.addf %289, %291 : vector<16x128xf32>
    %cst_127 = arith.constant 0.000000e+00 : f32
    %293 = vector.broadcast %cst_127 : f32 to vector<16x128xf32>
    %294 = arith.maximumf %292, %293 : vector<16x128xf32>
    %cst_128 = arith.constant dense<0.000000e+00> : vector<128xf32>
    %295 = vector.multi_reduction <add>, %294, %cst_128 [0] : vector<16x128xf32> to vector<128xf32>
    %296 = vector.shape_cast %295 : vector<128xf32> to vector<1x128xf32>
    %cst_129 = arith.constant 1.600000e+01 : f32
    %297 = vector.broadcast %cst_129 : f32 to vector<1x128xf32>
    %298 = arith.divf %296, %297 : vector<1x128xf32>
    %c0_130 = arith.constant 0 : index
    %c0_131 = arith.constant 0 : index
    %299 = vector.load %arg3[%c0_130, %c0_131] : memref<128x3xf32, #tpu.memory_space<vmem>>, vector<128x3xf32>
    %cst_132 = arith.constant dense<0.000000e+00> : vector<1x3xf32>
    %300 = tpu.matmul %298, %299, %cst_132 {dimension_numbers = #tpu.dot_dimension_numbers<[1], [0], [0], [1], [0, 0, 1, 1], [], []>} : vector<1x128xf32>, vector<128x3xf32>, vector<1x3xf32> -> vector<1x3xf32>
    %cst_133 = arith.constant 0.000000e+00 : f32
    %301 = vector.broadcast %cst_133 : f32 to vector<1x3xf32>
    %302 = arith.maximumf %300, %301 : vector<1x3xf32>
    %c0_134 = arith.constant 0 : index
    %c0_135 = arith.constant 0 : index
    %303 = vector.load %arg4[%c0_134, %c0_135] : memref<3x128xf32, #tpu.memory_space<vmem>>, vector<3x128xf32>
    %cst_136 = arith.constant dense<0.000000e+00> : vector<1x128xf32>
    %304 = tpu.matmul %302, %303, %cst_136 {dimension_numbers = #tpu.dot_dimension_numbers<[1], [0], [0], [1], [0, 0, 1, 1], [], []>} : vector<1x3xf32>, vector<3x128xf32>, vector<1x128xf32> -> vector<1x128xf32>
    %305 = arith.negf %304 : vector<1x128xf32>
    %306 = math.exp %305 : vector<1x128xf32>
    %cst_137 = arith.constant 1.000000e+00 : f32
    %307 = vector.broadcast %cst_137 : f32 to vector<1x128xf32>
    %308 = arith.addf %307, %306 : vector<1x128xf32>
    %309 = arith.divf %307, %308 : vector<1x128xf32>
    %310 = vector.broadcast %309 : vector<1x128xf32> to vector<16x128xf32>
    %311 = arith.mulf %294, %310 : vector<16x128xf32>
    %cst_138 = arith.constant 0.000000e+00 : f32
    %312 = vector.broadcast %cst_138 : f32 to vector<5x128xf32>
    %cst_139 = arith.constant 0.000000e+00 : f32
    %313 = vector.broadcast %cst_139 : f32 to vector<6x128xf32>
    %314 = tpu.concatenate %312, %311, %313 in 0 : vector<5x128xf32>, vector<16x128xf32>, vector<6x128xf32> -> vector<27x128xf32>
    %315 = vector.extract_strided_slice %314 {offsets = [0, 0], sizes = [16, 128], strides = [1, 1]} : vector<27x128xf32> to vector<16x128xf32>
    %316 = vector.extract_strided_slice %314 {offsets = [1, 0], sizes = [16, 128], strides = [1, 1]} : vector<27x128xf32> to vector<16x128xf32>
    %317 = vector.extract_strided_slice %314 {offsets = [2, 0], sizes = [16, 128], strides = [1, 1]} : vector<27x128xf32> to vector<16x128xf32>
    %318 = vector.extract_strided_slice %314 {offsets = [3, 0], sizes = [16, 128], strides = [1, 1]} : vector<27x128xf32> to vector<16x128xf32>
    %319 = vector.extract_strided_slice %314 {offsets = [4, 0], sizes = [16, 128], strides = [1, 1]} : vector<27x128xf32> to vector<16x128xf32>
    %320 = vector.extract_strided_slice %314 {offsets = [5, 0], sizes = [16, 128], strides = [1, 1]} : vector<27x128xf32> to vector<16x128xf32>
    %321 = vector.extract_strided_slice %314 {offsets = [6, 0], sizes = [16, 128], strides = [1, 1]} : vector<27x128xf32> to vector<16x128xf32>
    %322 = vector.extract_strided_slice %314 {offsets = [7, 0], sizes = [16, 128], strides = [1, 1]} : vector<27x128xf32> to vector<16x128xf32>
    %323 = vector.extract_strided_slice %314 {offsets = [8, 0], sizes = [16, 128], strides = [1, 1]} : vector<27x128xf32> to vector<16x128xf32>
    %324 = vector.extract_strided_slice %314 {offsets = [9, 0], sizes = [16, 128], strides = [1, 1]} : vector<27x128xf32> to vector<16x128xf32>
    %325 = vector.extract_strided_slice %314 {offsets = [10, 0], sizes = [16, 128], strides = [1, 1]} : vector<27x128xf32> to vector<16x128xf32>
    %326 = vector.extract_strided_slice %314 {offsets = [11, 0], sizes = [16, 128], strides = [1, 1]} : vector<27x128xf32> to vector<16x128xf32>
    %327 = tpu.concatenate %315, %316, %317, %318, %319, %320, %321, %322, %323, %324, %325, %326 in 1 : vector<16x128xf32>, vector<16x128xf32>, vector<16x128xf32>, vector<16x128xf32>, vector<16x128xf32>, vector<16x128xf32>, vector<16x128xf32>, vector<16x128xf32>, vector<16x128xf32>, vector<16x128xf32>, vector<16x128xf32>, vector<16x128xf32> -> vector<16x1536xf32>
    %c0_140 = arith.constant 0 : index
    %c0_141 = arith.constant 0 : index
    %328 = vector.load %arg5[%c0_140, %c0_141] : memref<1536x128xf32, #tpu.memory_space<vmem>>, vector<1536x128xf32>
    %cst_142 = arith.constant dense<0.000000e+00> : vector<16x128xf32>
    %329 = tpu.matmul %327, %328, %cst_142 {dimension_numbers = #tpu.dot_dimension_numbers<[1], [0], [0], [1], [0, 0, 1, 1], [], []>} : vector<16x1536xf32>, vector<1536x128xf32>, vector<16x128xf32> -> vector<16x128xf32>
    %c0_143 = arith.constant 0 : index
    %c0_144 = arith.constant 0 : index
    %330 = vector.load %arg6[%c0_143, %c0_144] : memref<1x128xf32, #tpu.memory_space<vmem>>, vector<1x128xf32>
    %331 = vector.broadcast %330 : vector<1x128xf32> to vector<16x128xf32>
    %332 = arith.addf %329, %331 : vector<16x128xf32>
    %cst_145 = arith.constant 0.000000e+00 : f32
    %333 = vector.broadcast %cst_145 : f32 to vector<16x128xf32>
    %334 = arith.maximumf %332, %333 : vector<16x128xf32>
    %cst_146 = arith.constant dense<0.000000e+00> : vector<128xf32>
    %335 = vector.multi_reduction <add>, %334, %cst_146 [0] : vector<16x128xf32> to vector<128xf32>
    %336 = vector.shape_cast %335 : vector<128xf32> to vector<1x128xf32>
    %cst_147 = arith.constant 1.600000e+01 : f32
    %337 = vector.broadcast %cst_147 : f32 to vector<1x128xf32>
    %338 = arith.divf %336, %337 : vector<1x128xf32>
    %c0_148 = arith.constant 0 : index
    %c0_149 = arith.constant 0 : index
    %339 = vector.load %arg7[%c0_148, %c0_149] : memref<128x3xf32, #tpu.memory_space<vmem>>, vector<128x3xf32>
    %cst_150 = arith.constant dense<0.000000e+00> : vector<1x3xf32>
    %340 = tpu.matmul %338, %339, %cst_150 {dimension_numbers = #tpu.dot_dimension_numbers<[1], [0], [0], [1], [0, 0, 1, 1], [], []>} : vector<1x128xf32>, vector<128x3xf32>, vector<1x3xf32> -> vector<1x3xf32>
    %cst_151 = arith.constant 0.000000e+00 : f32
    %341 = vector.broadcast %cst_151 : f32 to vector<1x3xf32>
    %342 = arith.maximumf %340, %341 : vector<1x3xf32>
    %c0_152 = arith.constant 0 : index
    %c0_153 = arith.constant 0 : index
    %343 = vector.load %arg8[%c0_152, %c0_153] : memref<3x128xf32, #tpu.memory_space<vmem>>, vector<3x128xf32>
    %cst_154 = arith.constant dense<0.000000e+00> : vector<1x128xf32>
    %344 = tpu.matmul %342, %343, %cst_154 {dimension_numbers = #tpu.dot_dimension_numbers<[1], [0], [0], [1], [0, 0, 1, 1], [], []>} : vector<1x3xf32>, vector<3x128xf32>, vector<1x128xf32> -> vector<1x128xf32>
    %345 = arith.negf %344 : vector<1x128xf32>
    %346 = math.exp %345 : vector<1x128xf32>
    %cst_155 = arith.constant 1.000000e+00 : f32
    %347 = vector.broadcast %cst_155 : f32 to vector<1x128xf32>
    %348 = arith.addf %347, %346 : vector<1x128xf32>
    %349 = arith.divf %347, %348 : vector<1x128xf32>
    %350 = vector.broadcast %349 : vector<1x128xf32> to vector<16x128xf32>
    %351 = arith.mulf %334, %350 : vector<16x128xf32>
    %cst_156 = arith.constant 0.000000e+00 : f32
    %352 = vector.broadcast %cst_156 : f32 to vector<1x128xf32>
    %353 = tpu.concatenate %352, %351, %352 in 0 : vector<1x128xf32>, vector<16x128xf32>, vector<1x128xf32> -> vector<18x128xf32>
    %354 = vector.extract_strided_slice %353 {offsets = [0, 0], sizes = [16, 128], strides = [1, 1]} : vector<18x128xf32> to vector<16x128xf32>
    %355 = vector.extract_strided_slice %353 {offsets = [1, 0], sizes = [16, 128], strides = [1, 1]} : vector<18x128xf32> to vector<16x128xf32>
    %356 = arith.maximumf %354, %355 : vector<16x128xf32>
    %357 = vector.extract_strided_slice %353 {offsets = [2, 0], sizes = [16, 128], strides = [1, 1]} : vector<18x128xf32> to vector<16x128xf32>
    %358 = arith.maximumf %356, %357 : vector<16x128xf32>
    %359 = vector.shape_cast %358 : vector<16x128xf32> to vector<8x2x128xf32>
    %360 = vector.extract_strided_slice %359 {offsets = [0, 0, 0], sizes = [8, 1, 128], strides = [1, 1, 1]} : vector<8x2x128xf32> to vector<8x1x128xf32>
    %361 = vector.shape_cast %360 : vector<8x1x128xf32> to vector<8x128xf32>
    %cst_157 = arith.constant 0.000000e+00 : f32
    %362 = vector.broadcast %cst_157 : f32 to vector<5x128xf32>
    %cst_158 = arith.constant 0.000000e+00 : f32
    %363 = vector.broadcast %cst_158 : f32 to vector<6x128xf32>
    %364 = tpu.concatenate %362, %361, %363 in 0 : vector<5x128xf32>, vector<8x128xf32>, vector<6x128xf32> -> vector<19x128xf32>
    %365 = vector.extract_strided_slice %364 {offsets = [0, 0], sizes = [8, 128], strides = [1, 1]} : vector<19x128xf32> to vector<8x128xf32>
    %366 = vector.extract_strided_slice %364 {offsets = [1, 0], sizes = [8, 128], strides = [1, 1]} : vector<19x128xf32> to vector<8x128xf32>
    %367 = vector.extract_strided_slice %364 {offsets = [2, 0], sizes = [8, 128], strides = [1, 1]} : vector<19x128xf32> to vector<8x128xf32>
    %368 = vector.extract_strided_slice %364 {offsets = [3, 0], sizes = [8, 128], strides = [1, 1]} : vector<19x128xf32> to vector<8x128xf32>
    %369 = vector.extract_strided_slice %364 {offsets = [4, 0], sizes = [8, 128], strides = [1, 1]} : vector<19x128xf32> to vector<8x128xf32>
    %370 = vector.extract_strided_slice %364 {offsets = [5, 0], sizes = [8, 128], strides = [1, 1]} : vector<19x128xf32> to vector<8x128xf32>
    %371 = vector.extract_strided_slice %364 {offsets = [6, 0], sizes = [8, 128], strides = [1, 1]} : vector<19x128xf32> to vector<8x128xf32>
    %372 = vector.extract_strided_slice %364 {offsets = [7, 0], sizes = [8, 128], strides = [1, 1]} : vector<19x128xf32> to vector<8x128xf32>
    %373 = vector.extract_strided_slice %364 {offsets = [8, 0], sizes = [8, 128], strides = [1, 1]} : vector<19x128xf32> to vector<8x128xf32>
    %374 = vector.extract_strided_slice %364 {offsets = [9, 0], sizes = [8, 128], strides = [1, 1]} : vector<19x128xf32> to vector<8x128xf32>
    %375 = vector.extract_strided_slice %364 {offsets = [10, 0], sizes = [8, 128], strides = [1, 1]} : vector<19x128xf32> to vector<8x128xf32>
    %376 = vector.extract_strided_slice %364 {offsets = [11, 0], sizes = [8, 128], strides = [1, 1]} : vector<19x128xf32> to vector<8x128xf32>
    %377 = tpu.concatenate %365, %366, %367, %368, %369, %370, %371, %372, %373, %374, %375, %376 in 1 : vector<8x128xf32>, vector<8x128xf32>, vector<8x128xf32>, vector<8x128xf32>, vector<8x128xf32>, vector<8x128xf32>, vector<8x128xf32>, vector<8x128xf32>, vector<8x128xf32>, vector<8x128xf32>, vector<8x128xf32>, vector<8x128xf32> -> vector<8x1536xf32>
    %c0_159 = arith.constant 0 : index
    %c0_160 = arith.constant 0 : index
    %378 = vector.load %arg9[%c0_159, %c0_160] : memref<1536x128xf32, #tpu.memory_space<vmem>>, vector<1536x128xf32>
    %cst_161 = arith.constant dense<0.000000e+00> : vector<8x128xf32>
    %379 = tpu.matmul %377, %378, %cst_161 {dimension_numbers = #tpu.dot_dimension_numbers<[1], [0], [0], [1], [0, 0, 1, 1], [], []>} : vector<8x1536xf32>, vector<1536x128xf32>, vector<8x128xf32> -> vector<8x128xf32>
    %c0_162 = arith.constant 0 : index
    %c0_163 = arith.constant 0 : index
    %380 = vector.load %arg10[%c0_162, %c0_163] : memref<1x128xf32, #tpu.memory_space<vmem>>, vector<1x128xf32>
    %381 = vector.broadcast %380 : vector<1x128xf32> to vector<8x128xf32>
    %382 = arith.addf %379, %381 : vector<8x128xf32>
    %cst_164 = arith.constant 0.000000e+00 : f32
    %383 = vector.broadcast %cst_164 : f32 to vector<8x128xf32>
    %384 = arith.maximumf %382, %383 : vector<8x128xf32>
    %cst_165 = arith.constant dense<0.000000e+00> : vector<128xf32>
    %385 = vector.multi_reduction <add>, %384, %cst_165 [0] : vector<8x128xf32> to vector<128xf32>
    %386 = vector.shape_cast %385 : vector<128xf32> to vector<1x128xf32>
    %cst_166 = arith.constant 8.000000e+00 : f32
    %387 = vector.broadcast %cst_166 : f32 to vector<1x128xf32>
    %388 = arith.divf %386, %387 : vector<1x128xf32>
    %c0_167 = arith.constant 0 : index
    %c0_168 = arith.constant 0 : index
    %389 = vector.load %arg11[%c0_167, %c0_168] : memref<128x6xf32, #tpu.memory_space<vmem>>, vector<128x6xf32>
    %cst_169 = arith.constant dense<0.000000e+00> : vector<1x6xf32>
    %390 = tpu.matmul %388, %389, %cst_169 {dimension_numbers = #tpu.dot_dimension_numbers<[1], [0], [0], [1], [0, 0, 1, 1], [], []>} : vector<1x128xf32>, vector<128x6xf32>, vector<1x6xf32> -> vector<1x6xf32>
    %cst_170 = arith.constant 0.000000e+00 : f32
    %391 = vector.broadcast %cst_170 : f32 to vector<1x6xf32>
    %392 = arith.maximumf %390, %391 : vector<1x6xf32>
    %c0_171 = arith.constant 0 : index
    %c0_172 = arith.constant 0 : index
    %393 = vector.load %arg12[%c0_171, %c0_172] : memref<6x128xf32, #tpu.memory_space<vmem>>, vector<6x128xf32>
    %cst_173 = arith.constant dense<0.000000e+00> : vector<1x128xf32>
    %394 = tpu.matmul %392, %393, %cst_173 {dimension_numbers = #tpu.dot_dimension_numbers<[1], [0], [0], [1], [0, 0, 1, 1], [], []>} : vector<1x6xf32>, vector<6x128xf32>, vector<1x128xf32> -> vector<1x128xf32>
    %395 = arith.negf %394 : vector<1x128xf32>
    %396 = math.exp %395 : vector<1x128xf32>
    %cst_174 = arith.constant 1.000000e+00 : f32
    %397 = vector.broadcast %cst_174 : f32 to vector<1x128xf32>
    %398 = arith.addf %397, %396 : vector<1x128xf32>
    %399 = arith.divf %397, %398 : vector<1x128xf32>
    %400 = vector.broadcast %399 : vector<1x128xf32> to vector<8x128xf32>
    %401 = arith.mulf %384, %400 : vector<8x128xf32>
    %cst_175 = arith.constant 0.000000e+00 : f32
    %402 = vector.broadcast %cst_175 : f32 to vector<5x128xf32>
    %cst_176 = arith.constant 0.000000e+00 : f32
    %403 = vector.broadcast %cst_176 : f32 to vector<6x128xf32>
    %404 = tpu.concatenate %402, %401, %403 in 0 : vector<5x128xf32>, vector<8x128xf32>, vector<6x128xf32> -> vector<19x128xf32>
    %405 = vector.extract_strided_slice %404 {offsets = [0, 0], sizes = [8, 128], strides = [1, 1]} : vector<19x128xf32> to vector<8x128xf32>
    %406 = vector.extract_strided_slice %404 {offsets = [1, 0], sizes = [8, 128], strides = [1, 1]} : vector<19x128xf32> to vector<8x128xf32>
    %407 = vector.extract_strided_slice %404 {offsets = [2, 0], sizes = [8, 128], strides = [1, 1]} : vector<19x128xf32> to vector<8x128xf32>
    %408 = vector.extract_strided_slice %404 {offsets = [3, 0], sizes = [8, 128], strides = [1, 1]} : vector<19x128xf32> to vector<8x128xf32>
    %409 = vector.extract_strided_slice %404 {offsets = [4, 0], sizes = [8, 128], strides = [1, 1]} : vector<19x128xf32> to vector<8x128xf32>
    %410 = vector.extract_strided_slice %404 {offsets = [5, 0], sizes = [8, 128], strides = [1, 1]} : vector<19x128xf32> to vector<8x128xf32>
    %411 = vector.extract_strided_slice %404 {offsets = [6, 0], sizes = [8, 128], strides = [1, 1]} : vector<19x128xf32> to vector<8x128xf32>
    %412 = vector.extract_strided_slice %404 {offsets = [7, 0], sizes = [8, 128], strides = [1, 1]} : vector<19x128xf32> to vector<8x128xf32>
    %413 = vector.extract_strided_slice %404 {offsets = [8, 0], sizes = [8, 128], strides = [1, 1]} : vector<19x128xf32> to vector<8x128xf32>
    %414 = vector.extract_strided_slice %404 {offsets = [9, 0], sizes = [8, 128], strides = [1, 1]} : vector<19x128xf32> to vector<8x128xf32>
    %415 = vector.extract_strided_slice %404 {offsets = [10, 0], sizes = [8, 128], strides = [1, 1]} : vector<19x128xf32> to vector<8x128xf32>
    %416 = vector.extract_strided_slice %404 {offsets = [11, 0], sizes = [8, 128], strides = [1, 1]} : vector<19x128xf32> to vector<8x128xf32>
    %417 = tpu.concatenate %405, %406, %407, %408, %409, %410, %411, %412, %413, %414, %415, %416 in 1 : vector<8x128xf32>, vector<8x128xf32>, vector<8x128xf32>, vector<8x128xf32>, vector<8x128xf32>, vector<8x128xf32>, vector<8x128xf32>, vector<8x128xf32>, vector<8x128xf32>, vector<8x128xf32>, vector<8x128xf32>, vector<8x128xf32> -> vector<8x1536xf32>
    %c0_177 = arith.constant 0 : index
    %c0_178 = arith.constant 0 : index
    %418 = vector.load %arg13[%c0_177, %c0_178] : memref<1536x128xf32, #tpu.memory_space<vmem>>, vector<1536x128xf32>
    %cst_179 = arith.constant dense<0.000000e+00> : vector<8x128xf32>
    %419 = tpu.matmul %417, %418, %cst_179 {dimension_numbers = #tpu.dot_dimension_numbers<[1], [0], [0], [1], [0, 0, 1, 1], [], []>} : vector<8x1536xf32>, vector<1536x128xf32>, vector<8x128xf32> -> vector<8x128xf32>
    %c0_180 = arith.constant 0 : index
    %c0_181 = arith.constant 0 : index
    %420 = vector.load %arg14[%c0_180, %c0_181] : memref<1x128xf32, #tpu.memory_space<vmem>>, vector<1x128xf32>
    %421 = vector.broadcast %420 : vector<1x128xf32> to vector<8x128xf32>
    %422 = arith.addf %419, %421 : vector<8x128xf32>
    %cst_182 = arith.constant 0.000000e+00 : f32
    %423 = vector.broadcast %cst_182 : f32 to vector<8x128xf32>
    %424 = arith.maximumf %422, %423 : vector<8x128xf32>
    %cst_183 = arith.constant dense<0.000000e+00> : vector<128xf32>
    %425 = vector.multi_reduction <add>, %424, %cst_183 [0] : vector<8x128xf32> to vector<128xf32>
    %426 = vector.shape_cast %425 : vector<128xf32> to vector<1x128xf32>
    %cst_184 = arith.constant 8.000000e+00 : f32
    %427 = vector.broadcast %cst_184 : f32 to vector<1x128xf32>
    %428 = arith.divf %426, %427 : vector<1x128xf32>
    %c0_185 = arith.constant 0 : index
    %c0_186 = arith.constant 0 : index
    %429 = vector.load %arg15[%c0_185, %c0_186] : memref<128x6xf32, #tpu.memory_space<vmem>>, vector<128x6xf32>
    %cst_187 = arith.constant dense<0.000000e+00> : vector<1x6xf32>
    %430 = tpu.matmul %428, %429, %cst_187 {dimension_numbers = #tpu.dot_dimension_numbers<[1], [0], [0], [1], [0, 0, 1, 1], [], []>} : vector<1x128xf32>, vector<128x6xf32>, vector<1x6xf32> -> vector<1x6xf32>
    %cst_188 = arith.constant 0.000000e+00 : f32
    %431 = vector.broadcast %cst_188 : f32 to vector<1x6xf32>
    %432 = arith.maximumf %430, %431 : vector<1x6xf32>
    %c0_189 = arith.constant 0 : index
    %c0_190 = arith.constant 0 : index
    %433 = vector.load %arg16[%c0_189, %c0_190] : memref<6x128xf32, #tpu.memory_space<vmem>>, vector<6x128xf32>
    %cst_191 = arith.constant dense<0.000000e+00> : vector<1x128xf32>
    %434 = tpu.matmul %432, %433, %cst_191 {dimension_numbers = #tpu.dot_dimension_numbers<[1], [0], [0], [1], [0, 0, 1, 1], [], []>} : vector<1x6xf32>, vector<6x128xf32>, vector<1x128xf32> -> vector<1x128xf32>
    %435 = arith.negf %434 : vector<1x128xf32>
    %436 = math.exp %435 : vector<1x128xf32>
    %cst_192 = arith.constant 1.000000e+00 : f32
    %437 = vector.broadcast %cst_192 : f32 to vector<1x128xf32>
    %438 = arith.addf %437, %436 : vector<1x128xf32>
    %439 = arith.divf %437, %438 : vector<1x128xf32>
    %440 = vector.broadcast %439 : vector<1x128xf32> to vector<8x128xf32>
    %441 = arith.mulf %424, %440 : vector<8x128xf32>
    %cst_193 = arith.constant 0.000000e+00 : f32
    %442 = vector.broadcast %cst_193 : f32 to vector<1x128xf32>
    %443 = tpu.concatenate %442, %441, %442 in 0 : vector<1x128xf32>, vector<8x128xf32>, vector<1x128xf32> -> vector<10x128xf32>
    %444 = vector.extract_strided_slice %443 {offsets = [0, 0], sizes = [8, 128], strides = [1, 1]} : vector<10x128xf32> to vector<8x128xf32>
    %445 = vector.extract_strided_slice %443 {offsets = [1, 0], sizes = [8, 128], strides = [1, 1]} : vector<10x128xf32> to vector<8x128xf32>
    %446 = arith.maximumf %444, %445 : vector<8x128xf32>
    %447 = vector.extract_strided_slice %443 {offsets = [2, 0], sizes = [8, 128], strides = [1, 1]} : vector<10x128xf32> to vector<8x128xf32>
    %448 = arith.maximumf %446, %447 : vector<8x128xf32>
    %449 = vector.shape_cast %448 : vector<8x128xf32> to vector<4x2x128xf32>
    %450 = vector.extract_strided_slice %449 {offsets = [0, 0, 0], sizes = [4, 1, 128], strides = [1, 1, 1]} : vector<4x2x128xf32> to vector<4x1x128xf32>
    %451 = vector.shape_cast %450 : vector<4x1x128xf32> to vector<4x128xf32>
    %cst_194 = arith.constant 0.000000e+00 : f32
    %452 = vector.broadcast %cst_194 : f32 to vector<5x128xf32>
    %cst_195 = arith.constant 0.000000e+00 : f32
    %453 = vector.broadcast %cst_195 : f32 to vector<6x128xf32>
    %454 = tpu.concatenate %452, %451, %453 in 0 : vector<5x128xf32>, vector<4x128xf32>, vector<6x128xf32> -> vector<15x128xf32>
    %455 = vector.extract_strided_slice %454 {offsets = [0, 0], sizes = [4, 128], strides = [1, 1]} : vector<15x128xf32> to vector<4x128xf32>
    %456 = vector.extract_strided_slice %454 {offsets = [1, 0], sizes = [4, 128], strides = [1, 1]} : vector<15x128xf32> to vector<4x128xf32>
    %457 = vector.extract_strided_slice %454 {offsets = [2, 0], sizes = [4, 128], strides = [1, 1]} : vector<15x128xf32> to vector<4x128xf32>
    %458 = vector.extract_strided_slice %454 {offsets = [3, 0], sizes = [4, 128], strides = [1, 1]} : vector<15x128xf32> to vector<4x128xf32>
    %459 = vector.extract_strided_slice %454 {offsets = [4, 0], sizes = [4, 128], strides = [1, 1]} : vector<15x128xf32> to vector<4x128xf32>
    %460 = vector.extract_strided_slice %454 {offsets = [5, 0], sizes = [4, 128], strides = [1, 1]} : vector<15x128xf32> to vector<4x128xf32>
    %461 = vector.extract_strided_slice %454 {offsets = [6, 0], sizes = [4, 128], strides = [1, 1]} : vector<15x128xf32> to vector<4x128xf32>
    %462 = vector.extract_strided_slice %454 {offsets = [7, 0], sizes = [4, 128], strides = [1, 1]} : vector<15x128xf32> to vector<4x128xf32>
    %463 = vector.extract_strided_slice %454 {offsets = [8, 0], sizes = [4, 128], strides = [1, 1]} : vector<15x128xf32> to vector<4x128xf32>
    %464 = vector.extract_strided_slice %454 {offsets = [9, 0], sizes = [4, 128], strides = [1, 1]} : vector<15x128xf32> to vector<4x128xf32>
    %465 = vector.extract_strided_slice %454 {offsets = [10, 0], sizes = [4, 128], strides = [1, 1]} : vector<15x128xf32> to vector<4x128xf32>
    %466 = vector.extract_strided_slice %454 {offsets = [11, 0], sizes = [4, 128], strides = [1, 1]} : vector<15x128xf32> to vector<4x128xf32>
    %467 = tpu.concatenate %455, %456, %457, %458, %459, %460, %461, %462, %463, %464, %465, %466 in 1 : vector<4x128xf32>, vector<4x128xf32>, vector<4x128xf32>, vector<4x128xf32>, vector<4x128xf32>, vector<4x128xf32>, vector<4x128xf32>, vector<4x128xf32>, vector<4x128xf32>, vector<4x128xf32>, vector<4x128xf32>, vector<4x128xf32> -> vector<4x1536xf32>
    %c0_196 = arith.constant 0 : index
    %c0_197 = arith.constant 0 : index
    %468 = vector.load %arg17[%c0_196, %c0_197] : memref<1536x256xf32, #tpu.memory_space<vmem>>, vector<1536x256xf32>
    %cst_198 = arith.constant dense<0.000000e+00> : vector<4x256xf32>
    %469 = tpu.matmul %467, %468, %cst_198 {dimension_numbers = #tpu.dot_dimension_numbers<[1], [0], [0], [1], [0, 0, 1, 1], [], []>} : vector<4x1536xf32>, vector<1536x256xf32>, vector<4x256xf32> -> vector<4x256xf32>
    %c0_199 = arith.constant 0 : index
    %c0_200 = arith.constant 0 : index
    %470 = vector.load %arg18[%c0_199, %c0_200] : memref<1x256xf32, #tpu.memory_space<vmem>>, vector<1x256xf32>
    %471 = vector.broadcast %470 : vector<1x256xf32> to vector<4x256xf32>
    %472 = arith.addf %469, %471 : vector<4x256xf32>
    %cst_201 = arith.constant 0.000000e+00 : f32
    %473 = vector.broadcast %cst_201 : f32 to vector<4x256xf32>
    %474 = arith.maximumf %472, %473 : vector<4x256xf32>
    %cst_202 = arith.constant dense<0.000000e+00> : vector<256xf32>
    %475 = vector.multi_reduction <add>, %474, %cst_202 [0] : vector<4x256xf32> to vector<256xf32>
    %476 = vector.shape_cast %475 : vector<256xf32> to vector<1x256xf32>
    %cst_203 = arith.constant 4.000000e+00 : f32
    %477 = vector.broadcast %cst_203 : f32 to vector<1x256xf32>
    %478 = arith.divf %476, %477 : vector<1x256xf32>
    %c0_204 = arith.constant 0 : index
    %c0_205 = arith.constant 0 : index
    %479 = vector.load %arg19[%c0_204, %c0_205] : memref<256x12xf32, #tpu.memory_space<vmem>>, vector<256x12xf32>
    %cst_206 = arith.constant dense<0.000000e+00> : vector<1x12xf32>
    %480 = tpu.matmul %478, %479, %cst_206 {dimension_numbers = #tpu.dot_dimension_numbers<[1], [0], [0], [1], [0, 0, 1, 1], [], []>} : vector<1x256xf32>, vector<256x12xf32>, vector<1x12xf32> -> vector<1x12xf32>
    %cst_207 = arith.constant 0.000000e+00 : f32
    %481 = vector.broadcast %cst_207 : f32 to vector<1x12xf32>
    %482 = arith.maximumf %480, %481 : vector<1x12xf32>
    %c0_208 = arith.constant 0 : index
    %c0_209 = arith.constant 0 : index
    %483 = vector.load %arg20[%c0_208, %c0_209] : memref<12x256xf32, #tpu.memory_space<vmem>>, vector<12x256xf32>
    %cst_210 = arith.constant dense<0.000000e+00> : vector<1x256xf32>
    %484 = tpu.matmul %482, %483, %cst_210 {dimension_numbers = #tpu.dot_dimension_numbers<[1], [0], [0], [1], [0, 0, 1, 1], [], []>} : vector<1x12xf32>, vector<12x256xf32>, vector<1x256xf32> -> vector<1x256xf32>
    %485 = arith.negf %484 : vector<1x256xf32>
    %486 = math.exp %485 : vector<1x256xf32>
    %cst_211 = arith.constant 1.000000e+00 : f32
    %487 = vector.broadcast %cst_211 : f32 to vector<1x256xf32>
    %488 = arith.addf %487, %486 : vector<1x256xf32>
    %489 = arith.divf %487, %488 : vector<1x256xf32>
    %490 = vector.broadcast %489 : vector<1x256xf32> to vector<4x256xf32>
    %491 = arith.mulf %474, %490 : vector<4x256xf32>
    %cst_212 = arith.constant 0.000000e+00 : f32
    %492 = vector.broadcast %cst_212 : f32 to vector<5x256xf32>
    %cst_213 = arith.constant 0.000000e+00 : f32
    %493 = vector.broadcast %cst_213 : f32 to vector<6x256xf32>
    %494 = tpu.concatenate %492, %491, %493 in 0 : vector<5x256xf32>, vector<4x256xf32>, vector<6x256xf32> -> vector<15x256xf32>
    %495 = vector.extract_strided_slice %494 {offsets = [0, 0], sizes = [4, 256], strides = [1, 1]} : vector<15x256xf32> to vector<4x256xf32>
    %496 = vector.extract_strided_slice %494 {offsets = [1, 0], sizes = [4, 256], strides = [1, 1]} : vector<15x256xf32> to vector<4x256xf32>
    %497 = vector.extract_strided_slice %494 {offsets = [2, 0], sizes = [4, 256], strides = [1, 1]} : vector<15x256xf32> to vector<4x256xf32>
    %498 = vector.extract_strided_slice %494 {offsets = [3, 0], sizes = [4, 256], strides = [1, 1]} : vector<15x256xf32> to vector<4x256xf32>
    %499 = vector.extract_strided_slice %494 {offsets = [4, 0], sizes = [4, 256], strides = [1, 1]} : vector<15x256xf32> to vector<4x256xf32>
    %500 = vector.extract_strided_slice %494 {offsets = [5, 0], sizes = [4, 256], strides = [1, 1]} : vector<15x256xf32> to vector<4x256xf32>
    %501 = vector.extract_strided_slice %494 {offsets = [6, 0], sizes = [4, 256], strides = [1, 1]} : vector<15x256xf32> to vector<4x256xf32>
    %502 = vector.extract_strided_slice %494 {offsets = [7, 0], sizes = [4, 256], strides = [1, 1]} : vector<15x256xf32> to vector<4x256xf32>
    %503 = vector.extract_strided_slice %494 {offsets = [8, 0], sizes = [4, 256], strides = [1, 1]} : vector<15x256xf32> to vector<4x256xf32>
    %504 = vector.extract_strided_slice %494 {offsets = [9, 0], sizes = [4, 256], strides = [1, 1]} : vector<15x256xf32> to vector<4x256xf32>
    %505 = vector.extract_strided_slice %494 {offsets = [10, 0], sizes = [4, 256], strides = [1, 1]} : vector<15x256xf32> to vector<4x256xf32>
    %506 = vector.extract_strided_slice %494 {offsets = [11, 0], sizes = [4, 256], strides = [1, 1]} : vector<15x256xf32> to vector<4x256xf32>
    %507 = tpu.concatenate %495, %496, %497, %498, %499, %500, %501, %502, %503, %504, %505, %506 in 1 : vector<4x256xf32>, vector<4x256xf32>, vector<4x256xf32>, vector<4x256xf32>, vector<4x256xf32>, vector<4x256xf32>, vector<4x256xf32>, vector<4x256xf32>, vector<4x256xf32>, vector<4x256xf32>, vector<4x256xf32>, vector<4x256xf32> -> vector<4x3072xf32>
    %c0_214 = arith.constant 0 : index
    %c0_215 = arith.constant 0 : index
    %508 = vector.load %arg21[%c0_214, %c0_215] : memref<3072x256xf32, #tpu.memory_space<vmem>>, vector<3072x256xf32>
    %cst_216 = arith.constant dense<0.000000e+00> : vector<4x256xf32>
    %509 = tpu.matmul %507, %508, %cst_216 {dimension_numbers = #tpu.dot_dimension_numbers<[1], [0], [0], [1], [0, 0, 1, 1], [], []>} : vector<4x3072xf32>, vector<3072x256xf32>, vector<4x256xf32> -> vector<4x256xf32>
    %c0_217 = arith.constant 0 : index
    %c0_218 = arith.constant 0 : index
    %510 = vector.load %arg22[%c0_217, %c0_218] : memref<1x256xf32, #tpu.memory_space<vmem>>, vector<1x256xf32>
    %511 = vector.broadcast %510 : vector<1x256xf32> to vector<4x256xf32>
    %512 = arith.addf %509, %511 : vector<4x256xf32>
    %cst_219 = arith.constant 0.000000e+00 : f32
    %513 = vector.broadcast %cst_219 : f32 to vector<4x256xf32>
    %514 = arith.maximumf %512, %513 : vector<4x256xf32>
    %cst_220 = arith.constant dense<0.000000e+00> : vector<256xf32>
    %515 = vector.multi_reduction <add>, %514, %cst_220 [0] : vector<4x256xf32> to vector<256xf32>
    %516 = vector.shape_cast %515 : vector<256xf32> to vector<1x256xf32>
    %cst_221 = arith.constant 4.000000e+00 : f32
    %517 = vector.broadcast %cst_221 : f32 to vector<1x256xf32>
    %518 = arith.divf %516, %517 : vector<1x256xf32>
    %c0_222 = arith.constant 0 : index
    %c0_223 = arith.constant 0 : index
    %519 = vector.load %arg23[%c0_222, %c0_223] : memref<256x12xf32, #tpu.memory_space<vmem>>, vector<256x12xf32>
    %cst_224 = arith.constant dense<0.000000e+00> : vector<1x12xf32>
    %520 = tpu.matmul %518, %519, %cst_224 {dimension_numbers = #tpu.dot_dimension_numbers<[1], [0], [0], [1], [0, 0, 1, 1], [], []>} : vector<1x256xf32>, vector<256x12xf32>, vector<1x12xf32> -> vector<1x12xf32>
    %cst_225 = arith.constant 0.000000e+00 : f32
    %521 = vector.broadcast %cst_225 : f32 to vector<1x12xf32>
    %522 = arith.maximumf %520, %521 : vector<1x12xf32>
    %c0_226 = arith.constant 0 : index
    %c0_227 = arith.constant 0 : index
    %523 = vector.load %arg24[%c0_226, %c0_227] : memref<12x256xf32, #tpu.memory_space<vmem>>, vector<12x256xf32>
    %cst_228 = arith.constant dense<0.000000e+00> : vector<1x256xf32>
    %524 = tpu.matmul %522, %523, %cst_228 {dimension_numbers = #tpu.dot_dimension_numbers<[1], [0], [0], [1], [0, 0, 1, 1], [], []>} : vector<1x12xf32>, vector<12x256xf32>, vector<1x256xf32> -> vector<1x256xf32>
    %525 = arith.negf %524 : vector<1x256xf32>
    %526 = math.exp %525 : vector<1x256xf32>
    %cst_229 = arith.constant 1.000000e+00 : f32
    %527 = vector.broadcast %cst_229 : f32 to vector<1x256xf32>
    %528 = arith.addf %527, %526 : vector<1x256xf32>
    %529 = arith.divf %527, %528 : vector<1x256xf32>
    %530 = vector.broadcast %529 : vector<1x256xf32> to vector<4x256xf32>
    %531 = arith.mulf %514, %530 : vector<4x256xf32>
    %cst_230 = arith.constant dense<0.000000e+00> : vector<256xf32>
    %532 = vector.multi_reduction <add>, %531, %cst_230 [0] : vector<4x256xf32> to vector<256xf32>
    %533 = vector.shape_cast %532 : vector<256xf32> to vector<1x256xf32>
    %cst_231 = arith.constant 4.000000e+00 : f32
    %534 = vector.broadcast %cst_231 : f32 to vector<1x256xf32>
    %535 = arith.divf %533, %534 : vector<1x256xf32>
    %c0_232 = arith.constant 0 : index
    %c0_233 = arith.constant 0 : index
    %536 = vector.load %arg25[%c0_232, %c0_233] : memref<256x128xf32, #tpu.memory_space<vmem>>, vector<256x128xf32>
    %cst_234 = arith.constant dense<0.000000e+00> : vector<1x128xf32>
    %537 = tpu.matmul %535, %536, %cst_234 {dimension_numbers = #tpu.dot_dimension_numbers<[1], [0], [0], [1], [0, 0, 1, 1], [], []>} : vector<1x256xf32>, vector<256x128xf32>, vector<1x128xf32> -> vector<1x128xf32>
    %c0_235 = arith.constant 0 : index
    %c0_236 = arith.constant 0 : index
    %538 = vector.load %arg26[%c0_235, %c0_236] : memref<1x128xf32, #tpu.memory_space<vmem>>, vector<1x128xf32>
    %539 = arith.addf %537, %538 : vector<1x128xf32>
    %540 = tpu.concatenate %269, %539 in 0 : vector<1x128xf32>, vector<1x128xf32> -> vector<2x128xf32>
    %c0_237 = arith.constant 0 : index
    %c0_238 = arith.constant 0 : index
    %541 = vector.load %arg27[%c0_237, %c0_238] : memref<2x128xf32, #tpu.memory_space<vmem>>, vector<2x128xf32>
    tpu.vector_store %arg27[%c0_237, %c0_238], %540 {strides = array<i32>} : memref<2x128xf32, #tpu.memory_space<vmem>>, vector<2x128xf32>,
    return
  }
}

</mosaic_0001>

<llo_original>
// kernel: tpu_custom_call.1
$region0: #{tpu_custom_call.1}
  #allocation0 [shape = 'u32[]', space=smem, size = 0x4, offset = 0x4, fixed_abs, tag = 'smem constant byte address 0x4 - core index']
  #allocation1 [shape = 'u32[72,128]{1,0:T(1,128)}', space=vmem, size = 0x9000, scoped, tag = 'internal scratch']
  %s0 = inlined_call_operand.hbm [shape: f32[2,16,128], index: 0, kind: input, shape index: {}]
  %s1 = inlined_call_operand.hbm [shape: f32[1536,128], index: 1, kind: input, shape index: {}]
  %s2 = inlined_call_operand.hbm [shape: f32[1,128], index: 2, kind: input, shape index: {}]
  %s3 = inlined_call_operand.vmem [shape: f32[128,3], index: 3, kind: input, shape index: {}]
  %s4 = inlined_call_operand.hbm [shape: f32[3,128], index: 4, kind: input, shape index: {}]
  %s5 = inlined_call_operand.hbm [shape: f32[1536,128], index: 5, kind: input, shape index: {}]
  %s6 = inlined_call_operand.hbm [shape: f32[1,128], index: 6, kind: input, shape index: {}]
  %s7 = inlined_call_operand.vmem [shape: f32[128,3], index: 7, kind: input, shape index: {}]
  %s8 = inlined_call_operand.hbm [shape: f32[3,128], index: 8, kind: input, shape index: {}]
  %s9 = inlined_call_operand.hbm [shape: f32[1536,128], index: 9, kind: input, shape index: {}]
  %s10 = inlined_call_operand.hbm [shape: f32[1,128], index: 10, kind: input, shape index: {}]
  %s11 = inlined_call_operand.vmem [shape: f32[128,6], index: 11, kind: input, shape index: {}]
  %s12 = inlined_call_operand.hbm [shape: f32[6,128], index: 12, kind: input, shape index: {}]
  %s13 = inlined_call_operand.hbm [shape: f32[1536,128], index: 13, kind: input, shape index: {}]
  %s14 = inlined_call_operand.hbm [shape: f32[1,128], index: 14, kind: input, shape index: {}]
  %s15 = inlined_call_operand.vmem [shape: f32[128,6], index: 15, kind: input, shape index: {}]
  %s16 = inlined_call_operand.hbm [shape: f32[6,128], index: 16, kind: input, shape index: {}]
  %s17 = inlined_call_operand.hbm [shape: f32[1536,256], index: 17, kind: input, shape index: {}]
  %s18 = inlined_call_operand.hbm [shape: f32[1,256], index: 18, kind: input, shape index: {}]
  %s19 = inlined_call_operand.vmem [shape: f32[256,12], index: 19, kind: input, shape index: {}]
  %s20 = inlined_call_operand.hbm [shape: f32[12,256], index: 20, kind: input, shape index: {}]
  %s21 = inlined_call_operand.hbm [shape: f32[3072,256], index: 21, kind: input, shape index: {}]
  %s22 = inlined_call_operand.hbm [shape: f32[1,256], index: 22, kind: input, shape index: {}]
  %s23 = inlined_call_operand.vmem [shape: f32[256,12], index: 23, kind: input, shape index: {}]
  %s24 = inlined_call_operand.hbm [shape: f32[12,256], index: 24, kind: input, shape index: {}]
  %s25 = inlined_call_operand.hbm [shape: f32[256,128], index: 25, kind: input, shape index: {}]
  %s26 = inlined_call_operand.hbm [shape: f32[1,128], index: 26, kind: input, shape index: {}]
  %s27 = inlined_call_operand.hbm [shape: f32[2,128], index: 27, kind: output, shape index: {}]
  %s28 = sld [smem:[#allocation0]]
  $region202: #{tpu_custom_call.1} parent=0
    _
  %s30 = ssub.s32 1, %s28
  %s31 = scalar_select 0, %s30, %s28
  $region1: #{tpu_custom_call.1} parent=0
    #allocation2 [shape = 'u8[16384]{0}', space=vmem, size = 0x4000, scoped, tag = 'input window, operand 0, single buffered']
    #allocation3 [shape = 's32[1]{0}', space=sflag, size = 0x4, scoped, tag = 'scoped memory for tpu_custom_call.1']
    #allocation4 [shape = 's32[1]{0}', space=sflag, size = 0x4, scoped, tag = 'scoped memory for tpu_custom_call.1']
    #allocation5 [shape = 'u8[786432]{0}', space=vmem, size = 0xc0000, scoped, tag = 'input window, operand 1, single buffered']
    #allocation6 [shape = 's32[1]{0}', space=sflag, size = 0x4, scoped, tag = 'scoped memory for tpu_custom_call.1']
    #allocation7 [shape = 'u8[512]{0}', space=vmem, size = 0x400, scoped, tag = 'input window, operand 2, single buffered']
    #allocation8 [shape = 'u8[2048]{0}', space=vmem, size = 0x800, scoped, tag = 'input window, operand 4, single buffered']
    #allocation9 [shape = 's32[1]{0}', space=sflag, size = 0x4, scoped, tag = 'scoped memory for tpu_custom_call.1']
    #allocation10 [shape = 'u8[786432]{0}', space=vmem, size = 0xc0000, scoped, tag = 'input window, operand 5, single buffered']
    #allocation11 [shape = 'u8[512]{0}', space=vmem, size = 0x400, scoped, tag = 'input window, operand 6, single buffered']
    #allocation12 [shape = 's32[1]{0}', space=sflag, size = 0x4, scoped, tag = 'scoped memory for tpu_custom_call.1']
    #allocation13 [shape = 'u8[2048]{0}', space=vmem, size = 0x800, scoped, tag = 'input window, operand 8, single buffered']
    #allocation14 [shape = 'u8[786432]{0}', space=vmem, size = 0xc0000, scoped, tag = 'input window, operand 9, single buffered']
    #allocation15 [shape = 's32[1]{0}', space=sflag, size = 0x4, scoped, tag = 'scoped memory for tpu_custom_call.1']
    #allocation16 [shape = 'u8[512]{0}', space=vmem, size = 0x400, scoped, tag = 'input window, operand 10, single buffered']
    #allocation17 [shape = 'u8[4096]{0}', space=vmem, size = 0x1000, scoped, tag = 'input window, operand 12, single buffered']
    #allocation18 [shape = 's32[1]{0}', space=sflag, size = 0x4, scoped, tag = 'scoped memory for tpu_custom_call.1']
    #allocation19 [shape = 'u8[786432]{0}', space=vmem, size = 0xc0000, scoped, tag = 'input window, operand 13, single buffered']
    #allocation20 [shape = 'u8[512]{0}', space=vmem, size = 0x400, scoped, tag = 'input window, operand 14, single buffered']
    #allocation21 [shape = 's32[1]{0}', space=sflag, size = 0x4, scoped, tag = 'scoped memory for tpu_custom_call.1']
    #allocation22 [shape = 'u8[4096]{0}', space=vmem, size = 0x1000, scoped, tag = 'input window, operand 16, single buffered']
    #allocation23 [shape = 'u8[1572864]{0}', space=vmem, size = 0x180000, scoped, tag = 'input window, operand 17, single buffered']
    #allocation24 [shape = 's32[1]{0}', space=sflag, size = 0x4, scoped, tag = 'scoped memory for tpu_custom_call.1']
    #allocation25 [shape = 'u8[1024]{0}', space=vmem, size = 0x400, scoped, tag = 'input window, operand 18, single buffered']
    #allocation26 [shape = 'u8[16384]{0}', space=vmem, size = 0x4000, scoped, tag = 'input window, operand 20, single buffered']
    #allocation27 [shape = 's32[1]{0}', space=sflag, size = 0x4, scoped, tag = 'scoped memory for tpu_custom_call.1']
    #allocation28 [shape = 'u8[3145728]{0}', space=vmem, size = 0x300000, scoped, tag = 'input window, operand 21, single buffered']
    #allocation29 [shape = 'u8[1024]{0}', space=vmem, size = 0x400, scoped, tag = 'input window, operand 22, single buffered']
    #allocation30 [shape = 's32[1]{0}', space=sflag, size = 0x4, scoped, tag = 'scoped memory for tpu_custom_call.1']
    #allocation31 [shape = 'u8[16384]{0}', space=vmem, size = 0x4000, scoped, tag = 'input window, operand 24, single buffered']
    #allocation32 [shape = 'u8[131072]{0}', space=vmem, size = 0x20000, scoped, tag = 'input window, operand 25, single buffered']
    #allocation33 [shape = 's32[1]{0}', space=sflag, size = 0x4, scoped, tag = 'scoped memory for tpu_custom_call.1']
    #allocation34 [shape = 'u8[512]{0}', space=vmem, size = 0x400, scoped, tag = 'input window, operand 26, single buffered']
    #allocation35 [shape = 'u8[1024]{0}', space=vmem, size = 0x400, scoped, tag = 'output window, operand 0, single buffered']
    %32 = vsyncpa [#allocation3], 0
    %33 = vsyncpa [#allocation6], 0
    %34 = vsyncpa [#allocation9], 0
    %35 = vsyncpa [#allocation12], 0
    %36 = vsyncpa [#allocation15], 0
    %37 = vsyncpa [#allocation18], 0
    %38 = vsyncpa [#allocation21], 0
    %39 = vsyncpa [#allocation24], 0
    %40 = vsyncpa [#allocation27], 0
    %41 = vsyncpa [#allocation30], 0
    %42 = vsyncpa [#allocation33], 0
    %43 = vsyncpa [#allocation4], 0
    // Predicated region
    $region2: #{tpu_custom_call.1} parent=1 // pred_check
      _
    $region3: #{tpu_custom_call.1} parent=1 // pred_check_branch
      %45 = sbr.rel (0) target = $region5
    $region4: #{tpu_custom_call.1} parent=1 // pred_region
      %47 = vsyncadd [#allocation3], 0
      %s48 = sshll.u32 %s0, 4
      %s49 = int_to_ptr.hbm [resolvable:$true] %s48
      %s50 = sshll.u32 [#allocation2], 4
      %s51 = int_to_ptr.vmem [resolvable:$true] %s50
      %56 = dma.hbm_to_vmem [thread:$0]  %s49, 512, %s51, [#allocation3], 128, 128, 8
    $region5: #{tpu_custom_call.1} parent=1 // pred_fallthru
      _
    // Predicated region
    $region6: #{tpu_custom_call.1} parent=1 // pred_check
      _
    $region7: #{tpu_custom_call.1} parent=1 // pred_check_branch
      %58 = sbr.rel (0) target = $region9
    $region8: #{tpu_custom_call.1} parent=1 // pred_region
      %60 = vsyncadd [#allocation6], 0
      %s61 = sshll.u32 %s1, 4
      %s62 = int_to_ptr.hbm [resolvable:$true] %s61
      %s63 = sshll.u32 [#allocation5], 4
      %s64 = int_to_ptr.vmem [resolvable:$true] %s63
      %69 = dma.hbm_to_vmem [thread:$0]  %s62, 24576, %s64, [#allocation6], 128, 128, 8
    $region9: #{tpu_custom_call.1} parent=1 // pred_fallthru
      _
    // Predicated region
    $region10: #{tpu_custom_call.1} parent=1 // pred_check
      _
    $region11: #{tpu_custom_call.1} parent=1 // pred_check_branch
      %71 = sbr.rel (0) target = $region13
    $region12: #{tpu_custom_call.1} parent=1 // pred_region
      %73 = vsyncadd [#allocation6], 0
      %s75 = sshll.u32 %s2, 4
      %s76 = int_to_ptr.hbm [resolvable:$true] %s75
      %s77 = sshll.u32 [#allocation7], 4
      %s78 = int_to_ptr.vmem [resolvable:$true] %s77
      %80 = dma.hbm_to_vmem [thread:$0]  %s76, 16, %s78, [#allocation6]
    $region13: #{tpu_custom_call.1} parent=1 // pred_fallthru
      _
    // Predicated region
    $region14: #{tpu_custom_call.1} parent=1 // pred_check
      _
    $region15: #{tpu_custom_call.1} parent=1 // pred_check_branch
      %82 = sbr.rel (0) target = $region17
    $region16: #{tpu_custom_call.1} parent=1 // pred_region
      _
    $region17: #{tpu_custom_call.1} parent=1 // pred_fallthru
      _
    // Predicated region
    $region18: #{tpu_custom_call.1} parent=1 // pred_check
      _
    $region19: #{tpu_custom_call.1} parent=1 // pred_check_branch
      %84 = sbr.rel (0) target = $region21
    $region20: #{tpu_custom_call.1} parent=1 // pred_region
      %86 = vsyncadd [#allocation9], 0
      %s88 = sshll.u32 %s4, 4
      %s89 = int_to_ptr.hbm [resolvable:$true] %s88
      %s90 = sshll.u32 [#allocation8], 4
      %s91 = int_to_ptr.vmem [resolvable:$true] %s90
      %93 = dma.hbm_to_vmem [thread:$0]  %s89, 64, %s91, [#allocation9]
    $region21: #{tpu_custom_call.1} parent=1 // pred_fallthru
      _
    // Predicated region
    $region22: #{tpu_custom_call.1} parent=1 // pred_check
      _
    $region23: #{tpu_custom_call.1} parent=1 // pred_check_branch
      %95 = sbr.rel (0) target = $region25
    $region24: #{tpu_custom_call.1} parent=1 // pred_region
      %97 = vsyncadd [#allocation9], 0
      %s98 = sshll.u32 %s5, 4
      %s99 = int_to_ptr.hbm [resolvable:$true] %s98
      %s100 = sshll.u32 [#allocation10], 4
      %s101 = int_to_ptr.vmem [resolvable:$true] %s100
      %106 = dma.hbm_to_vmem [thread:$0]  %s99, 24576, %s101, [#allocation9], 128, 128, 8
    $region25: #{tpu_custom_call.1} parent=1 // pred_fallthru
      _
    // Predicated region
    $region26: #{tpu_custom_call.1} parent=1 // pred_check
      _
    $region27: #{tpu_custom_call.1} parent=1 // pred_check_branch
      %108 = sbr.rel (0) target = $region29
    $region28: #{tpu_custom_call.1} parent=1 // pred_region
      %110 = vsyncadd [#allocation12], 0
      %s112 = sshll.u32 %s6, 4
      %s113 = int_to_ptr.hbm [resolvable:$true] %s112
      %s114 = sshll.u32 [#allocation11], 4
      %s115 = int_to_ptr.vmem [resolvable:$true] %s114
      %117 = dma.hbm_to_vmem [thread:$0]  %s113, 16, %s115, [#allocation12]
    $region29: #{tpu_custom_call.1} parent=1 // pred_fallthru
      _
    // Predicated region
    $region30: #{tpu_custom_call.1} parent=1 // pred_check
      _
    $region31: #{tpu_custom_call.1} parent=1 // pred_check_branch
      %119 = sbr.rel (0) target = $region33
    $region32: #{tpu_custom_call.1} parent=1 // pred_region
      _
    $region33: #{tpu_custom_call.1} parent=1 // pred_fallthru
      _
    // Predicated region
    $region34: #{tpu_custom_call.1} parent=1 // pred_check
      _
    $region35: #{tpu_custom_call.1} parent=1 // pred_check_branch
      %121 = sbr.rel (0) target = $region37
    $region36: #{tpu_custom_call.1} parent=1 // pred_region
      %123 = vsyncadd [#allocation12], 0
      %s125 = sshll.u32 %s8, 4
      %s126 = int_to_ptr.hbm [resolvable:$true] %s125
      %s127 = sshll.u32 [#allocation13], 4
      %s128 = int_to_ptr.vmem [resolvable:$true] %s127
      %130 = dma.hbm_to_vmem [thread:$0]  %s126, 64, %s128, [#allocation12]
    $region37: #{tpu_custom_call.1} parent=1 // pred_fallthru
      _
    // Predicated region
    $region38: #{tpu_custom_call.1} parent=1 // pred_check
      _
    $region39: #{tpu_custom_call.1} parent=1 // pred_check_branch
      %132 = sbr.rel (0) target = $region41
    $region40: #{tpu_custom_call.1} parent=1 // pred_region
      %134 = vsyncadd [#allocation15], 0
      %s135 = sshll.u32 %s9, 4
      %s136 = int_to_ptr.hbm [resolvable:$true] %s135
      %s137 = sshll.u32 [#allocation14], 4
      %s138 = int_to_ptr.vmem [resolvable:$true] %s137
      %143 = dma.hbm_to_vmem [thread:$0]  %s136, 24576, %s138, [#allocation15], 128, 128, 8
    $region41: #{tpu_custom_call.1} parent=1 // pred_fallthru
      _
    // Predicated region
    $region42: #{tpu_custom_call.1} parent=1 // pred_check
      _
    $region43: #{tpu_custom_call.1} parent=1 // pred_check_branch
      %145 = sbr.rel (0) target = $region45
    $region44: #{tpu_custom_call.1} parent=1 // pred_region
      %147 = vsyncadd [#allocation15], 0
      %s149 = sshll.u32 %s10, 4
      %s150 = int_to_ptr.hbm [resolvable:$true] %s149
      %s151 = sshll.u32 [#allocation16], 4
      %s152 = int_to_ptr.vmem [resolvable:$true] %s151
      %154 = dma.hbm_to_vmem [thread:$0]  %s150, 16, %s152, [#allocation15]
    $region45: #{tpu_custom_call.1} parent=1 // pred_fallthru
      _
    // Predicated region
    $region46: #{tpu_custom_call.1} parent=1 // pred_check
      _
    $region47: #{tpu_custom_call.1} parent=1 // pred_check_branch
      %156 = sbr.rel (0) target = $region49
    $region48: #{tpu_custom_call.1} parent=1 // pred_region
      _
    $region49: #{tpu_custom_call.1} parent=1 // pred_fallthru
      _
    // Predicated region
    $region50: #{tpu_custom_call.1} parent=1 // pred_check
      _
    $region51: #{tpu_custom_call.1} parent=1 // pred_check_branch
      %158 = sbr.rel (0) target = $region53
    $region52: #{tpu_custom_call.1} parent=1 // pred_region
      %160 = vsyncadd [#allocation18], 0
      %s162 = sshll.u32 %s12, 4
      %s163 = int_to_ptr.hbm [resolvable:$true] %s162
      %s164 = sshll.u32 [#allocation17], 4
      %s165 = int_to_ptr.vmem [resolvable:$true] %s164
      %167 = dma.hbm_to_vmem [thread:$0]  %s163, 128, %s165, [#allocation18]
    $region53: #{tpu_custom_call.1} parent=1 // pred_fallthru
      _
    // Predicated region
    $region54: #{tpu_custom_call.1} parent=1 // pred_check
      _
    $region55: #{tpu_custom_call.1} parent=1 // pred_check_branch
      %169 = sbr.rel (0) target = $region57
    $region56: #{tpu_custom_call.1} parent=1 // pred_region
      %171 = vsyncadd [#allocation18], 0
      %s172 = sshll.u32 %s13, 4
      %s173 = int_to_ptr.hbm [resolvable:$true] %s172
      %s174 = sshll.u32 [#allocation19], 4
      %s175 = int_to_ptr.vmem [resolvable:$true] %s174
      %180 = dma.hbm_to_vmem [thread:$0]  %s173, 24576, %s175, [#allocation18], 128, 128, 8
    $region57: #{tpu_custom_call.1} parent=1 // pred_fallthru
      _
    // Predicated region
    $region58: #{tpu_custom_call.1} parent=1 // pred_check
      _
    $region59: #{tpu_custom_call.1} parent=1 // pred_check_branch
      %182 = sbr.rel (0) target = $region61
    $region60: #{tpu_custom_call.1} parent=1 // pred_region
      %184 = vsyncadd [#allocation21], 0
      %s186 = sshll.u32 %s14, 4
      %s187 = int_to_ptr.hbm [resolvable:$true] %s186
      %s188 = sshll.u32 [#allocation20], 4
      %s189 = int_to_ptr.vmem [resolvable:$true] %s188
      %191 = dma.hbm_to_vmem [thread:$0]  %s187, 16, %s189, [#allocation21]
    $region61: #{tpu_custom_call.1} parent=1 // pred_fallthru
      _
    // Predicated region
    $region62: #{tpu_custom_call.1} parent=1 // pred_check
      _
    $region63: #{tpu_custom_call.1} parent=1 // pred_check_branch
      %193 = sbr.rel (0) target = $region65
    $region64: #{tpu_custom_call.1} parent=1 // pred_region
      _
    $region65: #{tpu_custom_call.1} parent=1 // pred_fallthru
      _
    // Predicated region
    $region66: #{tpu_custom_call.1} parent=1 // pred_check
      _
    $region67: #{tpu_custom_call.1} parent=1 // pred_check_branch
      %195 = sbr.rel (0) target = $region69
    $region68: #{tpu_custom_call.1} parent=1 // pred_region
      %197 = vsyncadd [#allocation21], 0
      %s199 = sshll.u32 %s16, 4
      %s200 = int_to_ptr.hbm [resolvable:$true] %s199
      %s201 = sshll.u32 [#allocation22], 4
      %s202 = int_to_ptr.vmem [resolvable:$true] %s201
      %204 = dma.hbm_to_vmem [thread:$0]  %s200, 128, %s202, [#allocation21]
    $region69: #{tpu_custom_call.1} parent=1 // pred_fallthru
      _
    // Predicated region
    $region70: #{tpu_custom_call.1} parent=1 // pred_check
      _
    $region71: #{tpu_custom_call.1} parent=1 // pred_check_branch
      %206 = sbr.rel (0) target = $region73
    $region72: #{tpu_custom_call.1} parent=1 // pred_region
      %208 = vsyncadd [#allocation24], 0
      %s209 = sshll.u32 %s17, 4
      %s210 = int_to_ptr.hbm [resolvable:$true] %s209
      %s211 = sshll.u32 [#allocation23], 4
      %s212 = int_to_ptr.vmem [resolvable:$true] %s211
      %217 = dma.hbm_to_vmem [thread:$0]  %s210, 49152, %s212, [#allocation24], 256, 256, 16
    $region73: #{tpu_custom_call.1} parent=1 // pred_fallthru
      _
    // Predicated region
    $region74: #{tpu_custom_call.1} parent=1 // pred_check
      _
    $region75: #{tpu_custom_call.1} parent=1 // pred_check_branch
      %219 = sbr.rel (0) target = $region77
    $region76: #{tpu_custom_call.1} parent=1 // pred_region
      %221 = vsyncadd [#allocation24], 0
      %s223 = sshll.u32 %s18, 4
      %s224 = int_to_ptr.hbm [resolvable:$true] %s223
      %s225 = sshll.u32 [#allocation25], 4
      %s226 = int_to_ptr.vmem [resolvable:$true] %s225
      %228 = dma.hbm_to_vmem [thread:$0]  %s224, 32, %s226, [#allocation24]
    $region77: #{tpu_custom_call.1} parent=1 // pred_fallthru
      _
    // Predicated region
    $region78: #{tpu_custom_call.1} parent=1 // pred_check
      _
    $region79: #{tpu_custom_call.1} parent=1 // pred_check_branch
      %230 = sbr.rel (0) target = $region81
    $region80: #{tpu_custom_call.1} parent=1 // pred_region
      _
    $region81: #{tpu_custom_call.1} parent=1 // pred_fallthru
      _
    // Predicated region
    $region82: #{tpu_custom_call.1} parent=1 // pred_check
      _
    $region83: #{tpu_custom_call.1} parent=1 // pred_check_branch
      %232 = sbr.rel (0) target = $region85
    $region84: #{tpu_custom_call.1} parent=1 // pred_region
      %234 = vsyncadd [#allocation27], 0
      %s235 = sshll.u32 %s20, 4
      %s236 = int_to_ptr.hbm [resolvable:$true] %s235
      %s237 = sshll.u32 [#allocation26], 4
      %s238 = int_to_ptr.vmem [resolvable:$true] %s237
      %243 = dma.hbm_to_vmem [thread:$0]  %s236, 512, %s238, [#allocation27], 256, 256, 16
    $region85: #{tpu_custom_call.1} parent=1 // pred_fallthru
      _
    // Predicated region
    $region86: #{tpu_custom_call.1} parent=1 // pred_check
      _
    $region87: #{tpu_custom_call.1} parent=1 // pred_check_branch
      %245 = sbr.rel (0) target = $region89
    $region88: #{tpu_custom_call.1} parent=1 // pred_region
      %247 = vsyncadd [#allocation27], 0
      %s248 = sshll.u32 %s21, 4
      %s249 = int_to_ptr.hbm [resolvable:$true] %s248
      %s250 = sshll.u32 [#allocation28], 4
      %s251 = int_to_ptr.vmem [resolvable:$true] %s250
      %256 = dma.hbm_to_vmem [thread:$0]  %s249, 98304, %s251, [#allocation27], 256, 256, 16
    $region89: #{tpu_custom_call.1} parent=1 // pred_fallthru
      _
    // Predicated region
    $region90: #{tpu_custom_call.1} parent=1 // pred_check
      _
    $region91: #{tpu_custom_call.1} parent=1 // pred_check_branch
      %258 = sbr.rel (0) target = $region93
    $region92: #{tpu_custom_call.1} parent=1 // pred_region
      %260 = vsyncadd [#allocation30], 0
      %s262 = sshll.u32 %s22, 4
      %s263 = int_to_ptr.hbm [resolvable:$true] %s262
      %s264 = sshll.u32 [#allocation29], 4
      %s265 = int_to_ptr.vmem [resolvable:$true] %s264
      %267 = dma.hbm_to_vmem [thread:$0]  %s263, 32, %s265, [#allocation30]
    $region93: #{tpu_custom_call.1} parent=1 // pred_fallthru
      _
    // Predicated region
    $region94: #{tpu_custom_call.1} parent=1 // pred_check
      _
    $region95: #{tpu_custom_call.1} parent=1 // pred_check_branch
      %269 = sbr.rel (0) target = $region97
    $region96: #{tpu_custom_call.1} parent=1 // pred_region
      _
    $region97: #{tpu_custom_call.1} parent=1 // pred_fallthru
      _
    // Predicated region
    $region98: #{tpu_custom_call.1} parent=1 // pred_check
      _
    $region99: #{tpu_custom_call.1} parent=1 // pred_check_branch
      %271 = sbr.rel (0) target = $region101
    $region100: #{tpu_custom_call.1} parent=1 // pred_region
      %273 = vsyncadd [#allocation30], 0
      %s274 = sshll.u32 %s24, 4
      %s275 = int_to_ptr.hbm [resolvable:$true] %s274
      %s276 = sshll.u32 [#allocation31], 4
      %s277 = int_to_ptr.vmem [resolvable:$true] %s276
      %282 = dma.hbm_to_vmem [thread:$0]  %s275, 512, %s277, [#allocation30], 256, 256, 16
    $region101: #{tpu_custom_call.1} parent=1 // pred_fallthru
      _
    // Predicated region
    $region102: #{tpu_custom_call.1} parent=1 // pred_check
      _
    $region103: #{tpu_custom_call.1} parent=1 // pred_check_branch
      %284 = sbr.rel (0) target = $region105
    $region104: #{tpu_custom_call.1} parent=1 // pred_region
      %286 = vsyncadd [#allocation33], 0
      %s287 = sshll.u32 %s25, 4
      %s288 = int_to_ptr.hbm [resolvable:$true] %s287
      %s289 = sshll.u32 [#allocation32], 4
      %s290 = int_to_ptr.vmem [resolvable:$true] %s289
      %295 = dma.hbm_to_vmem [thread:$0]  %s288, 4096, %s290, [#allocation33], 128, 128, 8
    $region105: #{tpu_custom_call.1} parent=1 // pred_fallthru
      _
    // Predicated region
    $region106: #{tpu_custom_call.1} parent=1 // pred_check
      _
    $region107: #{tpu_custom_call.1} parent=1 // pred_check_branch
      %297 = sbr.rel (0) target = $region109
    $region108: #{tpu_custom_call.1} parent=1 // pred_region
      %299 = vsyncadd [#allocation33], 0
      %s301 = sshll.u32 %s26, 4
      %s302 = int_to_ptr.hbm [resolvable:$true] %s301
      %s303 = sshll.u32 [#allocation34], 4
      %s304 = int_to_ptr.vmem [resolvable:$true] %s303
      %306 = dma.hbm_to_vmem [thread:$0]  %s302, 16, %s304, [#allocation33]
    $region109: #{tpu_custom_call.1} parent=1 // pred_fallthru
      _
    // Predicated region
    $region110: #{tpu_custom_call.1} parent=1 // pred_check
      _
    $region111: #{tpu_custom_call.1} parent=1 // pred_check_branch
      %308 = sbr.rel (0) target = $region113
    $region112: #{tpu_custom_call.1} parent=1 // pred_region
      %310 = dma.done [#allocation3], 512
    $region113: #{tpu_custom_call.1} parent=1 // pred_fallthru
      _
    // Predicated region
    $region114: #{tpu_custom_call.1} parent=1 // pred_check
      _
    $region115: #{tpu_custom_call.1} parent=1 // pred_check_branch
      %312 = sbr.rel (0) target = $region117
    $region116: #{tpu_custom_call.1} parent=1 // pred_region
      %314 = dma.done [#allocation6], 24576
    $region117: #{tpu_custom_call.1} parent=1 // pred_fallthru
      _
    // Predicated region
    $region118: #{tpu_custom_call.1} parent=1 // pred_check
      _
    $region119: #{tpu_custom_call.1} parent=1 // pred_check_branch
      %316 = sbr.rel (0) target = $region121
    $region120: #{tpu_custom_call.1} parent=1 // pred_region
      %318 = dma.done [#allocation6], 16
    $region121: #{tpu_custom_call.1} parent=1 // pred_fallthru
      _
    // Predicated region
    $region122: #{tpu_custom_call.1} parent=1 // pred_check
      _
    $region123: #{tpu_custom_call.1} parent=1 // pred_check_branch
      %320 = sbr.rel (0) target = $region125
    $region124: #{tpu_custom_call.1} parent=1 // pred_region
      %322 = dma.done [#allocation9], 64
    $region125: #{tpu_custom_call.1} parent=1 // pred_fallthru
      _
    // Predicated region
    $region126: #{tpu_custom_call.1} parent=1 // pred_check
      _
    $region127: #{tpu_custom_call.1} parent=1 // pred_check_branch
      %324 = sbr.rel (0) target = $region129
    $region128: #{tpu_custom_call.1} parent=1 // pred_region
      %326 = dma.done [#allocation9], 24576
    $region129: #{tpu_custom_call.1} parent=1 // pred_fallthru
      _
    // Predicated region
    $region130: #{tpu_custom_call.1} parent=1 // pred_check
      _
    $region131: #{tpu_custom_call.1} parent=1 // pred_check_branch
      %328 = sbr.rel (0) target = $region133
    $region132: #{tpu_custom_call.1} parent=1 // pred_region
      %330 = dma.done [#allocation12], 16
    $region133: #{tpu_custom_call.1} parent=1 // pred_fallthru
      _
    // Predicated region
    $region134: #{tpu_custom_call.1} parent=1 // pred_check
      _
    $region135: #{tpu_custom_call.1} parent=1 // pred_check_branch
      %332 = sbr.rel (0) target = $region137
    $region136: #{tpu_custom_call.1} parent=1 // pred_region
      %334 = dma.done [#allocation12], 64
    $region137: #{tpu_custom_call.1} parent=1 // pred_fallthru
      _
    // Predicated region
    $region138: #{tpu_custom_call.1} parent=1 // pred_check
      _
    $region139: #{tpu_custom_call.1} parent=1 // pred_check_branch
      %336 = sbr.rel (0) target = $region141
    $region140: #{tpu_custom_call.1} parent=1 // pred_region
      %338 = dma.done [#allocation15], 24576
    $region141: #{tpu_custom_call.1} parent=1 // pred_fallthru
      _
    // Predicated region
    $region142: #{tpu_custom_call.1} parent=1 // pred_check
      _
    $region143: #{tpu_custom_call.1} parent=1 // pred_check_branch
      %340 = sbr.rel (0) target = $region145
    $region144: #{tpu_custom_call.1} parent=1 // pred_region
      %342 = dma.done [#allocation15], 16
    $region145: #{tpu_custom_call.1} parent=1 // pred_fallthru
      _
    // Predicated region
    $region146: #{tpu_custom_call.1} parent=1 // pred_check
      _
    $region147: #{tpu_custom_call.1} parent=1 // pred_check_branch
      %344 = sbr.rel (0) target = $region149
    $region148: #{tpu_custom_call.1} parent=1 // pred_region
      %346 = dma.done [#allocation18], 128
    $region149: #{tpu_custom_call.1} parent=1 // pred_fallthru
      _
    // Predicated region
    $region150: #{tpu_custom_call.1} parent=1 // pred_check
      _
    $region151: #{tpu_custom_call.1} parent=1 // pred_check_branch
      %348 = sbr.rel (0) target = $region153
    $region152: #{tpu_custom_call.1} parent=1 // pred_region
      %350 = dma.done [#allocation18], 24576
    $region153: #{tpu_custom_call.1} parent=1 // pred_fallthru
      _
    // Predicated region
    $region154: #{tpu_custom_call.1} parent=1 // pred_check
      _
    $region155: #{tpu_custom_call.1} parent=1 // pred_check_branch
      %352 = sbr.rel (0) target = $region157
    $region156: #{tpu_custom_call.1} parent=1 // pred_region
      %354 = dma.done [#allocation21], 16
    $region157: #{tpu_custom_call.1} parent=1 // pred_fallthru
      _
    // Predicated region
    $region158: #{tpu_custom_call.1} parent=1 // pred_check
      _
    $region159: #{tpu_custom_call.1} parent=1 // pred_check_branch
      %356 = sbr.rel (0) target = $region161
    $region160: #{tpu_custom_call.1} parent=1 // pred_region
      %358 = dma.done [#allocation21], 128
    $region161: #{tpu_custom_call.1} parent=1 // pred_fallthru
      _
    // Predicated region
    $region162: #{tpu_custom_call.1} parent=1 // pred_check
      _
    $region163: #{tpu_custom_call.1} parent=1 // pred_check_branch
      %360 = sbr.rel (0) target = $region165
    $region164: #{tpu_custom_call.1} parent=1 // pred_region
      %362 = dma.done [#allocation24], 49152
    $region165: #{tpu_custom_call.1} parent=1 // pred_fallthru
      _
    // Predicated region
    $region166: #{tpu_custom_call.1} parent=1 // pred_check
      _
    $region167: #{tpu_custom_call.1} parent=1 // pred_check_branch
      %364 = sbr.rel (0) target = $region169
    $region168: #{tpu_custom_call.1} parent=1 // pred_region
      %366 = dma.done [#allocation24], 32
    $region169: #{tpu_custom_call.1} parent=1 // pred_fallthru
      _
    // Predicated region
    $region170: #{tpu_custom_call.1} parent=1 // pred_check
      _
    $region171: #{tpu_custom_call.1} parent=1 // pred_check_branch
      %368 = sbr.rel (0) target = $region173
    $region172: #{tpu_custom_call.1} parent=1 // pred_region
      %370 = dma.done [#allocation27], 512
    $region173: #{tpu_custom_call.1} parent=1 // pred_fallthru
      _
    // Predicated region
    $region174: #{tpu_custom_call.1} parent=1 // pred_check
      _
    $region175: #{tpu_custom_call.1} parent=1 // pred_check_branch
      %372 = sbr.rel (0) target = $region177
    $region176: #{tpu_custom_call.1} parent=1 // pred_region
      %374 = dma.done [#allocation27], 98304
    $region177: #{tpu_custom_call.1} parent=1 // pred_fallthru
      _
    // Predicated region
    $region178: #{tpu_custom_call.1} parent=1 // pred_check
      _
    $region179: #{tpu_custom_call.1} parent=1 // pred_check_branch
      %376 = sbr.rel (0) target = $region181
    $region180: #{tpu_custom_call.1} parent=1 // pred_region
      %378 = dma.done [#allocation30], 32
    $region181: #{tpu_custom_call.1} parent=1 // pred_fallthru
      _
    // Predicated region
    $region182: #{tpu_custom_call.1} parent=1 // pred_check
      _
    $region183: #{tpu_custom_call.1} parent=1 // pred_check_branch
      %380 = sbr.rel (0) target = $region185
    $region184: #{tpu_custom_call.1} parent=1 // pred_region
      %382 = dma.done [#allocation30], 512
    $region185: #{tpu_custom_call.1} parent=1 // pred_fallthru
      _
    // Predicated region
    $region186: #{tpu_custom_call.1} parent=1 // pred_check
      _
    $region187: #{tpu_custom_call.1} parent=1 // pred_check_branch
      %384 = sbr.rel (0) target = $region189
    $region188: #{tpu_custom_call.1} parent=1 // pred_region
      %386 = dma.done [#allocation33], 4096
    $region189: #{tpu_custom_call.1} parent=1 // pred_fallthru
      _
    // Predicated region
    $region190: #{tpu_custom_call.1} parent=1 // pred_check
      _
    $region191: #{tpu_custom_call.1} parent=1 // pred_check_branch
      %388 = sbr.rel (0) target = $region193
    $region192: #{tpu_custom_call.1} parent=1 // pred_region
      %390 = dma.done [#allocation33], 16
    $region193: #{tpu_custom_call.1} parent=1 // pred_fallthru
      _
    %v391 = vld [vmem:[#allocation2] sm:$0xff]
    %v392 = vld [vmem:[#allocation2 + $0x8] sm:$0xff]
    %vm395 = vcmask 1044480
    %v396 = vrot.slane %v391, 3
    %v397 = vrot.slane %v392, 3
    %v398 = vsel %vm395, %v396, %v397
    %v402 = vsel %vm395, 0.0, %v396
    %v403 = vsel %vm395, %v397, 0.0
    %vm406 = vcmask 1046528
    %v407 = vrot.slane %v402, 1
    %v408 = vrot.slane %v398, 1
    %v409 = vsel %vm406, %v407, %v408
    %v410 = vrot.slane %v403, 1
    %v411 = vsel %vm406, %v408, %v410
    %vm414 = vcmask 1045504
    %v415 = vrot.slane %v402, 2
    %v416 = vrot.slane %v398, 2
    %v417 = vsel %vm414, %v415, %v416
    %v418 = vrot.slane %v403, 2
    %v419 = vsel %vm414, %v416, %v418
    %v422 = vrot.slane %v402, 3
    %v423 = vrot.slane %v398, 3
    %v424 = vsel %vm395, %v422, %v423
    %v425 = vrot.slane %v403, 3
    %v426 = vsel %vm395, %v423, %v425
    %vm429 = vcmask 1043456
    %v430 = vrot.slane %v402, 4
    %v431 = vrot.slane %v398, 4
    %v432 = vsel %vm429, %v430, %v431
    %v433 = vrot.slane %v403, 4
    %v434 = vsel %vm429, %v431, %v433
    %vm437 = vcmask 1042432
    %v438 = vrot.slane %v402, 5
    %v439 = vrot.slane %v398, 5
    %v440 = vsel %vm437, %v438, %v439
    %v441 = vrot.slane %v403, 5
    %v442 = vsel %vm437, %v439, %v441
    %vm445 = vcmask 1041408
    %v446 = vrot.slane %v402, 6
    %v447 = vrot.slane %v398, 6
    %v448 = vsel %vm445, %v446, %v447
    %v449 = vrot.slane %v403, 6
    %v450 = vsel %vm445, %v447, %v449
    %vm453 = vcmask 1040384
    %v454 = vrot.slane %v402, 7
    %v455 = vrot.slane %v398, 7
    %v456 = vsel %vm453, %v454, %v455
    %v457 = vrot.slane %v403, 7
    %v458 = vsel %vm453, %v455, %v457
    %v462 = vrot.slane 0.0, 1
    %v463 = vsel %vm406, %v410, %v462
    %v465 = vrot.slane 0.0, 2
    %v466 = vsel %vm414, %v418, %v465
    %v468 = vrot.slane 0.0, 3
    %v469 = vsel %vm395, %v425, %v468
    %v471 = vld [vmem:[#allocation5] sm:$0xff]
    %v472 = vld [vmem:[#allocation5 + $0x8] sm:$0xff]
    %v473 = vld [vmem:[#allocation5 + $0x10] sm:$0xff]
    %v474 = vld [vmem:[#allocation5 + $0x18] sm:$0xff]
    %v475 = vld [vmem:[#allocation5 + $0x20] sm:$0xff]
    %v476 = vld [vmem:[#allocation5 + $0x28] sm:$0xff]
    %v477 = vld [vmem:[#allocation5 + $0x30] sm:$0xff]
    %v478 = vld [vmem:[#allocation5 + $0x38] sm:$0xff]
    %v479 = vld [vmem:[#allocation5 + $0x40] sm:$0xff]
    %v480 = vld [vmem:[#allocation5 + $0x48] sm:$0xff]
    %v481 = vld [vmem:[#allocation5 + $0x50] sm:$0xff]
    %v482 = vld [vmem:[#allocation5 + $0x58] sm:$0xff]
    %v483 = vld [vmem:[#allocation5 + $0x60] sm:$0xff]
    %v484 = vld [vmem:[#allocation5 + $0x68] sm:$0xff]
    %v485 = vld [vmem:[#allocation5 + $0x70] sm:$0xff]
    %v486 = vld [vmem:[#allocation5 + $0x78] sm:$0xff]
    %v487 = vld [vmem:[#allocation5 + $0x80] sm:$0xff]
    %v488 = vld [vmem:[#allocation5 + $0x88] sm:$0xff]
    %v489 = vld [vmem:[#allocation5 + $0x90] sm:$0xff]
    %v490 = vld [vmem:[#allocation5 + $0x98] sm:$0xff]
    %v491 = vld [vmem:[#allocation5 + $0xa0] sm:$0xff]
    %v492 = vld [vmem:[#allocation5 + $0xa8] sm:$0xff]
    %v493 = vld [vmem:[#allocation5 + $0xb0] sm:$0xff]
    %v494 = vld [vmem:[#allocation5 + $0xb8] sm:$0xff]
    %v495 = vld [vmem:[#allocation5 + $0xc0] sm:$0xff]
    %v496 = vld [vmem:[#allocation5 + $0xc8] sm:$0xff]
    %v497 = vld [vmem:[#allocation5 + $0xd0] sm:$0xff]
    %v498 = vld [vmem:[#allocation5 + $0xd8] sm:$0xff]
    %v499 = vld [vmem:[#allocation5 + $0xe0] sm:$0xff]
    %v500 = vld [vmem:[#allocation5 + $0xe8] sm:$0xff]
    %v501 = vld [vmem:[#allocation5 + $0xf0] sm:$0xff]
    %v502 = vld [vmem:[#allocation5 + $0xf8] sm:$0xff]
    %v503 = vld [vmem:[#allocation5 + $0x100] sm:$0xff]
    %v504 = vld [vmem:[#allocation5 + $0x108] sm:$0xff]
    %v505 = vld [vmem:[#allocation5 + $0x110] sm:$0xff]
    %v506 = vld [vmem:[#allocation5 + $0x118] sm:$0xff]
    %v507 = vld [vmem:[#allocation5 + $0x120] sm:$0xff]
    %v508 = vld [vmem:[#allocation5 + $0x128] sm:$0xff]
    %v509 = vld [vmem:[#allocation5 + $0x130] sm:$0xff]
    %v510 = vld [vmem:[#allocation5 + $0x138] sm:$0xff]
    %v511 = vld [vmem:[#allocation5 + $0x140] sm:$0xff]
    %v512 = vld [vmem:[#allocation5 + $0x148] sm:$0xff]
    %v513 = vld [vmem:[#allocation5 + $0x150] sm:$0xff]
    %v514 = vld [vmem:[#allocation5 + $0x158] sm:$0xff]
    %v515 = vld [vmem:[#allocation5 + $0x160] sm:$0xff]
    %v516 = vld [vmem:[#allocation5 + $0x168] sm:$0xff]
    %v517 = vld [vmem:[#allocation5 + $0x170] sm:$0xff]
    %v518 = vld [vmem:[#allocation5 + $0x178] sm:$0xff]
    %v519 = vld [vmem:[#allocation5 + $0x180] sm:$0xff]
    %v520 = vld [vmem:[#allocation5 + $0x188] sm:$0xff]
    %v521 = vld [vmem:[#allocation5 + $0x190] sm:$0xff]
    %v522 = vld [vmem:[#allocation5 + $0x198] sm:$0xff]
    %v523 = vld [vmem:[#allocation5 + $0x1a0] sm:$0xff]
    %v524 = vld [vmem:[#allocation5 + $0x1a8] sm:$0xff]
    %v525 = vld [vmem:[#allocation5 + $0x1b0] sm:$0xff]
    %v526 = vld [vmem:[#allocation5 + $0x1b8] sm:$0xff]
    %v527 = vld [vmem:[#allocation5 + $0x1c0] sm:$0xff]
    %v528 = vld [vmem:[#allocation5 + $0x1c8] sm:$0xff]
    %v529 = vld [vmem:[#allocation5 + $0x1d0] sm:$0xff]
    %v530 = vld [vmem:[#allocation5 + $0x1d8] sm:$0xff]
    %v531 = vld [vmem:[#allocation5 + $0x1e0] sm:$0xff]
    %v532 = vld [vmem:[#allocation5 + $0x1e8] sm:$0xff]
    %v533 = vld [vmem:[#allocation5 + $0x1f0] sm:$0xff]
    %v534 = vld [vmem:[#allocation5 + $0x1f8] sm:$0xff]
    %v535 = vld [vmem:[#allocation5 + $0x200] sm:$0xff]
    %v536 = vld [vmem:[#allocation5 + $0x208] sm:$0xff]
    %v537 = vld [vmem:[#allocation5 + $0x210] sm:$0xff]
    %v538 = vld [vmem:[#allocation5 + $0x218] sm:$0xff]
    %v539 = vld [vmem:[#allocation5 + $0x220] sm:$0xff]
    %v540 = vld [vmem:[#allocation5 + $0x228] sm:$0xff]
    %v541 = vld [vmem:[#allocation5 + $0x230] sm:$0xff]
    %v542 = vld [vmem:[#allocation5 + $0x238] sm:$0xff]
    %v543 = vld [vmem:[#allocation5 + $0x240] sm:$0xff]
    %v544 = vld [vmem:[#allocation5 + $0x248] sm:$0xff]
    %v545 = vld [vmem:[#allocation5 + $0x250] sm:$0xff]
    %v546 = vld [vmem:[#allocation5 + $0x258] sm:$0xff]
    %v547 = vld [vmem:[#allocation5 + $0x260] sm:$0xff]
    %v548 = vld [vmem:[#allocation5 + $0x268] sm:$0xff]
    %v549 = vld [vmem:[#allocation5 + $0x270] sm:$0xff]
    %v550 = vld [vmem:[#allocation5 + $0x278] sm:$0xff]
    %v551 = vld [vmem:[#allocation5 + $0x280] sm:$0xff]
    %v552 = vld [vmem:[#allocation5 + $0x288] sm:$0xff]
    %v553 = vld [vmem:[#allocation5 + $0x290] sm:$0xff]
    %v554 = vld [vmem:[#allocation5 + $0x298] sm:$0xff]
    %v555 = vld [vmem:[#allocation5 + $0x2a0] sm:$0xff]
    %v556 = vld [vmem:[#allocation5 + $0x2a8] sm:$0xff]
    %v557 = vld [vmem:[#allocation5 + $0x2b0] sm:$0xff]
    %v558 = vld [vmem:[#allocation5 + $0x2b8] sm:$0xff]
    %v559 = vld [vmem:[#allocation5 + $0x2c0] sm:$0xff]
    %v560 = vld [vmem:[#allocation5 + $0x2c8] sm:$0xff]
    %v561 = vld [vmem:[#allocation5 + $0x2d0] sm:$0xff]
    %v562 = vld [vmem:[#allocation5 + $0x2d8] sm:$0xff]
    %v563 = vld [vmem:[#allocation5 + $0x2e0] sm:$0xff]
    %v564 = vld [vmem:[#allocation5 + $0x2e8] sm:$0xff]
    %v565 = vld [vmem:[#allocation5 + $0x2f0] sm:$0xff]
    %v566 = vld [vmem:[#allocation5 + $0x2f8] sm:$0xff]
    %v567 = vld [vmem:[#allocation5 + $0x300] sm:$0xff]
    %v568 = vld [vmem:[#allocation5 + $0x308] sm:$0xff]
    %v569 = vld [vmem:[#allocation5 + $0x310] sm:$0xff]
    %v570 = vld [vmem:[#allocation5 + $0x318] sm:$0xff]
    %v571 = vld [vmem:[#allocation5 + $0x320] sm:$0xff]
    %v572 = vld [vmem:[#allocation5 + $0x328] sm:$0xff]
    %v573 = vld [vmem:[#allocation5 + $0x330] sm:$0xff]
    %v574 = vld [vmem:[#allocation5 + $0x338] sm:$0xff]
    %v575 = vld [vmem:[#allocation5 + $0x340] sm:$0xff]
    %v576 = vld [vmem:[#allocation5 + $0x348] sm:$0xff]
    %v577 = vld [vmem:[#allocation5 + $0x350] sm:$0xff]
    %v578 = vld [vmem:[#allocation5 + $0x358] sm:$0xff]
    %v579 = vld [vmem:[#allocation5 + $0x360] sm:$0xff]
    %v580 = vld [vmem:[#allocation5 + $0x368] sm:$0xff]
    %v581 = vld [vmem:[#allocation5 + $0x370] sm:$0xff]
    %v582 = vld [vmem:[#allocation5 + $0x378] sm:$0xff]
    %v583 = vld [vmem:[#allocation5 + $0x380] sm:$0xff]
    %v584 = vld [vmem:[#allocation5 + $0x388] sm:$0xff]
    %v585 = vld [vmem:[#allocation5 + $0x390] sm:$0xff]
    %v586 = vld [vmem:[#allocation5 + $0x398] sm:$0xff]
    %v587 = vld [vmem:[#allocation5 + $0x3a0] sm:$0xff]
    %v588 = vld [vmem:[#allocation5 + $0x3a8] sm:$0xff]
    %v589 = vld [vmem:[#allocation5 + $0x3b0] sm:$0xff]
    %v590 = vld [vmem:[#allocation5 + $0x3b8] sm:$0xff]
    %v591 = vld [vmem:[#allocation5 + $0x3c0] sm:$0xff]
    %v592 = vld [vmem:[#allocation5 + $0x3c8] sm:$0xff]
    %v593 = vld [vmem:[#allocation5 + $0x3d0] sm:$0xff]
    %v594 = vld [vmem:[#allocation5 + $0x3d8] sm:$0xff]
    %v595 = vld [vmem:[#allocation5 + $0x3e0] sm:$0xff]
    %v596 = vld [vmem:[#allocation5 + $0x3e8] sm:$0xff]
    %v597 = vld [vmem:[#allocation5 + $0x3f0] sm:$0xff]
    %v598 = vld [vmem:[#allocation5 + $0x3f8] sm:$0xff]
    %v599 = vld [vmem:[#allocation5 + $0x400] sm:$0xff]
    %v600 = vld [vmem:[#allocation5 + $0x408] sm:$0xff]
    %v601 = vld [vmem:[#allocation5 + $0x410] sm:$0xff]
    %v602 = vld [vmem:[#allocation5 + $0x418] sm:$0xff]
    %v603 = vld [vmem:[#allocation5 + $0x420] sm:$0xff]
    %v604 = vld [vmem:[#allocation5 + $0x428] sm:$0xff]
    %v605 = vld [vmem:[#allocation5 + $0x430] sm:$0xff]
    %v606 = vld [vmem:[#allocation5 + $0x438] sm:$0xff]
    %v607 = vld [vmem:[#allocation5 + $0x440] sm:$0xff]
    %v608 = vld [vmem:[#allocation5 + $0x448] sm:$0xff]
    %v609 = vld [vmem:[#allocation5 + $0x450] sm:$0xff]
    %v610 = vld [vmem:[#allocation5 + $0x458] sm:$0xff]
    %v611 = vld [vmem:[#allocation5 + $0x460] sm:$0xff]
    %v612 = vld [vmem:[#allocation5 + $0x468] sm:$0xff]
    %v613 = vld [vmem:[#allocation5 + $0x470] sm:$0xff]
    %v614 = vld [vmem:[#allocation5 + $0x478] sm:$0xff]
    %v615 = vld [vmem:[#allocation5 + $0x480] sm:$0xff]
    %v616 = vld [vmem:[#allocation5 + $0x488] sm:$0xff]
    %v617 = vld [vmem:[#allocation5 + $0x490] sm:$0xff]
    %v618 = vld [vmem:[#allocation5 + $0x498] sm:$0xff]
    %v619 = vld [vmem:[#allocation5 + $0x4a0] sm:$0xff]
    %v620 = vld [vmem:[#allocation5 + $0x4a8] sm:$0xff]
    %v621 = vld [vmem:[#allocation5 + $0x4b0] sm:$0xff]
    %v622 = vld [vmem:[#allocation5 + $0x4b8] sm:$0xff]
    %v623 = vld [vmem:[#allocation5 + $0x4c0] sm:$0xff]
    %v624 = vld [vmem:[#allocation5 + $0x4c8] sm:$0xff]
    %v625 = vld [vmem:[#allocation5 + $0x4d0] sm:$0xff]
    %v626 = vld [vmem:[#allocation5 + $0x4d8] sm:$0xff]
    %v627 = vld [vmem:[#allocation5 + $0x4e0] sm:$0xff]
    %v628 = vld [vmem:[#allocation5 + $0x4e8] sm:$0xff]
    %v629 = vld [vmem:[#allocation5 + $0x4f0] sm:$0xff]
    %v630 = vld [vmem:[#allocation5 + $0x4f8] sm:$0xff]
    %v631 = vld [vmem:[#allocation5 + $0x500] sm:$0xff]
    %v632 = vld [vmem:[#allocation5 + $0x508] sm:$0xff]
    %v633 = vld [vmem:[#allocation5 + $0x510] sm:$0xff]
    %v634 = vld [vmem:[#allocation5 + $0x518] sm:$0xff]
    %v635 = vld [vmem:[#allocation5 + $0x520] sm:$0xff]
    %v636 = vld [vmem:[#allocation5 + $0x528] sm:$0xff]
    %v637 = vld [vmem:[#allocation5 + $0x530] sm:$0xff]
    %v638 = vld [vmem:[#allocation5 + $0x538] sm:$0xff]
    %v639 = vld [vmem:[#allocation5 + $0x540] sm:$0xff]
    %v640 = vld [vmem:[#allocation5 + $0x548] sm:$0xff]
    %v641 = vld [vmem:[#allocation5 + $0x550] sm:$0xff]
    %v642 = vld [vmem:[#allocation5 + $0x558] sm:$0xff]
    %v643 = vld [vmem:[#allocation5 + $0x560] sm:$0xff]
    %v644 = vld [vmem:[#allocation5 + $0x568] sm:$0xff]
    %v645 = vld [vmem:[#allocation5 + $0x570] sm:$0xff]
    %v646 = vld [vmem:[#allocation5 + $0x578] sm:$0xff]
    %v647 = vld [vmem:[#allocation5 + $0x580] sm:$0xff]
    %v648 = vld [vmem:[#allocation5 + $0x588] sm:$0xff]
    %v649 = vld [vmem:[#allocation5 + $0x590] sm:$0xff]
    %v650 = vld [vmem:[#allocation5 + $0x598] sm:$0xff]
    %v651 = vld [vmem:[#allocation5 + $0x5a0] sm:$0xff]
    %v652 = vld [vmem:[#allocation5 + $0x5a8] sm:$0xff]
    %v653 = vld [vmem:[#allocation5 + $0x5b0] sm:$0xff]
    %v654 = vld [vmem:[#allocation5 + $0x5b8] sm:$0xff]
    %v655 = vld [vmem:[#allocation5 + $0x5c0] sm:$0xff]
    %v656 = vld [vmem:[#allocation5 + $0x5c8] sm:$0xff]
    %v657 = vld [vmem:[#allocation5 + $0x5d0] sm:$0xff]
    %v658 = vld [vmem:[#allocation5 + $0x5d8] sm:$0xff]
    %v659 = vld [vmem:[#allocation5 + $0x5e0] sm:$0xff]
    %v660 = vld [vmem:[#allocation5 + $0x5e8] sm:$0xff]
    %v661 = vld [vmem:[#allocation5 + $0x5f0] sm:$0xff]
    %v662 = vld [vmem:[#allocation5 + $0x5f8] sm:$0xff]
    %v663 = vld [vmem:[#allocation7] sm:$0x1]
    %v665 = vperm.slane %v663, 0
    %667 = vmatpush.msra.mxu0 %v486
    %668 = vmatpush.msra.mxu0 %v485
    %669 = vmatpush.msra.mxu0 %v484
    %670 = vmatpush.msra.mxu0 %v483
    %671 = vmatpush.msra.mxu0 %v482
    %672 = vmatpush.msra.mxu0 %v481
    %673 = vmatpush.msra.mxu0 %v480
    %674 = vmatpush.msra.mxu0 %v479
    %675 = vmatpush.msra.mxu0 %v478
    %676 = vmatpush.msra.mxu0 %v477
    %677 = vmatpush.msra.mxu0 %v476
    %678 = vmatpush.msra.mxu0 %v475
    %679 = vmatpush.msra.mxu0 %v474
    %680 = vmatpush.msra.mxu0 %v473
    %681 = vmatpush.msra.mxu0 %v472
    %682 = vmatpush.msra.mxu0 %v471
    %683 = vmatmul.f32.gmra.mxu0 %v402
    %v684 = vpop.f32.mrf.mxu0
    %v685 = vadd.f32 %v665, %v684
    %686 = vmatmul.f32.gmra.mxu0 %v398
    %v687 = vpop.f32.mrf.mxu0
    %v688 = vadd.f32 %v665, %v687
    %689 = vdwg.mxu0
    %690 = vmatpush.msra.mxu0 %v502
    %691 = vmatpush.msra.mxu0 %v501
    %692 = vmatpush.msra.mxu0 %v500
    %693 = vmatpush.msra.mxu0 %v499
    %694 = vmatpush.msra.mxu0 %v498
    %695 = vmatpush.msra.mxu0 %v497
    %696 = vmatpush.msra.mxu0 %v496
    %697 = vmatpush.msra.mxu0 %v495
    %698 = vmatpush.msra.mxu0 %v494
    %699 = vmatpush.msra.mxu0 %v493
    %700 = vmatpush.msra.mxu0 %v492
    %701 = vmatpush.msra.mxu0 %v491
    %702 = vmatpush.msra.mxu0 %v490
    %703 = vmatpush.msra.mxu0 %v489
    %704 = vmatpush.msra.mxu0 %v488
    %705 = vmatpush.msra.mxu0 %v487
    %706 = vmatmul.f32.gmra.mxu0 %v409
    %v707 = vpop.f32.mrf.mxu0
    %v708 = vadd.f32 %v685, %v707
    %709 = vmatmul.f32.gmra.mxu0 %v411
    %v710 = vpop.f32.mrf.mxu0
    %v711 = vadd.f32 %v688, %v710
    %712 = vdwg.mxu0
    %713 = vmatpush.msra.mxu0 %v518
    %714 = vmatpush.msra.mxu0 %v517
    %715 = vmatpush.msra.mxu0 %v516
    %716 = vmatpush.msra.mxu0 %v515
    %717 = vmatpush.msra.mxu0 %v514
    %718 = vmatpush.msra.mxu0 %v513
    %719 = vmatpush.msra.mxu0 %v512
    %720 = vmatpush.msra.mxu0 %v511
    %721 = vmatpush.msra.mxu0 %v510
    %722 = vmatpush.msra.mxu0 %v509
    %723 = vmatpush.msra.mxu0 %v508
    %724 = vmatpush.msra.mxu0 %v507
    %725 = vmatpush.msra.mxu0 %v506
    %726 = vmatpush.msra.mxu0 %v505
    %727 = vmatpush.msra.mxu0 %v504
    %728 = vmatpush.msra.mxu0 %v503
    %729 = vmatmul.f32.gmra.mxu0 %v417
    %v730 = vpop.f32.mrf.mxu0
    %v731 = vadd.f32 %v708, %v730
    %732 = vmatmul.f32.gmra.mxu0 %v419
    %v733 = vpop.f32.mrf.mxu0
    %v734 = vadd.f32 %v711, %v733
    %735 = vdwg.mxu0
    %736 = vmatpush.msra.mxu0 %v534
    %737 = vmatpush.msra.mxu0 %v533
    %738 = vmatpush.msra.mxu0 %v532
    %739 = vmatpush.msra.mxu0 %v531
    %740 = vmatpush.msra.mxu0 %v530
    %741 = vmatpush.msra.mxu0 %v529
    %742 = vmatpush.msra.mxu0 %v528
    %743 = vmatpush.msra.mxu0 %v527
    %744 = vmatpush.msra.mxu0 %v526
    %745 = vmatpush.msra.mxu0 %v525
    %746 = vmatpush.msra.mxu0 %v524
    %747 = vmatpush.msra.mxu0 %v523
    %748 = vmatpush.msra.mxu0 %v522
    %749 = vmatpush.msra.mxu0 %v521
    %750 = vmatpush.msra.mxu0 %v520
    %751 = vmatpush.msra.mxu0 %v519
    %752 = vmatmul.f32.gmra.mxu0 %v424
    %v753 = vpop.f32.mrf.mxu0
    %v754 = vadd.f32 %v731, %v753
    %755 = vmatmul.f32.gmra.mxu0 %v426
    %v756 = vpop.f32.mrf.mxu0
    %v757 = vadd.f32 %v734, %v756
    %758 = vdwg.mxu0
    %759 = vmatpush.msra.mxu0 %v550
    %760 = vmatpush.msra.mxu0 %v549
    %761 = vmatpush.msra.mxu0 %v548
    %762 = vmatpush.msra.mxu0 %v547
    %763 = vmatpush.msra.mxu0 %v546
    %764 = vmatpush.msra.mxu0 %v545
    %765 = vmatpush.msra.mxu0 %v544
    %766 = vmatpush.msra.mxu0 %v543
    %767 = vmatpush.msra.mxu0 %v542
    %768 = vmatpush.msra.mxu0 %v541
    %769 = vmatpush.msra.mxu0 %v540
    %770 = vmatpush.msra.mxu0 %v539
    %771 = vmatpush.msra.mxu0 %v538
    %772 = vmatpush.msra.mxu0 %v537
    %773 = vmatpush.msra.mxu0 %v536
    %774 = vmatpush.msra.mxu0 %v535
    %775 = vmatmul.f32.gmra.mxu0 %v432
    %v776 = vpop.f32.mrf.mxu0
    %v777 = vadd.f32 %v754, %v776
    %778 = vmatmul.f32.gmra.mxu0 %v434
    %v779 = vpop.f32.mrf.mxu0
    %v780 = vadd.f32 %v757, %v779
    %781 = vdwg.mxu0
    %782 = vmatpush.msra.mxu0 %v566
    %783 = vmatpush.msra.mxu0 %v565
    %784 = vmatpush.msra.mxu0 %v564
    %785 = vmatpush.msra.mxu0 %v563
    %786 = vmatpush.msra.mxu0 %v562
    %787 = vmatpush.msra.mxu0 %v561
    %788 = vmatpush.msra.mxu0 %v560
    %789 = vmatpush.msra.mxu0 %v559
    %790 = vmatpush.msra.mxu0 %v558
    %791 = vmatpush.msra.mxu0 %v557
    %792 = vmatpush.msra.mxu0 %v556
    %793 = vmatpush.msra.mxu0 %v555
    %794 = vmatpush.msra.mxu0 %v554
    %795 = vmatpush.msra.mxu0 %v553
    %796 = vmatpush.msra.mxu0 %v552
    %797 = vmatpush.msra.mxu0 %v551
    %798 = vmatmul.f32.gmra.mxu0 %v440
    %v799 = vpop.f32.mrf.mxu0
    %v800 = vadd.f32 %v777, %v799
    %801 = vmatmul.f32.gmra.mxu0 %v442
    %v802 = vpop.f32.mrf.mxu0
    %v803 = vadd.f32 %v780, %v802
    %804 = vdwg.mxu0
    %805 = vmatpush.msra.mxu0 %v582
    %806 = vmatpush.msra.mxu0 %v581
    %807 = vmatpush.msra.mxu0 %v580
    %808 = vmatpush.msra.mxu0 %v579
    %809 = vmatpush.msra.mxu0 %v578
    %810 = vmatpush.msra.mxu0 %v577
    %811 = vmatpush.msra.mxu0 %v576
    %812 = vmatpush.msra.mxu0 %v575
    %813 = vmatpush.msra.mxu0 %v574
    %814 = vmatpush.msra.mxu0 %v573
    %815 = vmatpush.msra.mxu0 %v572
    %816 = vmatpush.msra.mxu0 %v571
    %817 = vmatpush.msra.mxu0 %v570
    %818 = vmatpush.msra.mxu0 %v569
    %819 = vmatpush.msra.mxu0 %v568
    %820 = vmatpush.msra.mxu0 %v567
    %821 = vmatmul.f32.gmra.mxu0 %v448
    %v822 = vpop.f32.mrf.mxu0
    %v823 = vadd.f32 %v800, %v822
    %824 = vmatmul.f32.gmra.mxu0 %v450
    %v825 = vpop.f32.mrf.mxu0
    %v826 = vadd.f32 %v803, %v825
    %827 = vdwg.mxu0
    %828 = vmatpush.msra.mxu0 %v598
    %829 = vmatpush.msra.mxu0 %v597
    %830 = vmatpush.msra.mxu0 %v596
    %831 = vmatpush.msra.mxu0 %v595
    %832 = vmatpush.msra.mxu0 %v594
    %833 = vmatpush.msra.mxu0 %v593
    %834 = vmatpush.msra.mxu0 %v592
    %835 = vmatpush.msra.mxu0 %v591
    %836 = vmatpush.msra.mxu0 %v590
    %837 = vmatpush.msra.mxu0 %v589
    %838 = vmatpush.msra.mxu0 %v588
    %839 = vmatpush.msra.mxu0 %v587
    %840 = vmatpush.msra.mxu0 %v586
    %841 = vmatpush.msra.mxu0 %v585
    %842 = vmatpush.msra.mxu0 %v584
    %843 = vmatpush.msra.mxu0 %v583
    %844 = vmatmul.f32.gmra.mxu0 %v456
    %v845 = vpop.f32.mrf.mxu0
    %v846 = vadd.f32 %v823, %v845
    %847 = vmatmul.f32.gmra.mxu0 %v458
    %v848 = vpop.f32.mrf.mxu0
    %v849 = vadd.f32 %v826, %v848
    %850 = vdwg.mxu0
    %851 = vmatpush.msra.mxu0 %v614
    %852 = vmatpush.msra.mxu0 %v613
    %853 = vmatpush.msra.mxu0 %v612
    %854 = vmatpush.msra.mxu0 %v611
    %855 = vmatpush.msra.mxu0 %v610
    %856 = vmatpush.msra.mxu0 %v609
    %857 = vmatpush.msra.mxu0 %v608
    %858 = vmatpush.msra.mxu0 %v607
    %859 = vmatpush.msra.mxu0 %v606
    %860 = vmatpush.msra.mxu0 %v605
    %861 = vmatpush.msra.mxu0 %v604
    %862 = vmatpush.msra.mxu0 %v603
    %863 = vmatpush.msra.mxu0 %v602
    %864 = vmatpush.msra.mxu0 %v601
    %865 = vmatpush.msra.mxu0 %v600
    %866 = vmatpush.msra.mxu0 %v599
    %867 = vmatmul.f32.gmra.mxu0 %v398
    %v868 = vpop.f32.mrf.mxu0
    %v869 = vadd.f32 %v846, %v868
    %870 = vmatmul.f32.gmra.mxu0 %v403
    %v871 = vpop.f32.mrf.mxu0
    %v872 = vadd.f32 %v849, %v871
    %873 = vdwg.mxu0
    %874 = vmatpush.msra.mxu0 %v630
    %875 = vmatpush.msra.mxu0 %v629
    %876 = vmatpush.msra.mxu0 %v628
    %877 = vmatpush.msra.mxu0 %v627
    %878 = vmatpush.msra.mxu0 %v626
    %879 = vmatpush.msra.mxu0 %v625
    %880 = vmatpush.msra.mxu0 %v624
    %881 = vmatpush.msra.mxu0 %v623
    %882 = vmatpush.msra.mxu0 %v622
    %883 = vmatpush.msra.mxu0 %v621
    %884 = vmatpush.msra.mxu0 %v620
    %885 = vmatpush.msra.mxu0 %v619
    %886 = vmatpush.msra.mxu0 %v618
    %887 = vmatpush.msra.mxu0 %v617
    %888 = vmatpush.msra.mxu0 %v616
    %889 = vmatpush.msra.mxu0 %v615
    %890 = vmatmul.f32.gmra.mxu0 %v411
    %v891 = vpop.f32.mrf.mxu0
    %v892 = vadd.f32 %v869, %v891
    %893 = vmatmul.f32.gmra.mxu0 %v463
    %v894 = vpop.f32.mrf.mxu0
    %v895 = vadd.f32 %v872, %v894
    %896 = vdwg.mxu0
    %897 = vmatpush.msra.mxu0 %v646
    %898 = vmatpush.msra.mxu0 %v645
    %899 = vmatpush.msra.mxu0 %v644
    %900 = vmatpush.msra.mxu0 %v643
    %901 = vmatpush.msra.mxu0 %v642
    %902 = vmatpush.msra.mxu0 %v641
    %903 = vmatpush.msra.mxu0 %v640
    %904 = vmatpush.msra.mxu0 %v639
    %905 = vmatpush.msra.mxu0 %v638
    %906 = vmatpush.msra.mxu0 %v637
    %907 = vmatpush.msra.mxu0 %v636
    %908 = vmatpush.msra.mxu0 %v635
    %909 = vmatpush.msra.mxu0 %v634
    %910 = vmatpush.msra.mxu0 %v633
    %911 = vmatpush.msra.mxu0 %v632
    %912 = vmatpush.msra.mxu0 %v631
    %913 = vmatmul.f32.gmra.mxu0 %v419
    %v914 = vpop.f32.mrf.mxu0
    %v915 = vadd.f32 %v892, %v914
    %916 = vmatmul.f32.gmra.mxu0 %v466
    %v917 = vpop.f32.mrf.mxu0
    %v918 = vadd.f32 %v895, %v917
    %919 = vdwg.mxu0
    %920 = vmatpush.msra.mxu0 %v662
    %921 = vmatpush.msra.mxu0 %v661
    %922 = vmatpush.msra.mxu0 %v660
    %923 = vmatpush.msra.mxu0 %v659
    %924 = vmatpush.msra.mxu0 %v658
    %925 = vmatpush.msra.mxu0 %v657
    %926 = vmatpush.msra.mxu0 %v656
    %927 = vmatpush.msra.mxu0 %v655
    %928 = vmatpush.msra.mxu0 %v654
    %929 = vmatpush.msra.mxu0 %v653
    %930 = vmatpush.msra.mxu0 %v652
    %931 = vmatpush.msra.mxu0 %v651
    %932 = vmatpush.msra.mxu0 %v650
    %933 = vmatpush.msra.mxu0 %v649
    %934 = vmatpush.msra.mxu0 %v648
    %935 = vmatpush.msra.mxu0 %v647
    %936 = vmatmul.f32.gmra.mxu0 %v426
    %v937 = vpop.f32.mrf.mxu0
    %v938 = vadd.f32 %v915, %v937
    %939 = vmatmul.f32.gmra.mxu0 %v469
    %v940 = vpop.f32.mrf.mxu0
    %v941 = vadd.f32 %v918, %v940
    %942 = vdwg.mxu0
    %v943 = vmax.f32 %v938, 0.0
    %v944 = vmax.f32 %v941, 0.0
    %v945 = vadd.f32 %v943, %v944
    %v946 = vrot.slane %v945, 4
    %v947 = vadd.f32 %v945, %v946
    %v948 = vrot.slane %v947, 2
    %v949 = vadd.f32 %v947, %v948
    %v950 = vrot.slane %v949, 1
    %v951 = vadd.f32 %v949, %v950
    %v952 = vrcp.pop 16.0
    %v953 = vmul.f32 16.0, %v952
    %v954 = vsub.f32 1.0, %v953
    %v955 = vmul.f32 %v952, %v954
    %v956 = vadd.f32 %v952, %v955
    %vm957 = vweird.f32 %v952
    %v958 = vsel %vm957, %v952, %v956
    %v959 = vmul.f32 %v951, %v958
    %v960 = vld [vmem:[%s3] sm:$0xff]
    %v961 = vld [vmem:[%s3 + $0x8] sm:$0xff]
    %v962 = vld [vmem:[%s3 + $0x10] sm:$0xff]
    %v963 = vld [vmem:[%s3 + $0x18] sm:$0xff]
    %v964 = vld [vmem:[%s3 + $0x20] sm:$0xff]
    %v965 = vld [vmem:[%s3 + $0x28] sm:$0xff]
    %v966 = vld [vmem:[%s3 + $0x30] sm:$0xff]
    %v967 = vld [vmem:[%s3 + $0x38] sm:$0xff]
    %v968 = vld [vmem:[%s3 + $0x40] sm:$0xff]
    %v969 = vld [vmem:[%s3 + $0x48] sm:$0xff]
    %v970 = vld [vmem:[%s3 + $0x50] sm:$0xff]
    %v971 = vld [vmem:[%s3 + $0x58] sm:$0xff]
    %v972 = vld [vmem:[%s3 + $0x60] sm:$0xff]
    %v973 = vld [vmem:[%s3 + $0x68] sm:$0xff]
    %v974 = vld [vmem:[%s3 + $0x70] sm:$0xff]
    %v975 = vld [vmem:[%s3 + $0x78] sm:$0xff]
    %976 = vmatpush.msra.mxu0 %v975
    %977 = vmatpush.msra.mxu0 %v974
    %978 = vmatpush.msra.mxu0 %v973
    %979 = vmatpush.msra.mxu0 %v972
    %980 = vmatpush.msra.mxu0 %v971
    %981 = vmatpush.msra.mxu0 %v970
    %982 = vmatpush.msra.mxu0 %v969
    %983 = vmatpush.msra.mxu0 %v968
    %984 = vmatpush.msra.mxu0 %v967
    %985 = vmatpush.msra.mxu0 %v966
    %986 = vmatpush.msra.mxu0 %v965
    %987 = vmatpush.msra.mxu0 %v964
    %988 = vmatpush.msra.mxu0 %v963
    %989 = vmatpush.msra.mxu0 %v962
    %990 = vmatpush.msra.mxu0 %v961
    %991 = vmatpush.msra.mxu0 %v960
    %992 = vmatmul.f32.gmra.mxu0 %v959
    %v993 = vpop.f32.mrf.mxu0
    %v994 = vadd.f32 0.0, %v993
    %995 = vdwg.mxu0
    %v996 = vmax.f32 %v994, 0.0
    %v997 = vld [vmem:[#allocation8] sm:$0x7]
    %vm998 = vcmask 23552
    %v1000 = vsel %vm998, %v996, 0
    %v1003 = vsel %vm437, %v997, 0
    %1005 = vmatpush.msra.mxu0 0.0
    %1006 = vmatpush.msra.mxu0 0.0
    %1007 = vmatpush.msra.mxu0 0.0
    %1008 = vmatpush.msra.mxu0 0.0
    %1009 = vmatpush.msra.mxu0 0.0
    %1010 = vmatpush.msra.mxu0 0.0
    %1011 = vmatpush.msra.mxu0 0.0
    %1012 = vmatpush.msra.mxu0 0.0
    %1013 = vmatpush.msra.mxu0 0.0
    %1014 = vmatpush.msra.mxu0 0.0
    %1015 = vmatpush.msra.mxu0 0.0
    %1016 = vmatpush.msra.mxu0 0.0
    %1017 = vmatpush.msra.mxu0 0.0
    %1018 = vmatpush.msra.mxu0 0.0
    %1019 = vmatpush.msra.mxu0 0.0
    %1020 = vmatpush.msra.mxu0 %v1003
    %1021 = vmatmul.f32.gmra.mxu0 %v1000
    %v1022 = vpop.f32.mrf.mxu0
    %v1023 = vadd.f32 0.0, %v1022
    %1024 = vdwg.mxu0
    %v1025 = vxor.u32 %v1023, 2147483648
    %v1026 = vmul.f32 %v1025, 1.442695
    %v1027 = vpow.pop %v1026
    %v1028 = vadd.f32 %v1027, 1.0
    %v1029 = vrcp.pop %v1028
    %v1030 = vmul.f32 %v1028, %v1029
    %v1031 = vsub.f32 1.0, %v1030
    %v1032 = vmul.f32 %v1029, %v1031
    %v1033 = vadd.f32 %v1029, %v1032
    %vm1034 = vweird.f32 %v1028
    %vm1035 = vweird.f32 %v1029
    %vm1036 = vmor %vm1034, %vm1035
    %v1037 = vsel %vm1036, %v1029, %v1033
    %v1038 = vand.u32 2147483647, %v1028
    %vm1039 = vcmp.eq.f32.partialorder %v1038, 8.507059e+37
    %v1040 = vand.u32 %v1028, 2147483648
    %v1041 = vor.u32 1.1754944e-38, %v1040
    %v1042 = vsel %vm1039, %v1041, %v1037
    %v1043 = vmul.f32 1.0, %v1042
    %v1044 = vperm.slane %v1043, 0
    %v1045 = vmul.f32 %v943, %v1044
    %v1046 = vmul.f32 %v944, %v1044
    %v1049 = vrot.slane %v1045, 3
    %v1050 = vrot.slane %v1046, 3
    %v1051 = vsel %vm395, %v1049, %v1050
    %v1055 = vsel %vm395, 0.0, %v1049
    %v1056 = vsel %vm395, %v1050, 0.0
    %v1059 = vrot.slane %v1055, 1
    %v1060 = vrot.slane %v1051, 1
    %v1061 = vsel %vm406, %v1059, %v1060
    %v1062 = vrot.slane %v1056, 1
    %v1063 = vsel %vm406, %v1060, %v1062
    %v1066 = vrot.slane %v1055, 2
    %v1067 = vrot.slane %v1051, 2
    %v1068 = vsel %vm414, %v1066, %v1067
    %v1069 = vrot.slane %v1056, 2
    %v1070 = vsel %vm414, %v1067, %v1069
    %v1073 = vrot.slane %v1055, 3
    %v1074 = vrot.slane %v1051, 3
    %v1075 = vsel %vm395, %v1073, %v1074
    %v1076 = vrot.slane %v1056, 3
    %v1077 = vsel %vm395, %v1074, %v1076
    %v1080 = vrot.slane %v1055, 4
    %v1081 = vrot.slane %v1051, 4
    %v1082 = vsel %vm429, %v1080, %v1081
    %v1083 = vrot.slane %v1056, 4
    %v1084 = vsel %vm429, %v1081, %v1083
    %v1087 = vrot.slane %v1055, 5
    %v1088 = vrot.slane %v1051, 5
    %v1089 = vsel %vm437, %v1087, %v1088
    %v1090 = vrot.slane %v1056, 5
    %v1091 = vsel %vm437, %v1088, %v1090
    %v1094 = vrot.slane %v1055, 6
    %v1095 = vrot.slane %v1051, 6
    %v1096 = vsel %vm445, %v1094, %v1095
    %v1097 = vrot.slane %v1056, 6
    %v1098 = vsel %vm445, %v1095, %v1097
    %v1101 = vrot.slane %v1055, 7
    %v1102 = vrot.slane %v1051, 7
    %v1103 = vsel %vm453, %v1101, %v1102
    %v1104 = vrot.slane %v1056, 7
    %v1105 = vsel %vm453, %v1102, %v1104
    %v1108 = vsel %vm406, %v1062, %v462
    %v1110 = vsel %vm414, %v1069, %v465
    %v1112 = vsel %vm395, %v1076, %v468
    %v1114 = vld [vmem:[#allocation10] sm:$0xff]
    %v1115 = vld [vmem:[#allocation10 + $0x8] sm:$0xff]
    %v1116 = vld [vmem:[#allocation10 + $0x10] sm:$0xff]
    %v1117 = vld [vmem:[#allocation10 + $0x18] sm:$0xff]
    %v1118 = vld [vmem:[#allocation10 + $0x20] sm:$0xff]
    %v1119 = vld [vmem:[#allocation10 + $0x28] sm:$0xff]
    %v1120 = vld [vmem:[#allocation10 + $0x30] sm:$0xff]
    %v1121 = vld [vmem:[#allocation10 + $0x38] sm:$0xff]
    %v1122 = vld [vmem:[#allocation10 + $0x40] sm:$0xff]
    %v1123 = vld [vmem:[#allocation10 + $0x48] sm:$0xff]
    %v1124 = vld [vmem:[#allocation10 + $0x50] sm:$0xff]
    %v1125 = vld [vmem:[#allocation10 + $0x58] sm:$0xff]
    %v1126 = vld [vmem:[#allocation10 + $0x60] sm:$0xff]
    %v1127 = vld [vmem:[#allocation10 + $0x68] sm:$0xff]
    %v1128 = vld [vmem:[#allocation10 + $0x70] sm:$0xff]
    %v1129 = vld [vmem:[#allocation10 + $0x78] sm:$0xff]
    %v1130 = vld [vmem:[#allocation10 + $0x80] sm:$0xff]
    %v1131 = vld [vmem:[#allocation10 + $0x88] sm:$0xff]
    %v1132 = vld [vmem:[#allocation10 + $0x90] sm:$0xff]
    %v1133 = vld [vmem:[#allocation10 + $0x98] sm:$0xff]
    %v1134 = vld [vmem:[#allocation10 + $0xa0] sm:$0xff]
    %v1135 = vld [vmem:[#allocation10 + $0xa8] sm:$0xff]
    %v1136 = vld [vmem:[#allocation10 + $0xb0] sm:$0xff]
    %v1137 = vld [vmem:[#allocation10 + $0xb8] sm:$0xff]
    %v1138 = vld [vmem:[#allocation10 + $0xc0] sm:$0xff]
    %v1139 = vld [vmem:[#allocation10 + $0xc8] sm:$0xff]
    %v1140 = vld [vmem:[#allocation10 + $0xd0] sm:$0xff]
    %v1141 = vld [vmem:[#allocation10 + $0xd8] sm:$0xff]
    %v1142 = vld [vmem:[#allocation10 + $0xe0] sm:$0xff]
    %v1143 = vld [vmem:[#allocation10 + $0xe8] sm:$0xff]
    %v1144 = vld [vmem:[#allocation10 + $0xf0] sm:$0xff]
    %v1145 = vld [vmem:[#allocation10 + $0xf8] sm:$0xff]
    %v1146 = vld [vmem:[#allocation10 + $0x100] sm:$0xff]
    %v1147 = vld [vmem:[#allocation10 + $0x108] sm:$0xff]
    %v1148 = vld [vmem:[#allocation10 + $0x110] sm:$0xff]
    %v1149 = vld [vmem:[#allocation10 + $0x118] sm:$0xff]
    %v1150 = vld [vmem:[#allocation10 + $0x120] sm:$0xff]
    %v1151 = vld [vmem:[#allocation10 + $0x128] sm:$0xff]
    %v1152 = vld [vmem:[#allocation10 + $0x130] sm:$0xff]
    %v1153 = vld [vmem:[#allocation10 + $0x138] sm:$0xff]
    %v1154 = vld [vmem:[#allocation10 + $0x140] sm:$0xff]
    %v1155 = vld [vmem:[#allocation10 + $0x148] sm:$0xff]
    %v1156 = vld [vmem:[#allocation10 + $0x150] sm:$0xff]
    %v1157 = vld [vmem:[#allocation10 + $0x158] sm:$0xff]
    %v1158 = vld [vmem:[#allocation10 + $0x160] sm:$0xff]
    %v1159 = vld [vmem:[#allocation10 + $0x168] sm:$0xff]
    %v1160 = vld [vmem:[#allocation10 + $0x170] sm:$0xff]
    %v1161 = vld [vmem:[#allocation10 + $0x178] sm:$0xff]
    %v1162 = vld [vmem:[#allocation10 + $0x180] sm:$0xff]
    %v1163 = vld [vmem:[#allocation10 + $0x188] sm:$0xff]
    %v1164 = vld [vmem:[#allocation10 + $0x190] sm:$0xff]
    %v1165 = vld [vmem:[#allocation10 + $0x198] sm:$0xff]
    %v1166 = vld [vmem:[#allocation10 + $0x1a0] sm:$0xff]
    %v1167 = vld [vmem:[#allocation10 + $0x1a8] sm:$0xff]
    %v1168 = vld [vmem:[#allocation10 + $0x1b0] sm:$0xff]
    %v1169 = vld [vmem:[#allocation10 + $0x1b8] sm:$0xff]
    %v1170 = vld [vmem:[#allocation10 + $0x1c0] sm:$0xff]
    %v1171 = vld [vmem:[#allocation10 + $0x1c8] sm:$0xff]
    %v1172 = vld [vmem:[#allocation10 + $0x1d0] sm:$0xff]
    %v1173 = vld [vmem:[#allocation10 + $0x1d8] sm:$0xff]
    %v1174 = vld [vmem:[#allocation10 + $0x1e0] sm:$0xff]
    %v1175 = vld [vmem:[#allocation10 + $0x1e8] sm:$0xff]
    %v1176 = vld [vmem:[#allocation10 + $0x1f0] sm:$0xff]
    %v1177 = vld [vmem:[#allocation10 + $0x1f8] sm:$0xff]
    %v1178 = vld [vmem:[#allocation10 + $0x200] sm:$0xff]
    %v1179 = vld [vmem:[#allocation10 + $0x208] sm:$0xff]
    %v1180 = vld [vmem:[#allocation10 + $0x210] sm:$0xff]
    %v1181 = vld [vmem:[#allocation10 + $0x218] sm:$0xff]
    %v1182 = vld [vmem:[#allocation10 + $0x220] sm:$0xff]
    %v1183 = vld [vmem:[#allocation10 + $0x228] sm:$0xff]
    %v1184 = vld [vmem:[#allocation10 + $0x230] sm:$0xff]
    %v1185 = vld [vmem:[#allocation10 + $0x238] sm:$0xff]
    %v1186 = vld [vmem:[#allocation10 + $0x240] sm:$0xff]
    %v1187 = vld [vmem:[#allocation10 + $0x248] sm:$0xff]
    %v1188 = vld [vmem:[#allocation10 + $0x250] sm:$0xff]
    %v1189 = vld [vmem:[#allocation10 + $0x258] sm:$0xff]
    %v1190 = vld [vmem:[#allocation10 + $0x260] sm:$0xff]
    %v1191 = vld [vmem:[#allocation10 + $0x268] sm:$0xff]
    %v1192 = vld [vmem:[#allocation10 + $0x270] sm:$0xff]
    %v1193 = vld [vmem:[#allocation10 + $0x278] sm:$0xff]
    %v1194 = vld [vmem:[#allocation10 + $0x280] sm:$0xff]
    %v1195 = vld [vmem:[#allocation10 + $0x288] sm:$0xff]
    %v1196 = vld [vmem:[#allocation10 + $0x290] sm:$0xff]
    %v1197 = vld [vmem:[#allocation10 + $0x298] sm:$0xff]
    %v1198 = vld [vmem:[#allocation10 + $0x2a0] sm:$0xff]
    %v1199 = vld [vmem:[#allocation10 + $0x2a8] sm:$0xff]
    %v1200 = vld [vmem:[#allocation10 + $0x2b0] sm:$0xff]
    %v1201 = vld [vmem:[#allocation10 + $0x2b8] sm:$0xff]
    %v1202 = vld [vmem:[#allocation10 + $0x2c0] sm:$0xff]
    %v1203 = vld [vmem:[#allocation10 + $0x2c8] sm:$0xff]
    %v1204 = vld [vmem:[#allocation10 + $0x2d0] sm:$0xff]
    %v1205 = vld [vmem:[#allocation10 + $0x2d8] sm:$0xff]
    %v1206 = vld [vmem:[#allocation10 + $0x2e0] sm:$0xff]
    %v1207 = vld [vmem:[#allocation10 + $0x2e8] sm:$0xff]
    %v1208 = vld [vmem:[#allocation10 + $0x2f0] sm:$0xff]
    %v1209 = vld [vmem:[#allocation10 + $0x2f8] sm:$0xff]
    %v1210 = vld [vmem:[#allocation10 + $0x300] sm:$0xff]
    %v1211 = vld [vmem:[#allocation10 + $0x308] sm:$0xff]
    %v1212 = vld [vmem:[#allocation10 + $0x310] sm:$0xff]
    %v1213 = vld [vmem:[#allocation10 + $0x318] sm:$0xff]
    %v1214 = vld [vmem:[#allocation10 + $0x320] sm:$0xff]
    %v1215 = vld [vmem:[#allocation10 + $0x328] sm:$0xff]
    %v1216 = vld [vmem:[#allocation10 + $0x330] sm:$0xff]
    %v1217 = vld [vmem:[#allocation10 + $0x338] sm:$0xff]
    %v1218 = vld [vmem:[#allocation10 + $0x340] sm:$0xff]
    %v1219 = vld [vmem:[#allocation10 + $0x348] sm:$0xff]
    %v1220 = vld [vmem:[#allocation10 + $0x350] sm:$0xff]
    %v1221 = vld [vmem:[#allocation10 + $0x358] sm:$0xff]
    %v1222 = vld [vmem:[#allocation10 + $0x360] sm:$0xff]
    %v1223 = vld [vmem:[#allocation10 + $0x368] sm:$0xff]
    %v1224 = vld [vmem:[#allocation10 + $0x370] sm:$0xff]
    %v1225 = vld [vmem:[#allocation10 + $0x378] sm:$0xff]
    %v1226 = vld [vmem:[#allocation10 + $0x380] sm:$0xff]
    %v1227 = vld [vmem:[#allocation10 + $0x388] sm:$0xff]
    %v1228 = vld [vmem:[#allocation10 + $0x390] sm:$0xff]
    %v1229 = vld [vmem:[#allocation10 + $0x398] sm:$0xff]
    %v1230 = vld [vmem:[#allocation10 + $0x3a0] sm:$0xff]
    %v1231 = vld [vmem:[#allocation10 + $0x3a8] sm:$0xff]
    %v1232 = vld [vmem:[#allocation10 + $0x3b0] sm:$0xff]
    %v1233 = vld [vmem:[#allocation10 + $0x3b8] sm:$0xff]
    %v1234 = vld [vmem:[#allocation10 + $0x3c0] sm:$0xff]
    %v1235 = vld [vmem:[#allocation10 + $0x3c8] sm:$0xff]
    %v1236 = vld [vmem:[#allocation10 + $0x3d0] sm:$0xff]
    %v1237 = vld [vmem:[#allocation10 + $0x3d8] sm:$0xff]
    %v1238 = vld [vmem:[#allocation10 + $0x3e0] sm:$0xff]
    %v1239 = vld [vmem:[#allocation10 + $0x3e8] sm:$0xff]
    %v1240 = vld [vmem:[#allocation10 + $0x3f0] sm:$0xff]
    %v1241 = vld [vmem:[#allocation10 + $0x3f8] sm:$0xff]
    %v1242 = vld [vmem:[#allocation10 + $0x400] sm:$0xff]
    %v1243 = vld [vmem:[#allocation10 + $0x408] sm:$0xff]
    %v1244 = vld [vmem:[#allocation10 + $0x410] sm:$0xff]
    %v1245 = vld [vmem:[#allocation10 + $0x418] sm:$0xff]
    %v1246 = vld [vmem:[#allocation10 + $0x420] sm:$0xff]
    %v1247 = vld [vmem:[#allocation10 + $0x428] sm:$0xff]
    %v1248 = vld [vmem:[#allocation10 + $0x430] sm:$0xff]
    %v1249 = vld [vmem:[#allocation10 + $0x438] sm:$0xff]
    %v1250 = vld [vmem:[#allocation10 + $0x440] sm:$0xff]
    %v1251 = vld [vmem:[#allocation10 + $0x448] sm:$0xff]
    %v1252 = vld [vmem:[#allocation10 + $0x450] sm:$0xff]
    %v1253 = vld [vmem:[#allocation10 + $0x458] sm:$0xff]
    %v1254 = vld [vmem:[#allocation10 + $0x460] sm:$0xff]
    %v1255 = vld [vmem:[#allocation10 + $0x468] sm:$0xff]
    %v1256 = vld [vmem:[#allocation10 + $0x470] sm:$0xff]
    %v1257 = vld [vmem:[#allocation10 + $0x478] sm:$0xff]
    %v1258 = vld [vmem:[#allocation10 + $0x480] sm:$0xff]
    %v1259 = vld [vmem:[#allocation10 + $0x488] sm:$0xff]
    %v1260 = vld [vmem:[#allocation10 + $0x490] sm:$0xff]
    %v1261 = vld [vmem:[#allocation10 + $0x498] sm:$0xff]
    %v1262 = vld [vmem:[#allocation10 + $0x4a0] sm:$0xff]
    %v1263 = vld [vmem:[#allocation10 + $0x4a8] sm:$0xff]
    %v1264 = vld [vmem:[#allocation10 + $0x4b0] sm:$0xff]
    %v1265 = vld [vmem:[#allocation10 + $0x4b8] sm:$0xff]
    %v1266 = vld [vmem:[#allocation10 + $0x4c0] sm:$0xff]
    %v1267 = vld [vmem:[#allocation10 + $0x4c8] sm:$0xff]
    %v1268 = vld [vmem:[#allocation10 + $0x4d0] sm:$0xff]
    %v1269 = vld [vmem:[#allocation10 + $0x4d8] sm:$0xff]
    %v1270 = vld [vmem:[#allocation10 + $0x4e0] sm:$0xff]
    %v1271 = vld [vmem:[#allocation10 + $0x4e8] sm:$0xff]
    %v1272 = vld [vmem:[#allocation10 + $0x4f0] sm:$0xff]
    %v1273 = vld [vmem:[#allocation10 + $0x4f8] sm:$0xff]
    %v1274 = vld [vmem:[#allocation10 + $0x500] sm:$0xff]
    %v1275 = vld [vmem:[#allocation10 + $0x508] sm:$0xff]
    %v1276 = vld [vmem:[#allocation10 + $0x510] sm:$0xff]
    %v1277 = vld [vmem:[#allocation10 + $0x518] sm:$0xff]
    %v1278 = vld [vmem:[#allocation10 + $0x520] sm:$0xff]
    %v1279 = vld [vmem:[#allocation10 + $0x528] sm:$0xff]
    %v1280 = vld [vmem:[#allocation10 + $0x530] sm:$0xff]
    %v1281 = vld [vmem:[#allocation10 + $0x538] sm:$0xff]
    %v1282 = vld [vmem:[#allocation10 + $0x540] sm:$0xff]
    %v1283 = vld [vmem:[#allocation10 + $0x548] sm:$0xff]
    %v1284 = vld [vmem:[#allocation10 + $0x550] sm:$0xff]
    %v1285 = vld [vmem:[#allocation10 + $0x558] sm:$0xff]
    %v1286 = vld [vmem:[#allocation10 + $0x560] sm:$0xff]
    %v1287 = vld [vmem:[#allocation10 + $0x568] sm:$0xff]
    %v1288 = vld [vmem:[#allocation10 + $0x570] sm:$0xff]
    %v1289 = vld [vmem:[#allocation10 + $0x578] sm:$0xff]
    %v1290 = vld [vmem:[#allocation10 + $0x580] sm:$0xff]
    %v1291 = vld [vmem:[#allocation10 + $0x588] sm:$0xff]
    %v1292 = vld [vmem:[#allocation10 + $0x590] sm:$0xff]
    %v1293 = vld [vmem:[#allocation10 + $0x598] sm:$0xff]
    %v1294 = vld [vmem:[#allocation10 + $0x5a0] sm:$0xff]
    %v1295 = vld [vmem:[#allocation10 + $0x5a8] sm:$0xff]
    %v1296 = vld [vmem:[#allocation10 + $0x5b0] sm:$0xff]
    %v1297 = vld [vmem:[#allocation10 + $0x5b8] sm:$0xff]
    %v1298 = vld [vmem:[#allocation10 + $0x5c0] sm:$0xff]
    %v1299 = vld [vmem:[#allocation10 + $0x5c8] sm:$0xff]
    %v1300 = vld [vmem:[#allocation10 + $0x5d0] sm:$0xff]
    %v1301 = vld [vmem:[#allocation10 + $0x5d8] sm:$0xff]
    %v1302 = vld [vmem:[#allocation10 + $0x5e0] sm:$0xff]
    %v1303 = vld [vmem:[#allocation10 + $0x5e8] sm:$0xff]
    %v1304 = vld [vmem:[#allocation10 + $0x5f0] sm:$0xff]
    %v1305 = vld [vmem:[#allocation10 + $0x5f8] sm:$0xff]
    %v1306 = vld [vmem:[#allocation11] sm:$0x1]
    %v1308 = vperm.slane %v1306, 0
    %1310 = vmatpush.msra.mxu0 %v1129
    %1311 = vmatpush.msra.mxu0 %v1128
    %1312 = vmatpush.msra.mxu0 %v1127
    %1313 = vmatpush.msra.mxu0 %v1126
    %1314 = vmatpush.msra.mxu0 %v1125
    %1315 = vmatpush.msra.mxu0 %v1124
    %1316 = vmatpush.msra.mxu0 %v1123
    %1317 = vmatpush.msra.mxu0 %v1122
    %1318 = vmatpush.msra.mxu0 %v1121
    %1319 = vmatpush.msra.mxu0 %v1120
    %1320 = vmatpush.msra.mxu0 %v1119
    %1321 = vmatpush.msra.mxu0 %v1118
    %1322 = vmatpush.msra.mxu0 %v1117
    %1323 = vmatpush.msra.mxu0 %v1116
    %1324 = vmatpush.msra.mxu0 %v1115
    %1325 = vmatpush.msra.mxu0 %v1114
    %1326 = vmatmul.f32.gmra.mxu0 %v1055
    %v1327 = vpop.f32.mrf.mxu0
    %v1328 = vadd.f32 %v1308, %v1327
    %1329 = vmatmul.f32.gmra.mxu0 %v1051
    %v1330 = vpop.f32.mrf.mxu0
    %v1331 = vadd.f32 %v1308, %v1330
    %1332 = vdwg.mxu0
    %1333 = vmatpush.msra.mxu0 %v1145
    %1334 = vmatpush.msra.mxu0 %v1144
    %1335 = vmatpush.msra.mxu0 %v1143
    %1336 = vmatpush.msra.mxu0 %v1142
    %1337 = vmatpush.msra.mxu0 %v1141
    %1338 = vmatpush.msra.mxu0 %v1140
    %1339 = vmatpush.msra.mxu0 %v1139
    %1340 = vmatpush.msra.mxu0 %v1138
    %1341 = vmatpush.msra.mxu0 %v1137
    %1342 = vmatpush.msra.mxu0 %v1136
    %1343 = vmatpush.msra.mxu0 %v1135
    %1344 = vmatpush.msra.mxu0 %v1134
    %1345 = vmatpush.msra.mxu0 %v1133
    %1346 = vmatpush.msra.mxu0 %v1132
    %1347 = vmatpush.msra.mxu0 %v1131
    %1348 = vmatpush.msra.mxu0 %v1130
    %1349 = vmatmul.f32.gmra.mxu0 %v1061
    %v1350 = vpop.f32.mrf.mxu0
    %v1351 = vadd.f32 %v1328, %v1350
    %1352 = vmatmul.f32.gmra.mxu0 %v1063
    %v1353 = vpop.f32.mrf.mxu0
    %v1354 = vadd.f32 %v1331, %v1353
    %1355 = vdwg.mxu0
    %1356 = vmatpush.msra.mxu0 %v1161
    %1357 = vmatpush.msra.mxu0 %v1160
    %1358 = vmatpush.msra.mxu0 %v1159
    %1359 = vmatpush.msra.mxu0 %v1158
    %1360 = vmatpush.msra.mxu0 %v1157
    %1361 = vmatpush.msra.mxu0 %v1156
    %1362 = vmatpush.msra.mxu0 %v1155
    %1363 = vmatpush.msra.mxu0 %v1154
    %1364 = vmatpush.msra.mxu0 %v1153
    %1365 = vmatpush.msra.mxu0 %v1152
    %1366 = vmatpush.msra.mxu0 %v1151
    %1367 = vmatpush.msra.mxu0 %v1150
    %1368 = vmatpush.msra.mxu0 %v1149
    %1369 = vmatpush.msra.mxu0 %v1148
    %1370 = vmatpush.msra.mxu0 %v1147
    %1371 = vmatpush.msra.mxu0 %v1146
    %1372 = vmatmul.f32.gmra.mxu0 %v1068
    %v1373 = vpop.f32.mrf.mxu0
    %v1374 = vadd.f32 %v1351, %v1373
    %1375 = vmatmul.f32.gmra.mxu0 %v1070
    %v1376 = vpop.f32.mrf.mxu0
    %v1377 = vadd.f32 %v1354, %v1376
    %1378 = vdwg.mxu0
    %1379 = vmatpush.msra.mxu0 %v1177
    %1380 = vmatpush.msra.mxu0 %v1176
    %1381 = vmatpush.msra.mxu0 %v1175
    %1382 = vmatpush.msra.mxu0 %v1174
    %1383 = vmatpush.msra.mxu0 %v1173
    %1384 = vmatpush.msra.mxu0 %v1172
    %1385 = vmatpush.msra.mxu0 %v1171
    %1386 = vmatpush.msra.mxu0 %v1170
    %1387 = vmatpush.msra.mxu0 %v1169
    %1388 = vmatpush.msra.mxu0 %v1168
    %1389 = vmatpush.msra.mxu0 %v1167
    %1390 = vmatpush.msra.mxu0 %v1166
    %1391 = vmatpush.msra.mxu0 %v1165
    %1392 = vmatpush.msra.mxu0 %v1164
    %1393 = vmatpush.msra.mxu0 %v1163
    %1394 = vmatpush.msra.mxu0 %v1162
    %1395 = vmatmul.f32.gmra.mxu0 %v1075
    %v1396 = vpop.f32.mrf.mxu0
    %v1397 = vadd.f32 %v1374, %v1396
    %1398 = vmatmul.f32.gmra.mxu0 %v1077
    %v1399 = vpop.f32.mrf.mxu0
    %v1400 = vadd.f32 %v1377, %v1399
    %1401 = vdwg.mxu0
    %1402 = vmatpush.msra.mxu0 %v1193
    %1403 = vmatpush.msra.mxu0 %v1192
    %1404 = vmatpush.msra.mxu0 %v1191
    %1405 = vmatpush.msra.mxu0 %v1190
    %1406 = vmatpush.msra.mxu0 %v1189
    %1407 = vmatpush.msra.mxu0 %v1188
    %1408 = vmatpush.msra.mxu0 %v1187
    %1409 = vmatpush.msra.mxu0 %v1186
    %1410 = vmatpush.msra.mxu0 %v1185
    %1411 = vmatpush.msra.mxu0 %v1184
    %1412 = vmatpush.msra.mxu0 %v1183
    %1413 = vmatpush.msra.mxu0 %v1182
    %1414 = vmatpush.msra.mxu0 %v1181
    %1415 = vmatpush.msra.mxu0 %v1180
    %1416 = vmatpush.msra.mxu0 %v1179
    %1417 = vmatpush.msra.mxu0 %v1178
    %1418 = vmatmul.f32.gmra.mxu0 %v1082
    %v1419 = vpop.f32.mrf.mxu0
    %v1420 = vadd.f32 %v1397, %v1419
    %1421 = vmatmul.f32.gmra.mxu0 %v1084
    %v1422 = vpop.f32.mrf.mxu0
    %v1423 = vadd.f32 %v1400, %v1422
    %1424 = vdwg.mxu0
    %1425 = vmatpush.msra.mxu0 %v1209
    %1426 = vmatpush.msra.mxu0 %v1208
    %1427 = vmatpush.msra.mxu0 %v1207
    %1428 = vmatpush.msra.mxu0 %v1206
    %1429 = vmatpush.msra.mxu0 %v1205
    %1430 = vmatpush.msra.mxu0 %v1204
    %1431 = vmatpush.msra.mxu0 %v1203
    %1432 = vmatpush.msra.mxu0 %v1202
    %1433 = vmatpush.msra.mxu0 %v1201
    %1434 = vmatpush.msra.mxu0 %v1200
    %1435 = vmatpush.msra.mxu0 %v1199
    %1436 = vmatpush.msra.mxu0 %v1198
    %1437 = vmatpush.msra.mxu0 %v1197
    %1438 = vmatpush.msra.mxu0 %v1196
    %1439 = vmatpush.msra.mxu0 %v1195
    %1440 = vmatpush.msra.mxu0 %v1194
    %1441 = vmatmul.f32.gmra.mxu0 %v1089
    %v1442 = vpop.f32.mrf.mxu0
    %v1443 = vadd.f32 %v1420, %v1442
    %1444 = vmatmul.f32.gmra.mxu0 %v1091
    %v1445 = vpop.f32.mrf.mxu0
    %v1446 = vadd.f32 %v1423, %v1445
    %1447 = vdwg.mxu0
    %1448 = vmatpush.msra.mxu0 %v1225
    %1449 = vmatpush.msra.mxu0 %v1224
    %1450 = vmatpush.msra.mxu0 %v1223
    %1451 = vmatpush.msra.mxu0 %v1222
    %1452 = vmatpush.msra.mxu0 %v1221
    %1453 = vmatpush.msra.mxu0 %v1220
    %1454 = vmatpush.msra.mxu0 %v1219
    %1455 = vmatpush.msra.mxu0 %v1218
    %1456 = vmatpush.msra.mxu0 %v1217
    %1457 = vmatpush.msra.mxu0 %v1216
    %1458 = vmatpush.msra.mxu0 %v1215
    %1459 = vmatpush.msra.mxu0 %v1214
    %1460 = vmatpush.msra.mxu0 %v1213
    %1461 = vmatpush.msra.mxu0 %v1212
    %1462 = vmatpush.msra.mxu0 %v1211
    %1463 = vmatpush.msra.mxu0 %v1210
    %1464 = vmatmul.f32.gmra.mxu0 %v1096
    %v1465 = vpop.f32.mrf.mxu0
    %v1466 = vadd.f32 %v1443, %v1465
    %1467 = vmatmul.f32.gmra.mxu0 %v1098
    %v1468 = vpop.f32.mrf.mxu0
    %v1469 = vadd.f32 %v1446, %v1468
    %1470 = vdwg.mxu0
    %1471 = vmatpush.msra.mxu0 %v1241
    %1472 = vmatpush.msra.mxu0 %v1240
    %1473 = vmatpush.msra.mxu0 %v1239
    %1474 = vmatpush.msra.mxu0 %v1238
    %1475 = vmatpush.msra.mxu0 %v1237
    %1476 = vmatpush.msra.mxu0 %v1236
    %1477 = vmatpush.msra.mxu0 %v1235
    %1478 = vmatpush.msra.mxu0 %v1234
    %1479 = vmatpush.msra.mxu0 %v1233
    %1480 = vmatpush.msra.mxu0 %v1232
    %1481 = vmatpush.msra.mxu0 %v1231
    %1482 = vmatpush.msra.mxu0 %v1230
    %1483 = vmatpush.msra.mxu0 %v1229
    %1484 = vmatpush.msra.mxu0 %v1228
    %1485 = vmatpush.msra.mxu0 %v1227
    %1486 = vmatpush.msra.mxu0 %v1226
    %1487 = vmatmul.f32.gmra.mxu0 %v1103
    %v1488 = vpop.f32.mrf.mxu0
    %v1489 = vadd.f32 %v1466, %v1488
    %1490 = vmatmul.f32.gmra.mxu0 %v1105
    %v1491 = vpop.f32.mrf.mxu0
    %v1492 = vadd.f32 %v1469, %v1491
    %1493 = vdwg.mxu0
    %1494 = vmatpush.msra.mxu0 %v1257
    %1495 = vmatpush.msra.mxu0 %v1256
    %1496 = vmatpush.msra.mxu0 %v1255
    %1497 = vmatpush.msra.mxu0 %v1254
    %1498 = vmatpush.msra.mxu0 %v1253
    %1499 = vmatpush.msra.mxu0 %v1252
    %1500 = vmatpush.msra.mxu0 %v1251
    %1501 = vmatpush.msra.mxu0 %v1250
    %1502 = vmatpush.msra.mxu0 %v1249
    %1503 = vmatpush.msra.mxu0 %v1248
    %1504 = vmatpush.msra.mxu0 %v1247
    %1505 = vmatpush.msra.mxu0 %v1246
    %1506 = vmatpush.msra.mxu0 %v1245
    %1507 = vmatpush.msra.mxu0 %v1244
    %1508 = vmatpush.msra.mxu0 %v1243
    %1509 = vmatpush.msra.mxu0 %v1242
    %1510 = vmatmul.f32.gmra.mxu0 %v1051
    %v1511 = vpop.f32.mrf.mxu0
    %v1512 = vadd.f32 %v1489, %v1511
    %1513 = vmatmul.f32.gmra.mxu0 %v1056
    %v1514 = vpop.f32.mrf.mxu0
    %v1515 = vadd.f32 %v1492, %v1514
    %1516 = vdwg.mxu0
    %1517 = vmatpush.msra.mxu0 %v1273
    %1518 = vmatpush.msra.mxu0 %v1272
    %1519 = vmatpush.msra.mxu0 %v1271
    %1520 = vmatpush.msra.mxu0 %v1270
    %1521 = vmatpush.msra.mxu0 %v1269
    %1522 = vmatpush.msra.mxu0 %v1268
    %1523 = vmatpush.msra.mxu0 %v1267
    %1524 = vmatpush.msra.mxu0 %v1266
    %1525 = vmatpush.msra.mxu0 %v1265
    %1526 = vmatpush.msra.mxu0 %v1264
    %1527 = vmatpush.msra.mxu0 %v1263
    %1528 = vmatpush.msra.mxu0 %v1262
    %1529 = vmatpush.msra.mxu0 %v1261
    %1530 = vmatpush.msra.mxu0 %v1260
    %1531 = vmatpush.msra.mxu0 %v1259
    %1532 = vmatpush.msra.mxu0 %v1258
    %1533 = vmatmul.f32.gmra.mxu0 %v1063
    %v1534 = vpop.f32.mrf.mxu0
    %v1535 = vadd.f32 %v1512, %v1534
    %1536 = vmatmul.f32.gmra.mxu0 %v1108
    %v1537 = vpop.f32.mrf.mxu0
    %v1538 = vadd.f32 %v1515, %v1537
    %1539 = vdwg.mxu0
    %1540 = vmatpush.msra.mxu0 %v1289
    %1541 = vmatpush.msra.mxu0 %v1288
    %1542 = vmatpush.msra.mxu0 %v1287
    %1543 = vmatpush.msra.mxu0 %v1286
    %1544 = vmatpush.msra.mxu0 %v1285
    %1545 = vmatpush.msra.mxu0 %v1284
    %1546 = vmatpush.msra.mxu0 %v1283
    %1547 = vmatpush.msra.mxu0 %v1282
    %1548 = vmatpush.msra.mxu0 %v1281
    %1549 = vmatpush.msra.mxu0 %v1280
    %1550 = vmatpush.msra.mxu0 %v1279
    %1551 = vmatpush.msra.mxu0 %v1278
    %1552 = vmatpush.msra.mxu0 %v1277
    %1553 = vmatpush.msra.mxu0 %v1276
    %1554 = vmatpush.msra.mxu0 %v1275
    %1555 = vmatpush.msra.mxu0 %v1274
    %1556 = vmatmul.f32.gmra.mxu0 %v1070
    %v1557 = vpop.f32.mrf.mxu0
    %v1558 = vadd.f32 %v1535, %v1557
    %1559 = vmatmul.f32.gmra.mxu0 %v1110
    %v1560 = vpop.f32.mrf.mxu0
    %v1561 = vadd.f32 %v1538, %v1560
    %1562 = vdwg.mxu0
    %1563 = vmatpush.msra.mxu0 %v1305
    %1564 = vmatpush.msra.mxu0 %v1304
    %1565 = vmatpush.msra.mxu0 %v1303
    %1566 = vmatpush.msra.mxu0 %v1302
    %1567 = vmatpush.msra.mxu0 %v1301
    %1568 = vmatpush.msra.mxu0 %v1300
    %1569 = vmatpush.msra.mxu0 %v1299
    %1570 = vmatpush.msra.mxu0 %v1298
    %1571 = vmatpush.msra.mxu0 %v1297
    %1572 = vmatpush.msra.mxu0 %v1296
    %1573 = vmatpush.msra.mxu0 %v1295
    %1574 = vmatpush.msra.mxu0 %v1294
    %1575 = vmatpush.msra.mxu0 %v1293
    %1576 = vmatpush.msra.mxu0 %v1292
    %1577 = vmatpush.msra.mxu0 %v1291
    %1578 = vmatpush.msra.mxu0 %v1290
    %1579 = vmatmul.f32.gmra.mxu0 %v1077
    %v1580 = vpop.f32.mrf.mxu0
    %v1581 = vadd.f32 %v1558, %v1580
    %1582 = vmatmul.f32.gmra.mxu0 %v1112
    %v1583 = vpop.f32.mrf.mxu0
    %v1584 = vadd.f32 %v1561, %v1583
    %1585 = vdwg.mxu0
    %v1586 = vmax.f32 %v1581, 0.0
    %v1587 = vmax.f32 %v1584, 0.0
    %v1588 = vadd.f32 %v1586, %v1587
    %v1589 = vrot.slane %v1588, 4
    %v1590 = vadd.f32 %v1588, %v1589
    %v1591 = vrot.slane %v1590, 2
    %v1592 = vadd.f32 %v1590, %v1591
    %v1593 = vrot.slane %v1592, 1
    %v1594 = vadd.f32 %v1592, %v1593
    %v1595 = vmul.f32 %v1594, %v958
    %v1596 = vld [vmem:[%s7] sm:$0xff]
    %v1597 = vld [vmem:[%s7 + $0x8] sm:$0xff]
    %v1598 = vld [vmem:[%s7 + $0x10] sm:$0xff]
    %v1599 = vld [vmem:[%s7 + $0x18] sm:$0xff]
    %v1600 = vld [vmem:[%s7 + $0x20] sm:$0xff]
    %v1601 = vld [vmem:[%s7 + $0x28] sm:$0xff]
    %v1602 = vld [vmem:[%s7 + $0x30] sm:$0xff]
    %v1603 = vld [vmem:[%s7 + $0x38] sm:$0xff]
    %v1604 = vld [vmem:[%s7 + $0x40] sm:$0xff]
    %v1605 = vld [vmem:[%s7 + $0x48] sm:$0xff]
    %v1606 = vld [vmem:[%s7 + $0x50] sm:$0xff]
    %v1607 = vld [vmem:[%s7 + $0x58] sm:$0xff]
    %v1608 = vld [vmem:[%s7 + $0x60] sm:$0xff]
    %v1609 = vld [vmem:[%s7 + $0x68] sm:$0xff]
    %v1610 = vld [vmem:[%s7 + $0x70] sm:$0xff]
    %v1611 = vld [vmem:[%s7 + $0x78] sm:$0xff]
    %1612 = vmatpush.msra.mxu0 %v1611
    %1613 = vmatpush.msra.mxu0 %v1610
    %1614 = vmatpush.msra.mxu0 %v1609
    %1615 = vmatpush.msra.mxu0 %v1608
    %1616 = vmatpush.msra.mxu0 %v1607
    %1617 = vmatpush.msra.mxu0 %v1606
    %1618 = vmatpush.msra.mxu0 %v1605
    %1619 = vmatpush.msra.mxu0 %v1604
    %1620 = vmatpush.msra.mxu0 %v1603
    %1621 = vmatpush.msra.mxu0 %v1602
    %1622 = vmatpush.msra.mxu0 %v1601
    %1623 = vmatpush.msra.mxu0 %v1600
    %1624 = vmatpush.msra.mxu0 %v1599
    %1625 = vmatpush.msra.mxu0 %v1598
    %1626 = vmatpush.msra.mxu0 %v1597
    %1627 = vmatpush.msra.mxu0 %v1596
    %1628 = vmatmul.f32.gmra.mxu0 %v1595
    %v1629 = vpop.f32.mrf.mxu0
    %v1630 = vadd.f32 0.0, %v1629
    %1631 = vdwg.mxu0
    %v1632 = vmax.f32 %v1630, 0.0
    %v1633 = vld [vmem:[#allocation13] sm:$0x7]
    %v1635 = vsel %vm998, %v1632, 0
    %v1638 = vsel %vm437, %v1633, 0
    %1640 = vmatpush.msra.mxu0 0.0
    %1641 = vmatpush.msra.mxu0 0.0
    %1642 = vmatpush.msra.mxu0 0.0
    %1643 = vmatpush.msra.mxu0 0.0
    %1644 = vmatpush.msra.mxu0 0.0
    %1645 = vmatpush.msra.mxu0 0.0
    %1646 = vmatpush.msra.mxu0 0.0
    %1647 = vmatpush.msra.mxu0 0.0
    %1648 = vmatpush.msra.mxu0 0.0
    %1649 = vmatpush.msra.mxu0 0.0
    %1650 = vmatpush.msra.mxu0 0.0
    %1651 = vmatpush.msra.mxu0 0.0
    %1652 = vmatpush.msra.mxu0 0.0
    %1653 = vmatpush.msra.mxu0 0.0
    %1654 = vmatpush.msra.mxu0 0.0
    %1655 = vmatpush.msra.mxu0 %v1638
    %1656 = vmatmul.f32.gmra.mxu0 %v1635
    %v1657 = vpop.f32.mrf.mxu0
    %v1658 = vadd.f32 0.0, %v1657
    %1659 = vdwg.mxu0
    %v1660 = vxor.u32 %v1658, 2147483648
    %v1661 = vmul.f32 %v1660, 1.442695
    %v1662 = vpow.pop %v1661
    %v1663 = vadd.f32 %v1662, 1.0
    %v1664 = vrcp.pop %v1663
    %v1665 = vmul.f32 %v1663, %v1664
    %v1666 = vsub.f32 1.0, %v1665
    %v1667 = vmul.f32 %v1664, %v1666
    %v1668 = vadd.f32 %v1664, %v1667
    %vm1669 = vweird.f32 %v1663
    %vm1670 = vweird.f32 %v1664
    %vm1671 = vmor %vm1669, %vm1670
    %v1672 = vsel %vm1671, %v1664, %v1668
    %v1673 = vand.u32 2147483647, %v1663
    %vm1674 = vcmp.eq.f32.partialorder %v1673, 8.507059e+37
    %v1675 = vand.u32 %v1663, 2147483648
    %v1676 = vor.u32 1.1754944e-38, %v1675
    %v1677 = vsel %vm1674, %v1676, %v1672
    %v1678 = vmul.f32 1.0, %v1677
    %v1679 = vperm.slane %v1678, 0
    %v1680 = vmul.f32 %v1586, %v1679
    %v1681 = vmul.f32 %v1587, %v1679
    %v1684 = vrot.slane %v1680, 7
    %v1685 = vrot.slane %v1681, 7
    %v1686 = vsel %vm453, %v1684, %v1685
    %v1690 = vsel %vm453, 0.0, %v1684
    %v1691 = vsel %vm453, %v1685, 0.0
    %v1694 = vrot.slane %v1690, 1
    %v1695 = vrot.slane %v1686, 1
    %v1696 = vsel %vm406, %v1694, %v1695
    %v1697 = vrot.slane %v1691, 1
    %v1698 = vsel %vm406, %v1695, %v1697
    %v1701 = vmax.f32 %v1690, %v1696
    %v1702 = vmax.f32 %v1686, %v1698
    %v1703 = vrot.slane %v1690, 2
    %v1704 = vrot.slane %v1686, 2
    %v1705 = vsel %vm414, %v1703, %v1704
    %v1706 = vrot.slane %v1691, 2
    %v1707 = vsel %vm414, %v1704, %v1706
    %v1710 = vmax.f32 %v1701, %v1705
    %v1711 = vmax.f32 %v1702, %v1707
    %v1714 = vrot.slane %v1710, 2
    %v1715 = vrot.slane %v1710, 4
    %v1716 = vrot.slane %v1710, 6
    %v1717 = vrot.slane %v1711, 2
    %v1718 = vrot.slane %v1711, 4
    %v1719 = vrot.slane %v1711, 6
    %v1720 = vperm.slane %v1710, 0
    %v1721 = vperm.slane %v1714, 0
    %v1722 = vperm.slane %v1715, 0
    %v1723 = vperm.slane %v1716, 0
    %v1724 = vperm.slane %v1711, 0
    %v1725 = vperm.slane %v1717, 0
    %v1726 = vperm.slane %v1718, 0
    %v1727 = vperm.slane %v1719, 0
    %vm1728 = vcmask 1046534
    %v1729 = vsel %vm1728, %v1721, %v1720
    %vm1730 = vcmask 1047559
    %v1731 = vsel %vm1730, %v1722, %v1729
    %vm1732 = vcmask 1041409
    %v1733 = vsel %vm1732, %v1724, %v1723
    %vm1734 = vcmask 1042434
    %v1735 = vsel %vm1734, %v1725, %v1733
    %vm1736 = vcmask 1043459
    %v1737 = vsel %vm1736, %v1726, %v1735
    %vm1738 = vcmask 1044484
    %v1739 = vsel %vm1738, %v1727, %v1737
    %v1742 = vsel %vm395, 0.0, %v1731
    %v1743 = vsel %vm395, %v1739, 0.0
    %v1746 = vrot.slane %v1742, 1
    %v1747 = vrot.slane %v1743, 1
    %v1748 = vsel %vm406, %v1746, %v1747
    %v1750 = vrot.slane %v1742, 2
    %v1751 = vrot.slane %v1743, 2
    %v1752 = vsel %vm414, %v1750, %v1751
    %v1754 = vrot.slane %v1742, 3
    %v1755 = vrot.slane %v1743, 3
    %v1756 = vsel %vm395, %v1754, %v1755
    %v1758 = vrot.slane %v1742, 4
    %v1759 = vrot.slane %v1743, 4
    %v1760 = vsel %vm429, %v1758, %v1759
    %v1762 = vrot.slane %v1742, 5
    %v1763 = vrot.slane %v1743, 5
    %v1764 = vsel %vm437, %v1762, %v1763
    %v1766 = vrot.slane %v1742, 6
    %v1767 = vrot.slane %v1743, 6
    %v1768 = vsel %vm445, %v1766, %v1767
    %v1770 = vrot.slane %v1742, 7
    %v1771 = vrot.slane %v1743, 7
    %v1772 = vsel %vm453, %v1770, %v1771
    %v1774 = vsel %vm406, %v1747, %v462
    %v1776 = vsel %vm414, %v1751, %v465
    %v1778 = vsel %vm395, %v1755, %v468
    %v1780 = vld [vmem:[#allocation14] sm:$0xff]
    %v1781 = vld [vmem:[#allocation14 + $0x8] sm:$0xff]
    %v1782 = vld [vmem:[#allocation14 + $0x10] sm:$0xff]
    %v1783 = vld [vmem:[#allocation14 + $0x18] sm:$0xff]
    %v1784 = vld [vmem:[#allocation14 + $0x20] sm:$0xff]
    %v1785 = vld [vmem:[#allocation14 + $0x28] sm:$0xff]
    %v1786 = vld [vmem:[#allocation14 + $0x30] sm:$0xff]
    %v1787 = vld [vmem:[#allocation14 + $0x38] sm:$0xff]
    %v1788 = vld [vmem:[#allocation14 + $0x40] sm:$0xff]
    %v1789 = vld [vmem:[#allocation14 + $0x48] sm:$0xff]
    %v1790 = vld [vmem:[#allocation14 + $0x50] sm:$0xff]
    %v1791 = vld [vmem:[#allocation14 + $0x58] sm:$0xff]
    %v1792 = vld [vmem:[#allocation14 + $0x60] sm:$0xff]
    %v1793 = vld [vmem:[#allocation14 + $0x68] sm:$0xff]
    %v1794 = vld [vmem:[#allocation14 + $0x70] sm:$0xff]
    %v1795 = vld [vmem:[#allocation14 + $0x78] sm:$0xff]
    %v1796 = vld [vmem:[#allocation14 + $0x80] sm:$0xff]
    %v1797 = vld [vmem:[#allocation14 + $0x88] sm:$0xff]
    %v1798 = vld [vmem:[#allocation14 + $0x90] sm:$0xff]
    %v1799 = vld [vmem:[#allocation14 + $0x98] sm:$0xff]
    %v1800 = vld [vmem:[#allocation14 + $0xa0] sm:$0xff]
    %v1801 = vld [vmem:[#allocation14 + $0xa8] sm:$0xff]
    %v1802 = vld [vmem:[#allocation14 + $0xb0] sm:$0xff]
    %v1803 = vld [vmem:[#allocation14 + $0xb8] sm:$0xff]
    %v1804 = vld [vmem:[#allocation14 + $0xc0] sm:$0xff]
    %v1805 = vld [vmem:[#allocation14 + $0xc8] sm:$0xff]
    %v1806 = vld [vmem:[#allocation14 + $0xd0] sm:$0xff]
    %v1807 = vld [vmem:[#allocation14 + $0xd8] sm:$0xff]
    %v1808 = vld [vmem:[#allocation14 + $0xe0] sm:$0xff]
    %v1809 = vld [vmem:[#allocation14 + $0xe8] sm:$0xff]
    %v1810 = vld [vmem:[#allocation14 + $0xf0] sm:$0xff]
    %v1811 = vld [vmem:[#allocation14 + $0xf8] sm:$0xff]
    %v1812 = vld [vmem:[#allocation14 + $0x100] sm:$0xff]
    %v1813 = vld [vmem:[#allocation14 + $0x108] sm:$0xff]
    %v1814 = vld [vmem:[#allocation14 + $0x110] sm:$0xff]
    %v1815 = vld [vmem:[#allocation14 + $0x118] sm:$0xff]
    %v1816 = vld [vmem:[#allocation14 + $0x120] sm:$0xff]
    %v1817 = vld [vmem:[#allocation14 + $0x128] sm:$0xff]
    %v1818 = vld [vmem:[#allocation14 + $0x130] sm:$0xff]
    %v1819 = vld [vmem:[#allocation14 + $0x138] sm:$0xff]
    %v1820 = vld [vmem:[#allocation14 + $0x140] sm:$0xff]
    %v1821 = vld [vmem:[#allocation14 + $0x148] sm:$0xff]
    %v1822 = vld [vmem:[#allocation14 + $0x150] sm:$0xff]
    %v1823 = vld [vmem:[#allocation14 + $0x158] sm:$0xff]
    %v1824 = vld [vmem:[#allocation14 + $0x160] sm:$0xff]
    %v1825 = vld [vmem:[#allocation14 + $0x168] sm:$0xff]
    %v1826 = vld [vmem:[#allocation14 + $0x170] sm:$0xff]
    %v1827 = vld [vmem:[#allocation14 + $0x178] sm:$0xff]
    %v1828 = vld [vmem:[#allocation14 + $0x180] sm:$0xff]
    %v1829 = vld [vmem:[#allocation14 + $0x188] sm:$0xff]
    %v1830 = vld [vmem:[#allocation14 + $0x190] sm:$0xff]
    %v1831 = vld [vmem:[#allocation14 + $0x198] sm:$0xff]
    %v1832 = vld [vmem:[#allocation14 + $0x1a0] sm:$0xff]
    %v1833 = vld [vmem:[#allocation14 + $0x1a8] sm:$0xff]
    %v1834 = vld [vmem:[#allocation14 + $0x1b0] sm:$0xff]
    %v1835 = vld [vmem:[#allocation14 + $0x1b8] sm:$0xff]
    %v1836 = vld [vmem:[#allocation14 + $0x1c0] sm:$0xff]
    %v1837 = vld [vmem:[#allocation14 + $0x1c8] sm:$0xff]
    %v1838 = vld [vmem:[#allocation14 + $0x1d0] sm:$0xff]
    %v1839 = vld [vmem:[#allocation14 + $0x1d8] sm:$0xff]
    %v1840 = vld [vmem:[#allocation14 + $0x1e0] sm:$0xff]
    %v1841 = vld [vmem:[#allocation14 + $0x1e8] sm:$0xff]
    %v1842 = vld [vmem:[#allocation14 + $0x1f0] sm:$0xff]
    %v1843 = vld [vmem:[#allocation14 + $0x1f8] sm:$0xff]
    %v1844 = vld [vmem:[#allocation14 + $0x200] sm:$0xff]
    %v1845 = vld [vmem:[#allocation14 + $0x208] sm:$0xff]
    %v1846 = vld [vmem:[#allocation14 + $0x210] sm:$0xff]
    %v1847 = vld [vmem:[#allocation14 + $0x218] sm:$0xff]
    %v1848 = vld [vmem:[#allocation14 + $0x220] sm:$0xff]
    %v1849 = vld [vmem:[#allocation14 + $0x228] sm:$0xff]
    %v1850 = vld [vmem:[#allocation14 + $0x230] sm:$0xff]
    %v1851 = vld [vmem:[#allocation14 + $0x238] sm:$0xff]
    %v1852 = vld [vmem:[#allocation14 + $0x240] sm:$0xff]
    %v1853 = vld [vmem:[#allocation14 + $0x248] sm:$0xff]
    %v1854 = vld [vmem:[#allocation14 + $0x250] sm:$0xff]
    %v1855 = vld [vmem:[#allocation14 + $0x258] sm:$0xff]
    %v1856 = vld [vmem:[#allocation14 + $0x260] sm:$0xff]
    %v1857 = vld [vmem:[#allocation14 + $0x268] sm:$0xff]
    %v1858 = vld [vmem:[#allocation14 + $0x270] sm:$0xff]
    %v1859 = vld [vmem:[#allocation14 + $0x278] sm:$0xff]
    %v1860 = vld [vmem:[#allocation14 + $0x280] sm:$0xff]
    %v1861 = vld [vmem:[#allocation14 + $0x288] sm:$0xff]
    %v1862 = vld [vmem:[#allocation14 + $0x290] sm:$0xff]
    %v1863 = vld [vmem:[#allocation14 + $0x298] sm:$0xff]
    %v1864 = vld [vmem:[#allocation14 + $0x2a0] sm:$0xff]
    %v1865 = vld [vmem:[#allocation14 + $0x2a8] sm:$0xff]
    %v1866 = vld [vmem:[#allocation14 + $0x2b0] sm:$0xff]
    %v1867 = vld [vmem:[#allocation14 + $0x2b8] sm:$0xff]
    %v1868 = vld [vmem:[#allocation14 + $0x2c0] sm:$0xff]
    %v1869 = vld [vmem:[#allocation14 + $0x2c8] sm:$0xff]
    %v1870 = vld [vmem:[#allocation14 + $0x2d0] sm:$0xff]
    %v1871 = vld [vmem:[#allocation14 + $0x2d8] sm:$0xff]
    %v1872 = vld [vmem:[#allocation14 + $0x2e0] sm:$0xff]
    %v1873 = vld [vmem:[#allocation14 + $0x2e8] sm:$0xff]
    %v1874 = vld [vmem:[#allocation14 + $0x2f0] sm:$0xff]
    %v1875 = vld [vmem:[#allocation14 + $0x2f8] sm:$0xff]
    %v1876 = vld [vmem:[#allocation14 + $0x300] sm:$0xff]
    %v1877 = vld [vmem:[#allocation14 + $0x308] sm:$0xff]
    %v1878 = vld [vmem:[#allocation14 + $0x310] sm:$0xff]
    %v1879 = vld [vmem:[#allocation14 + $0x318] sm:$0xff]
    %v1880 = vld [vmem:[#allocation14 + $0x320] sm:$0xff]
    %v1881 = vld [vmem:[#allocation14 + $0x328] sm:$0xff]
    %v1882 = vld [vmem:[#allocation14 + $0x330] sm:$0xff]
    %v1883 = vld [vmem:[#allocation14 + $0x338] sm:$0xff]
    %v1884 = vld [vmem:[#allocation14 + $0x340] sm:$0xff]
    %v1885 = vld [vmem:[#allocation14 + $0x348] sm:$0xff]
    %v1886 = vld [vmem:[#allocation14 + $0x350] sm:$0xff]
    %v1887 = vld [vmem:[#allocation14 + $0x358] sm:$0xff]
    %v1888 = vld [vmem:[#allocation14 + $0x360] sm:$0xff]
    %v1889 = vld [vmem:[#allocation14 + $0x368] sm:$0xff]
    %v1890 = vld [vmem:[#allocation14 + $0x370] sm:$0xff]
    %v1891 = vld [vmem:[#allocation14 + $0x378] sm:$0xff]
    %v1892 = vld [vmem:[#allocation14 + $0x380] sm:$0xff]
    %v1893 = vld [vmem:[#allocation14 + $0x388] sm:$0xff]
    %v1894 = vld [vmem:[#allocation14 + $0x390] sm:$0xff]
    %v1895 = vld [vmem:[#allocation14 + $0x398] sm:$0xff]
    %v1896 = vld [vmem:[#allocation14 + $0x3a0] sm:$0xff]
    %v1897 = vld [vmem:[#allocation14 + $0x3a8] sm:$0xff]
    %v1898 = vld [vmem:[#allocation14 + $0x3b0] sm:$0xff]
    %v1899 = vld [vmem:[#allocation14 + $0x3b8] sm:$0xff]
    %v1900 = vld [vmem:[#allocation14 + $0x3c0] sm:$0xff]
    %v1901 = vld [vmem:[#allocation14 + $0x3c8] sm:$0xff]
    %v1902 = vld [vmem:[#allocation14 + $0x3d0] sm:$0xff]
    %v1903 = vld [vmem:[#allocation14 + $0x3d8] sm:$0xff]
    %v1904 = vld [vmem:[#allocation14 + $0x3e0] sm:$0xff]
    %v1905 = vld [vmem:[#allocation14 + $0x3e8] sm:$0xff]
    %v1906 = vld [vmem:[#allocation14 + $0x3f0] sm:$0xff]
    %v1907 = vld [vmem:[#allocation14 + $0x3f8] sm:$0xff]
    %v1908 = vld [vmem:[#allocation14 + $0x400] sm:$0xff]
    %v1909 = vld [vmem:[#allocation14 + $0x408] sm:$0xff]
    %v1910 = vld [vmem:[#allocation14 + $0x410] sm:$0xff]
    %v1911 = vld [vmem:[#allocation14 + $0x418] sm:$0xff]
    %v1912 = vld [vmem:[#allocation14 + $0x420] sm:$0xff]
    %v1913 = vld [vmem:[#allocation14 + $0x428] sm:$0xff]
    %v1914 = vld [vmem:[#allocation14 + $0x430] sm:$0xff]
    %v1915 = vld [vmem:[#allocation14 + $0x438] sm:$0xff]
    %v1916 = vld [vmem:[#allocation14 + $0x440] sm:$0xff]
    %v1917 = vld [vmem:[#allocation14 + $0x448] sm:$0xff]
    %v1918 = vld [vmem:[#allocation14 + $0x450] sm:$0xff]
    %v1919 = vld [vmem:[#allocation14 + $0x458] sm:$0xff]
    %v1920 = vld [vmem:[#allocation14 + $0x460] sm:$0xff]
    %v1921 = vld [vmem:[#allocation14 + $0x468] sm:$0xff]
    %v1922 = vld [vmem:[#allocation14 + $0x470] sm:$0xff]
    %v1923 = vld [vmem:[#allocation14 + $0x478] sm:$0xff]
    %v1924 = vld [vmem:[#allocation14 + $0x480] sm:$0xff]
    %v1925 = vld [vmem:[#allocation14 + $0x488] sm:$0xff]
    %v1926 = vld [vmem:[#allocation14 + $0x490] sm:$0xff]
    %v1927 = vld [vmem:[#allocation14 + $0x498] sm:$0xff]
    %v1928 = vld [vmem:[#allocation14 + $0x4a0] sm:$0xff]
    %v1929 = vld [vmem:[#allocation14 + $0x4a8] sm:$0xff]
    %v1930 = vld [vmem:[#allocation14 + $0x4b0] sm:$0xff]
    %v1931 = vld [vmem:[#allocation14 + $0x4b8] sm:$0xff]
    %v1932 = vld [vmem:[#allocation14 + $0x4c0] sm:$0xff]
    %v1933 = vld [vmem:[#allocation14 + $0x4c8] sm:$0xff]
    %v1934 = vld [vmem:[#allocation14 + $0x4d0] sm:$0xff]
    %v1935 = vld [vmem:[#allocation14 + $0x4d8] sm:$0xff]
    %v1936 = vld [vmem:[#allocation14 + $0x4e0] sm:$0xff]
    %v1937 = vld [vmem:[#allocation14 + $0x4e8] sm:$0xff]
    %v1938 = vld [vmem:[#allocation14 + $0x4f0] sm:$0xff]
    %v1939 = vld [vmem:[#allocation14 + $0x4f8] sm:$0xff]
    %v1940 = vld [vmem:[#allocation14 + $0x500] sm:$0xff]
    %v1941 = vld [vmem:[#allocation14 + $0x508] sm:$0xff]
    %v1942 = vld [vmem:[#allocation14 + $0x510] sm:$0xff]
    %v1943 = vld [vmem:[#allocation14 + $0x518] sm:$0xff]
    %v1944 = vld [vmem:[#allocation14 + $0x520] sm:$0xff]
    %v1945 = vld [vmem:[#allocation14 + $0x528] sm:$0xff]
    %v1946 = vld [vmem:[#allocation14 + $0x530] sm:$0xff]
    %v1947 = vld [vmem:[#allocation14 + $0x538] sm:$0xff]
    %v1948 = vld [vmem:[#allocation14 + $0x540] sm:$0xff]
    %v1949 = vld [vmem:[#allocation14 + $0x548] sm:$0xff]
    %v1950 = vld [vmem:[#allocation14 + $0x550] sm:$0xff]
    %v1951 = vld [vmem:[#allocation14 + $0x558] sm:$0xff]
    %v1952 = vld [vmem:[#allocation14 + $0x560] sm:$0xff]
    %v1953 = vld [vmem:[#allocation14 + $0x568] sm:$0xff]
    %v1954 = vld [vmem:[#allocation14 + $0x570] sm:$0xff]
    %v1955 = vld [vmem:[#allocation14 + $0x578] sm:$0xff]
    %v1956 = vld [vmem:[#allocation14 + $0x580] sm:$0xff]
    %v1957 = vld [vmem:[#allocation14 + $0x588] sm:$0xff]
    %v1958 = vld [vmem:[#allocation14 + $0x590] sm:$0xff]
    %v1959 = vld [vmem:[#allocation14 + $0x598] sm:$0xff]
    %v1960 = vld [vmem:[#allocation14 + $0x5a0] sm:$0xff]
    %v1961 = vld [vmem:[#allocation14 + $0x5a8] sm:$0xff]
    %v1962 = vld [vmem:[#allocation14 + $0x5b0] sm:$0xff]
    %v1963 = vld [vmem:[#allocation14 + $0x5b8] sm:$0xff]
    %v1964 = vld [vmem:[#allocation14 + $0x5c0] sm:$0xff]
    %v1965 = vld [vmem:[#allocation14 + $0x5c8] sm:$0xff]
    %v1966 = vld [vmem:[#allocation14 + $0x5d0] sm:$0xff]
    %v1967 = vld [vmem:[#allocation14 + $0x5d8] sm:$0xff]
    %v1968 = vld [vmem:[#allocation14 + $0x5e0] sm:$0xff]
    %v1969 = vld [vmem:[#allocation14 + $0x5e8] sm:$0xff]
    %v1970 = vld [vmem:[#allocation14 + $0x5f0] sm:$0xff]
    %v1971 = vld [vmem:[#allocation14 + $0x5f8] sm:$0xff]
    %v1972 = vld [vmem:[#allocation16] sm:$0x1]
    %v1974 = vperm.slane %v1972, 0
    %1976 = vmatpush.msra.mxu0 %v1795
    %1977 = vmatpush.msra.mxu0 %v1794
    %1978 = vmatpush.msra.mxu0 %v1793
    %1979 = vmatpush.msra.mxu0 %v1792
    %1980 = vmatpush.msra.mxu0 %v1791
    %1981 = vmatpush.msra.mxu0 %v1790
    %1982 = vmatpush.msra.mxu0 %v1789
    %1983 = vmatpush.msra.mxu0 %v1788
    %1984 = vmatpush.msra.mxu0 %v1787
    %1985 = vmatpush.msra.mxu0 %v1786
    %1986 = vmatpush.msra.mxu0 %v1785
    %1987 = vmatpush.msra.mxu0 %v1784
    %1988 = vmatpush.msra.mxu0 %v1783
    %1989 = vmatpush.msra.mxu0 %v1782
    %1990 = vmatpush.msra.mxu0 %v1781
    %1991 = vmatpush.msra.mxu0 %v1780
    %1992 = vmatmul.f32.gmra.mxu0 %v1742
    %v1993 = vpop.f32.mrf.mxu0
    %v1994 = vadd.f32 %v1974, %v1993
    %1995 = vdwg.mxu0
    %1996 = vmatpush.msra.mxu0 %v1811
    %1997 = vmatpush.msra.mxu0 %v1810
    %1998 = vmatpush.msra.mxu0 %v1809
    %1999 = vmatpush.msra.mxu0 %v1808
    %2000 = vmatpush.msra.mxu0 %v1807
    %2001 = vmatpush.msra.mxu0 %v1806
    %2002 = vmatpush.msra.mxu0 %v1805
    %2003 = vmatpush.msra.mxu0 %v1804
    %2004 = vmatpush.msra.mxu0 %v1803
    %2005 = vmatpush.msra.mxu0 %v1802
    %2006 = vmatpush.msra.mxu0 %v1801
    %2007 = vmatpush.msra.mxu0 %v1800
    %2008 = vmatpush.msra.mxu0 %v1799
    %2009 = vmatpush.msra.mxu0 %v1798
    %2010 = vmatpush.msra.mxu0 %v1797
    %2011 = vmatpush.msra.mxu0 %v1796
    %2012 = vmatmul.f32.gmra.mxu0 %v1748
    %v2013 = vpop.f32.mrf.mxu0
    %v2014 = vadd.f32 %v1994, %v2013
    %2015 = vdwg.mxu0
    %2016 = vmatpush.msra.mxu0 %v1827
    %2017 = vmatpush.msra.mxu0 %v1826
    %2018 = vmatpush.msra.mxu0 %v1825
    %2019 = vmatpush.msra.mxu0 %v1824
    %2020 = vmatpush.msra.mxu0 %v1823
    %2021 = vmatpush.msra.mxu0 %v1822
    %2022 = vmatpush.msra.mxu0 %v1821
    %2023 = vmatpush.msra.mxu0 %v1820
    %2024 = vmatpush.msra.mxu0 %v1819
    %2025 = vmatpush.msra.mxu0 %v1818
    %2026 = vmatpush.msra.mxu0 %v1817
    %2027 = vmatpush.msra.mxu0 %v1816
    %2028 = vmatpush.msra.mxu0 %v1815
    %2029 = vmatpush.msra.mxu0 %v1814
    %2030 = vmatpush.msra.mxu0 %v1813
    %2031 = vmatpush.msra.mxu0 %v1812
    %2032 = vmatmul.f32.gmra.mxu0 %v1752
    %v2033 = vpop.f32.mrf.mxu0
    %v2034 = vadd.f32 %v2014, %v2033
    %2035 = vdwg.mxu0
    %2036 = vmatpush.msra.mxu0 %v1843
    %2037 = vmatpush.msra.mxu0 %v1842
    %2038 = vmatpush.msra.mxu0 %v1841
    %2039 = vmatpush.msra.mxu0 %v1840
    %2040 = vmatpush.msra.mxu0 %v1839
    %2041 = vmatpush.msra.mxu0 %v1838
    %2042 = vmatpush.msra.mxu0 %v1837
    %2043 = vmatpush.msra.mxu0 %v1836
    %2044 = vmatpush.msra.mxu0 %v1835
    %2045 = vmatpush.msra.mxu0 %v1834
    %2046 = vmatpush.msra.mxu0 %v1833
    %2047 = vmatpush.msra.mxu0 %v1832
    %2048 = vmatpush.msra.mxu0 %v1831
    %2049 = vmatpush.msra.mxu0 %v1830
    %2050 = vmatpush.msra.mxu0 %v1829
    %2051 = vmatpush.msra.mxu0 %v1828
    %2052 = vmatmul.f32.gmra.mxu0 %v1756
    %v2053 = vpop.f32.mrf.mxu0
    %v2054 = vadd.f32 %v2034, %v2053
    %2055 = vdwg.mxu0
    %2056 = vmatpush.msra.mxu0 %v1859
    %2057 = vmatpush.msra.mxu0 %v1858
    %2058 = vmatpush.msra.mxu0 %v1857
    %2059 = vmatpush.msra.mxu0 %v1856
    %2060 = vmatpush.msra.mxu0 %v1855
    %2061 = vmatpush.msra.mxu0 %v1854
    %2062 = vmatpush.msra.mxu0 %v1853
    %2063 = vmatpush.msra.mxu0 %v1852
    %2064 = vmatpush.msra.mxu0 %v1851
    %2065 = vmatpush.msra.mxu0 %v1850
    %2066 = vmatpush.msra.mxu0 %v1849
    %2067 = vmatpush.msra.mxu0 %v1848
    %2068 = vmatpush.msra.mxu0 %v1847
    %2069 = vmatpush.msra.mxu0 %v1846
    %2070 = vmatpush.msra.mxu0 %v1845
    %2071 = vmatpush.msra.mxu0 %v1844
    %2072 = vmatmul.f32.gmra.mxu0 %v1760
    %v2073 = vpop.f32.mrf.mxu0
    %v2074 = vadd.f32 %v2054, %v2073
    %2075 = vdwg.mxu0
    %2076 = vmatpush.msra.mxu0 %v1875
    %2077 = vmatpush.msra.mxu0 %v1874
    %2078 = vmatpush.msra.mxu0 %v1873
    %2079 = vmatpush.msra.mxu0 %v1872
    %2080 = vmatpush.msra.mxu0 %v1871
    %2081 = vmatpush.msra.mxu0 %v1870
    %2082 = vmatpush.msra.mxu0 %v1869
    %2083 = vmatpush.msra.mxu0 %v1868
    %2084 = vmatpush.msra.mxu0 %v1867
    %2085 = vmatpush.msra.mxu0 %v1866
    %2086 = vmatpush.msra.mxu0 %v1865
    %2087 = vmatpush.msra.mxu0 %v1864
    %2088 = vmatpush.msra.mxu0 %v1863
    %2089 = vmatpush.msra.mxu0 %v1862
    %2090 = vmatpush.msra.mxu0 %v1861
    %2091 = vmatpush.msra.mxu0 %v1860
    %2092 = vmatmul.f32.gmra.mxu0 %v1764
    %v2093 = vpop.f32.mrf.mxu0
    %v2094 = vadd.f32 %v2074, %v2093
    %2095 = vdwg.mxu0
    %2096 = vmatpush.msra.mxu0 %v1891
    %2097 = vmatpush.msra.mxu0 %v1890
    %2098 = vmatpush.msra.mxu0 %v1889
    %2099 = vmatpush.msra.mxu0 %v1888
    %2100 = vmatpush.msra.mxu0 %v1887
    %2101 = vmatpush.msra.mxu0 %v1886
    %2102 = vmatpush.msra.mxu0 %v1885
    %2103 = vmatpush.msra.mxu0 %v1884
    %2104 = vmatpush.msra.mxu0 %v1883
    %2105 = vmatpush.msra.mxu0 %v1882
    %2106 = vmatpush.msra.mxu0 %v1881
    %2107 = vmatpush.msra.mxu0 %v1880
    %2108 = vmatpush.msra.mxu0 %v1879
    %2109 = vmatpush.msra.mxu0 %v1878
    %2110 = vmatpush.msra.mxu0 %v1877
    %2111 = vmatpush.msra.mxu0 %v1876
    %2112 = vmatmul.f32.gmra.mxu0 %v1768
    %v2113 = vpop.f32.mrf.mxu0
    %v2114 = vadd.f32 %v2094, %v2113
    %2115 = vdwg.mxu0
    %2116 = vmatpush.msra.mxu0 %v1907
    %2117 = vmatpush.msra.mxu0 %v1906
    %2118 = vmatpush.msra.mxu0 %v1905
    %2119 = vmatpush.msra.mxu0 %v1904
    %2120 = vmatpush.msra.mxu0 %v1903
    %2121 = vmatpush.msra.mxu0 %v1902
    %2122 = vmatpush.msra.mxu0 %v1901
    %2123 = vmatpush.msra.mxu0 %v1900
    %2124 = vmatpush.msra.mxu0 %v1899
    %2125 = vmatpush.msra.mxu0 %v1898
    %2126 = vmatpush.msra.mxu0 %v1897
    %2127 = vmatpush.msra.mxu0 %v1896
    %2128 = vmatpush.msra.mxu0 %v1895
    %2129 = vmatpush.msra.mxu0 %v1894
    %2130 = vmatpush.msra.mxu0 %v1893
    %2131 = vmatpush.msra.mxu0 %v1892
    %2132 = vmatmul.f32.gmra.mxu0 %v1772
    %v2133 = vpop.f32.mrf.mxu0
    %v2134 = vadd.f32 %v2114, %v2133
    %2135 = vdwg.mxu0
    %2136 = vmatpush.msra.mxu0 %v1923
    %2137 = vmatpush.msra.mxu0 %v1922
    %2138 = vmatpush.msra.mxu0 %v1921
    %2139 = vmatpush.msra.mxu0 %v1920
    %2140 = vmatpush.msra.mxu0 %v1919
    %2141 = vmatpush.msra.mxu0 %v1918
    %2142 = vmatpush.msra.mxu0 %v1917
    %2143 = vmatpush.msra.mxu0 %v1916
    %2144 = vmatpush.msra.mxu0 %v1915
    %2145 = vmatpush.msra.mxu0 %v1914
    %2146 = vmatpush.msra.mxu0 %v1913
    %2147 = vmatpush.msra.mxu0 %v1912
    %2148 = vmatpush.msra.mxu0 %v1911
    %2149 = vmatpush.msra.mxu0 %v1910
    %2150 = vmatpush.msra.mxu0 %v1909
    %2151 = vmatpush.msra.mxu0 %v1908
    %2152 = vmatmul.f32.gmra.mxu0 %v1743
    %v2153 = vpop.f32.mrf.mxu0
    %v2154 = vadd.f32 %v2134, %v2153
    %2155 = vdwg.mxu0
    %2156 = vmatpush.msra.mxu0 %v1939
    %2157 = vmatpush.msra.mxu0 %v1938
    %2158 = vmatpush.msra.mxu0 %v1937
    %2159 = vmatpush.msra.mxu0 %v1936
    %2160 = vmatpush.msra.mxu0 %v1935
    %2161 = vmatpush.msra.mxu0 %v1934
    %2162 = vmatpush.msra.mxu0 %v1933
    %2163 = vmatpush.msra.mxu0 %v1932
    %2164 = vmatpush.msra.mxu0 %v1931
    %2165 = vmatpush.msra.mxu0 %v1930
    %2166 = vmatpush.msra.mxu0 %v1929
    %2167 = vmatpush.msra.mxu0 %v1928
    %2168 = vmatpush.msra.mxu0 %v1927
    %2169 = vmatpush.msra.mxu0 %v1926
    %2170 = vmatpush.msra.mxu0 %v1925
    %2171 = vmatpush.msra.mxu0 %v1924
    %2172 = vmatmul.f32.gmra.mxu0 %v1774
    %v2173 = vpop.f32.mrf.mxu0
    %v2174 = vadd.f32 %v2154, %v2173
    %2175 = vdwg.mxu0
    %2176 = vmatpush.msra.mxu0 %v1955
    %2177 = vmatpush.msra.mxu0 %v1954
    %2178 = vmatpush.msra.mxu0 %v1953
    %2179 = vmatpush.msra.mxu0 %v1952
    %2180 = vmatpush.msra.mxu0 %v1951
    %2181 = vmatpush.msra.mxu0 %v1950
    %2182 = vmatpush.msra.mxu0 %v1949
    %2183 = vmatpush.msra.mxu0 %v1948
    %2184 = vmatpush.msra.mxu0 %v1947
    %2185 = vmatpush.msra.mxu0 %v1946
    %2186 = vmatpush.msra.mxu0 %v1945
    %2187 = vmatpush.msra.mxu0 %v1944
    %2188 = vmatpush.msra.mxu0 %v1943
    %2189 = vmatpush.msra.mxu0 %v1942
    %2190 = vmatpush.msra.mxu0 %v1941
    %2191 = vmatpush.msra.mxu0 %v1940
    %2192 = vmatmul.f32.gmra.mxu0 %v1776
    %v2193 = vpop.f32.mrf.mxu0
    %v2194 = vadd.f32 %v2174, %v2193
    %2195 = vdwg.mxu0
    %2196 = vmatpush.msra.mxu0 %v1971
    %2197 = vmatpush.msra.mxu0 %v1970
    %2198 = vmatpush.msra.mxu0 %v1969
    %2199 = vmatpush.msra.mxu0 %v1968
    %2200 = vmatpush.msra.mxu0 %v1967
    %2201 = vmatpush.msra.mxu0 %v1966
    %2202 = vmatpush.msra.mxu0 %v1965
    %2203 = vmatpush.msra.mxu0 %v1964
    %2204 = vmatpush.msra.mxu0 %v1963
    %2205 = vmatpush.msra.mxu0 %v1962
    %2206 = vmatpush.msra.mxu0 %v1961
    %2207 = vmatpush.msra.mxu0 %v1960
    %2208 = vmatpush.msra.mxu0 %v1959
    %2209 = vmatpush.msra.mxu0 %v1958
    %2210 = vmatpush.msra.mxu0 %v1957
    %2211 = vmatpush.msra.mxu0 %v1956
    %2212 = vmatmul.f32.gmra.mxu0 %v1778
    %v2213 = vpop.f32.mrf.mxu0
    %v2214 = vadd.f32 %v2194, %v2213
    %2215 = vdwg.mxu0
    %v2216 = vmax.f32 %v2214, 0.0
    %v2217 = vrot.slane %v2216, 4
    %v2218 = vadd.f32 %v2216, %v2217
    %v2219 = vrot.slane %v2218, 2
    %v2220 = vadd.f32 %v2218, %v2219
    %v2221 = vrot.slane %v2220, 1
    %v2222 = vadd.f32 %v2220, %v2221
    %v2223 = vrcp.pop 8.0
    %v2224 = vmul.f32 8.0, %v2223
    %v2225 = vsub.f32 1.0, %v2224
    %v2226 = vmul.f32 %v2223, %v2225
    %v2227 = vadd.f32 %v2223, %v2226
    %vm2228 = vweird.f32 %v2223
    %v2229 = vsel %vm2228, %v2223, %v2227
    %v2230 = vmul.f32 %v2222, %v2229
    %v2231 = vld [vmem:[%s11] sm:$0xff]
    %v2232 = vld [vmem:[%s11 + $0x8] sm:$0xff]
    %v2233 = vld [vmem:[%s11 + $0x10] sm:$0xff]
    %v2234 = vld [vmem:[%s11 + $0x18] sm:$0xff]
    %v2235 = vld [vmem:[%s11 + $0x20] sm:$0xff]
    %v2236 = vld [vmem:[%s11 + $0x28] sm:$0xff]
    %v2237 = vld [vmem:[%s11 + $0x30] sm:$0xff]
    %v2238 = vld [vmem:[%s11 + $0x38] sm:$0xff]
    %v2239 = vld [vmem:[%s11 + $0x40] sm:$0xff]
    %v2240 = vld [vmem:[%s11 + $0x48] sm:$0xff]
    %v2241 = vld [vmem:[%s11 + $0x50] sm:$0xff]
    %v2242 = vld [vmem:[%s11 + $0x58] sm:$0xff]
    %v2243 = vld [vmem:[%s11 + $0x60] sm:$0xff]
    %v2244 = vld [vmem:[%s11 + $0x68] sm:$0xff]
    %v2245 = vld [vmem:[%s11 + $0x70] sm:$0xff]
    %v2246 = vld [vmem:[%s11 + $0x78] sm:$0xff]
    %2247 = vmatpush.msra.mxu0 %v2246
    %2248 = vmatpush.msra.mxu0 %v2245
    %2249 = vmatpush.msra.mxu0 %v2244
    %2250 = vmatpush.msra.mxu0 %v2243
    %2251 = vmatpush.msra.mxu0 %v2242
    %2252 = vmatpush.msra.mxu0 %v2241
    %2253 = vmatpush.msra.mxu0 %v2240
    %2254 = vmatpush.msra.mxu0 %v2239
    %2255 = vmatpush.msra.mxu0 %v2238
    %2256 = vmatpush.msra.mxu0 %v2237
    %2257 = vmatpush.msra.mxu0 %v2236
    %2258 = vmatpush.msra.mxu0 %v2235
    %2259 = vmatpush.msra.mxu0 %v2234
    %2260 = vmatpush.msra.mxu0 %v2233
    %2261 = vmatpush.msra.mxu0 %v2232
    %2262 = vmatpush.msra.mxu0 %v2231
    %2263 = vmatmul.f32.gmra.mxu0 %v2230
    %v2264 = vpop.f32.mrf.mxu0
    %v2265 = vadd.f32 0.0, %v2264
    %2266 = vdwg.mxu0
    %v2267 = vmax.f32 %v2265, 0.0
    %v2268 = vld [vmem:[#allocation17] sm:$0x3f]
    %vm2269 = vcmask 48128
    %v2271 = vsel %vm2269, %v2267, 0
    %v2274 = vsel %vm414, %v2268, 0
    %2276 = vmatpush.msra.mxu0 0.0
    %2277 = vmatpush.msra.mxu0 0.0
    %2278 = vmatpush.msra.mxu0 0.0
    %2279 = vmatpush.msra.mxu0 0.0
    %2280 = vmatpush.msra.mxu0 0.0
    %2281 = vmatpush.msra.mxu0 0.0
    %2282 = vmatpush.msra.mxu0 0.0
    %2283 = vmatpush.msra.mxu0 0.0
    %2284 = vmatpush.msra.mxu0 0.0
    %2285 = vmatpush.msra.mxu0 0.0
    %2286 = vmatpush.msra.mxu0 0.0
    %2287 = vmatpush.msra.mxu0 0.0
    %2288 = vmatpush.msra.mxu0 0.0
    %2289 = vmatpush.msra.mxu0 0.0
    %2290 = vmatpush.msra.mxu0 0.0
    %2291 = vmatpush.msra.mxu0 %v2274
    %2292 = vmatmul.f32.gmra.mxu0 %v2271
    %v2293 = vpop.f32.mrf.mxu0
    %v2294 = vadd.f32 0.0, %v2293
    %2295 = vdwg.mxu0
    %v2296 = vxor.u32 %v2294, 2147483648
    %v2297 = vmul.f32 %v2296, 1.442695
    %v2298 = vpow.pop %v2297
    %v2299 = vadd.f32 %v2298, 1.0
    %v2300 = vrcp.pop %v2299
    %v2301 = vmul.f32 %v2299, %v2300
    %v2302 = vsub.f32 1.0, %v2301
    %v2303 = vmul.f32 %v2300, %v2302
    %v2304 = vadd.f32 %v2300, %v2303
    %vm2305 = vweird.f32 %v2299
    %vm2306 = vweird.f32 %v2300
    %vm2307 = vmor %vm2305, %vm2306
    %v2308 = vsel %vm2307, %v2300, %v2304
    %v2309 = vand.u32 2147483647, %v2299
    %vm2310 = vcmp.eq.f32.partialorder %v2309, 8.507059e+37
    %v2311 = vand.u32 %v2299, 2147483648
    %v2312 = vor.u32 1.1754944e-38, %v2311
    %v2313 = vsel %vm2310, %v2312, %v2308
    %v2314 = vmul.f32 1.0, %v2313
    %v2315 = vperm.slane %v2314, 0
    %v2316 = vmul.f32 %v2216, %v2315
    %v2318 = vrot.slane %v2316, 3
    %v2320 = vsel %vm395, 0.0, %v2318
    %v2321 = vsel %vm395, %v2318, 0.0
    %v2324 = vrot.slane %v2320, 1
    %v2325 = vrot.slane %v2321, 1
    %v2326 = vsel %vm406, %v2324, %v2325
    %v2328 = vrot.slane %v2320, 2
    %v2329 = vrot.slane %v2321, 2
    %v2330 = vsel %vm414, %v2328, %v2329
    %v2332 = vrot.slane %v2320, 3
    %v2333 = vrot.slane %v2321, 3
    %v2334 = vsel %vm395, %v2332, %v2333
    %v2336 = vrot.slane %v2320, 4
    %v2337 = vrot.slane %v2321, 4
    %v2338 = vsel %vm429, %v2336, %v2337
    %v2340 = vrot.slane %v2320, 5
    %v2341 = vrot.slane %v2321, 5
    %v2342 = vsel %vm437, %v2340, %v2341
    %v2344 = vrot.slane %v2320, 6
    %v2345 = vrot.slane %v2321, 6
    %v2346 = vsel %vm445, %v2344, %v2345
    %v2348 = vrot.slane %v2320, 7
    %v2349 = vrot.slane %v2321, 7
    %v2350 = vsel %vm453, %v2348, %v2349
    %v2352 = vsel %vm406, %v2325, %v462
    %v2354 = vsel %vm414, %v2329, %v465
    %v2356 = vsel %vm395, %v2333, %v468
    %v2358 = vld [vmem:[#allocation19] sm:$0xff]
    %v2359 = vld [vmem:[#allocation19 + $0x8] sm:$0xff]
    %v2360 = vld [vmem:[#allocation19 + $0x10] sm:$0xff]
    %v2361 = vld [vmem:[#allocation19 + $0x18] sm:$0xff]
    %v2362 = vld [vmem:[#allocation19 + $0x20] sm:$0xff]
    %v2363 = vld [vmem:[#allocation19 + $0x28] sm:$0xff]
    %v2364 = vld [vmem:[#allocation19 + $0x30] sm:$0xff]
    %v2365 = vld [vmem:[#allocation19 + $0x38] sm:$0xff]
    %v2366 = vld [vmem:[#allocation19 + $0x40] sm:$0xff]
    %v2367 = vld [vmem:[#allocation19 + $0x48] sm:$0xff]
    %v2368 = vld [vmem:[#allocation19 + $0x50] sm:$0xff]
    %v2369 = vld [vmem:[#allocation19 + $0x58] sm:$0xff]
    %v2370 = vld [vmem:[#allocation19 + $0x60] sm:$0xff]
    %v2371 = vld [vmem:[#allocation19 + $0x68] sm:$0xff]
    %v2372 = vld [vmem:[#allocation19 + $0x70] sm:$0xff]
    %v2373 = vld [vmem:[#allocation19 + $0x78] sm:$0xff]
    %v2374 = vld [vmem:[#allocation19 + $0x80] sm:$0xff]
    %v2375 = vld [vmem:[#allocation19 + $0x88] sm:$0xff]
    %v2376 = vld [vmem:[#allocation19 + $0x90] sm:$0xff]
    %v2377 = vld [vmem:[#allocation19 + $0x98] sm:$0xff]
    %v2378 = vld [vmem:[#allocation19 + $0xa0] sm:$0xff]
    %v2379 = vld [vmem:[#allocation19 + $0xa8] sm:$0xff]
    %v2380 = vld [vmem:[#allocation19 + $0xb0] sm:$0xff]
    %v2381 = vld [vmem:[#allocation19 + $0xb8] sm:$0xff]
    %v2382 = vld [vmem:[#allocation19 + $0xc0] sm:$0xff]
    %v2383 = vld [vmem:[#allocation19 + $0xc8] sm:$0xff]
    %v2384 = vld [vmem:[#allocation19 + $0xd0] sm:$0xff]
    %v2385 = vld [vmem:[#allocation19 + $0xd8] sm:$0xff]
    %v2386 = vld [vmem:[#allocation19 + $0xe0] sm:$0xff]
    %v2387 = vld [vmem:[#allocation19 + $0xe8] sm:$0xff]
    %v2388 = vld [vmem:[#allocation19 + $0xf0] sm:$0xff]
    %v2389 = vld [vmem:[#allocation19 + $0xf8] sm:$0xff]
    %v2390 = vld [vmem:[#allocation19 + $0x100] sm:$0xff]
    %v2391 = vld [vmem:[#allocation19 + $0x108] sm:$0xff]
    %v2392 = vld [vmem:[#allocation19 + $0x110] sm:$0xff]
    %v2393 = vld [vmem:[#allocation19 + $0x118] sm:$0xff]
    %v2394 = vld [vmem:[#allocation19 + $0x120] sm:$0xff]
    %v2395 = vld [vmem:[#allocation19 + $0x128] sm:$0xff]
    %v2396 = vld [vmem:[#allocation19 + $0x130] sm:$0xff]
    %v2397 = vld [vmem:[#allocation19 + $0x138] sm:$0xff]
    %v2398 = vld [vmem:[#allocation19 + $0x140] sm:$0xff]
    %v2399 = vld [vmem:[#allocation19 + $0x148] sm:$0xff]
    %v2400 = vld [vmem:[#allocation19 + $0x150] sm:$0xff]
    %v2401 = vld [vmem:[#allocation19 + $0x158] sm:$0xff]
    %v2402 = vld [vmem:[#allocation19 + $0x160] sm:$0xff]
    %v2403 = vld [vmem:[#allocation19 + $0x168] sm:$0xff]
    %v2404 = vld [vmem:[#allocation19 + $0x170] sm:$0xff]
    %v2405 = vld [vmem:[#allocation19 + $0x178] sm:$0xff]
    %v2406 = vld [vmem:[#allocation19 + $0x180] sm:$0xff]
    %v2407 = vld [vmem:[#allocation19 + $0x188] sm:$0xff]
    %v2408 = vld [vmem:[#allocation19 + $0x190] sm:$0xff]
    %v2409 = vld [vmem:[#allocation19 + $0x198] sm:$0xff]
    %v2410 = vld [vmem:[#allocation19 + $0x1a0] sm:$0xff]
    %v2411 = vld [vmem:[#allocation19 + $0x1a8] sm:$0xff]
    %v2412 = vld [vmem:[#allocation19 + $0x1b0] sm:$0xff]
    %v2413 = vld [vmem:[#allocation19 + $0x1b8] sm:$0xff]
    %v2414 = vld [vmem:[#allocation19 + $0x1c0] sm:$0xff]
    %v2415 = vld [vmem:[#allocation19 + $0x1c8] sm:$0xff]
    %v2416 = vld [vmem:[#allocation19 + $0x1d0] sm:$0xff]
    %v2417 = vld [vmem:[#allocation19 + $0x1d8] sm:$0xff]
    %v2418 = vld [vmem:[#allocation19 + $0x1e0] sm:$0xff]
    %v2419 = vld [vmem:[#allocation19 + $0x1e8] sm:$0xff]
    %v2420 = vld [vmem:[#allocation19 + $0x1f0] sm:$0xff]
    %v2421 = vld [vmem:[#allocation19 + $0x1f8] sm:$0xff]
    %v2422 = vld [vmem:[#allocation19 + $0x200] sm:$0xff]
    %v2423 = vld [vmem:[#allocation19 + $0x208] sm:$0xff]
    %v2424 = vld [vmem:[#allocation19 + $0x210] sm:$0xff]
    %v2425 = vld [vmem:[#allocation19 + $0x218] sm:$0xff]
    %v2426 = vld [vmem:[#allocation19 + $0x220] sm:$0xff]
    %v2427 = vld [vmem:[#allocation19 + $0x228] sm:$0xff]
    %v2428 = vld [vmem:[#allocation19 + $0x230] sm:$0xff]
    %v2429 = vld [vmem:[#allocation19 + $0x238] sm:$0xff]
    %v2430 = vld [vmem:[#allocation19 + $0x240] sm:$0xff]
    %v2431 = vld [vmem:[#allocation19 + $0x248] sm:$0xff]
    %v2432 = vld [vmem:[#allocation19 + $0x250] sm:$0xff]
    %v2433 = vld [vmem:[#allocation19 + $0x258] sm:$0xff]
    %v2434 = vld [vmem:[#allocation19 + $0x260] sm:$0xff]
    %v2435 = vld [vmem:[#allocation19 + $0x268] sm:$0xff]
    %v2436 = vld [vmem:[#allocation19 + $0x270] sm:$0xff]
    %v2437 = vld [vmem:[#allocation19 + $0x278] sm:$0xff]
    %v2438 = vld [vmem:[#allocation19 + $0x280] sm:$0xff]
    %v2439 = vld [vmem:[#allocation19 + $0x288] sm:$0xff]
    %v2440 = vld [vmem:[#allocation19 + $0x290] sm:$0xff]
    %v2441 = vld [vmem:[#allocation19 + $0x298] sm:$0xff]
    %v2442 = vld [vmem:[#allocation19 + $0x2a0] sm:$0xff]
    %v2443 = vld [vmem:[#allocation19 + $0x2a8] sm:$0xff]
    %v2444 = vld [vmem:[#allocation19 + $0x2b0] sm:$0xff]
    %v2445 = vld [vmem:[#allocation19 + $0x2b8] sm:$0xff]
    %v2446 = vld [vmem:[#allocation19 + $0x2c0] sm:$0xff]
    %v2447 = vld [vmem:[#allocation19 + $0x2c8] sm:$0xff]
    %v2448 = vld [vmem:[#allocation19 + $0x2d0] sm:$0xff]
    %v2449 = vld [vmem:[#allocation19 + $0x2d8] sm:$0xff]
    %v2450 = vld [vmem:[#allocation19 + $0x2e0] sm:$0xff]
    %v2451 = vld [vmem:[#allocation19 + $0x2e8] sm:$0xff]
    %v2452 = vld [vmem:[#allocation19 + $0x2f0] sm:$0xff]
    %v2453 = vld [vmem:[#allocation19 + $0x2f8] sm:$0xff]
    %v2454 = vld [vmem:[#allocation19 + $0x300] sm:$0xff]
    %v2455 = vld [vmem:[#allocation19 + $0x308] sm:$0xff]
    %v2456 = vld [vmem:[#allocation19 + $0x310] sm:$0xff]
    %v2457 = vld [vmem:[#allocation19 + $0x318] sm:$0xff]
    %v2458 = vld [vmem:[#allocation19 + $0x320] sm:$0xff]
    %v2459 = vld [vmem:[#allocation19 + $0x328] sm:$0xff]
    %v2460 = vld [vmem:[#allocation19 + $0x330] sm:$0xff]
    %v2461 = vld [vmem:[#allocation19 + $0x338] sm:$0xff]
    %v2462 = vld [vmem:[#allocation19 + $0x340] sm:$0xff]
    %v2463 = vld [vmem:[#allocation19 + $0x348] sm:$0xff]
    %v2464 = vld [vmem:[#allocation19 + $0x350] sm:$0xff]
    %v2465 = vld [vmem:[#allocation19 + $0x358] sm:$0xff]
    %v2466 = vld [vmem:[#allocation19 + $0x360] sm:$0xff]
    %v2467 = vld [vmem:[#allocation19 + $0x368] sm:$0xff]
    %v2468 = vld [vmem:[#allocation19 + $0x370] sm:$0xff]
    %v2469 = vld [vmem:[#allocation19 + $0x378] sm:$0xff]
    %v2470 = vld [vmem:[#allocation19 + $0x380] sm:$0xff]
    %v2471 = vld [vmem:[#allocation19 + $0x388] sm:$0xff]
    %v2472 = vld [vmem:[#allocation19 + $0x390] sm:$0xff]
    %v2473 = vld [vmem:[#allocation19 + $0x398] sm:$0xff]
    %v2474 = vld [vmem:[#allocation19 + $0x3a0] sm:$0xff]
    %v2475 = vld [vmem:[#allocation19 + $0x3a8] sm:$0xff]
    %v2476 = vld [vmem:[#allocation19 + $0x3b0] sm:$0xff]
    %v2477 = vld [vmem:[#allocation19 + $0x3b8] sm:$0xff]
    %v2478 = vld [vmem:[#allocation19 + $0x3c0] sm:$0xff]
    %v2479 = vld [vmem:[#allocation19 + $0x3c8] sm:$0xff]
    %v2480 = vld [vmem:[#allocation19 + $0x3d0] sm:$0xff]
    %v2481 = vld [vmem:[#allocation19 + $0x3d8] sm:$0xff]
    %v2482 = vld [vmem:[#allocation19 + $0x3e0] sm:$0xff]
    %v2483 = vld [vmem:[#allocation19 + $0x3e8] sm:$0xff]
    %v2484 = vld [vmem:[#allocation19 + $0x3f0] sm:$0xff]
    %v2485 = vld [vmem:[#allocation19 + $0x3f8] sm:$0xff]
    %v2486 = vld [vmem:[#allocation19 + $0x400] sm:$0xff]
    %v2487 = vld [vmem:[#allocation19 + $0x408] sm:$0xff]
    %v2488 = vld [vmem:[#allocation19 + $0x410] sm:$0xff]
    %v2489 = vld [vmem:[#allocation19 + $0x418] sm:$0xff]
    %v2490 = vld [vmem:[#allocation19 + $0x420] sm:$0xff]
    %v2491 = vld [vmem:[#allocation19 + $0x428] sm:$0xff]
    %v2492 = vld [vmem:[#allocation19 + $0x430] sm:$0xff]
    %v2493 = vld [vmem:[#allocation19 + $0x438] sm:$0xff]
    %v2494 = vld [vmem:[#allocation19 + $0x440] sm:$0xff]
    %v2495 = vld [vmem:[#allocation19 + $0x448] sm:$0xff]
    %v2496 = vld [vmem:[#allocation19 + $0x450] sm:$0xff]
    %v2497 = vld [vmem:[#allocation19 + $0x458] sm:$0xff]
    %v2498 = vld [vmem:[#allocation19 + $0x460] sm:$0xff]
    %v2499 = vld [vmem:[#allocation19 + $0x468] sm:$0xff]
    %v2500 = vld [vmem:[#allocation19 + $0x470] sm:$0xff]
    %v2501 = vld [vmem:[#allocation19 + $0x478] sm:$0xff]
    %v2502 = vld [vmem:[#allocation19 + $0x480] sm:$0xff]
    %v2503 = vld [vmem:[#allocation19 + $0x488] sm:$0xff]
    %v2504 = vld [vmem:[#allocation19 + $0x490] sm:$0xff]
    %v2505 = vld [vmem:[#allocation19 + $0x498] sm:$0xff]
    %v2506 = vld [vmem:[#allocation19 + $0x4a0] sm:$0xff]
    %v2507 = vld [vmem:[#allocation19 + $0x4a8] sm:$0xff]
    %v2508 = vld [vmem:[#allocation19 + $0x4b0] sm:$0xff]
    %v2509 = vld [vmem:[#allocation19 + $0x4b8] sm:$0xff]
    %v2510 = vld [vmem:[#allocation19 + $0x4c0] sm:$0xff]
    %v2511 = vld [vmem:[#allocation19 + $0x4c8] sm:$0xff]
    %v2512 = vld [vmem:[#allocation19 + $0x4d0] sm:$0xff]
    %v2513 = vld [vmem:[#allocation19 + $0x4d8] sm:$0xff]
    %v2514 = vld [vmem:[#allocation19 + $0x4e0] sm:$0xff]
    %v2515 = vld [vmem:[#allocation19 + $0x4e8] sm:$0xff]
    %v2516 = vld [vmem:[#allocation19 + $0x4f0] sm:$0xff]
    %v2517 = vld [vmem:[#allocation19 + $0x4f8] sm:$0xff]
    %v2518 = vld [vmem:[#allocation19 + $0x500] sm:$0xff]
    %v2519 = vld [vmem:[#allocation19 + $0x508] sm:$0xff]
    %v2520 = vld [vmem:[#allocation19 + $0x510] sm:$0xff]
    %v2521 = vld [vmem:[#allocation19 + $0x518] sm:$0xff]
    %v2522 = vld [vmem:[#allocation19 + $0x520] sm:$0xff]
    %v2523 = vld [vmem:[#allocation19 + $0x528] sm:$0xff]
    %v2524 = vld [vmem:[#allocation19 + $0x530] sm:$0xff]
    %v2525 = vld [vmem:[#allocation19 + $0x538] sm:$0xff]
    %v2526 = vld [vmem:[#allocation19 + $0x540] sm:$0xff]
    %v2527 = vld [vmem:[#allocation19 + $0x548] sm:$0xff]
    %v2528 = vld [vmem:[#allocation19 + $0x550] sm:$0xff]
    %v2529 = vld [vmem:[#allocation19 + $0x558] sm:$0xff]
    %v2530 = vld [vmem:[#allocation19 + $0x560] sm:$0xff]
    %v2531 = vld [vmem:[#allocation19 + $0x568] sm:$0xff]
    %v2532 = vld [vmem:[#allocation19 + $0x570] sm:$0xff]
    %v2533 = vld [vmem:[#allocation19 + $0x578] sm:$0xff]
    %v2534 = vld [vmem:[#allocation19 + $0x580] sm:$0xff]
    %v2535 = vld [vmem:[#allocation19 + $0x588] sm:$0xff]
    %v2536 = vld [vmem:[#allocation19 + $0x590] sm:$0xff]
    %v2537 = vld [vmem:[#allocation19 + $0x598] sm:$0xff]
    %v2538 = vld [vmem:[#allocation19 + $0x5a0] sm:$0xff]
    %v2539 = vld [vmem:[#allocation19 + $0x5a8] sm:$0xff]
    %v2540 = vld [vmem:[#allocation19 + $0x5b0] sm:$0xff]
    %v2541 = vld [vmem:[#allocation19 + $0x5b8] sm:$0xff]
    %v2542 = vld [vmem:[#allocation19 + $0x5c0] sm:$0xff]
    %v2543 = vld [vmem:[#allocation19 + $0x5c8] sm:$0xff]
    %v2544 = vld [vmem:[#allocation19 + $0x5d0] sm:$0xff]
    %v2545 = vld [vmem:[#allocation19 + $0x5d8] sm:$0xff]
    %v2546 = vld [vmem:[#allocation19 + $0x5e0] sm:$0xff]
    %v2547 = vld [vmem:[#allocation19 + $0x5e8] sm:$0xff]
    %v2548 = vld [vmem:[#allocation19 + $0x5f0] sm:$0xff]
    %v2549 = vld [vmem:[#allocation19 + $0x5f8] sm:$0xff]
    %v2550 = vld [vmem:[#allocation20] sm:$0x1]
    %v2552 = vperm.slane %v2550, 0
    %2554 = vmatpush.msra.mxu0 %v2373
    %2555 = vmatpush.msra.mxu0 %v2372
    %2556 = vmatpush.msra.mxu0 %v2371
    %2557 = vmatpush.msra.mxu0 %v2370
    %2558 = vmatpush.msra.mxu0 %v2369
    %2559 = vmatpush.msra.mxu0 %v2368
    %2560 = vmatpush.msra.mxu0 %v2367
    %2561 = vmatpush.msra.mxu0 %v2366
    %2562 = vmatpush.msra.mxu0 %v2365
    %2563 = vmatpush.msra.mxu0 %v2364
    %2564 = vmatpush.msra.mxu0 %v2363
    %2565 = vmatpush.msra.mxu0 %v2362
    %2566 = vmatpush.msra.mxu0 %v2361
    %2567 = vmatpush.msra.mxu0 %v2360
    %2568 = vmatpush.msra.mxu0 %v2359
    %2569 = vmatpush.msra.mxu0 %v2358
    %2570 = vmatmul.f32.gmra.mxu0 %v2320
    %v2571 = vpop.f32.mrf.mxu0
    %v2572 = vadd.f32 %v2552, %v2571
    %2573 = vdwg.mxu0
    %2574 = vmatpush.msra.mxu0 %v2389
    %2575 = vmatpush.msra.mxu0 %v2388
    %2576 = vmatpush.msra.mxu0 %v2387
    %2577 = vmatpush.msra.mxu0 %v2386
    %2578 = vmatpush.msra.mxu0 %v2385
    %2579 = vmatpush.msra.mxu0 %v2384
    %2580 = vmatpush.msra.mxu0 %v2383
    %2581 = vmatpush.msra.mxu0 %v2382
    %2582 = vmatpush.msra.mxu0 %v2381
    %2583 = vmatpush.msra.mxu0 %v2380
    %2584 = vmatpush.msra.mxu0 %v2379
    %2585 = vmatpush.msra.mxu0 %v2378
    %2586 = vmatpush.msra.mxu0 %v2377
    %2587 = vmatpush.msra.mxu0 %v2376
    %2588 = vmatpush.msra.mxu0 %v2375
    %2589 = vmatpush.msra.mxu0 %v2374
    %2590 = vmatmul.f32.gmra.mxu0 %v2326
    %v2591 = vpop.f32.mrf.mxu0
    %v2592 = vadd.f32 %v2572, %v2591
    %2593 = vdwg.mxu0
    %2594 = vmatpush.msra.mxu0 %v2405
    %2595 = vmatpush.msra.mxu0 %v2404
    %2596 = vmatpush.msra.mxu0 %v2403
    %2597 = vmatpush.msra.mxu0 %v2402
    %2598 = vmatpush.msra.mxu0 %v2401
    %2599 = vmatpush.msra.mxu0 %v2400
    %2600 = vmatpush.msra.mxu0 %v2399
    %2601 = vmatpush.msra.mxu0 %v2398
    %2602 = vmatpush.msra.mxu0 %v2397
    %2603 = vmatpush.msra.mxu0 %v2396
    %2604 = vmatpush.msra.mxu0 %v2395
    %2605 = vmatpush.msra.mxu0 %v2394
    %2606 = vmatpush.msra.mxu0 %v2393
    %2607 = vmatpush.msra.mxu0 %v2392
    %2608 = vmatpush.msra.mxu0 %v2391
    %2609 = vmatpush.msra.mxu0 %v2390
    %2610 = vmatmul.f32.gmra.mxu0 %v2330
    %v2611 = vpop.f32.mrf.mxu0
    %v2612 = vadd.f32 %v2592, %v2611
    %2613 = vdwg.mxu0
    %2614 = vmatpush.msra.mxu0 %v2421
    %2615 = vmatpush.msra.mxu0 %v2420
    %2616 = vmatpush.msra.mxu0 %v2419
    %2617 = vmatpush.msra.mxu0 %v2418
    %2618 = vmatpush.msra.mxu0 %v2417
    %2619 = vmatpush.msra.mxu0 %v2416
    %2620 = vmatpush.msra.mxu0 %v2415
    %2621 = vmatpush.msra.mxu0 %v2414
    %2622 = vmatpush.msra.mxu0 %v2413
    %2623 = vmatpush.msra.mxu0 %v2412
    %2624 = vmatpush.msra.mxu0 %v2411
    %2625 = vmatpush.msra.mxu0 %v2410
    %2626 = vmatpush.msra.mxu0 %v2409
    %2627 = vmatpush.msra.mxu0 %v2408
    %2628 = vmatpush.msra.mxu0 %v2407
    %2629 = vmatpush.msra.mxu0 %v2406
    %2630 = vmatmul.f32.gmra.mxu0 %v2334
    %v2631 = vpop.f32.mrf.mxu0
    %v2632 = vadd.f32 %v2612, %v2631
    %2633 = vdwg.mxu0
    %2634 = vmatpush.msra.mxu0 %v2437
    %2635 = vmatpush.msra.mxu0 %v2436
    %2636 = vmatpush.msra.mxu0 %v2435
    %2637 = vmatpush.msra.mxu0 %v2434
    %2638 = vmatpush.msra.mxu0 %v2433
    %2639 = vmatpush.msra.mxu0 %v2432
    %2640 = vmatpush.msra.mxu0 %v2431
    %2641 = vmatpush.msra.mxu0 %v2430
    %2642 = vmatpush.msra.mxu0 %v2429
    %2643 = vmatpush.msra.mxu0 %v2428
    %2644 = vmatpush.msra.mxu0 %v2427
    %2645 = vmatpush.msra.mxu0 %v2426
    %2646 = vmatpush.msra.mxu0 %v2425
    %2647 = vmatpush.msra.mxu0 %v2424
    %2648 = vmatpush.msra.mxu0 %v2423
    %2649 = vmatpush.msra.mxu0 %v2422
    %2650 = vmatmul.f32.gmra.mxu0 %v2338
    %v2651 = vpop.f32.mrf.mxu0
    %v2652 = vadd.f32 %v2632, %v2651
    %2653 = vdwg.mxu0
    %2654 = vmatpush.msra.mxu0 %v2453
    %2655 = vmatpush.msra.mxu0 %v2452
    %2656 = vmatpush.msra.mxu0 %v2451
    %2657 = vmatpush.msra.mxu0 %v2450
    %2658 = vmatpush.msra.mxu0 %v2449
    %2659 = vmatpush.msra.mxu0 %v2448
    %2660 = vmatpush.msra.mxu0 %v2447
    %2661 = vmatpush.msra.mxu0 %v2446
    %2662 = vmatpush.msra.mxu0 %v2445
    %2663 = vmatpush.msra.mxu0 %v2444
    %2664 = vmatpush.msra.mxu0 %v2443
    %2665 = vmatpush.msra.mxu0 %v2442
    %2666 = vmatpush.msra.mxu0 %v2441
    %2667 = vmatpush.msra.mxu0 %v2440
    %2668 = vmatpush.msra.mxu0 %v2439
    %2669 = vmatpush.msra.mxu0 %v2438
    %2670 = vmatmul.f32.gmra.mxu0 %v2342
    %v2671 = vpop.f32.mrf.mxu0
    %v2672 = vadd.f32 %v2652, %v2671
    %2673 = vdwg.mxu0
    %2674 = vmatpush.msra.mxu0 %v2469
    %2675 = vmatpush.msra.mxu0 %v2468
    %2676 = vmatpush.msra.mxu0 %v2467
    %2677 = vmatpush.msra.mxu0 %v2466
    %2678 = vmatpush.msra.mxu0 %v2465
    %2679 = vmatpush.msra.mxu0 %v2464
    %2680 = vmatpush.msra.mxu0 %v2463
    %2681 = vmatpush.msra.mxu0 %v2462
    %2682 = vmatpush.msra.mxu0 %v2461
    %2683 = vmatpush.msra.mxu0 %v2460
    %2684 = vmatpush.msra.mxu0 %v2459
    %2685 = vmatpush.msra.mxu0 %v2458
    %2686 = vmatpush.msra.mxu0 %v2457
    %2687 = vmatpush.msra.mxu0 %v2456
    %2688 = vmatpush.msra.mxu0 %v2455
    %2689 = vmatpush.msra.mxu0 %v2454
    %2690 = vmatmul.f32.gmra.mxu0 %v2346
    %v2691 = vpop.f32.mrf.mxu0
    %v2692 = vadd.f32 %v2672, %v2691
    %2693 = vdwg.mxu0
    %2694 = vmatpush.msra.mxu0 %v2485
    %2695 = vmatpush.msra.mxu0 %v2484
    %2696 = vmatpush.msra.mxu0 %v2483
    %2697 = vmatpush.msra.mxu0 %v2482
    %2698 = vmatpush.msra.mxu0 %v2481
    %2699 = vmatpush.msra.mxu0 %v2480
    %2700 = vmatpush.msra.mxu0 %v2479
    %2701 = vmatpush.msra.mxu0 %v2478
    %2702 = vmatpush.msra.mxu0 %v2477
    %2703 = vmatpush.msra.mxu0 %v2476
    %2704 = vmatpush.msra.mxu0 %v2475
    %2705 = vmatpush.msra.mxu0 %v2474
    %2706 = vmatpush.msra.mxu0 %v2473
    %2707 = vmatpush.msra.mxu0 %v2472
    %2708 = vmatpush.msra.mxu0 %v2471
    %2709 = vmatpush.msra.mxu0 %v2470
    %2710 = vmatmul.f32.gmra.mxu0 %v2350
    %v2711 = vpop.f32.mrf.mxu0
    %v2712 = vadd.f32 %v2692, %v2711
    %2713 = vdwg.mxu0
    %2714 = vmatpush.msra.mxu0 %v2501
    %2715 = vmatpush.msra.mxu0 %v2500
    %2716 = vmatpush.msra.mxu0 %v2499
    %2717 = vmatpush.msra.mxu0 %v2498
    %2718 = vmatpush.msra.mxu0 %v2497
    %2719 = vmatpush.msra.mxu0 %v2496
    %2720 = vmatpush.msra.mxu0 %v2495
    %2721 = vmatpush.msra.mxu0 %v2494
    %2722 = vmatpush.msra.mxu0 %v2493
    %2723 = vmatpush.msra.mxu0 %v2492
    %2724 = vmatpush.msra.mxu0 %v2491
    %2725 = vmatpush.msra.mxu0 %v2490
    %2726 = vmatpush.msra.mxu0 %v2489
    %2727 = vmatpush.msra.mxu0 %v2488
    %2728 = vmatpush.msra.mxu0 %v2487
    %2729 = vmatpush.msra.mxu0 %v2486
    %2730 = vmatmul.f32.gmra.mxu0 %v2321
    %v2731 = vpop.f32.mrf.mxu0
    %v2732 = vadd.f32 %v2712, %v2731
    %2733 = vdwg.mxu0
    %2734 = vmatpush.msra.mxu0 %v2517
    %2735 = vmatpush.msra.mxu0 %v2516
    %2736 = vmatpush.msra.mxu0 %v2515
    %2737 = vmatpush.msra.mxu0 %v2514
    %2738 = vmatpush.msra.mxu0 %v2513
    %2739 = vmatpush.msra.mxu0 %v2512
    %2740 = vmatpush.msra.mxu0 %v2511
    %2741 = vmatpush.msra.mxu0 %v2510
    %2742 = vmatpush.msra.mxu0 %v2509
    %2743 = vmatpush.msra.mxu0 %v2508
    %2744 = vmatpush.msra.mxu0 %v2507
    %2745 = vmatpush.msra.mxu0 %v2506
    %2746 = vmatpush.msra.mxu0 %v2505
    %2747 = vmatpush.msra.mxu0 %v2504
    %2748 = vmatpush.msra.mxu0 %v2503
    %2749 = vmatpush.msra.mxu0 %v2502
    %2750 = vmatmul.f32.gmra.mxu0 %v2352
    %v2751 = vpop.f32.mrf.mxu0
    %v2752 = vadd.f32 %v2732, %v2751
    %2753 = vdwg.mxu0
    %2754 = vmatpush.msra.mxu0 %v2533
    %2755 = vmatpush.msra.mxu0 %v2532
    %2756 = vmatpush.msra.mxu0 %v2531
    %2757 = vmatpush.msra.mxu0 %v2530
    %2758 = vmatpush.msra.mxu0 %v2529
    %2759 = vmatpush.msra.mxu0 %v2528
    %2760 = vmatpush.msra.mxu0 %v2527
    %2761 = vmatpush.msra.mxu0 %v2526
    %2762 = vmatpush.msra.mxu0 %v2525
    %2763 = vmatpush.msra.mxu0 %v2524
    %2764 = vmatpush.msra.mxu0 %v2523
    %2765 = vmatpush.msra.mxu0 %v2522
    %2766 = vmatpush.msra.mxu0 %v2521
    %2767 = vmatpush.msra.mxu0 %v2520
    %2768 = vmatpush.msra.mxu0 %v2519
    %2769 = vmatpush.msra.mxu0 %v2518
    %2770 = vmatmul.f32.gmra.mxu0 %v2354
    %v2771 = vpop.f32.mrf.mxu0
    %v2772 = vadd.f32 %v2752, %v2771
    %2773 = vdwg.mxu0
    %2774 = vmatpush.msra.mxu0 %v2549
    %2775 = vmatpush.msra.mxu0 %v2548
    %2776 = vmatpush.msra.mxu0 %v2547
    %2777 = vmatpush.msra.mxu0 %v2546
    %2778 = vmatpush.msra.mxu0 %v2545
    %2779 = vmatpush.msra.mxu0 %v2544
    %2780 = vmatpush.msra.mxu0 %v2543
    %2781 = vmatpush.msra.mxu0 %v2542
    %2782 = vmatpush.msra.mxu0 %v2541
    %2783 = vmatpush.msra.mxu0 %v2540
    %2784 = vmatpush.msra.mxu0 %v2539
    %2785 = vmatpush.msra.mxu0 %v2538
    %2786 = vmatpush.msra.mxu0 %v2537
    %2787 = vmatpush.msra.mxu0 %v2536
    %2788 = vmatpush.msra.mxu0 %v2535
    %2789 = vmatpush.msra.mxu0 %v2534
    %2790 = vmatmul.f32.gmra.mxu0 %v2356
    %v2791 = vpop.f32.mrf.mxu0
    %v2792 = vadd.f32 %v2772, %v2791
    %2793 = vdwg.mxu0
    %v2794 = vmax.f32 %v2792, 0.0
    %v2795 = vrot.slane %v2794, 4
    %v2796 = vadd.f32 %v2794, %v2795
    %v2797 = vrot.slane %v2796, 2
    %v2798 = vadd.f32 %v2796, %v2797
    %v2799 = vrot.slane %v2798, 1
    %v2800 = vadd.f32 %v2798, %v2799
    %v2801 = vmul.f32 %v2800, %v2229
    %v2802 = vld [vmem:[%s15] sm:$0xff]
    %v2803 = vld [vmem:[%s15 + $0x8] sm:$0xff]
    %v2804 = vld [vmem:[%s15 + $0x10] sm:$0xff]
    %v2805 = vld [vmem:[%s15 + $0x18] sm:$0xff]
    %v2806 = vld [vmem:[%s15 + $0x20] sm:$0xff]
    %v2807 = vld [vmem:[%s15 + $0x28] sm:$0xff]
    %v2808 = vld [vmem:[%s15 + $0x30] sm:$0xff]
    %v2809 = vld [vmem:[%s15 + $0x38] sm:$0xff]
    %v2810 = vld [vmem:[%s15 + $0x40] sm:$0xff]
    %v2811 = vld [vmem:[%s15 + $0x48] sm:$0xff]
    %v2812 = vld [vmem:[%s15 + $0x50] sm:$0xff]
    %v2813 = vld [vmem:[%s15 + $0x58] sm:$0xff]
    %v2814 = vld [vmem:[%s15 + $0x60] sm:$0xff]
    %v2815 = vld [vmem:[%s15 + $0x68] sm:$0xff]
    %v2816 = vld [vmem:[%s15 + $0x70] sm:$0xff]
    %v2817 = vld [vmem:[%s15 + $0x78] sm:$0xff]
    %2818 = vmatpush.msra.mxu0 %v2817
    %2819 = vmatpush.msra.mxu0 %v2816
    %2820 = vmatpush.msra.mxu0 %v2815
    %2821 = vmatpush.msra.mxu0 %v2814
    %2822 = vmatpush.msra.mxu0 %v2813
    %2823 = vmatpush.msra.mxu0 %v2812
    %2824 = vmatpush.msra.mxu0 %v2811
    %2825 = vmatpush.msra.mxu0 %v2810
    %2826 = vmatpush.msra.mxu0 %v2809
    %2827 = vmatpush.msra.mxu0 %v2808
    %2828 = vmatpush.msra.mxu0 %v2807
    %2829 = vmatpush.msra.mxu0 %v2806
    %2830 = vmatpush.msra.mxu0 %v2805
    %2831 = vmatpush.msra.mxu0 %v2804
    %2832 = vmatpush.msra.mxu0 %v2803
    %2833 = vmatpush.msra.mxu0 %v2802
    %2834 = vmatmul.f32.gmra.mxu0 %v2801
    %v2835 = vpop.f32.mrf.mxu0
    %v2836 = vadd.f32 0.0, %v2835
    %2837 = vdwg.mxu0
    %v2838 = vmax.f32 %v2836, 0.0
    %v2839 = vld [vmem:[#allocation22] sm:$0x3f]
    %v2841 = vsel %vm2269, %v2838, 0
    %v2844 = vsel %vm414, %v2839, 0
    %2846 = vmatpush.msra.mxu0 0.0
    %2847 = vmatpush.msra.mxu0 0.0
    %2848 = vmatpush.msra.mxu0 0.0
    %2849 = vmatpush.msra.mxu0 0.0
    %2850 = vmatpush.msra.mxu0 0.0
    %2851 = vmatpush.msra.mxu0 0.0
    %2852 = vmatpush.msra.mxu0 0.0
    %2853 = vmatpush.msra.mxu0 0.0
    %2854 = vmatpush.msra.mxu0 0.0
    %2855 = vmatpush.msra.mxu0 0.0
    %2856 = vmatpush.msra.mxu0 0.0
    %2857 = vmatpush.msra.mxu0 0.0
    %2858 = vmatpush.msra.mxu0 0.0
    %2859 = vmatpush.msra.mxu0 0.0
    %2860 = vmatpush.msra.mxu0 0.0
    %2861 = vmatpush.msra.mxu0 %v2844
    %2862 = vmatmul.f32.gmra.mxu0 %v2841
    %v2863 = vpop.f32.mrf.mxu0
    %v2864 = vadd.f32 0.0, %v2863
    %2865 = vdwg.mxu0
    %v2866 = vxor.u32 %v2864, 2147483648
    %v2867 = vmul.f32 %v2866, 1.442695
    %v2868 = vpow.pop %v2867
    %v2869 = vadd.f32 %v2868, 1.0
    %v2870 = vrcp.pop %v2869
    %v2871 = vmul.f32 %v2869, %v2870
    %v2872 = vsub.f32 1.0, %v2871
    %v2873 = vmul.f32 %v2870, %v2872
    %v2874 = vadd.f32 %v2870, %v2873
    %vm2875 = vweird.f32 %v2869
    %vm2876 = vweird.f32 %v2870
    %vm2877 = vmor %vm2875, %vm2876
    %v2878 = vsel %vm2877, %v2870, %v2874
    %v2879 = vand.u32 2147483647, %v2869
    %vm2880 = vcmp.eq.f32.partialorder %v2879, 8.507059e+37
    %v2881 = vand.u32 %v2869, 2147483648
    %v2882 = vor.u32 1.1754944e-38, %v2881
    %v2883 = vsel %vm2880, %v2882, %v2878
    %v2884 = vmul.f32 1.0, %v2883
    %v2885 = vperm.slane %v2884, 0
    %v2886 = vmul.f32 %v2794, %v2885
    %v2888 = vrot.slane %v2886, 7
    %v2890 = vsel %vm453, 0.0, %v2888
    %v2891 = vsel %vm453, %v2888, 0.0
    %v2894 = vrot.slane %v2890, 1
    %v2895 = vrot.slane %v2891, 1
    %v2896 = vsel %vm406, %v2894, %v2895
    %v2898 = vmax.f32 %v2890, %v2896
    %v2899 = vrot.slane %v2890, 2
    %v2900 = vrot.slane %v2891, 2
    %v2901 = vsel %vm414, %v2899, %v2900
    %v2903 = vmax.f32 %v2898, %v2901
    %v2905 = vrot.slane %v2903, 2
    %v2906 = vrot.slane %v2903, 4
    %v2907 = vrot.slane %v2903, 6
    %v2908 = vperm.slane %v2903, 0
    %v2909 = vperm.slane %v2905, 0
    %v2910 = vperm.slane %v2906, 0
    %v2911 = vperm.slane %v2907, 0
    %v2912 = vsel %vm1728, %v2909, %v2908
    %v2913 = vsel %vm1730, %v2910, %v2912
    %v2916 = vsel %vm395, 0.0, %v2913
    %v2917 = vsel %vm453, %v2911, 0.0
    %v2919 = vrot.slane %v2916, 1
    %v2921 = vrot.slane %v2916, 2
    %v2923 = vrot.slane %v2916, 3
    %v2925 = vrot.slane %v2916, 4
    %v2928 = vrot.slane %v2916, 5
    %v2929 = vrot.slane %v2917, 5
    %v2930 = vsel %vm437, %v2928, %v2929
    %v2932 = vrot.slane %v2916, 6
    %v2933 = vrot.slane %v2917, 6
    %v2934 = vsel %vm445, %v2932, %v2933
    %v2936 = vrot.slane %v2916, 7
    %v2937 = vrot.slane %v2917, 7
    %v2938 = vsel %vm453, %v2936, %v2937
    %v2940 = vrot.slane %v2917, 1
    %v2942 = vrot.slane %v2917, 2
    %v2944 = vrot.slane %v2917, 3
    %v2946 = vld [vmem:[#allocation23] sm:$0xff]
    %v2947 = vld [vmem:[#allocation23 + $0x8] sm:$0xff]
    %v2948 = vld [vmem:[#allocation23 + $0x10] sm:$0xff]
    %v2949 = vld [vmem:[#allocation23 + $0x18] sm:$0xff]
    %v2950 = vld [vmem:[#allocation23 + $0x20] sm:$0xff]
    %v2951 = vld [vmem:[#allocation23 + $0x28] sm:$0xff]
    %v2952 = vld [vmem:[#allocation23 + $0x30] sm:$0xff]
    %v2953 = vld [vmem:[#allocation23 + $0x38] sm:$0xff]
    %v2954 = vld [vmem:[#allocation23 + $0x40] sm:$0xff]
    %v2955 = vld [vmem:[#allocation23 + $0x48] sm:$0xff]
    %v2956 = vld [vmem:[#allocation23 + $0x50] sm:$0xff]
    %v2957 = vld [vmem:[#allocation23 + $0x58] sm:$0xff]
    %v2958 = vld [vmem:[#allocation23 + $0x60] sm:$0xff]
    %v2959 = vld [vmem:[#allocation23 + $0x68] sm:$0xff]
    %v2960 = vld [vmem:[#allocation23 + $0x70] sm:$0xff]
    %v2961 = vld [vmem:[#allocation23 + $0x78] sm:$0xff]
    %v2962 = vld [vmem:[#allocation23 + $0x80] sm:$0xff]
    %v2963 = vld [vmem:[#allocation23 + $0x88] sm:$0xff]
    %v2964 = vld [vmem:[#allocation23 + $0x90] sm:$0xff]
    %v2965 = vld [vmem:[#allocation23 + $0x98] sm:$0xff]
    %v2966 = vld [vmem:[#allocation23 + $0xa0] sm:$0xff]
    %v2967 = vld [vmem:[#allocation23 + $0xa8] sm:$0xff]
    %v2968 = vld [vmem:[#allocation23 + $0xb0] sm:$0xff]
    %v2969 = vld [vmem:[#allocation23 + $0xb8] sm:$0xff]
    %v2970 = vld [vmem:[#allocation23 + $0xc0] sm:$0xff]
    %v2971 = vld [vmem:[#allocation23 + $0xc8] sm:$0xff]
    %v2972 = vld [vmem:[#allocation23 + $0xd0] sm:$0xff]
    %v2973 = vld [vmem:[#allocation23 + $0xd8] sm:$0xff]
    %v2974 = vld [vmem:[#allocation23 + $0xe0] sm:$0xff]
    %v2975 = vld [vmem:[#allocation23 + $0xe8] sm:$0xff]
    %v2976 = vld [vmem:[#allocation23 + $0xf0] sm:$0xff]
    %v2977 = vld [vmem:[#allocation23 + $0xf8] sm:$0xff]
    %v2978 = vld [vmem:[#allocation23 + $0x100] sm:$0xff]
    %v2979 = vld [vmem:[#allocation23 + $0x108] sm:$0xff]
    %v2980 = vld [vmem:[#allocation23 + $0x110] sm:$0xff]
    %v2981 = vld [vmem:[#allocation23 + $0x118] sm:$0xff]
    %v2982 = vld [vmem:[#allocation23 + $0x120] sm:$0xff]
    %v2983 = vld [vmem:[#allocation23 + $0x128] sm:$0xff]
    %v2984 = vld [vmem:[#allocation23 + $0x130] sm:$0xff]
    %v2985 = vld [vmem:[#allocation23 + $0x138] sm:$0xff]
    %v2986 = vld [vmem:[#allocation23 + $0x140] sm:$0xff]
    %v2987 = vld [vmem:[#allocation23 + $0x148] sm:$0xff]
    %v2988 = vld [vmem:[#allocation23 + $0x150] sm:$0xff]
    %v2989 = vld [vmem:[#allocation23 + $0x158] sm:$0xff]
    %v2990 = vld [vmem:[#allocation23 + $0x160] sm:$0xff]
    %v2991 = vld [vmem:[#allocation23 + $0x168] sm:$0xff]
    %v2992 = vld [vmem:[#allocation23 + $0x170] sm:$0xff]
    %v2993 = vld [vmem:[#allocation23 + $0x178] sm:$0xff]
    %v2994 = vld [vmem:[#allocation23 + $0x180] sm:$0xff]
    %v2995 = vld [vmem:[#allocation23 + $0x188] sm:$0xff]
    %v2996 = vld [vmem:[#allocation23 + $0x190] sm:$0xff]
    %v2997 = vld [vmem:[#allocation23 + $0x198] sm:$0xff]
    %v2998 = vld [vmem:[#allocation23 + $0x1a0] sm:$0xff]
    %v2999 = vld [vmem:[#allocation23 + $0x1a8] sm:$0xff]
    %v3000 = vld [vmem:[#allocation23 + $0x1b0] sm:$0xff]
    %v3001 = vld [vmem:[#allocation23 + $0x1b8] sm:$0xff]
    %v3002 = vld [vmem:[#allocation23 + $0x1c0] sm:$0xff]
    %v3003 = vld [vmem:[#allocation23 + $0x1c8] sm:$0xff]
    %v3004 = vld [vmem:[#allocation23 + $0x1d0] sm:$0xff]
    %v3005 = vld [vmem:[#allocation23 + $0x1d8] sm:$0xff]
    %v3006 = vld [vmem:[#allocation23 + $0x1e0] sm:$0xff]
    %v3007 = vld [vmem:[#allocation23 + $0x1e8] sm:$0xff]
    %v3008 = vld [vmem:[#allocation23 + $0x1f0] sm:$0xff]
    %v3009 = vld [vmem:[#allocation23 + $0x1f8] sm:$0xff]
    %v3010 = vld [vmem:[#allocation23 + $0x200] sm:$0xff]
    %v3011 = vld [vmem:[#allocation23 + $0x208] sm:$0xff]
    %v3012 = vld [vmem:[#allocation23 + $0x210] sm:$0xff]
    %v3013 = vld [vmem:[#allocation23 + $0x218] sm:$0xff]
    %v3014 = vld [vmem:[#allocation23 + $0x220] sm:$0xff]
    %v3015 = vld [vmem:[#allocation23 + $0x228] sm:$0xff]
    %v3016 = vld [vmem:[#allocation23 + $0x230] sm:$0xff]
    %v3017 = vld [vmem:[#allocation23 + $0x238] sm:$0xff]
    %v3018 = vld [vmem:[#allocation23 + $0x240] sm:$0xff]
    %v3019 = vld [vmem:[#allocation23 + $0x248] sm:$0xff]
    %v3020 = vld [vmem:[#allocation23 + $0x250] sm:$0xff]
    %v3021 = vld [vmem:[#allocation23 + $0x258] sm:$0xff]
    %v3022 = vld [vmem:[#allocation23 + $0x260] sm:$0xff]
    %v3023 = vld [vmem:[#allocation23 + $0x268] sm:$0xff]
    %v3024 = vld [vmem:[#allocation23 + $0x270] sm:$0xff]
    %v3025 = vld [vmem:[#allocation23 + $0x278] sm:$0xff]
    %v3026 = vld [vmem:[#allocation23 + $0x280] sm:$0xff]
    %v3027 = vld [vmem:[#allocation23 + $0x288] sm:$0xff]
    %v3028 = vld [vmem:[#allocation23 + $0x290] sm:$0xff]
    %v3029 = vld [vmem:[#allocation23 + $0x298] sm:$0xff]
    %v3030 = vld [vmem:[#allocation23 + $0x2a0] sm:$0xff]
    %v3031 = vld [vmem:[#allocation23 + $0x2a8] sm:$0xff]
    %v3032 = vld [vmem:[#allocation23 + $0x2b0] sm:$0xff]
    %v3033 = vld [vmem:[#allocation23 + $0x2b8] sm:$0xff]
    %v3034 = vld [vmem:[#allocation23 + $0x2c0] sm:$0xff]
    %v3035 = vld [vmem:[#allocation23 + $0x2c8] sm:$0xff]
    %v3036 = vld [vmem:[#allocation23 + $0x2d0] sm:$0xff]
    %v3037 = vld [vmem:[#allocation23 + $0x2d8] sm:$0xff]
    %v3038 = vld [vmem:[#allocation23 + $0x2e0] sm:$0xff]
    %v3039 = vld [vmem:[#allocation23 + $0x2e8] sm:$0xff]
    %v3040 = vld [vmem:[#allocation23 + $0x2f0] sm:$0xff]
    %v3041 = vld [vmem:[#allocation23 + $0x2f8] sm:$0xff]
    %v3042 = vld [vmem:[#allocation23 + $0x300] sm:$0xff]
    %v3043 = vld [vmem:[#allocation23 + $0x308] sm:$0xff]
    %v3044 = vld [vmem:[#allocation23 + $0x310] sm:$0xff]
    %v3045 = vld [vmem:[#allocation23 + $0x318] sm:$0xff]
    %v3046 = vld [vmem:[#allocation23 + $0x320] sm:$0xff]
    %v3047 = vld [vmem:[#allocation23 + $0x328] sm:$0xff]
    %v3048 = vld [vmem:[#allocation23 + $0x330] sm:$0xff]
    %v3049 = vld [vmem:[#allocation23 + $0x338] sm:$0xff]
    %v3050 = vld [vmem:[#allocation23 + $0x340] sm:$0xff]
    %v3051 = vld [vmem:[#allocation23 + $0x348] sm:$0xff]
    %v3052 = vld [vmem:[#allocation23 + $0x350] sm:$0xff]
    %v3053 = vld [vmem:[#allocation23 + $0x358] sm:$0xff]
    %v3054 = vld [vmem:[#allocation23 + $0x360] sm:$0xff]
    %v3055 = vld [vmem:[#allocation23 + $0x368] sm:$0xff]
    %v3056 = vld [vmem:[#allocation23 + $0x370] sm:$0xff]
    %v3057 = vld [vmem:[#allocation23 + $0x378] sm:$0xff]
    %v3058 = vld [vmem:[#allocation23 + $0x380] sm:$0xff]
    %v3059 = vld [vmem:[#allocation23 + $0x388] sm:$0xff]
    %v3060 = vld [vmem:[#allocation23 + $0x390] sm:$0xff]
    %v3061 = vld [vmem:[#allocation23 + $0x398] sm:$0xff]
    %v3062 = vld [vmem:[#allocation23 + $0x3a0] sm:$0xff]
    %v3063 = vld [vmem:[#allocation23 + $0x3a8] sm:$0xff]
    %v3064 = vld [vmem:[#allocation23 + $0x3b0] sm:$0xff]
    %v3065 = vld [vmem:[#allocation23 + $0x3b8] sm:$0xff]
    %v3066 = vld [vmem:[#allocation23 + $0x3c0] sm:$0xff]
    %v3067 = vld [vmem:[#allocation23 + $0x3c8] sm:$0xff]
    %v3068 = vld [vmem:[#allocation23 + $0x3d0] sm:$0xff]
    %v3069 = vld [vmem:[#allocation23 + $0x3d8] sm:$0xff]
    %v3070 = vld [vmem:[#allocation23 + $0x3e0] sm:$0xff]
    %v3071 = vld [vmem:[#allocation23 + $0x3e8] sm:$0xff]
    %v3072 = vld [vmem:[#allocation23 + $0x3f0] sm:$0xff]
    %v3073 = vld [vmem:[#allocation23 + $0x3f8] sm:$0xff]
    %v3074 = vld [vmem:[#allocation23 + $0x400] sm:$0xff]
    %v3075 = vld [vmem:[#allocation23 + $0x408] sm:$0xff]
    %v3076 = vld [vmem:[#allocation23 + $0x410] sm:$0xff]
    %v3077 = vld [vmem:[#allocation23 + $0x418] sm:$0xff]
    %v3078 = vld [vmem:[#allocation23 + $0x420] sm:$0xff]
    %v3079 = vld [vmem:[#allocation23 + $0x428] sm:$0xff]
    %v3080 = vld [vmem:[#allocation23 + $0x430] sm:$0xff]
    %v3081 = vld [vmem:[#allocation23 + $0x438] sm:$0xff]
    %v3082 = vld [vmem:[#allocation23 + $0x440] sm:$0xff]
    %v3083 = vld [vmem:[#allocation23 + $0x448] sm:$0xff]
    %v3084 = vld [vmem:[#allocation23 + $0x450] sm:$0xff]
    %v3085 = vld [vmem:[#allocation23 + $0x458] sm:$0xff]
    %v3086 = vld [vmem:[#allocation23 + $0x460] sm:$0xff]
    %v3087 = vld [vmem:[#allocation23 + $0x468] sm:$0xff]
    %v3088 = vld [vmem:[#allocation23 + $0x470] sm:$0xff]
    %v3089 = vld [vmem:[#allocation23 + $0x478] sm:$0xff]
    %v3090 = vld [vmem:[#allocation23 + $0x480] sm:$0xff]
    %v3091 = vld [vmem:[#allocation23 + $0x488] sm:$0xff]
    %v3092 = vld [vmem:[#allocation23 + $0x490] sm:$0xff]
    %v3093 = vld [vmem:[#allocation23 + $0x498] sm:$0xff]
    %v3094 = vld [vmem:[#allocation23 + $0x4a0] sm:$0xff]
    %v3095 = vld [vmem:[#allocation23 + $0x4a8] sm:$0xff]
    %v3096 = vld [vmem:[#allocation23 + $0x4b0] sm:$0xff]
    %v3097 = vld [vmem:[#allocation23 + $0x4b8] sm:$0xff]
    %v3098 = vld [vmem:[#allocation23 + $0x4c0] sm:$0xff]
    %v3099 = vld [vmem:[#allocation23 + $0x4c8] sm:$0xff]
    %v3100 = vld [vmem:[#allocation23 + $0x4d0] sm:$0xff]
    %v3101 = vld [vmem:[#allocation23 + $0x4d8] sm:$0xff]
    %v3102 = vld [vmem:[#allocation23 + $0x4e0] sm:$0xff]
    %v3103 = vld [vmem:[#allocation23 + $0x4e8] sm:$0xff]
    %v3104 = vld [vmem:[#allocation23 + $0x4f0] sm:$0xff]
    %v3105 = vld [vmem:[#allocation23 + $0x4f8] sm:$0xff]
    %v3106 = vld [vmem:[#allocation23 + $0x500] sm:$0xff]
    %v3107 = vld [vmem:[#allocation23 + $0x508] sm:$0xff]
    %v3108 = vld [vmem:[#allocation23 + $0x510] sm:$0xff]
    %v3109 = vld [vmem:[#allocation23 + $0x518] sm:$0xff]
    %v3110 = vld [vmem:[#allocation23 + $0x520] sm:$0xff]
    %v3111 = vld [vmem:[#allocation23 + $0x528] sm:$0xff]
    %v3112 = vld [vmem:[#allocation23 + $0x530] sm:$0xff]
    %v3113 = vld [vmem:[#allocation23 + $0x538] sm:$0xff]
    %v3114 = vld [vmem:[#allocation23 + $0x540] sm:$0xff]
    %v3115 = vld [vmem:[#allocation23 + $0x548] sm:$0xff]
    %v3116 = vld [vmem:[#allocation23 + $0x550] sm:$0xff]
    %v3117 = vld [vmem:[#allocation23 + $0x558] sm:$0xff]
    %v3118 = vld [vmem:[#allocation23 + $0x560] sm:$0xff]
    %v3119 = vld [vmem:[#allocation23 + $0x568] sm:$0xff]
    %v3120 = vld [vmem:[#allocation23 + $0x570] sm:$0xff]
    %v3121 = vld [vmem:[#allocation23 + $0x578] sm:$0xff]
    %v3122 = vld [vmem:[#allocation23 + $0x580] sm:$0xff]
    %v3123 = vld [vmem:[#allocation23 + $0x588] sm:$0xff]
    %v3124 = vld [vmem:[#allocation23 + $0x590] sm:$0xff]
    %v3125 = vld [vmem:[#allocation23 + $0x598] sm:$0xff]
    %v3126 = vld [vmem:[#allocation23 + $0x5a0] sm:$0xff]
    %v3127 = vld [vmem:[#allocation23 + $0x5a8] sm:$0xff]
    %v3128 = vld [vmem:[#allocation23 + $0x5b0] sm:$0xff]
    %v3129 = vld [vmem:[#allocation23 + $0x5b8] sm:$0xff]
    %v3130 = vld [vmem:[#allocation23 + $0x5c0] sm:$0xff]
    %v3131 = vld [vmem:[#allocation23 + $0x5c8] sm:$0xff]
    %v3132 = vld [vmem:[#allocation23 + $0x5d0] sm:$0xff]
    %v3133 = vld [vmem:[#allocation23 + $0x5d8] sm:$0xff]
    %v3134 = vld [vmem:[#allocation23 + $0x5e0] sm:$0xff]
    %v3135 = vld [vmem:[#allocation23 + $0x5e8] sm:$0xff]
    %v3136 = vld [vmem:[#allocation23 + $0x5f0] sm:$0xff]
    %v3137 = vld [vmem:[#allocation23 + $0x5f8] sm:$0xff]
    %v3138 = vld [vmem:[#allocation23 + $0x600] sm:$0xff]
    %v3139 = vld [vmem:[#allocation23 + $0x608] sm:$0xff]
    %v3140 = vld [vmem:[#allocation23 + $0x610] sm:$0xff]
    %v3141 = vld [vmem:[#allocation23 + $0x618] sm:$0xff]
    %v3142 = vld [vmem:[#allocation23 + $0x620] sm:$0xff]
    %v3143 = vld [vmem:[#allocation23 + $0x628] sm:$0xff]
    %v3144 = vld [vmem:[#allocation23 + $0x630] sm:$0xff]
    %v3145 = vld [vmem:[#allocation23 + $0x638] sm:$0xff]
    %v3146 = vld [vmem:[#allocation23 + $0x640] sm:$0xff]
    %v3147 = vld [vmem:[#allocation23 + $0x648] sm:$0xff]
    %v3148 = vld [vmem:[#allocation23 + $0x650] sm:$0xff]
    %v3149 = vld [vmem:[#allocation23 + $0x658] sm:$0xff]
    %v3150 = vld [vmem:[#allocation23 + $0x660] sm:$0xff]
    %v3151 = vld [vmem:[#allocation23 + $0x668] sm:$0xff]
    %v3152 = vld [vmem:[#allocation23 + $0x670] sm:$0xff]
    %v3153 = vld [vmem:[#allocation23 + $0x678] sm:$0xff]
    %v3154 = vld [vmem:[#allocation23 + $0x680] sm:$0xff]
    %v3155 = vld [vmem:[#allocation23 + $0x688] sm:$0xff]
    %v3156 = vld [vmem:[#allocation23 + $0x690] sm:$0xff]
    %v3157 = vld [vmem:[#allocation23 + $0x698] sm:$0xff]
    %v3158 = vld [vmem:[#allocation23 + $0x6a0] sm:$0xff]
    %v3159 = vld [vmem:[#allocation23 + $0x6a8] sm:$0xff]
    %v3160 = vld [vmem:[#allocation23 + $0x6b0] sm:$0xff]
    %v3161 = vld [vmem:[#allocation23 + $0x6b8] sm:$0xff]
    %v3162 = vld [vmem:[#allocation23 + $0x6c0] sm:$0xff]
    %v3163 = vld [vmem:[#allocation23 + $0x6c8] sm:$0xff]
    %v3164 = vld [vmem:[#allocation23 + $0x6d0] sm:$0xff]
    %v3165 = vld [vmem:[#allocation23 + $0x6d8] sm:$0xff]
    %v3166 = vld [vmem:[#allocation23 + $0x6e0] sm:$0xff]
    %v3167 = vld [vmem:[#allocation23 + $0x6e8] sm:$0xff]
    %v3168 = vld [vmem:[#allocation23 + $0x6f0] sm:$0xff]
    %v3169 = vld [vmem:[#allocation23 + $0x6f8] sm:$0xff]
    %v3170 = vld [vmem:[#allocation23 + $0x700] sm:$0xff]
    %v3171 = vld [vmem:[#allocation23 + $0x708] sm:$0xff]
    %v3172 = vld [vmem:[#allocation23 + $0x710] sm:$0xff]
    %v3173 = vld [vmem:[#allocation23 + $0x718] sm:$0xff]
    %v3174 = vld [vmem:[#allocation23 + $0x720] sm:$0xff]
    %v3175 = vld [vmem:[#allocation23 + $0x728] sm:$0xff]
    %v3176 = vld [vmem:[#allocation23 + $0x730] sm:$0xff]
    %v3177 = vld [vmem:[#allocation23 + $0x738] sm:$0xff]
    %v3178 = vld [vmem:[#allocation23 + $0x740] sm:$0xff]
    %v3179 = vld [vmem:[#allocation23 + $0x748] sm:$0xff]
    %v3180 = vld [vmem:[#allocation23 + $0x750] sm:$0xff]
    %v3181 = vld [vmem:[#allocation23 + $0x758] sm:$0xff]
    %v3182 = vld [vmem:[#allocation23 + $0x760] sm:$0xff]
    %v3183 = vld [vmem:[#allocation23 + $0x768] sm:$0xff]
    %v3184 = vld [vmem:[#allocation23 + $0x770] sm:$0xff]
    %v3185 = vld [vmem:[#allocation23 + $0x778] sm:$0xff]
    %v3186 = vld [vmem:[#allocation23 + $0x780] sm:$0xff]
    %v3187 = vld [vmem:[#allocation23 + $0x788] sm:$0xff]
    %v3188 = vld [vmem:[#allocation23 + $0x790] sm:$0xff]
    %v3189 = vld [vmem:[#allocation23 + $0x798] sm:$0xff]
    %v3190 = vld [vmem:[#allocation23 + $0x7a0] sm:$0xff]
    %v3191 = vld [vmem:[#allocation23 + $0x7a8] sm:$0xff]
    %v3192 = vld [vmem:[#allocation23 + $0x7b0] sm:$0xff]
    %v3193 = vld [vmem:[#allocation23 + $0x7b8] sm:$0xff]
    %v3194 = vld [vmem:[#allocation23 + $0x7c0] sm:$0xff]
    %v3195 = vld [vmem:[#allocation23 + $0x7c8] sm:$0xff]
    %v3196 = vld [vmem:[#allocation23 + $0x7d0] sm:$0xff]
    %v3197 = vld [vmem:[#allocation23 + $0x7d8] sm:$0xff]
    %v3198 = vld [vmem:[#allocation23 + $0x7e0] sm:$0xff]
    %v3199 = vld [vmem:[#allocation23 + $0x7e8] sm:$0xff]
    %v3200 = vld [vmem:[#allocation23 + $0x7f0] sm:$0xff]
    %v3201 = vld [vmem:[#allocation23 + $0x7f8] sm:$0xff]
    %v3202 = vld [vmem:[#allocation23 + $0x800] sm:$0xff]
    %v3203 = vld [vmem:[#allocation23 + $0x808] sm:$0xff]
    %v3204 = vld [vmem:[#allocation23 + $0x810] sm:$0xff]
    %v3205 = vld [vmem:[#allocation23 + $0x818] sm:$0xff]
    %v3206 = vld [vmem:[#allocation23 + $0x820] sm:$0xff]
    %v3207 = vld [vmem:[#allocation23 + $0x828] sm:$0xff]
    %v3208 = vld [vmem:[#allocation23 + $0x830] sm:$0xff]
    %v3209 = vld [vmem:[#allocation23 + $0x838] sm:$0xff]
    %v3210 = vld [vmem:[#allocation23 + $0x840] sm:$0xff]
    %v3211 = vld [vmem:[#allocation23 + $0x848] sm:$0xff]
    %v3212 = vld [vmem:[#allocation23 + $0x850] sm:$0xff]
    %v3213 = vld [vmem:[#allocation23 + $0x858] sm:$0xff]
    %v3214 = vld [vmem:[#allocation23 + $0x860] sm:$0xff]
    %v3215 = vld [vmem:[#allocation23 + $0x868] sm:$0xff]
    %v3216 = vld [vmem:[#allocation23 + $0x870] sm:$0xff]
    %v3217 = vld [vmem:[#allocation23 + $0x878] sm:$0xff]
    %v3218 = vld [vmem:[#allocation23 + $0x880] sm:$0xff]
    %v3219 = vld [vmem:[#allocation23 + $0x888] sm:$0xff]
    %v3220 = vld [vmem:[#allocation23 + $0x890] sm:$0xff]
    %v3221 = vld [vmem:[#allocation23 + $0x898] sm:$0xff]
    %v3222 = vld [vmem:[#allocation23 + $0x8a0] sm:$0xff]
    %v3223 = vld [vmem:[#allocation23 + $0x8a8] sm:$0xff]
    %v3224 = vld [vmem:[#allocation23 + $0x8b0] sm:$0xff]
    %v3225 = vld [vmem:[#allocation23 + $0x8b8] sm:$0xff]
    %v3226 = vld [vmem:[#allocation23 + $0x8c0] sm:$0xff]
    %v3227 = vld [vmem:[#allocation23 + $0x8c8] sm:$0xff]
    %v3228 = vld [vmem:[#allocation23 + $0x8d0] sm:$0xff]
    %v3229 = vld [vmem:[#allocation23 + $0x8d8] sm:$0xff]
    %v3230 = vld [vmem:[#allocation23 + $0x8e0] sm:$0xff]
    %v3231 = vld [vmem:[#allocation23 + $0x8e8] sm:$0xff]
    %v3232 = vld [vmem:[#allocation23 + $0x8f0] sm:$0xff]
    %v3233 = vld [vmem:[#allocation23 + $0x8f8] sm:$0xff]
    %v3234 = vld [vmem:[#allocation23 + $0x900] sm:$0xff]
    %v3235 = vld [vmem:[#allocation23 + $0x908] sm:$0xff]
    %v3236 = vld [vmem:[#allocation23 + $0x910] sm:$0xff]
    %v3237 = vld [vmem:[#allocation23 + $0x918] sm:$0xff]
    %v3238 = vld [vmem:[#allocation23 + $0x920] sm:$0xff]
    %v3239 = vld [vmem:[#allocation23 + $0x928] sm:$0xff]
    %v3240 = vld [vmem:[#allocation23 + $0x930] sm:$0xff]
    %v3241 = vld [vmem:[#allocation23 + $0x938] sm:$0xff]
    %v3242 = vld [vmem:[#allocation23 + $0x940] sm:$0xff]
    %v3243 = vld [vmem:[#allocation23 + $0x948] sm:$0xff]
    %v3244 = vld [vmem:[#allocation23 + $0x950] sm:$0xff]
    %v3245 = vld [vmem:[#allocation23 + $0x958] sm:$0xff]
    %v3246 = vld [vmem:[#allocation23 + $0x960] sm:$0xff]
    %v3247 = vld [vmem:[#allocation23 + $0x968] sm:$0xff]
    %v3248 = vld [vmem:[#allocation23 + $0x970] sm:$0xff]
    %v3249 = vld [vmem:[#allocation23 + $0x978] sm:$0xff]
    %v3250 = vld [vmem:[#allocation23 + $0x980] sm:$0xff]
    %v3251 = vld [vmem:[#allocation23 + $0x988] sm:$0xff]
    %v3252 = vld [vmem:[#allocation23 + $0x990] sm:$0xff]
    %v3253 = vld [vmem:[#allocation23 + $0x998] sm:$0xff]
    %v3254 = vld [vmem:[#allocation23 + $0x9a0] sm:$0xff]
    %v3255 = vld [vmem:[#allocation23 + $0x9a8] sm:$0xff]
    %v3256 = vld [vmem:[#allocation23 + $0x9b0] sm:$0xff]
    %v3257 = vld [vmem:[#allocation23 + $0x9b8] sm:$0xff]
    %v3258 = vld [vmem:[#allocation23 + $0x9c0] sm:$0xff]
    %v3259 = vld [vmem:[#allocation23 + $0x9c8] sm:$0xff]
    %v3260 = vld [vmem:[#allocation23 + $0x9d0] sm:$0xff]
    %v3261 = vld [vmem:[#allocation23 + $0x9d8] sm:$0xff]
    %v3262 = vld [vmem:[#allocation23 + $0x9e0] sm:$0xff]
    %v3263 = vld [vmem:[#allocation23 + $0x9e8] sm:$0xff]
    %v3264 = vld [vmem:[#allocation23 + $0x9f0] sm:$0xff]
    %v3265 = vld [vmem:[#allocation23 + $0x9f8] sm:$0xff]
    %v3266 = vld [vmem:[#allocation23 + $0xa00] sm:$0xff]
    %v3267 = vld [vmem:[#allocation23 + $0xa08] sm:$0xff]
    %v3268 = vld [vmem:[#allocation23 + $0xa10] sm:$0xff]
    %v3269 = vld [vmem:[#allocation23 + $0xa18] sm:$0xff]
    %v3270 = vld [vmem:[#allocation23 + $0xa20] sm:$0xff]
    %v3271 = vld [vmem:[#allocation23 + $0xa28] sm:$0xff]
    %v3272 = vld [vmem:[#allocation23 + $0xa30] sm:$0xff]
    %v3273 = vld [vmem:[#allocation23 + $0xa38] sm:$0xff]
    %v3274 = vld [vmem:[#allocation23 + $0xa40] sm:$0xff]
    %v3275 = vld [vmem:[#allocation23 + $0xa48] sm:$0xff]
    %v3276 = vld [vmem:[#allocation23 + $0xa50] sm:$0xff]
    %v3277 = vld [vmem:[#allocation23 + $0xa58] sm:$0xff]
    %v3278 = vld [vmem:[#allocation23 + $0xa60] sm:$0xff]
    %v3279 = vld [vmem:[#allocation23 + $0xa68] sm:$0xff]
    %v3280 = vld [vmem:[#allocation23 + $0xa70] sm:$0xff]
    %v3281 = vld [vmem:[#allocation23 + $0xa78] sm:$0xff]
    %v3282 = vld [vmem:[#allocation23 + $0xa80] sm:$0xff]
    %v3283 = vld [vmem:[#allocation23 + $0xa88] sm:$0xff]
    %v3284 = vld [vmem:[#allocation23 + $0xa90] sm:$0xff]
    %v3285 = vld [vmem:[#allocation23 + $0xa98] sm:$0xff]
    %v3286 = vld [vmem:[#allocation23 + $0xaa0] sm:$0xff]
    %v3287 = vld [vmem:[#allocation23 + $0xaa8] sm:$0xff]
    %v3288 = vld [vmem:[#allocation23 + $0xab0] sm:$0xff]
    %v3289 = vld [vmem:[#allocation23 + $0xab8] sm:$0xff]
    %v3290 = vld [vmem:[#allocation23 + $0xac0] sm:$0xff]
    %v3291 = vld [vmem:[#allocation23 + $0xac8] sm:$0xff]
    %v3292 = vld [vmem:[#allocation23 + $0xad0] sm:$0xff]
    %v3293 = vld [vmem:[#allocation23 + $0xad8] sm:$0xff]
    %v3294 = vld [vmem:[#allocation23 + $0xae0] sm:$0xff]
    %v3295 = vld [vmem:[#allocation23 + $0xae8] sm:$0xff]
    %v3296 = vld [vmem:[#allocation23 + $0xaf0] sm:$0xff]
    %v3297 = vld [vmem:[#allocation23 + $0xaf8] sm:$0xff]
    %v3298 = vld [vmem:[#allocation23 + $0xb00] sm:$0xff]
    %v3299 = vld [vmem:[#allocation23 + $0xb08] sm:$0xff]
    %v3300 = vld [vmem:[#allocation23 + $0xb10] sm:$0xff]
    %v3301 = vld [vmem:[#allocation23 + $0xb18] sm:$0xff]
    %v3302 = vld [vmem:[#allocation23 + $0xb20] sm:$0xff]
    %v3303 = vld [vmem:[#allocation23 + $0xb28] sm:$0xff]
    %v3304 = vld [vmem:[#allocation23 + $0xb30] sm:$0xff]
    %v3305 = vld [vmem:[#allocation23 + $0xb38] sm:$0xff]
    %v3306 = vld [vmem:[#allocation23 + $0xb40] sm:$0xff]
    %v3307 = vld [vmem:[#allocation23 + $0xb48] sm:$0xff]
    %v3308 = vld [vmem:[#allocation23 + $0xb50] sm:$0xff]
    %v3309 = vld [vmem:[#allocation23 + $0xb58] sm:$0xff]
    %v3310 = vld [vmem:[#allocation23 + $0xb60] sm:$0xff]
    %v3311 = vld [vmem:[#allocation23 + $0xb68] sm:$0xff]
    %v3312 = vld [vmem:[#allocation23 + $0xb70] sm:$0xff]
    %v3313 = vld [vmem:[#allocation23 + $0xb78] sm:$0xff]
    %v3314 = vld [vmem:[#allocation23 + $0xb80] sm:$0xff]
    %v3315 = vld [vmem:[#allocation23 + $0xb88] sm:$0xff]
    %v3316 = vld [vmem:[#allocation23 + $0xb90] sm:$0xff]
    %v3317 = vld [vmem:[#allocation23 + $0xb98] sm:$0xff]
    %v3318 = vld [vmem:[#allocation23 + $0xba0] sm:$0xff]
    %v3319 = vld [vmem:[#allocation23 + $0xba8] sm:$0xff]
    %v3320 = vld [vmem:[#allocation23 + $0xbb0] sm:$0xff]
    %v3321 = vld [vmem:[#allocation23 + $0xbb8] sm:$0xff]
    %v3322 = vld [vmem:[#allocation23 + $0xbc0] sm:$0xff]
    %v3323 = vld [vmem:[#allocation23 + $0xbc8] sm:$0xff]
    %v3324 = vld [vmem:[#allocation23 + $0xbd0] sm:$0xff]
    %v3325 = vld [vmem:[#allocation23 + $0xbd8] sm:$0xff]
    %v3326 = vld [vmem:[#allocation23 + $0xbe0] sm:$0xff]
    %v3327 = vld [vmem:[#allocation23 + $0xbe8] sm:$0xff]
    %v3328 = vld [vmem:[#allocation23 + $0xbf0] sm:$0xff]
    %v3329 = vld [vmem:[#allocation23 + $0xbf8] sm:$0xff]
    %v3330 = vld [vmem:[#allocation25] sm:$0x3]
    %v3332 = vperm.slane %v3330, 0
    %v3333 = vperm.slane %v3330, 1
    %3336 = vmatpush.msra.mxu0 %v2976
    %3337 = vmatpush.msra.mxu0 %v2974
    %3338 = vmatpush.msra.mxu0 %v2972
    %3339 = vmatpush.msra.mxu0 %v2970
    %3340 = vmatpush.msra.mxu0 %v2968
    %3341 = vmatpush.msra.mxu0 %v2966
    %3342 = vmatpush.msra.mxu0 %v2964
    %3343 = vmatpush.msra.mxu0 %v2962
    %3344 = vmatpush.msra.mxu0 %v2960
    %3345 = vmatpush.msra.mxu0 %v2958
    %3346 = vmatpush.msra.mxu0 %v2956
    %3347 = vmatpush.msra.mxu0 %v2954
    %3348 = vmatpush.msra.mxu0 %v2952
    %3349 = vmatpush.msra.mxu0 %v2950
    %3350 = vmatpush.msra.mxu0 %v2948
    %3351 = vmatpush.msra.mxu0 %v2946
    %3352 = vmatmul.f32.gmra.mxu0 %v2916
    %v3353 = vpop.f32.mrf.mxu0
    %v3354 = vadd.f32 %v3332, %v3353
    %3355 = vdwg.mxu0
    %3356 = vmatpush.msra.mxu0 %v3008
    %3357 = vmatpush.msra.mxu0 %v3006
    %3358 = vmatpush.msra.mxu0 %v3004
    %3359 = vmatpush.msra.mxu0 %v3002
    %3360 = vmatpush.msra.mxu0 %v3000
    %3361 = vmatpush.msra.mxu0 %v2998
    %3362 = vmatpush.msra.mxu0 %v2996
    %3363 = vmatpush.msra.mxu0 %v2994
    %3364 = vmatpush.msra.mxu0 %v2992
    %3365 = vmatpush.msra.mxu0 %v2990
    %3366 = vmatpush.msra.mxu0 %v2988
    %3367 = vmatpush.msra.mxu0 %v2986
    %3368 = vmatpush.msra.mxu0 %v2984
    %3369 = vmatpush.msra.mxu0 %v2982
    %3370 = vmatpush.msra.mxu0 %v2980
    %3371 = vmatpush.msra.mxu0 %v2978
    %3372 = vmatmul.f32.gmra.mxu0 %v2919
    %v3373 = vpop.f32.mrf.mxu0
    %v3374 = vadd.f32 %v3354, %v3373
    %3375 = vdwg.mxu0
    %3376 = vmatpush.msra.mxu0 %v3040
    %3377 = vmatpush.msra.mxu0 %v3038
    %3378 = vmatpush.msra.mxu0 %v3036
    %3379 = vmatpush.msra.mxu0 %v3034
    %3380 = vmatpush.msra.mxu0 %v3032
    %3381 = vmatpush.msra.mxu0 %v3030
    %3382 = vmatpush.msra.mxu0 %v3028
    %3383 = vmatpush.msra.mxu0 %v3026
    %3384 = vmatpush.msra.mxu0 %v3024
    %3385 = vmatpush.msra.mxu0 %v3022
    %3386 = vmatpush.msra.mxu0 %v3020
    %3387 = vmatpush.msra.mxu0 %v3018
    %3388 = vmatpush.msra.mxu0 %v3016
    %3389 = vmatpush.msra.mxu0 %v3014
    %3390 = vmatpush.msra.mxu0 %v3012
    %3391 = vmatpush.msra.mxu0 %v3010
    %3392 = vmatmul.f32.gmra.mxu0 %v2921
    %v3393 = vpop.f32.mrf.mxu0
    %v3394 = vadd.f32 %v3374, %v3393
    %3395 = vdwg.mxu0
    %3396 = vmatpush.msra.mxu0 %v3072
    %3397 = vmatpush.msra.mxu0 %v3070
    %3398 = vmatpush.msra.mxu0 %v3068
    %3399 = vmatpush.msra.mxu0 %v3066
    %3400 = vmatpush.msra.mxu0 %v3064
    %3401 = vmatpush.msra.mxu0 %v3062
    %3402 = vmatpush.msra.mxu0 %v3060
    %3403 = vmatpush.msra.mxu0 %v3058
    %3404 = vmatpush.msra.mxu0 %v3056
    %3405 = vmatpush.msra.mxu0 %v3054
    %3406 = vmatpush.msra.mxu0 %v3052
    %3407 = vmatpush.msra.mxu0 %v3050
    %3408 = vmatpush.msra.mxu0 %v3048
    %3409 = vmatpush.msra.mxu0 %v3046
    %3410 = vmatpush.msra.mxu0 %v3044
    %3411 = vmatpush.msra.mxu0 %v3042
    %3412 = vmatmul.f32.gmra.mxu0 %v2923
    %v3413 = vpop.f32.mrf.mxu0
    %v3414 = vadd.f32 %v3394, %v3413
    %3415 = vdwg.mxu0
    %3416 = vmatpush.msra.mxu0 %v3104
    %3417 = vmatpush.msra.mxu0 %v3102
    %3418 = vmatpush.msra.mxu0 %v3100
    %3419 = vmatpush.msra.mxu0 %v3098
    %3420 = vmatpush.msra.mxu0 %v3096
    %3421 = vmatpush.msra.mxu0 %v3094
    %3422 = vmatpush.msra.mxu0 %v3092
    %3423 = vmatpush.msra.mxu0 %v3090
    %3424 = vmatpush.msra.mxu0 %v3088
    %3425 = vmatpush.msra.mxu0 %v3086
    %3426 = vmatpush.msra.mxu0 %v3084
    %3427 = vmatpush.msra.mxu0 %v3082
    %3428 = vmatpush.msra.mxu0 %v3080
    %3429 = vmatpush.msra.mxu0 %v3078
    %3430 = vmatpush.msra.mxu0 %v3076
    %3431 = vmatpush.msra.mxu0 %v3074
    %3432 = vmatmul.f32.gmra.mxu0 %v2925
    %v3433 = vpop.f32.mrf.mxu0
    %v3434 = vadd.f32 %v3414, %v3433
    %3435 = vdwg.mxu0
    %3436 = vmatpush.msra.mxu0 %v3136
    %3437 = vmatpush.msra.mxu0 %v3134
    %3438 = vmatpush.msra.mxu0 %v3132
    %3439 = vmatpush.msra.mxu0 %v3130
    %3440 = vmatpush.msra.mxu0 %v3128
    %3441 = vmatpush.msra.mxu0 %v3126
    %3442 = vmatpush.msra.mxu0 %v3124
    %3443 = vmatpush.msra.mxu0 %v3122
    %3444 = vmatpush.msra.mxu0 %v3120
    %3445 = vmatpush.msra.mxu0 %v3118
    %3446 = vmatpush.msra.mxu0 %v3116
    %3447 = vmatpush.msra.mxu0 %v3114
    %3448 = vmatpush.msra.mxu0 %v3112
    %3449 = vmatpush.msra.mxu0 %v3110
    %3450 = vmatpush.msra.mxu0 %v3108
    %3451 = vmatpush.msra.mxu0 %v3106
    %3452 = vmatmul.f32.gmra.mxu0 %v2930
    %v3453 = vpop.f32.mrf.mxu0
    %v3454 = vadd.f32 %v3434, %v3453
    %3455 = vdwg.mxu0
    %3456 = vmatpush.msra.mxu0 %v3168
    %3457 = vmatpush.msra.mxu0 %v3166
    %3458 = vmatpush.msra.mxu0 %v3164
    %3459 = vmatpush.msra.mxu0 %v3162
    %3460 = vmatpush.msra.mxu0 %v3160
    %3461 = vmatpush.msra.mxu0 %v3158
    %3462 = vmatpush.msra.mxu0 %v3156
    %3463 = vmatpush.msra.mxu0 %v3154
    %3464 = vmatpush.msra.mxu0 %v3152
    %3465 = vmatpush.msra.mxu0 %v3150
    %3466 = vmatpush.msra.mxu0 %v3148
    %3467 = vmatpush.msra.mxu0 %v3146
    %3468 = vmatpush.msra.mxu0 %v3144
    %3469 = vmatpush.msra.mxu0 %v3142
    %3470 = vmatpush.msra.mxu0 %v3140
    %3471 = vmatpush.msra.mxu0 %v3138
    %3472 = vmatmul.f32.gmra.mxu0 %v2934
    %v3473 = vpop.f32.mrf.mxu0
    %v3474 = vadd.f32 %v3454, %v3473
    %3475 = vdwg.mxu0
    %3476 = vmatpush.msra.mxu0 %v3200
    %3477 = vmatpush.msra.mxu0 %v3198
    %3478 = vmatpush.msra.mxu0 %v3196
    %3479 = vmatpush.msra.mxu0 %v3194
    %3480 = vmatpush.msra.mxu0 %v3192
    %3481 = vmatpush.msra.mxu0 %v3190
    %3482 = vmatpush.msra.mxu0 %v3188
    %3483 = vmatpush.msra.mxu0 %v3186
    %3484 = vmatpush.msra.mxu0 %v3184
    %3485 = vmatpush.msra.mxu0 %v3182
    %3486 = vmatpush.msra.mxu0 %v3180
    %3487 = vmatpush.msra.mxu0 %v3178
    %3488 = vmatpush.msra.mxu0 %v3176
    %3489 = vmatpush.msra.mxu0 %v3174
    %3490 = vmatpush.msra.mxu0 %v3172
    %3491 = vmatpush.msra.mxu0 %v3170
    %3492 = vmatmul.f32.gmra.mxu0 %v2938
    %v3493 = vpop.f32.mrf.mxu0
    %v3494 = vadd.f32 %v3474, %v3493
    %3495 = vdwg.mxu0
    %3496 = vmatpush.msra.mxu0 %v3232
    %3497 = vmatpush.msra.mxu0 %v3230
    %3498 = vmatpush.msra.mxu0 %v3228
    %3499 = vmatpush.msra.mxu0 %v3226
    %3500 = vmatpush.msra.mxu0 %v3224
    %3501 = vmatpush.msra.mxu0 %v3222
    %3502 = vmatpush.msra.mxu0 %v3220
    %3503 = vmatpush.msra.mxu0 %v3218
    %3504 = vmatpush.msra.mxu0 %v3216
    %3505 = vmatpush.msra.mxu0 %v3214
    %3506 = vmatpush.msra.mxu0 %v3212
    %3507 = vmatpush.msra.mxu0 %v3210
    %3508 = vmatpush.msra.mxu0 %v3208
    %3509 = vmatpush.msra.mxu0 %v3206
    %3510 = vmatpush.msra.mxu0 %v3204
    %3511 = vmatpush.msra.mxu0 %v3202
    %3512 = vmatmul.f32.gmra.mxu0 %v2917
    %v3513 = vpop.f32.mrf.mxu0
    %v3514 = vadd.f32 %v3494, %v3513
    %3515 = vdwg.mxu0
    %3516 = vmatpush.msra.mxu0 %v3264
    %3517 = vmatpush.msra.mxu0 %v3262
    %3518 = vmatpush.msra.mxu0 %v3260
    %3519 = vmatpush.msra.mxu0 %v3258
    %3520 = vmatpush.msra.mxu0 %v3256
    %3521 = vmatpush.msra.mxu0 %v3254
    %3522 = vmatpush.msra.mxu0 %v3252
    %3523 = vmatpush.msra.mxu0 %v3250
    %3524 = vmatpush.msra.mxu0 %v3248
    %3525 = vmatpush.msra.mxu0 %v3246
    %3526 = vmatpush.msra.mxu0 %v3244
    %3527 = vmatpush.msra.mxu0 %v3242
    %3528 = vmatpush.msra.mxu0 %v3240
    %3529 = vmatpush.msra.mxu0 %v3238
    %3530 = vmatpush.msra.mxu0 %v3236
    %3531 = vmatpush.msra.mxu0 %v3234
    %3532 = vmatmul.f32.gmra.mxu0 %v2940
    %v3533 = vpop.f32.mrf.mxu0
    %v3534 = vadd.f32 %v3514, %v3533
    %3535 = vdwg.mxu0
    %3536 = vmatpush.msra.mxu0 %v3296
    %3537 = vmatpush.msra.mxu0 %v3294
    %3538 = vmatpush.msra.mxu0 %v3292
    %3539 = vmatpush.msra.mxu0 %v3290
    %3540 = vmatpush.msra.mxu0 %v3288
    %3541 = vmatpush.msra.mxu0 %v3286
    %3542 = vmatpush.msra.mxu0 %v3284
    %3543 = vmatpush.msra.mxu0 %v3282
    %3544 = vmatpush.msra.mxu0 %v3280
    %3545 = vmatpush.msra.mxu0 %v3278
    %3546 = vmatpush.msra.mxu0 %v3276
    %3547 = vmatpush.msra.mxu0 %v3274
    %3548 = vmatpush.msra.mxu0 %v3272
    %3549 = vmatpush.msra.mxu0 %v3270
    %3550 = vmatpush.msra.mxu0 %v3268
    %3551 = vmatpush.msra.mxu0 %v3266
    %3552 = vmatmul.f32.gmra.mxu0 %v2942
    %v3553 = vpop.f32.mrf.mxu0
    %v3554 = vadd.f32 %v3534, %v3553
    %3555 = vdwg.mxu0
    %3556 = vmatpush.msra.mxu0 %v3328
    %3557 = vmatpush.msra.mxu0 %v3326
    %3558 = vmatpush.msra.mxu0 %v3324
    %3559 = vmatpush.msra.mxu0 %v3322
    %3560 = vmatpush.msra.mxu0 %v3320
    %3561 = vmatpush.msra.mxu0 %v3318
    %3562 = vmatpush.msra.mxu0 %v3316
    %3563 = vmatpush.msra.mxu0 %v3314
    %3564 = vmatpush.msra.mxu0 %v3312
    %3565 = vmatpush.msra.mxu0 %v3310
    %3566 = vmatpush.msra.mxu0 %v3308
    %3567 = vmatpush.msra.mxu0 %v3306
    %3568 = vmatpush.msra.mxu0 %v3304
    %3569 = vmatpush.msra.mxu0 %v3302
    %3570 = vmatpush.msra.mxu0 %v3300
    %3571 = vmatpush.msra.mxu0 %v3298
    %3572 = vmatmul.f32.gmra.mxu0 %v2944
    %v3573 = vpop.f32.mrf.mxu0
    %v3574 = vadd.f32 %v3554, %v3573
    %3575 = vdwg.mxu0
    %3576 = vmatpush.msra.mxu0 %v2977
    %3577 = vmatpush.msra.mxu0 %v2975
    %3578 = vmatpush.msra.mxu0 %v2973
    %3579 = vmatpush.msra.mxu0 %v2971
    %3580 = vmatpush.msra.mxu0 %v2969
    %3581 = vmatpush.msra.mxu0 %v2967
    %3582 = vmatpush.msra.mxu0 %v2965
    %3583 = vmatpush.msra.mxu0 %v2963
    %3584 = vmatpush.msra.mxu0 %v2961
    %3585 = vmatpush.msra.mxu0 %v2959
    %3586 = vmatpush.msra.mxu0 %v2957
    %3587 = vmatpush.msra.mxu0 %v2955
    %3588 = vmatpush.msra.mxu0 %v2953
    %3589 = vmatpush.msra.mxu0 %v2951
    %3590 = vmatpush.msra.mxu0 %v2949
    %3591 = vmatpush.msra.mxu0 %v2947
    %3592 = vmatmul.f32.gmra.mxu0 %v2916
    %v3593 = vpop.f32.mrf.mxu0
    %v3594 = vadd.f32 %v3333, %v3593
    %3595 = vdwg.mxu0
    %3596 = vmatpush.msra.mxu0 %v3009
    %3597 = vmatpush.msra.mxu0 %v3007
    %3598 = vmatpush.msra.mxu0 %v3005
    %3599 = vmatpush.msra.mxu0 %v3003
    %3600 = vmatpush.msra.mxu0 %v3001
    %3601 = vmatpush.msra.mxu0 %v2999
    %3602 = vmatpush.msra.mxu0 %v2997
    %3603 = vmatpush.msra.mxu0 %v2995
    %3604 = vmatpush.msra.mxu0 %v2993
    %3605 = vmatpush.msra.mxu0 %v2991
    %3606 = vmatpush.msra.mxu0 %v2989
    %3607 = vmatpush.msra.mxu0 %v2987
    %3608 = vmatpush.msra.mxu0 %v2985
    %3609 = vmatpush.msra.mxu0 %v2983
    %3610 = vmatpush.msra.mxu0 %v2981
    %3611 = vmatpush.msra.mxu0 %v2979
    %3612 = vmatmul.f32.gmra.mxu0 %v2919
    %v3613 = vpop.f32.mrf.mxu0
    %v3614 = vadd.f32 %v3594, %v3613
    %3615 = vdwg.mxu0
    %3616 = vmatpush.msra.mxu0 %v3041
    %3617 = vmatpush.msra.mxu0 %v3039
    %3618 = vmatpush.msra.mxu0 %v3037
    %3619 = vmatpush.msra.mxu0 %v3035
    %3620 = vmatpush.msra.mxu0 %v3033
    %3621 = vmatpush.msra.mxu0 %v3031
    %3622 = vmatpush.msra.mxu0 %v3029
    %3623 = vmatpush.msra.mxu0 %v3027
    %3624 = vmatpush.msra.mxu0 %v3025
    %3625 = vmatpush.msra.mxu0 %v3023
    %3626 = vmatpush.msra.mxu0 %v3021
    %3627 = vmatpush.msra.mxu0 %v3019
    %3628 = vmatpush.msra.mxu0 %v3017
    %3629 = vmatpush.msra.mxu0 %v3015
    %3630 = vmatpush.msra.mxu0 %v3013
    %3631 = vmatpush.msra.mxu0 %v3011
    %3632 = vmatmul.f32.gmra.mxu0 %v2921
    %v3633 = vpop.f32.mrf.mxu0
    %v3634 = vadd.f32 %v3614, %v3633
    %3635 = vdwg.mxu0
    %3636 = vmatpush.msra.mxu0 %v3073
    %3637 = vmatpush.msra.mxu0 %v3071
    %3638 = vmatpush.msra.mxu0 %v3069
    %3639 = vmatpush.msra.mxu0 %v3067
    %3640 = vmatpush.msra.mxu0 %v3065
    %3641 = vmatpush.msra.mxu0 %v3063
    %3642 = vmatpush.msra.mxu0 %v3061
    %3643 = vmatpush.msra.mxu0 %v3059
    %3644 = vmatpush.msra.mxu0 %v3057
    %3645 = vmatpush.msra.mxu0 %v3055
    %3646 = vmatpush.msra.mxu0 %v3053
    %3647 = vmatpush.msra.mxu0 %v3051
    %3648 = vmatpush.msra.mxu0 %v3049
    %3649 = vmatpush.msra.mxu0 %v3047
    %3650 = vmatpush.msra.mxu0 %v3045
    %3651 = vmatpush.msra.mxu0 %v3043
    %3652 = vmatmul.f32.gmra.mxu0 %v2923
    %v3653 = vpop.f32.mrf.mxu0
    %v3654 = vadd.f32 %v3634, %v3653
    %3655 = vdwg.mxu0
    %3656 = vmatpush.msra.mxu0 %v3105
    %3657 = vmatpush.msra.mxu0 %v3103
    %3658 = vmatpush.msra.mxu0 %v3101
    %3659 = vmatpush.msra.mxu0 %v3099
    %3660 = vmatpush.msra.mxu0 %v3097
    %3661 = vmatpush.msra.mxu0 %v3095
    %3662 = vmatpush.msra.mxu0 %v3093
    %3663 = vmatpush.msra.mxu0 %v3091
    %3664 = vmatpush.msra.mxu0 %v3089
    %3665 = vmatpush.msra.mxu0 %v3087
    %3666 = vmatpush.msra.mxu0 %v3085
    %3667 = vmatpush.msra.mxu0 %v3083
    %3668 = vmatpush.msra.mxu0 %v3081
    %3669 = vmatpush.msra.mxu0 %v3079
    %3670 = vmatpush.msra.mxu0 %v3077
    %3671 = vmatpush.msra.mxu0 %v3075
    %3672 = vmatmul.f32.gmra.mxu0 %v2925
    %v3673 = vpop.f32.mrf.mxu0
    %v3674 = vadd.f32 %v3654, %v3673
    %3675 = vdwg.mxu0
    %3676 = vmatpush.msra.mxu0 %v3137
    %3677 = vmatpush.msra.mxu0 %v3135
    %3678 = vmatpush.msra.mxu0 %v3133
    %3679 = vmatpush.msra.mxu0 %v3131
    %3680 = vmatpush.msra.mxu0 %v3129
    %3681 = vmatpush.msra.mxu0 %v3127
    %3682 = vmatpush.msra.mxu0 %v3125
    %3683 = vmatpush.msra.mxu0 %v3123
    %3684 = vmatpush.msra.mxu0 %v3121
    %3685 = vmatpush.msra.mxu0 %v3119
    %3686 = vmatpush.msra.mxu0 %v3117
    %3687 = vmatpush.msra.mxu0 %v3115
    %3688 = vmatpush.msra.mxu0 %v3113
    %3689 = vmatpush.msra.mxu0 %v3111
    %3690 = vmatpush.msra.mxu0 %v3109
    %3691 = vmatpush.msra.mxu0 %v3107
    %3692 = vmatmul.f32.gmra.mxu0 %v2930
    %v3693 = vpop.f32.mrf.mxu0
    %v3694 = vadd.f32 %v3674, %v3693
    %3695 = vdwg.mxu0
    %3696 = vmatpush.msra.mxu0 %v3169
    %3697 = vmatpush.msra.mxu0 %v3167
    %3698 = vmatpush.msra.mxu0 %v3165
    %3699 = vmatpush.msra.mxu0 %v3163
    %3700 = vmatpush.msra.mxu0 %v3161
    %3701 = vmatpush.msra.mxu0 %v3159
    %3702 = vmatpush.msra.mxu0 %v3157
    %3703 = vmatpush.msra.mxu0 %v3155
    %3704 = vmatpush.msra.mxu0 %v3153
    %3705 = vmatpush.msra.mxu0 %v3151
    %3706 = vmatpush.msra.mxu0 %v3149
    %3707 = vmatpush.msra.mxu0 %v3147
    %3708 = vmatpush.msra.mxu0 %v3145
    %3709 = vmatpush.msra.mxu0 %v3143
    %3710 = vmatpush.msra.mxu0 %v3141
    %3711 = vmatpush.msra.mxu0 %v3139
    %3712 = vmatmul.f32.gmra.mxu0 %v2934
    %v3713 = vpop.f32.mrf.mxu0
    %v3714 = vadd.f32 %v3694, %v3713
    %3715 = vdwg.mxu0
    %3716 = vmatpush.msra.mxu0 %v3201
    %3717 = vmatpush.msra.mxu0 %v3199
    %3718 = vmatpush.msra.mxu0 %v3197
    %3719 = vmatpush.msra.mxu0 %v3195
    %3720 = vmatpush.msra.mxu0 %v3193
    %3721 = vmatpush.msra.mxu0 %v3191
    %3722 = vmatpush.msra.mxu0 %v3189
    %3723 = vmatpush.msra.mxu0 %v3187
    %3724 = vmatpush.msra.mxu0 %v3185
    %3725 = vmatpush.msra.mxu0 %v3183
    %3726 = vmatpush.msra.mxu0 %v3181
    %3727 = vmatpush.msra.mxu0 %v3179
    %3728 = vmatpush.msra.mxu0 %v3177
    %3729 = vmatpush.msra.mxu0 %v3175
    %3730 = vmatpush.msra.mxu0 %v3173
    %3731 = vmatpush.msra.mxu0 %v3171
    %3732 = vmatmul.f32.gmra.mxu0 %v2938
    %v3733 = vpop.f32.mrf.mxu0
    %v3734 = vadd.f32 %v3714, %v3733
    %3735 = vdwg.mxu0
    %3736 = vmatpush.msra.mxu0 %v3233
    %3737 = vmatpush.msra.mxu0 %v3231
    %3738 = vmatpush.msra.mxu0 %v3229
    %3739 = vmatpush.msra.mxu0 %v3227
    %3740 = vmatpush.msra.mxu0 %v3225
    %3741 = vmatpush.msra.mxu0 %v3223
    %3742 = vmatpush.msra.mxu0 %v3221
    %3743 = vmatpush.msra.mxu0 %v3219
    %3744 = vmatpush.msra.mxu0 %v3217
    %3745 = vmatpush.msra.mxu0 %v3215
    %3746 = vmatpush.msra.mxu0 %v3213
    %3747 = vmatpush.msra.mxu0 %v3211
    %3748 = vmatpush.msra.mxu0 %v3209
    %3749 = vmatpush.msra.mxu0 %v3207
    %3750 = vmatpush.msra.mxu0 %v3205
    %3751 = vmatpush.msra.mxu0 %v3203
    %3752 = vmatmul.f32.gmra.mxu0 %v2917
    %v3753 = vpop.f32.mrf.mxu0
    %v3754 = vadd.f32 %v3734, %v3753
    %3755 = vdwg.mxu0
    %3756 = vmatpush.msra.mxu0 %v3265
    %3757 = vmatpush.msra.mxu0 %v3263
    %3758 = vmatpush.msra.mxu0 %v3261
    %3759 = vmatpush.msra.mxu0 %v3259
    %3760 = vmatpush.msra.mxu0 %v3257
    %3761 = vmatpush.msra.mxu0 %v3255
    %3762 = vmatpush.msra.mxu0 %v3253
    %3763 = vmatpush.msra.mxu0 %v3251
    %3764 = vmatpush.msra.mxu0 %v3249
    %3765 = vmatpush.msra.mxu0 %v3247
    %3766 = vmatpush.msra.mxu0 %v3245
    %3767 = vmatpush.msra.mxu0 %v3243
    %3768 = vmatpush.msra.mxu0 %v3241
    %3769 = vmatpush.msra.mxu0 %v3239
    %3770 = vmatpush.msra.mxu0 %v3237
    %3771 = vmatpush.msra.mxu0 %v3235
    %3772 = vmatmul.f32.gmra.mxu0 %v2940
    %v3773 = vpop.f32.mrf.mxu0
    %v3774 = vadd.f32 %v3754, %v3773
    %3775 = vdwg.mxu0
    %3776 = vmatpush.msra.mxu0 %v3297
    %3777 = vmatpush.msra.mxu0 %v3295
    %3778 = vmatpush.msra.mxu0 %v3293
    %3779 = vmatpush.msra.mxu0 %v3291
    %3780 = vmatpush.msra.mxu0 %v3289
    %3781 = vmatpush.msra.mxu0 %v3287
    %3782 = vmatpush.msra.mxu0 %v3285
    %3783 = vmatpush.msra.mxu0 %v3283
    %3784 = vmatpush.msra.mxu0 %v3281
    %3785 = vmatpush.msra.mxu0 %v3279
    %3786 = vmatpush.msra.mxu0 %v3277
    %3787 = vmatpush.msra.mxu0 %v3275
    %3788 = vmatpush.msra.mxu0 %v3273
    %3789 = vmatpush.msra.mxu0 %v3271
    %3790 = vmatpush.msra.mxu0 %v3269
    %3791 = vmatpush.msra.mxu0 %v3267
    %3792 = vmatmul.f32.gmra.mxu0 %v2942
    %v3793 = vpop.f32.mrf.mxu0
    %v3794 = vadd.f32 %v3774, %v3793
    %3795 = vdwg.mxu0
    %3796 = vmatpush.msra.mxu0 %v3329
    %3797 = vmatpush.msra.mxu0 %v3327
    %3798 = vmatpush.msra.mxu0 %v3325
    %3799 = vmatpush.msra.mxu0 %v3323
    %3800 = vmatpush.msra.mxu0 %v3321
    %3801 = vmatpush.msra.mxu0 %v3319
    %3802 = vmatpush.msra.mxu0 %v3317
    %3803 = vmatpush.msra.mxu0 %v3315
    %3804 = vmatpush.msra.mxu0 %v3313
    %3805 = vmatpush.msra.mxu0 %v3311
    %3806 = vmatpush.msra.mxu0 %v3309
    %3807 = vmatpush.msra.mxu0 %v3307
    %3808 = vmatpush.msra.mxu0 %v3305
    %3809 = vmatpush.msra.mxu0 %v3303
    %3810 = vmatpush.msra.mxu0 %v3301
    %3811 = vmatpush.msra.mxu0 %v3299
    %3812 = vmatmul.f32.gmra.mxu0 %v2944
    %v3813 = vpop.f32.mrf.mxu0
    %v3814 = vadd.f32 %v3794, %v3813
    %3815 = vdwg.mxu0
    %v3816 = vmax.f32 %v3574, 0.0
    %v3817 = vmax.f32 %v3814, 0.0
    %v3818 = vsel %vm429, %v3816, 0.0
    %v3819 = vrot.slane %v3818, 4
    %v3820 = vadd.f32 %v3818, %v3819
    %v3821 = vrot.slane %v3820, 2
    %v3822 = vadd.f32 %v3820, %v3821
    %v3823 = vrot.slane %v3822, 1
    %v3824 = vadd.f32 %v3822, %v3823
    %v3825 = vsel %vm429, %v3817, 0.0
    %v3826 = vrot.slane %v3825, 4
    %v3827 = vadd.f32 %v3825, %v3826
    %v3828 = vrot.slane %v3827, 2
    %v3829 = vadd.f32 %v3827, %v3828
    %v3830 = vrot.slane %v3829, 1
    %v3831 = vadd.f32 %v3829, %v3830
    %v3832 = vrcp.pop 4.0
    %v3833 = vmul.f32 4.0, %v3832
    %v3834 = vsub.f32 1.0, %v3833
    %v3835 = vmul.f32 %v3832, %v3834
    %v3836 = vadd.f32 %v3832, %v3835
    %vm3837 = vweird.f32 %v3832
    %v3838 = vsel %vm3837, %v3832, %v3836
    %v3839 = vmul.f32 %v3824, %v3838
    %v3840 = vmul.f32 %v3831, %v3838
    %v3841 = vld [vmem:[%s19] sm:$0xff]
    %v3842 = vld [vmem:[%s19 + $0x8] sm:$0xff]
    %v3843 = vld [vmem:[%s19 + $0x10] sm:$0xff]
    %v3844 = vld [vmem:[%s19 + $0x18] sm:$0xff]
    %v3845 = vld [vmem:[%s19 + $0x20] sm:$0xff]
    %v3846 = vld [vmem:[%s19 + $0x28] sm:$0xff]
    %v3847 = vld [vmem:[%s19 + $0x30] sm:$0xff]
    %v3848 = vld [vmem:[%s19 + $0x38] sm:$0xff]
    %v3849 = vld [vmem:[%s19 + $0x40] sm:$0xff]
    %v3850 = vld [vmem:[%s19 + $0x48] sm:$0xff]
    %v3851 = vld [vmem:[%s19 + $0x50] sm:$0xff]
    %v3852 = vld [vmem:[%s19 + $0x58] sm:$0xff]
    %v3853 = vld [vmem:[%s19 + $0x60] sm:$0xff]
    %v3854 = vld [vmem:[%s19 + $0x68] sm:$0xff]
    %v3855 = vld [vmem:[%s19 + $0x70] sm:$0xff]
    %v3856 = vld [vmem:[%s19 + $0x78] sm:$0xff]
    %v3857 = vld [vmem:[%s19 + $0x80] sm:$0xff]
    %v3858 = vld [vmem:[%s19 + $0x88] sm:$0xff]
    %v3859 = vld [vmem:[%s19 + $0x90] sm:$0xff]
    %v3860 = vld [vmem:[%s19 + $0x98] sm:$0xff]
    %v3861 = vld [vmem:[%s19 + $0xa0] sm:$0xff]
    %v3862 = vld [vmem:[%s19 + $0xa8] sm:$0xff]
    %v3863 = vld [vmem:[%s19 + $0xb0] sm:$0xff]
    %v3864 = vld [vmem:[%s19 + $0xb8] sm:$0xff]
    %v3865 = vld [vmem:[%s19 + $0xc0] sm:$0xff]
    %v3866 = vld [vmem:[%s19 + $0xc8] sm:$0xff]
    %v3867 = vld [vmem:[%s19 + $0xd0] sm:$0xff]
    %v3868 = vld [vmem:[%s19 + $0xd8] sm:$0xff]
    %v3869 = vld [vmem:[%s19 + $0xe0] sm:$0xff]
    %v3870 = vld [vmem:[%s19 + $0xe8] sm:$0xff]
    %v3871 = vld [vmem:[%s19 + $0xf0] sm:$0xff]
    %v3872 = vld [vmem:[%s19 + $0xf8] sm:$0xff]
    %3873 = vmatpush.msra.mxu0 %v3856
    %3874 = vmatpush.msra.mxu0 %v3855
    %3875 = vmatpush.msra.mxu0 %v3854
    %3876 = vmatpush.msra.mxu0 %v3853
    %3877 = vmatpush.msra.mxu0 %v3852
    %3878 = vmatpush.msra.mxu0 %v3851
    %3879 = vmatpush.msra.mxu0 %v3850
    %3880 = vmatpush.msra.mxu0 %v3849
    %3881 = vmatpush.msra.mxu0 %v3848
    %3882 = vmatpush.msra.mxu0 %v3847
    %3883 = vmatpush.msra.mxu0 %v3846
    %3884 = vmatpush.msra.mxu0 %v3845
    %3885 = vmatpush.msra.mxu0 %v3844
    %3886 = vmatpush.msra.mxu0 %v3843
    %3887 = vmatpush.msra.mxu0 %v3842
    %3888 = vmatpush.msra.mxu0 %v3841
    %3889 = vmatmul.f32.gmra.mxu0 %v3839
    %v3890 = vpop.f32.mrf.mxu0
    %v3891 = vadd.f32 0.0, %v3890
    %3892 = vdwg.mxu0
    %3893 = vmatpush.msra.mxu0 %v3872
    %3894 = vmatpush.msra.mxu0 %v3871
    %3895 = vmatpush.msra.mxu0 %v3870
    %3896 = vmatpush.msra.mxu0 %v3869
    %3897 = vmatpush.msra.mxu0 %v3868
    %3898 = vmatpush.msra.mxu0 %v3867
    %3899 = vmatpush.msra.mxu0 %v3866
    %3900 = vmatpush.msra.mxu0 %v3865
    %3901 = vmatpush.msra.mxu0 %v3864
    %3902 = vmatpush.msra.mxu0 %v3863
    %3903 = vmatpush.msra.mxu0 %v3862
    %3904 = vmatpush.msra.mxu0 %v3861
    %3905 = vmatpush.msra.mxu0 %v3860
    %3906 = vmatpush.msra.mxu0 %v3859
    %3907 = vmatpush.msra.mxu0 %v3858
    %3908 = vmatpush.msra.mxu0 %v3857
    %3909 = vmatmul.f32.gmra.mxu0 %v3840
    %v3910 = vpop.f32.mrf.mxu0
    %v3911 = vadd.f32 %v3891, %v3910
    %3912 = vdwg.mxu0
    %v3913 = vmax.f32 %v3911, 0.0
    %v3914 = vld [vmem:[#allocation26] sm:$0xff]
    %v3915 = vld [vmem:[#allocation26 + $0x8] sm:$0xff]
    %v3916 = vld [vmem:[#allocation26 + $0x10] sm:$0xf]
    %v3917 = vld [vmem:[#allocation26 + $0x18] sm:$0xf]
    %vm3918 = vcmask 97280
    %v3920 = vsel %vm3918, %v3913, 0
    %v3923 = vsel %vm429, %v3916, 0
    %v3926 = vsel %vm429, %v3917, 0
    %3928 = vmatpush.msra.mxu0 0.0
    %3929 = vmatpush.msra.mxu0 0.0
    %3930 = vmatpush.msra.mxu0 0.0
    %3931 = vmatpush.msra.mxu0 0.0
    %3932 = vmatpush.msra.mxu0 0.0
    %3933 = vmatpush.msra.mxu0 0.0
    %3934 = vmatpush.msra.mxu0 0.0
    %3935 = vmatpush.msra.mxu0 0.0
    %3936 = vmatpush.msra.mxu0 0.0
    %3937 = vmatpush.msra.mxu0 0.0
    %3938 = vmatpush.msra.mxu0 0.0
    %3939 = vmatpush.msra.mxu0 0.0
    %3940 = vmatpush.msra.mxu0 0.0
    %3941 = vmatpush.msra.mxu0 0.0
    %3942 = vmatpush.msra.mxu0 %v3923
    %3943 = vmatpush.msra.mxu0 %v3914
    %3944 = vmatmul.f32.gmra.mxu0 %v3920
    %v3945 = vpop.f32.mrf.mxu0
    %v3946 = vadd.f32 0.0, %v3945
    %3947 = vdwg.mxu0
    %3948 = vmatpush.msra.mxu0 0.0
    %3949 = vmatpush.msra.mxu0 0.0
    %3950 = vmatpush.msra.mxu0 0.0
    %3951 = vmatpush.msra.mxu0 0.0
    %3952 = vmatpush.msra.mxu0 0.0
    %3953 = vmatpush.msra.mxu0 0.0
    %3954 = vmatpush.msra.mxu0 0.0
    %3955 = vmatpush.msra.mxu0 0.0
    %3956 = vmatpush.msra.mxu0 0.0
    %3957 = vmatpush.msra.mxu0 0.0
    %3958 = vmatpush.msra.mxu0 0.0
    %3959 = vmatpush.msra.mxu0 0.0
    %3960 = vmatpush.msra.mxu0 0.0
    %3961 = vmatpush.msra.mxu0 0.0
    %3962 = vmatpush.msra.mxu0 %v3926
    %3963 = vmatpush.msra.mxu0 %v3915
    %3964 = vmatmul.f32.gmra.mxu0 %v3920
    %v3965 = vpop.f32.mrf.mxu0
    %v3966 = vadd.f32 0.0, %v3965
    %3967 = vdwg.mxu0
    %v3968 = vxor.u32 %v3946, 2147483648
    %v3969 = vxor.u32 %v3966, 2147483648
    %v3970 = vmul.f32 %v3968, 1.442695
    %v3971 = vpow.pop %v3970
    %v3972 = vmul.f32 %v3969, 1.442695
    %v3973 = vpow.pop %v3972
    %v3974 = vadd.f32 %v3971, 1.0
    %v3975 = vadd.f32 %v3973, 1.0
    %v3976 = vrcp.pop %v3974
    %v3977 = vmul.f32 %v3974, %v3976
    %v3978 = vsub.f32 1.0, %v3977
    %v3979 = vmul.f32 %v3976, %v3978
    %v3980 = vadd.f32 %v3976, %v3979
    %vm3981 = vweird.f32 %v3974
    %vm3982 = vweird.f32 %v3976
    %vm3983 = vmor %vm3981, %vm3982
    %v3984 = vsel %vm3983, %v3976, %v3980
    %v3985 = vand.u32 2147483647, %v3974
    %vm3986 = vcmp.eq.f32.partialorder %v3985, 8.507059e+37
    %v3987 = vand.u32 %v3974, 2147483648
    %v3988 = vor.u32 1.1754944e-38, %v3987
    %v3989 = vsel %vm3986, %v3988, %v3984
    %v3990 = vmul.f32 1.0, %v3989
    %v3991 = vrcp.pop %v3975
    %v3992 = vmul.f32 %v3975, %v3991
    %v3993 = vsub.f32 1.0, %v3992
    %v3994 = vmul.f32 %v3991, %v3993
    %v3995 = vadd.f32 %v3991, %v3994
    %vm3996 = vweird.f32 %v3975
    %vm3997 = vweird.f32 %v3991
    %vm3998 = vmor %vm3996, %vm3997
    %v3999 = vsel %vm3998, %v3991, %v3995
    %v4000 = vand.u32 2147483647, %v3975
    %vm4001 = vcmp.eq.f32.partialorder %v4000, 8.507059e+37
    %v4002 = vand.u32 %v3975, 2147483648
    %v4003 = vor.u32 1.1754944e-38, %v4002
    %v4004 = vsel %vm4001, %v4003, %v3999
    %v4005 = vmul.f32 1.0, %v4004
    %v4006 = vperm.slane %v3990, 0
    %v4007 = vperm.slane %v4005, 0
    %v4008 = vmul.f32 %v3816, %v4006
    %v4009 = vmul.f32 %v3817, %v4007
    %v4012 = vrot.slane %v4008, 3
    %v4013 = vrot.slane %v4009, 3
    %v4016 = vsel %vm395, 0.0, %v4012
    %v4017 = vsel %vm395, 0.0, %v4013
    %v4018 = vsel %vm453, %v4012, 0.0
    %v4019 = vsel %vm453, %v4013, 0.0
    %v4022 = vrot.slane %v4016, 1
    %v4023 = vrot.slane %v4017, 1
    %v4026 = vrot.slane %v4016, 2
    %v4027 = vrot.slane %v4017, 2
    %v4030 = vrot.slane %v4016, 3
    %v4031 = vrot.slane %v4017, 3
    %v4034 = vrot.slane %v4016, 4
    %v4035 = vrot.slane %v4017, 4
    %v4040 = vrot.slane %v4016, 5
    %v4041 = vrot.slane %v4018, 5
    %v4042 = vsel %vm437, %v4040, %v4041
    %v4043 = vrot.slane %v4017, 5
    %v4044 = vrot.slane %v4019, 5
    %v4045 = vsel %vm437, %v4043, %v4044
    %v4048 = vrot.slane %v4016, 6
    %v4049 = vrot.slane %v4018, 6
    %v4050 = vsel %vm445, %v4048, %v4049
    %v4051 = vrot.slane %v4017, 6
    %v4052 = vrot.slane %v4019, 6
    %v4053 = vsel %vm445, %v4051, %v4052
    %v4056 = vrot.slane %v4016, 7
    %v4057 = vrot.slane %v4018, 7
    %v4058 = vsel %vm453, %v4056, %v4057
    %v4059 = vrot.slane %v4017, 7
    %v4060 = vrot.slane %v4019, 7
    %v4061 = vsel %vm453, %v4059, %v4060
    %v4064 = vrot.slane %v4018, 1
    %v4065 = vrot.slane %v4019, 1
    %v4068 = vrot.slane %v4018, 2
    %v4069 = vrot.slane %v4019, 2
    %v4072 = vrot.slane %v4018, 3
    %v4073 = vrot.slane %v4019, 3
    %v4076 = vld [vmem:[#allocation28] sm:$0xff]
    %v4077 = vld [vmem:[#allocation28 + $0x8] sm:$0xff]
    %v4078 = vld [vmem:[#allocation28 + $0x10] sm:$0xff]
    %v4079 = vld [vmem:[#allocation28 + $0x18] sm:$0xff]
    %v4080 = vld [vmem:[#allocation28 + $0x20] sm:$0xff]
    %v4081 = vld [vmem:[#allocation28 + $0x28] sm:$0xff]
    %v4082 = vld [vmem:[#allocation28 + $0x30] sm:$0xff]
    %v4083 = vld [vmem:[#allocation28 + $0x38] sm:$0xff]
    %v4084 = vld [vmem:[#allocation28 + $0x40] sm:$0xff]
    %v4085 = vld [vmem:[#allocation28 + $0x48] sm:$0xff]
    %v4086 = vld [vmem:[#allocation28 + $0x50] sm:$0xff]
    %v4087 = vld [vmem:[#allocation28 + $0x58] sm:$0xff]
    %v4088 = vld [vmem:[#allocation28 + $0x60] sm:$0xff]
    %v4089 = vld [vmem:[#allocation28 + $0x68] sm:$0xff]
    %v4090 = vld [vmem:[#allocation28 + $0x70] sm:$0xff]
    %v4091 = vld [vmem:[#allocation28 + $0x78] sm:$0xff]
    %v4092 = vld [vmem:[#allocation28 + $0x80] sm:$0xff]
    %v4093 = vld [vmem:[#allocation28 + $0x88] sm:$0xff]
    %v4094 = vld [vmem:[#allocation28 + $0x90] sm:$0xff]
    %v4095 = vld [vmem:[#allocation28 + $0x98] sm:$0xff]
    %v4096 = vld [vmem:[#allocation28 + $0xa0] sm:$0xff]
    %v4097 = vld [vmem:[#allocation28 + $0xa8] sm:$0xff]
    %v4098 = vld [vmem:[#allocation28 + $0xb0] sm:$0xff]
    %v4099 = vld [vmem:[#allocation28 + $0xb8] sm:$0xff]
    %v4100 = vld [vmem:[#allocation28 + $0xc0] sm:$0xff]
    %v4101 = vld [vmem:[#allocation28 + $0xc8] sm:$0xff]
    %v4102 = vld [vmem:[#allocation28 + $0xd0] sm:$0xff]
    %v4103 = vld [vmem:[#allocation28 + $0xd8] sm:$0xff]
    %v4104 = vld [vmem:[#allocation28 + $0xe0] sm:$0xff]
    %v4105 = vld [vmem:[#allocation28 + $0xe8] sm:$0xff]
    %v4106 = vld [vmem:[#allocation28 + $0xf0] sm:$0xff]
    %v4107 = vld [vmem:[#allocation28 + $0xf8] sm:$0xff]
    %v4108 = vld [vmem:[#allocation28 + $0x100] sm:$0xff]
    %v4109 = vld [vmem:[#allocation28 + $0x108] sm:$0xff]
    %v4110 = vld [vmem:[#allocation28 + $0x110] sm:$0xff]
    %v4111 = vld [vmem:[#allocation28 + $0x118] sm:$0xff]
    %v4112 = vld [vmem:[#allocation28 + $0x120] sm:$0xff]
    %v4113 = vld [vmem:[#allocation28 + $0x128] sm:$0xff]
    %v4114 = vld [vmem:[#allocation28 + $0x130] sm:$0xff]
    %v4115 = vld [vmem:[#allocation28 + $0x138] sm:$0xff]
    %v4116 = vld [vmem:[#allocation28 + $0x140] sm:$0xff]
    %v4117 = vld [vmem:[#allocation28 + $0x148] sm:$0xff]
    %v4118 = vld [vmem:[#allocation28 + $0x150] sm:$0xff]
    %v4119 = vld [vmem:[#allocation28 + $0x158] sm:$0xff]
    %v4120 = vld [vmem:[#allocation28 + $0x160] sm:$0xff]
    %v4121 = vld [vmem:[#allocation28 + $0x168] sm:$0xff]
    %v4122 = vld [vmem:[#allocation28 + $0x170] sm:$0xff]
    %v4123 = vld [vmem:[#allocation28 + $0x178] sm:$0xff]
    %v4124 = vld [vmem:[#allocation28 + $0x180] sm:$0xff]
    %v4125 = vld [vmem:[#allocation28 + $0x188] sm:$0xff]
    %v4126 = vld [vmem:[#allocation28 + $0x190] sm:$0xff]
    %v4127 = vld [vmem:[#allocation28 + $0x198] sm:$0xff]
    %v4128 = vld [vmem:[#allocation28 + $0x1a0] sm:$0xff]
    %v4129 = vld [vmem:[#allocation28 + $0x1a8] sm:$0xff]
    %v4130 = vld [vmem:[#allocation28 + $0x1b0] sm:$0xff]
    %v4131 = vld [vmem:[#allocation28 + $0x1b8] sm:$0xff]
    %v4132 = vld [vmem:[#allocation28 + $0x1c0] sm:$0xff]
    %v4133 = vld [vmem:[#allocation28 + $0x1c8] sm:$0xff]
    %v4134 = vld [vmem:[#allocation28 + $0x1d0] sm:$0xff]
    %v4135 = vld [vmem:[#allocation28 + $0x1d8] sm:$0xff]
    %v4136 = vld [vmem:[#allocation28 + $0x1e0] sm:$0xff]
    %v4137 = vld [vmem:[#allocation28 + $0x1e8] sm:$0xff]
    %v4138 = vld [vmem:[#allocation28 + $0x1f0] sm:$0xff]
    %v4139 = vld [vmem:[#allocation28 + $0x1f8] sm:$0xff]
    %v4140 = vld [vmem:[#allocation28 + $0x200] sm:$0xff]
    %v4141 = vld [vmem:[#allocation28 + $0x208] sm:$0xff]
    %v4142 = vld [vmem:[#allocation28 + $0x210] sm:$0xff]
    %v4143 = vld [vmem:[#allocation28 + $0x218] sm:$0xff]
    %v4144 = vld [vmem:[#allocation28 + $0x220] sm:$0xff]
    %v4145 = vld [vmem:[#allocation28 + $0x228] sm:$0xff]
    %v4146 = vld [vmem:[#allocation28 + $0x230] sm:$0xff]
    %v4147 = vld [vmem:[#allocation28 + $0x238] sm:$0xff]
    %v4148 = vld [vmem:[#allocation28 + $0x240] sm:$0xff]
    %v4149 = vld [vmem:[#allocation28 + $0x248] sm:$0xff]
    %v4150 = vld [vmem:[#allocation28 + $0x250] sm:$0xff]
    %v4151 = vld [vmem:[#allocation28 + $0x258] sm:$0xff]
    %v4152 = vld [vmem:[#allocation28 + $0x260] sm:$0xff]
    %v4153 = vld [vmem:[#allocation28 + $0x268] sm:$0xff]
    %v4154 = vld [vmem:[#allocation28 + $0x270] sm:$0xff]
    %v4155 = vld [vmem:[#allocation28 + $0x278] sm:$0xff]
    %v4156 = vld [vmem:[#allocation28 + $0x280] sm:$0xff]
    %v4157 = vld [vmem:[#allocation28 + $0x288] sm:$0xff]
    %v4158 = vld [vmem:[#allocation28 + $0x290] sm:$0xff]
    %v4159 = vld [vmem:[#allocation28 + $0x298] sm:$0xff]
    %v4160 = vld [vmem:[#allocation28 + $0x2a0] sm:$0xff]
    %v4161 = vld [vmem:[#allocation28 + $0x2a8] sm:$0xff]
    %v4162 = vld [vmem:[#allocation28 + $0x2b0] sm:$0xff]
    %v4163 = vld [vmem:[#allocation28 + $0x2b8] sm:$0xff]
    %v4164 = vld [vmem:[#allocation28 + $0x2c0] sm:$0xff]
    %v4165 = vld [vmem:[#allocation28 + $0x2c8] sm:$0xff]
    %v4166 = vld [vmem:[#allocation28 + $0x2d0] sm:$0xff]
    %v4167 = vld [vmem:[#allocation28 + $0x2d8] sm:$0xff]
    %v4168 = vld [vmem:[#allocation28 + $0x2e0] sm:$0xff]
    %v4169 = vld [vmem:[#allocation28 + $0x2e8] sm:$0xff]
    %v4170 = vld [vmem:[#allocation28 + $0x2f0] sm:$0xff]
    %v4171 = vld [vmem:[#allocation28 + $0x2f8] sm:$0xff]
    %v4172 = vld [vmem:[#allocation28 + $0x300] sm:$0xff]
    %v4173 = vld [vmem:[#allocation28 + $0x308] sm:$0xff]
    %v4174 = vld [vmem:[#allocation28 + $0x310] sm:$0xff]
    %v4175 = vld [vmem:[#allocation28 + $0x318] sm:$0xff]
    %v4176 = vld [vmem:[#allocation28 + $0x320] sm:$0xff]
    %v4177 = vld [vmem:[#allocation28 + $0x328] sm:$0xff]
    %v4178 = vld [vmem:[#allocation28 + $0x330] sm:$0xff]
    %v4179 = vld [vmem:[#allocation28 + $0x338] sm:$0xff]
    %v4180 = vld [vmem:[#allocation28 + $0x340] sm:$0xff]
    %v4181 = vld [vmem:[#allocation28 + $0x348] sm:$0xff]
    %v4182 = vld [vmem:[#allocation28 + $0x350] sm:$0xff]
    %v4183 = vld [vmem:[#allocation28 + $0x358] sm:$0xff]
    %v4184 = vld [vmem:[#allocation28 + $0x360] sm:$0xff]
    %v4185 = vld [vmem:[#allocation28 + $0x368] sm:$0xff]
    %v4186 = vld [vmem:[#allocation28 + $0x370] sm:$0xff]
    %v4187 = vld [vmem:[#allocation28 + $0x378] sm:$0xff]
    %v4188 = vld [vmem:[#allocation28 + $0x380] sm:$0xff]
    %v4189 = vld [vmem:[#allocation28 + $0x388] sm:$0xff]
    %v4190 = vld [vmem:[#allocation28 + $0x390] sm:$0xff]
    %v4191 = vld [vmem:[#allocation28 + $0x398] sm:$0xff]
    %v4192 = vld [vmem:[#allocation28 + $0x3a0] sm:$0xff]
    %v4193 = vld [vmem:[#allocation28 + $0x3a8] sm:$0xff]
    %v4194 = vld [vmem:[#allocation28 + $0x3b0] sm:$0xff]
    %v4195 = vld [vmem:[#allocation28 + $0x3b8] sm:$0xff]
    %v4196 = vld [vmem:[#allocation28 + $0x3c0] sm:$0xff]
    %v4197 = vld [vmem:[#allocation28 + $0x3c8] sm:$0xff]
    %v4198 = vld [vmem:[#allocation28 + $0x3d0] sm:$0xff]
    %v4199 = vld [vmem:[#allocation28 + $0x3d8] sm:$0xff]
    %v4200 = vld [vmem:[#allocation28 + $0x3e0] sm:$0xff]
    %v4201 = vld [vmem:[#allocation28 + $0x3e8] sm:$0xff]
    %v4202 = vld [vmem:[#allocation28 + $0x3f0] sm:$0xff]
    %v4203 = vld [vmem:[#allocation28 + $0x3f8] sm:$0xff]
    %v4204 = vld [vmem:[#allocation28 + $0x400] sm:$0xff]
    %v4205 = vld [vmem:[#allocation28 + $0x408] sm:$0xff]
    %v4206 = vld [vmem:[#allocation28 + $0x410] sm:$0xff]
    %v4207 = vld [vmem:[#allocation28 + $0x418] sm:$0xff]
    %v4208 = vld [vmem:[#allocation28 + $0x420] sm:$0xff]
    %v4209 = vld [vmem:[#allocation28 + $0x428] sm:$0xff]
    %v4210 = vld [vmem:[#allocation28 + $0x430] sm:$0xff]
    %v4211 = vld [vmem:[#allocation28 + $0x438] sm:$0xff]
    %v4212 = vld [vmem:[#allocation28 + $0x440] sm:$0xff]
    %v4213 = vld [vmem:[#allocation28 + $0x448] sm:$0xff]
    %v4214 = vld [vmem:[#allocation28 + $0x450] sm:$0xff]
    %v4215 = vld [vmem:[#allocation28 + $0x458] sm:$0xff]
    %v4216 = vld [vmem:[#allocation28 + $0x460] sm:$0xff]
    %v4217 = vld [vmem:[#allocation28 + $0x468] sm:$0xff]
    %v4218 = vld [vmem:[#allocation28 + $0x470] sm:$0xff]
    %v4219 = vld [vmem:[#allocation28 + $0x478] sm:$0xff]
    %v4220 = vld [vmem:[#allocation28 + $0x480] sm:$0xff]
    %v4221 = vld [vmem:[#allocation28 + $0x488] sm:$0xff]
    %v4222 = vld [vmem:[#allocation28 + $0x490] sm:$0xff]
    %v4223 = vld [vmem:[#allocation28 + $0x498] sm:$0xff]
    %v4224 = vld [vmem:[#allocation28 + $0x4a0] sm:$0xff]
    %v4225 = vld [vmem:[#allocation28 + $0x4a8] sm:$0xff]
    %v4226 = vld [vmem:[#allocation28 + $0x4b0] sm:$0xff]
    %v4227 = vld [vmem:[#allocation28 + $0x4b8] sm:$0xff]
    %v4228 = vld [vmem:[#allocation28 + $0x4c0] sm:$0xff]
    %v4229 = vld [vmem:[#allocation28 + $0x4c8] sm:$0xff]
    %v4230 = vld [vmem:[#allocation28 + $0x4d0] sm:$0xff]
    %v4231 = vld [vmem:[#allocation28 + $0x4d8] sm:$0xff]
    %v4232 = vld [vmem:[#allocation28 + $0x4e0] sm:$0xff]
    %v4233 = vld [vmem:[#allocation28 + $0x4e8] sm:$0xff]
    %v4234 = vld [vmem:[#allocation28 + $0x4f0] sm:$0xff]
    %v4235 = vld [vmem:[#allocation28 + $0x4f8] sm:$0xff]
    %v4236 = vld [vmem:[#allocation28 + $0x500] sm:$0xff]
    %v4237 = vld [vmem:[#allocation28 + $0x508] sm:$0xff]
    %v4238 = vld [vmem:[#allocation28 + $0x510] sm:$0xff]
    %v4239 = vld [vmem:[#allocation28 + $0x518] sm:$0xff]
    %v4240 = vld [vmem:[#allocation28 + $0x520] sm:$0xff]
    %v4241 = vld [vmem:[#allocation28 + $0x528] sm:$0xff]
    %v4242 = vld [vmem:[#allocation28 + $0x530] sm:$0xff]
    %v4243 = vld [vmem:[#allocation28 + $0x538] sm:$0xff]
    %v4244 = vld [vmem:[#allocation28 + $0x540] sm:$0xff]
    %v4245 = vld [vmem:[#allocation28 + $0x548] sm:$0xff]
    %v4246 = vld [vmem:[#allocation28 + $0x550] sm:$0xff]
    %v4247 = vld [vmem:[#allocation28 + $0x558] sm:$0xff]
    %v4248 = vld [vmem:[#allocation28 + $0x560] sm:$0xff]
    %v4249 = vld [vmem:[#allocation28 + $0x568] sm:$0xff]
    %v4250 = vld [vmem:[#allocation28 + $0x570] sm:$0xff]
    %v4251 = vld [vmem:[#allocation28 + $0x578] sm:$0xff]
    %v4252 = vld [vmem:[#allocation28 + $0x580] sm:$0xff]
    %v4253 = vld [vmem:[#allocation28 + $0x588] sm:$0xff]
    %v4254 = vld [vmem:[#allocation28 + $0x590] sm:$0xff]
    %v4255 = vld [vmem:[#allocation28 + $0x598] sm:$0xff]
    %v4256 = vld [vmem:[#allocation28 + $0x5a0] sm:$0xff]
    %v4257 = vld [vmem:[#allocation28 + $0x5a8] sm:$0xff]
    %v4258 = vld [vmem:[#allocation28 + $0x5b0] sm:$0xff]
    %v4259 = vld [vmem:[#allocation28 + $0x5b8] sm:$0xff]
    %v4260 = vld [vmem:[#allocation28 + $0x5c0] sm:$0xff]
    %v4261 = vld [vmem:[#allocation28 + $0x5c8] sm:$0xff]
    %v4262 = vld [vmem:[#allocation28 + $0x5d0] sm:$0xff]
    %v4263 = vld [vmem:[#allocation28 + $0x5d8] sm:$0xff]
    %v4264 = vld [vmem:[#allocation28 + $0x5e0] sm:$0xff]
    %v4265 = vld [vmem:[#allocation28 + $0x5e8] sm:$0xff]
    %v4266 = vld [vmem:[#allocation28 + $0x5f0] sm:$0xff]
    %v4267 = vld [vmem:[#allocation28 + $0x5f8] sm:$0xff]
    %v4268 = vld [vmem:[#allocation28 + $0x600] sm:$0xff]
    %v4269 = vld [vmem:[#allocation28 + $0x608] sm:$0xff]
    %v4270 = vld [vmem:[#allocation28 + $0x610] sm:$0xff]
    %v4271 = vld [vmem:[#allocation28 + $0x618] sm:$0xff]
    %v4272 = vld [vmem:[#allocation28 + $0x620] sm:$0xff]
    %v4273 = vld [vmem:[#allocation28 + $0x628] sm:$0xff]
    %v4274 = vld [vmem:[#allocation28 + $0x630] sm:$0xff]
    %v4275 = vld [vmem:[#allocation28 + $0x638] sm:$0xff]
    %v4276 = vld [vmem:[#allocation28 + $0x640] sm:$0xff]
    %v4277 = vld [vmem:[#allocation28 + $0x648] sm:$0xff]
    %v4278 = vld [vmem:[#allocation28 + $0x650] sm:$0xff]
    %v4279 = vld [vmem:[#allocation28 + $0x658] sm:$0xff]
    %v4280 = vld [vmem:[#allocation28 + $0x660] sm:$0xff]
    %v4281 = vld [vmem:[#allocation28 + $0x668] sm:$0xff]
    %v4282 = vld [vmem:[#allocation28 + $0x670] sm:$0xff]
    %v4283 = vld [vmem:[#allocation28 + $0x678] sm:$0xff]
    %v4284 = vld [vmem:[#allocation28 + $0x680] sm:$0xff]
    %v4285 = vld [vmem:[#allocation28 + $0x688] sm:$0xff]
    %v4286 = vld [vmem:[#allocation28 + $0x690] sm:$0xff]
    %v4287 = vld [vmem:[#allocation28 + $0x698] sm:$0xff]
    %v4288 = vld [vmem:[#allocation28 + $0x6a0] sm:$0xff]
    %v4289 = vld [vmem:[#allocation28 + $0x6a8] sm:$0xff]
    %v4290 = vld [vmem:[#allocation28 + $0x6b0] sm:$0xff]
    %v4291 = vld [vmem:[#allocation28 + $0x6b8] sm:$0xff]
    %v4292 = vld [vmem:[#allocation28 + $0x6c0] sm:$0xff]
    %v4293 = vld [vmem:[#allocation28 + $0x6c8] sm:$0xff]
    %v4294 = vld [vmem:[#allocation28 + $0x6d0] sm:$0xff]
    %v4295 = vld [vmem:[#allocation28 + $0x6d8] sm:$0xff]
    %v4296 = vld [vmem:[#allocation28 + $0x6e0] sm:$0xff]
    %v4297 = vld [vmem:[#allocation28 + $0x6e8] sm:$0xff]
    %v4298 = vld [vmem:[#allocation28 + $0x6f0] sm:$0xff]
    %v4299 = vld [vmem:[#allocation28 + $0x6f8] sm:$0xff]
    %v4300 = vld [vmem:[#allocation28 + $0x700] sm:$0xff]
    %v4301 = vld [vmem:[#allocation28 + $0x708] sm:$0xff]
    %v4302 = vld [vmem:[#allocation28 + $0x710] sm:$0xff]
    %v4303 = vld [vmem:[#allocation28 + $0x718] sm:$0xff]
    %v4304 = vld [vmem:[#allocation28 + $0x720] sm:$0xff]
    %v4305 = vld [vmem:[#allocation28 + $0x728] sm:$0xff]
    %v4306 = vld [vmem:[#allocation28 + $0x730] sm:$0xff]
    %v4307 = vld [vmem:[#allocation28 + $0x738] sm:$0xff]
    %v4308 = vld [vmem:[#allocation28 + $0x740] sm:$0xff]
    %v4309 = vld [vmem:[#allocation28 + $0x748] sm:$0xff]
    %v4310 = vld [vmem:[#allocation28 + $0x750] sm:$0xff]
    %v4311 = vld [vmem:[#allocation28 + $0x758] sm:$0xff]
    %v4312 = vld [vmem:[#allocation28 + $0x760] sm:$0xff]
    %v4313 = vld [vmem:[#allocation28 + $0x768] sm:$0xff]
    %v4314 = vld [vmem:[#allocation28 + $0x770] sm:$0xff]
    %v4315 = vld [vmem:[#allocation28 + $0x778] sm:$0xff]
    %v4316 = vld [vmem:[#allocation28 + $0x780] sm:$0xff]
    %v4317 = vld [vmem:[#allocation28 + $0x788] sm:$0xff]
    %v4318 = vld [vmem:[#allocation28 + $0x790] sm:$0xff]
    %v4319 = vld [vmem:[#allocation28 + $0x798] sm:$0xff]
    %v4320 = vld [vmem:[#allocation28 + $0x7a0] sm:$0xff]
    %v4321 = vld [vmem:[#allocation28 + $0x7a8] sm:$0xff]
    %v4322 = vld [vmem:[#allocation28 + $0x7b0] sm:$0xff]
    %v4323 = vld [vmem:[#allocation28 + $0x7b8] sm:$0xff]
    %v4324 = vld [vmem:[#allocation28 + $0x7c0] sm:$0xff]
    %v4325 = vld [vmem:[#allocation28 + $0x7c8] sm:$0xff]
    %v4326 = vld [vmem:[#allocation28 + $0x7d0] sm:$0xff]
    %v4327 = vld [vmem:[#allocation28 + $0x7d8] sm:$0xff]
    %v4328 = vld [vmem:[#allocation28 + $0x7e0] sm:$0xff]
    %v4329 = vld [vmem:[#allocation28 + $0x7e8] sm:$0xff]
    %v4330 = vld [vmem:[#allocation28 + $0x7f0] sm:$0xff]
    %v4331 = vld [vmem:[#allocation28 + $0x7f8] sm:$0xff]
    %v4332 = vld [vmem:[#allocation28 + $0x800] sm:$0xff]
    %v4333 = vld [vmem:[#allocation28 + $0x808] sm:$0xff]
    %v4334 = vld [vmem:[#allocation28 + $0x810] sm:$0xff]
    %v4335 = vld [vmem:[#allocation28 + $0x818] sm:$0xff]
    %v4336 = vld [vmem:[#allocation28 + $0x820] sm:$0xff]
    %v4337 = vld [vmem:[#allocation28 + $0x828] sm:$0xff]
    %v4338 = vld [vmem:[#allocation28 + $0x830] sm:$0xff]
    %v4339 = vld [vmem:[#allocation28 + $0x838] sm:$0xff]
    %v4340 = vld [vmem:[#allocation28 + $0x840] sm:$0xff]
    %v4341 = vld [vmem:[#allocation28 + $0x848] sm:$0xff]
    %v4342 = vld [vmem:[#allocation28 + $0x850] sm:$0xff]
    %v4343 = vld [vmem:[#allocation28 + $0x858] sm:$0xff]
    %v4344 = vld [vmem:[#allocation28 + $0x860] sm:$0xff]
    %v4345 = vld [vmem:[#allocation28 + $0x868] sm:$0xff]
    %v4346 = vld [vmem:[#allocation28 + $0x870] sm:$0xff]
    %v4347 = vld [vmem:[#allocation28 + $0x878] sm:$0xff]
    %v4348 = vld [vmem:[#allocation28 + $0x880] sm:$0xff]
    %v4349 = vld [vmem:[#allocation28 + $0x888] sm:$0xff]
    %v4350 = vld [vmem:[#allocation28 + $0x890] sm:$0xff]
    %v4351 = vld [vmem:[#allocation28 + $0x898] sm:$0xff]
    %v4352 = vld [vmem:[#allocation28 + $0x8a0] sm:$0xff]
    %v4353 = vld [vmem:[#allocation28 + $0x8a8] sm:$0xff]
    %v4354 = vld [vmem:[#allocation28 + $0x8b0] sm:$0xff]
    %v4355 = vld [vmem:[#allocation28 + $0x8b8] sm:$0xff]
    %v4356 = vld [vmem:[#allocation28 + $0x8c0] sm:$0xff]
    %v4357 = vld [vmem:[#allocation28 + $0x8c8] sm:$0xff]
    %v4358 = vld [vmem:[#allocation28 + $0x8d0] sm:$0xff]
    %v4359 = vld [vmem:[#allocation28 + $0x8d8] sm:$0xff]
    %v4360 = vld [vmem:[#allocation28 + $0x8e0] sm:$0xff]
    %v4361 = vld [vmem:[#allocation28 + $0x8e8] sm:$0xff]
    %v4362 = vld [vmem:[#allocation28 + $0x8f0] sm:$0xff]
    %v4363 = vld [vmem:[#allocation28 + $0x8f8] sm:$0xff]
    %v4364 = vld [vmem:[#allocation28 + $0x900] sm:$0xff]
    %v4365 = vld [vmem:[#allocation28 + $0x908] sm:$0xff]
    %v4366 = vld [vmem:[#allocation28 + $0x910] sm:$0xff]
    %v4367 = vld [vmem:[#allocation28 + $0x918] sm:$0xff]
    %v4368 = vld [vmem:[#allocation28 + $0x920] sm:$0xff]
    %v4369 = vld [vmem:[#allocation28 + $0x928] sm:$0xff]
    %v4370 = vld [vmem:[#allocation28 + $0x930] sm:$0xff]
    %v4371 = vld [vmem:[#allocation28 + $0x938] sm:$0xff]
    %v4372 = vld [vmem:[#allocation28 + $0x940] sm:$0xff]
    %v4373 = vld [vmem:[#allocation28 + $0x948] sm:$0xff]
    %v4374 = vld [vmem:[#allocation28 + $0x950] sm:$0xff]
    %v4375 = vld [vmem:[#allocation28 + $0x958] sm:$0xff]
    %v4376 = vld [vmem:[#allocation28 + $0x960] sm:$0xff]
    %v4377 = vld [vmem:[#allocation28 + $0x968] sm:$0xff]
    %v4378 = vld [vmem:[#allocation28 + $0x970] sm:$0xff]
    %v4379 = vld [vmem:[#allocation28 + $0x978] sm:$0xff]
    %v4380 = vld [vmem:[#allocation28 + $0x980] sm:$0xff]
    %v4381 = vld [vmem:[#allocation28 + $0x988] sm:$0xff]
    %v4382 = vld [vmem:[#allocation28 + $0x990] sm:$0xff]
    %v4383 = vld [vmem:[#allocation28 + $0x998] sm:$0xff]
    %v4384 = vld [vmem:[#allocation28 + $0x9a0] sm:$0xff]
    %v4385 = vld [vmem:[#allocation28 + $0x9a8] sm:$0xff]
    %v4386 = vld [vmem:[#allocation28 + $0x9b0] sm:$0xff]
    %v4387 = vld [vmem:[#allocation28 + $0x9b8] sm:$0xff]
    %v4388 = vld [vmem:[#allocation28 + $0x9c0] sm:$0xff]
    %v4389 = vld [vmem:[#allocation28 + $0x9c8] sm:$0xff]
    %v4390 = vld [vmem:[#allocation28 + $0x9d0] sm:$0xff]
    %v4391 = vld [vmem:[#allocation28 + $0x9d8] sm:$0xff]
    %v4392 = vld [vmem:[#allocation28 + $0x9e0] sm:$0xff]
    %v4393 = vld [vmem:[#allocation28 + $0x9e8] sm:$0xff]
    %v4394 = vld [vmem:[#allocation28 + $0x9f0] sm:$0xff]
    %v4395 = vld [vmem:[#allocation28 + $0x9f8] sm:$0xff]
    %v4396 = vld [vmem:[#allocation28 + $0xa00] sm:$0xff]
    %v4397 = vld [vmem:[#allocation28 + $0xa08] sm:$0xff]
    %v4398 = vld [vmem:[#allocation28 + $0xa10] sm:$0xff]
    %v4399 = vld [vmem:[#allocation28 + $0xa18] sm:$0xff]
    %v4400 = vld [vmem:[#allocation28 + $0xa20] sm:$0xff]
    %v4401 = vld [vmem:[#allocation28 + $0xa28] sm:$0xff]
    %v4402 = vld [vmem:[#allocation28 + $0xa30] sm:$0xff]
    %v4403 = vld [vmem:[#allocation28 + $0xa38] sm:$0xff]
    %v4404 = vld [vmem:[#allocation28 + $0xa40] sm:$0xff]
    %v4405 = vld [vmem:[#allocation28 + $0xa48] sm:$0xff]
    %v4406 = vld [vmem:[#allocation28 + $0xa50] sm:$0xff]
    %v4407 = vld [vmem:[#allocation28 + $0xa58] sm:$0xff]
    %v4408 = vld [vmem:[#allocation28 + $0xa60] sm:$0xff]
    %v4409 = vld [vmem:[#allocation28 + $0xa68] sm:$0xff]
    %v4410 = vld [vmem:[#allocation28 + $0xa70] sm:$0xff]
    %v4411 = vld [vmem:[#allocation28 + $0xa78] sm:$0xff]
    %v4412 = vld [vmem:[#allocation28 + $0xa80] sm:$0xff]
    %v4413 = vld [vmem:[#allocation28 + $0xa88] sm:$0xff]
    %v4414 = vld [vmem:[#allocation28 + $0xa90] sm:$0xff]
    %v4415 = vld [vmem:[#allocation28 + $0xa98] sm:$0xff]
    %v4416 = vld [vmem:[#allocation28 + $0xaa0] sm:$0xff]
    %v4417 = vld [vmem:[#allocation28 + $0xaa8] sm:$0xff]
    %v4418 = vld [vmem:[#allocation28 + $0xab0] sm:$0xff]
    %v4419 = vld [vmem:[#allocation28 + $0xab8] sm:$0xff]
    %v4420 = vld [vmem:[#allocation28 + $0xac0] sm:$0xff]
    %v4421 = vld [vmem:[#allocation28 + $0xac8] sm:$0xff]
    %v4422 = vld [vmem:[#allocation28 + $0xad0] sm:$0xff]
    %v4423 = vld [vmem:[#allocation28 + $0xad8] sm:$0xff]
    %v4424 = vld [vmem:[#allocation28 + $0xae0] sm:$0xff]
    %v4425 = vld [vmem:[#allocation28 + $0xae8] sm:$0xff]
    %v4426 = vld [vmem:[#allocation28 + $0xaf0] sm:$0xff]
    %v4427 = vld [vmem:[#allocation28 + $0xaf8] sm:$0xff]
    %v4428 = vld [vmem:[#allocation28 + $0xb00] sm:$0xff]
    %v4429 = vld [vmem:[#allocation28 + $0xb08] sm:$0xff]
    %v4430 = vld [vmem:[#allocation28 + $0xb10] sm:$0xff]
    %v4431 = vld [vmem:[#allocation28 + $0xb18] sm:$0xff]
    %v4432 = vld [vmem:[#allocation28 + $0xb20] sm:$0xff]
    %v4433 = vld [vmem:[#allocation28 + $0xb28] sm:$0xff]
    %v4434 = vld [vmem:[#allocation28 + $0xb30] sm:$0xff]
    %v4435 = vld [vmem:[#allocation28 + $0xb38] sm:$0xff]
    %v4436 = vld [vmem:[#allocation28 + $0xb40] sm:$0xff]
    %v4437 = vld [vmem:[#allocation28 + $0xb48] sm:$0xff]
    %v4438 = vld [vmem:[#allocation28 + $0xb50] sm:$0xff]
    %v4439 = vld [vmem:[#allocation28 + $0xb58] sm:$0xff]
    %v4440 = vld [vmem:[#allocation28 + $0xb60] sm:$0xff]
    %v4441 = vld [vmem:[#allocation28 + $0xb68] sm:$0xff]
    %v4442 = vld [vmem:[#allocation28 + $0xb70] sm:$0xff]
    %v4443 = vld [vmem:[#allocation28 + $0xb78] sm:$0xff]
    %v4444 = vld [vmem:[#allocation28 + $0xb80] sm:$0xff]
    %v4445 = vld [vmem:[#allocation28 + $0xb88] sm:$0xff]
    %v4446 = vld [vmem:[#allocation28 + $0xb90] sm:$0xff]
    %v4447 = vld [vmem:[#allocation28 + $0xb98] sm:$0xff]
    %v4448 = vld [vmem:[#allocation28 + $0xba0] sm:$0xff]
    %v4449 = vld [vmem:[#allocation28 + $0xba8] sm:$0xff]
    %v4450 = vld [vmem:[#allocation28 + $0xbb0] sm:$0xff]
    %v4451 = vld [vmem:[#allocation28 + $0xbb8] sm:$0xff]
    %v4452 = vld [vmem:[#allocation28 + $0xbc0] sm:$0xff]
    %v4453 = vld [vmem:[#allocation28 + $0xbc8] sm:$0xff]
    %v4454 = vld [vmem:[#allocation28 + $0xbd0] sm:$0xff]
    %v4455 = vld [vmem:[#allocation28 + $0xbd8] sm:$0xff]
    %v4456 = vld [vmem:[#allocation28 + $0xbe0] sm:$0xff]
    %v4457 = vld [vmem:[#allocation28 + $0xbe8] sm:$0xff]
    %v4458 = vld [vmem:[#allocation28 + $0xbf0] sm:$0xff]
    %v4459 = vld [vmem:[#allocation28 + $0xbf8] sm:$0xff]
    %v4460 = vld [vmem:[#allocation28 + $0xc00] sm:$0xff]
    %v4461 = vld [vmem:[#allocation28 + $0xc08] sm:$0xff]
    %v4462 = vld [vmem:[#allocation28 + $0xc10] sm:$0xff]
    %v4463 = vld [vmem:[#allocation28 + $0xc18] sm:$0xff]
    %v4464 = vld [vmem:[#allocation28 + $0xc20] sm:$0xff]
    %v4465 = vld [vmem:[#allocation28 + $0xc28] sm:$0xff]
    %v4466 = vld [vmem:[#allocation28 + $0xc30] sm:$0xff]
    %v4467 = vld [vmem:[#allocation28 + $0xc38] sm:$0xff]
    %v4468 = vld [vmem:[#allocation28 + $0xc40] sm:$0xff]
    %v4469 = vld [vmem:[#allocation28 + $0xc48] sm:$0xff]
    %v4470 = vld [vmem:[#allocation28 + $0xc50] sm:$0xff]
    %v4471 = vld [vmem:[#allocation28 + $0xc58] sm:$0xff]
    %v4472 = vld [vmem:[#allocation28 + $0xc60] sm:$0xff]
    %v4473 = vld [vmem:[#allocation28 + $0xc68] sm:$0xff]
    %v4474 = vld [vmem:[#allocation28 + $0xc70] sm:$0xff]
    %v4475 = vld [vmem:[#allocation28 + $0xc78] sm:$0xff]
    %v4476 = vld [vmem:[#allocation28 + $0xc80] sm:$0xff]
    %v4477 = vld [vmem:[#allocation28 + $0xc88] sm:$0xff]
    %v4478 = vld [vmem:[#allocation28 + $0xc90] sm:$0xff]
    %v4479 = vld [vmem:[#allocation28 + $0xc98] sm:$0xff]
    %v4480 = vld [vmem:[#allocation28 + $0xca0] sm:$0xff]
    %v4481 = vld [vmem:[#allocation28 + $0xca8] sm:$0xff]
    %v4482 = vld [vmem:[#allocation28 + $0xcb0] sm:$0xff]
    %v4483 = vld [vmem:[#allocation28 + $0xcb8] sm:$0xff]
    %v4484 = vld [vmem:[#allocation28 + $0xcc0] sm:$0xff]
    %v4485 = vld [vmem:[#allocation28 + $0xcc8] sm:$0xff]
    %v4486 = vld [vmem:[#allocation28 + $0xcd0] sm:$0xff]
    %v4487 = vld [vmem:[#allocation28 + $0xcd8] sm:$0xff]
    %v4488 = vld [vmem:[#allocation28 + $0xce0] sm:$0xff]
    %v4489 = vld [vmem:[#allocation28 + $0xce8] sm:$0xff]
    %v4490 = vld [vmem:[#allocation28 + $0xcf0] sm:$0xff]
    %v4491 = vld [vmem:[#allocation28 + $0xcf8] sm:$0xff]
    %v4492 = vld [vmem:[#allocation28 + $0xd00] sm:$0xff]
    %v4493 = vld [vmem:[#allocation28 + $0xd08] sm:$0xff]
    %v4494 = vld [vmem:[#allocation28 + $0xd10] sm:$0xff]
    %v4495 = vld [vmem:[#allocation28 + $0xd18] sm:$0xff]
    %v4496 = vld [vmem:[#allocation28 + $0xd20] sm:$0xff]
    %v4497 = vld [vmem:[#allocation28 + $0xd28] sm:$0xff]
    %v4498 = vld [vmem:[#allocation28 + $0xd30] sm:$0xff]
    %v4499 = vld [vmem:[#allocation28 + $0xd38] sm:$0xff]
    %v4500 = vld [vmem:[#allocation28 + $0xd40] sm:$0xff]
    %v4501 = vld [vmem:[#allocation28 + $0xd48] sm:$0xff]
    %v4502 = vld [vmem:[#allocation28 + $0xd50] sm:$0xff]
    %v4503 = vld [vmem:[#allocation28 + $0xd58] sm:$0xff]
    %v4504 = vld [vmem:[#allocation28 + $0xd60] sm:$0xff]
    %v4505 = vld [vmem:[#allocation28 + $0xd68] sm:$0xff]
    %v4506 = vld [vmem:[#allocation28 + $0xd70] sm:$0xff]
    %v4507 = vld [vmem:[#allocation28 + $0xd78] sm:$0xff]
    %v4508 = vld [vmem:[#allocation28 + $0xd80] sm:$0xff]
    %v4509 = vld [vmem:[#allocation28 + $0xd88] sm:$0xff]
    %v4510 = vld [vmem:[#allocation28 + $0xd90] sm:$0xff]
    %v4511 = vld [vmem:[#allocation28 + $0xd98] sm:$0xff]
    %v4512 = vld [vmem:[#allocation28 + $0xda0] sm:$0xff]
    %v4513 = vld [vmem:[#allocation28 + $0xda8] sm:$0xff]
    %v4514 = vld [vmem:[#allocation28 + $0xdb0] sm:$0xff]
    %v4515 = vld [vmem:[#allocation28 + $0xdb8] sm:$0xff]
    %v4516 = vld [vmem:[#allocation28 + $0xdc0] sm:$0xff]
    %v4517 = vld [vmem:[#allocation28 + $0xdc8] sm:$0xff]
    %v4518 = vld [vmem:[#allocation28 + $0xdd0] sm:$0xff]
    %v4519 = vld [vmem:[#allocation28 + $0xdd8] sm:$0xff]
    %v4520 = vld [vmem:[#allocation28 + $0xde0] sm:$0xff]
    %v4521 = vld [vmem:[#allocation28 + $0xde8] sm:$0xff]
    %v4522 = vld [vmem:[#allocation28 + $0xdf0] sm:$0xff]
    %v4523 = vld [vmem:[#allocation28 + $0xdf8] sm:$0xff]
    %v4524 = vld [vmem:[#allocation28 + $0xe00] sm:$0xff]
    %v4525 = vld [vmem:[#allocation28 + $0xe08] sm:$0xff]
    %v4526 = vld [vmem:[#allocation28 + $0xe10] sm:$0xff]
    %v4527 = vld [vmem:[#allocation28 + $0xe18] sm:$0xff]
    %v4528 = vld [vmem:[#allocation28 + $0xe20] sm:$0xff]
    %v4529 = vld [vmem:[#allocation28 + $0xe28] sm:$0xff]
    %v4530 = vld [vmem:[#allocation28 + $0xe30] sm:$0xff]
    %v4531 = vld [vmem:[#allocation28 + $0xe38] sm:$0xff]
    %v4532 = vld [vmem:[#allocation28 + $0xe40] sm:$0xff]
    %v4533 = vld [vmem:[#allocation28 + $0xe48] sm:$0xff]
    %v4534 = vld [vmem:[#allocation28 + $0xe50] sm:$0xff]
    %v4535 = vld [vmem:[#allocation28 + $0xe58] sm:$0xff]
    %v4536 = vld [vmem:[#allocation28 + $0xe60] sm:$0xff]
    %v4537 = vld [vmem:[#allocation28 + $0xe68] sm:$0xff]
    %v4538 = vld [vmem:[#allocation28 + $0xe70] sm:$0xff]
    %v4539 = vld [vmem:[#allocation28 + $0xe78] sm:$0xff]
    %v4540 = vld [vmem:[#allocation28 + $0xe80] sm:$0xff]
    %v4541 = vld [vmem:[#allocation28 + $0xe88] sm:$0xff]
    %v4542 = vld [vmem:[#allocation28 + $0xe90] sm:$0xff]
    %v4543 = vld [vmem:[#allocation28 + $0xe98] sm:$0xff]
    %v4544 = vld [vmem:[#allocation28 + $0xea0] sm:$0xff]
    %v4545 = vld [vmem:[#allocation28 + $0xea8] sm:$0xff]
    %v4546 = vld [vmem:[#allocation28 + $0xeb0] sm:$0xff]
    %v4547 = vld [vmem:[#allocation28 + $0xeb8] sm:$0xff]
    %v4548 = vld [vmem:[#allocation28 + $0xec0] sm:$0xff]
    %v4549 = vld [vmem:[#allocation28 + $0xec8] sm:$0xff]
    %v4550 = vld [vmem:[#allocation28 + $0xed0] sm:$0xff]
    %v4551 = vld [vmem:[#allocation28 + $0xed8] sm:$0xff]
    %v4552 = vld [vmem:[#allocation28 + $0xee0] sm:$0xff]
    %v4553 = vld [vmem:[#allocation28 + $0xee8] sm:$0xff]
    %v4554 = vld [vmem:[#allocation28 + $0xef0] sm:$0xff]
    %v4555 = vld [vmem:[#allocation28 + $0xef8] sm:$0xff]
    %v4556 = vld [vmem:[#allocation28 + $0xf00] sm:$0xff]
    %v4557 = vld [vmem:[#allocation28 + $0xf08] sm:$0xff]
    %v4558 = vld [vmem:[#allocation28 + $0xf10] sm:$0xff]
    %v4559 = vld [vmem:[#allocation28 + $0xf18] sm:$0xff]
    %v4560 = vld [vmem:[#allocation28 + $0xf20] sm:$0xff]
    %v4561 = vld [vmem:[#allocation28 + $0xf28] sm:$0xff]
    %v4562 = vld [vmem:[#allocation28 + $0xf30] sm:$0xff]
    %v4563 = vld [vmem:[#allocation28 + $0xf38] sm:$0xff]
    %v4564 = vld [vmem:[#allocation28 + $0xf40] sm:$0xff]
    %v4565 = vld [vmem:[#allocation28 + $0xf48] sm:$0xff]
    %v4566 = vld [vmem:[#allocation28 + $0xf50] sm:$0xff]
    %v4567 = vld [vmem:[#allocation28 + $0xf58] sm:$0xff]
    %v4568 = vld [vmem:[#allocation28 + $0xf60] sm:$0xff]
    %v4569 = vld [vmem:[#allocation28 + $0xf68] sm:$0xff]
    %v4570 = vld [vmem:[#allocation28 + $0xf70] sm:$0xff]
    %v4571 = vld [vmem:[#allocation28 + $0xf78] sm:$0xff]
    %v4572 = vld [vmem:[#allocation28 + $0xf80] sm:$0xff]
    %v4573 = vld [vmem:[#allocation28 + $0xf88] sm:$0xff]
    %v4574 = vld [vmem:[#allocation28 + $0xf90] sm:$0xff]
    %v4575 = vld [vmem:[#allocation28 + $0xf98] sm:$0xff]
    %v4576 = vld [vmem:[#allocation28 + $0xfa0] sm:$0xff]
    %v4577 = vld [vmem:[#allocation28 + $0xfa8] sm:$0xff]
    %v4578 = vld [vmem:[#allocation28 + $0xfb0] sm:$0xff]
    %v4579 = vld [vmem:[#allocation28 + $0xfb8] sm:$0xff]
    %v4580 = vld [vmem:[#allocation28 + $0xfc0] sm:$0xff]
    %v4581 = vld [vmem:[#allocation28 + $0xfc8] sm:$0xff]
    %v4582 = vld [vmem:[#allocation28 + $0xfd0] sm:$0xff]
    %v4583 = vld [vmem:[#allocation28 + $0xfd8] sm:$0xff]
    %v4584 = vld [vmem:[#allocation28 + $0xfe0] sm:$0xff]
    %v4585 = vld [vmem:[#allocation28 + $0xfe8] sm:$0xff]
    %v4586 = vld [vmem:[#allocation28 + $0xff0] sm:$0xff]
    %v4587 = vld [vmem:[#allocation28 + $0xff8] sm:$0xff]
    %v4588 = vld [vmem:[#allocation28 + $0x1000] sm:$0xff]
    %v4589 = vld [vmem:[#allocation28 + $0x1008] sm:$0xff]
    %v4590 = vld [vmem:[#allocation28 + $0x1010] sm:$0xff]
    %v4591 = vld [vmem:[#allocation28 + $0x1018] sm:$0xff]
    %v4592 = vld [vmem:[#allocation28 + $0x1020] sm:$0xff]
    %v4593 = vld [vmem:[#allocation28 + $0x1028] sm:$0xff]
    %v4594 = vld [vmem:[#allocation28 + $0x1030] sm:$0xff]
    %v4595 = vld [vmem:[#allocation28 + $0x1038] sm:$0xff]
    %v4596 = vld [vmem:[#allocation28 + $0x1040] sm:$0xff]
    %v4597 = vld [vmem:[#allocation28 + $0x1048] sm:$0xff]
    %v4598 = vld [vmem:[#allocation28 + $0x1050] sm:$0xff]
    %v4599 = vld [vmem:[#allocation28 + $0x1058] sm:$0xff]
    %v4600 = vld [vmem:[#allocation28 + $0x1060] sm:$0xff]
    %v4601 = vld [vmem:[#allocation28 + $0x1068] sm:$0xff]
    %v4602 = vld [vmem:[#allocation28 + $0x1070] sm:$0xff]
    %v4603 = vld [vmem:[#allocation28 + $0x1078] sm:$0xff]
    %v4604 = vld [vmem:[#allocation28 + $0x1080] sm:$0xff]
    %v4605 = vld [vmem:[#allocation28 + $0x1088] sm:$0xff]
    %v4606 = vld [vmem:[#allocation28 + $0x1090] sm:$0xff]
    %v4607 = vld [vmem:[#allocation28 + $0x1098] sm:$0xff]
    %v4608 = vld [vmem:[#allocation28 + $0x10a0] sm:$0xff]
    %v4609 = vld [vmem:[#allocation28 + $0x10a8] sm:$0xff]
    %v4610 = vld [vmem:[#allocation28 + $0x10b0] sm:$0xff]
    %v4611 = vld [vmem:[#allocation28 + $0x10b8] sm:$0xff]
    %v4612 = vld [vmem:[#allocation28 + $0x10c0] sm:$0xff]
    %v4613 = vld [vmem:[#allocation28 + $0x10c8] sm:$0xff]
    %v4614 = vld [vmem:[#allocation28 + $0x10d0] sm:$0xff]
    %v4615 = vld [vmem:[#allocation28 + $0x10d8] sm:$0xff]
    %v4616 = vld [vmem:[#allocation28 + $0x10e0] sm:$0xff]
    %v4617 = vld [vmem:[#allocation28 + $0x10e8] sm:$0xff]
    %v4618 = vld [vmem:[#allocation28 + $0x10f0] sm:$0xff]
    %v4619 = vld [vmem:[#allocation28 + $0x10f8] sm:$0xff]
    %v4620 = vld [vmem:[#allocation28 + $0x1100] sm:$0xff]
    %v4621 = vld [vmem:[#allocation28 + $0x1108] sm:$0xff]
    %v4622 = vld [vmem:[#allocation28 + $0x1110] sm:$0xff]
    %v4623 = vld [vmem:[#allocation28 + $0x1118] sm:$0xff]
    %v4624 = vld [vmem:[#allocation28 + $0x1120] sm:$0xff]
    %v4625 = vld [vmem:[#allocation28 + $0x1128] sm:$0xff]
    %v4626 = vld [vmem:[#allocation28 + $0x1130] sm:$0xff]
    %v4627 = vld [vmem:[#allocation28 + $0x1138] sm:$0xff]
    %v4628 = vld [vmem:[#allocation28 + $0x1140] sm:$0xff]
    %v4629 = vld [vmem:[#allocation28 + $0x1148] sm:$0xff]
    %v4630 = vld [vmem:[#allocation28 + $0x1150] sm:$0xff]
    %v4631 = vld [vmem:[#allocation28 + $0x1158] sm:$0xff]
    %v4632 = vld [vmem:[#allocation28 + $0x1160] sm:$0xff]
    %v4633 = vld [vmem:[#allocation28 + $0x1168] sm:$0xff]
    %v4634 = vld [vmem:[#allocation28 + $0x1170] sm:$0xff]
    %v4635 = vld [vmem:[#allocation28 + $0x1178] sm:$0xff]
    %v4636 = vld [vmem:[#allocation28 + $0x1180] sm:$0xff]
    %v4637 = vld [vmem:[#allocation28 + $0x1188] sm:$0xff]
    %v4638 = vld [vmem:[#allocation28 + $0x1190] sm:$0xff]
    %v4639 = vld [vmem:[#allocation28 + $0x1198] sm:$0xff]
    %v4640 = vld [vmem:[#allocation28 + $0x11a0] sm:$0xff]
    %v4641 = vld [vmem:[#allocation28 + $0x11a8] sm:$0xff]
    %v4642 = vld [vmem:[#allocation28 + $0x11b0] sm:$0xff]
    %v4643 = vld [vmem:[#allocation28 + $0x11b8] sm:$0xff]
    %v4644 = vld [vmem:[#allocation28 + $0x11c0] sm:$0xff]
    %v4645 = vld [vmem:[#allocation28 + $0x11c8] sm:$0xff]
    %v4646 = vld [vmem:[#allocation28 + $0x11d0] sm:$0xff]
    %v4647 = vld [vmem:[#allocation28 + $0x11d8] sm:$0xff]
    %v4648 = vld [vmem:[#allocation28 + $0x11e0] sm:$0xff]
    %v4649 = vld [vmem:[#allocation28 + $0x11e8] sm:$0xff]
    %v4650 = vld [vmem:[#allocation28 + $0x11f0] sm:$0xff]
    %v4651 = vld [vmem:[#allocation28 + $0x11f8] sm:$0xff]
    %v4652 = vld [vmem:[#allocation28 + $0x1200] sm:$0xff]
    %v4653 = vld [vmem:[#allocation28 + $0x1208] sm:$0xff]
    %v4654 = vld [vmem:[#allocation28 + $0x1210] sm:$0xff]
    %v4655 = vld [vmem:[#allocation28 + $0x1218] sm:$0xff]
    %v4656 = vld [vmem:[#allocation28 + $0x1220] sm:$0xff]
    %v4657 = vld [vmem:[#allocation28 + $0x1228] sm:$0xff]
    %v4658 = vld [vmem:[#allocation28 + $0x1230] sm:$0xff]
    %v4659 = vld [vmem:[#allocation28 + $0x1238] sm:$0xff]
    %v4660 = vld [vmem:[#allocation28 + $0x1240] sm:$0xff]
    %v4661 = vld [vmem:[#allocation28 + $0x1248] sm:$0xff]
    %v4662 = vld [vmem:[#allocation28 + $0x1250] sm:$0xff]
    %v4663 = vld [vmem:[#allocation28 + $0x1258] sm:$0xff]
    %v4664 = vld [vmem:[#allocation28 + $0x1260] sm:$0xff]
    %v4665 = vld [vmem:[#allocation28 + $0x1268] sm:$0xff]
    %v4666 = vld [vmem:[#allocation28 + $0x1270] sm:$0xff]
    %v4667 = vld [vmem:[#allocation28 + $0x1278] sm:$0xff]
    %v4668 = vld [vmem:[#allocation28 + $0x1280] sm:$0xff]
    %v4669 = vld [vmem:[#allocation28 + $0x1288] sm:$0xff]
    %v4670 = vld [vmem:[#allocation28 + $0x1290] sm:$0xff]
    %v4671 = vld [vmem:[#allocation28 + $0x1298] sm:$0xff]
    %v4672 = vld [vmem:[#allocation28 + $0x12a0] sm:$0xff]
    %v4673 = vld [vmem:[#allocation28 + $0x12a8] sm:$0xff]
    %v4674 = vld [vmem:[#allocation28 + $0x12b0] sm:$0xff]
    %v4675 = vld [vmem:[#allocation28 + $0x12b8] sm:$0xff]
    %v4676 = vld [vmem:[#allocation28 + $0x12c0] sm:$0xff]
    %v4677 = vld [vmem:[#allocation28 + $0x12c8] sm:$0xff]
    %v4678 = vld [vmem:[#allocation28 + $0x12d0] sm:$0xff]
    %v4679 = vld [vmem:[#allocation28 + $0x12d8] sm:$0xff]
    %v4680 = vld [vmem:[#allocation28 + $0x12e0] sm:$0xff]
    %v4681 = vld [vmem:[#allocation28 + $0x12e8] sm:$0xff]
    %v4682 = vld [vmem:[#allocation28 + $0x12f0] sm:$0xff]
    %v4683 = vld [vmem:[#allocation28 + $0x12f8] sm:$0xff]
    %v4684 = vld [vmem:[#allocation28 + $0x1300] sm:$0xff]
    %v4685 = vld [vmem:[#allocation28 + $0x1308] sm:$0xff]
    %v4686 = vld [vmem:[#allocation28 + $0x1310] sm:$0xff]
    %v4687 = vld [vmem:[#allocation28 + $0x1318] sm:$0xff]
    %v4688 = vld [vmem:[#allocation28 + $0x1320] sm:$0xff]
    %v4689 = vld [vmem:[#allocation28 + $0x1328] sm:$0xff]
    %v4690 = vld [vmem:[#allocation28 + $0x1330] sm:$0xff]
    %v4691 = vld [vmem:[#allocation28 + $0x1338] sm:$0xff]
    %v4692 = vld [vmem:[#allocation28 + $0x1340] sm:$0xff]
    %v4693 = vld [vmem:[#allocation28 + $0x1348] sm:$0xff]
    %v4694 = vld [vmem:[#allocation28 + $0x1350] sm:$0xff]
    %v4695 = vld [vmem:[#allocation28 + $0x1358] sm:$0xff]
    %v4696 = vld [vmem:[#allocation28 + $0x1360] sm:$0xff]
    %v4697 = vld [vmem:[#allocation28 + $0x1368] sm:$0xff]
    %v4698 = vld [vmem:[#allocation28 + $0x1370] sm:$0xff]
    %v4699 = vld [vmem:[#allocation28 + $0x1378] sm:$0xff]
    %v4700 = vld [vmem:[#allocation28 + $0x1380] sm:$0xff]
    %v4701 = vld [vmem:[#allocation28 + $0x1388] sm:$0xff]
    %v4702 = vld [vmem:[#allocation28 + $0x1390] sm:$0xff]
    %v4703 = vld [vmem:[#allocation28 + $0x1398] sm:$0xff]
    %v4704 = vld [vmem:[#allocation28 + $0x13a0] sm:$0xff]
    %v4705 = vld [vmem:[#allocation28 + $0x13a8] sm:$0xff]
    %v4706 = vld [vmem:[#allocation28 + $0x13b0] sm:$0xff]
    %v4707 = vld [vmem:[#allocation28 + $0x13b8] sm:$0xff]
    %v4708 = vld [vmem:[#allocation28 + $0x13c0] sm:$0xff]
    %v4709 = vld [vmem:[#allocation28 + $0x13c8] sm:$0xff]
    %v4710 = vld [vmem:[#allocation28 + $0x13d0] sm:$0xff]
    %v4711 = vld [vmem:[#allocation28 + $0x13d8] sm:$0xff]
    %v4712 = vld [vmem:[#allocation28 + $0x13e0] sm:$0xff]
    %v4713 = vld [vmem:[#allocation28 + $0x13e8] sm:$0xff]
    %v4714 = vld [vmem:[#allocation28 + $0x13f0] sm:$0xff]
    %v4715 = vld [vmem:[#allocation28 + $0x13f8] sm:$0xff]
    %v4716 = vld [vmem:[#allocation28 + $0x1400] sm:$0xff]
    %v4717 = vld [vmem:[#allocation28 + $0x1408] sm:$0xff]
    %v4718 = vld [vmem:[#allocation28 + $0x1410] sm:$0xff]
    %v4719 = vld [vmem:[#allocation28 + $0x1418] sm:$0xff]
    %v4720 = vld [vmem:[#allocation28 + $0x1420] sm:$0xff]
    %v4721 = vld [vmem:[#allocation28 + $0x1428] sm:$0xff]
    %v4722 = vld [vmem:[#allocation28 + $0x1430] sm:$0xff]
    %v4723 = vld [vmem:[#allocation28 + $0x1438] sm:$0xff]
    %v4724 = vld [vmem:[#allocation28 + $0x1440] sm:$0xff]
    %v4725 = vld [vmem:[#allocation28 + $0x1448] sm:$0xff]
    %v4726 = vld [vmem:[#allocation28 + $0x1450] sm:$0xff]
    %v4727 = vld [vmem:[#allocation28 + $0x1458] sm:$0xff]
    %v4728 = vld [vmem:[#allocation28 + $0x1460] sm:$0xff]
    %v4729 = vld [vmem:[#allocation28 + $0x1468] sm:$0xff]
    %v4730 = vld [vmem:[#allocation28 + $0x1470] sm:$0xff]
    %v4731 = vld [vmem:[#allocation28 + $0x1478] sm:$0xff]
    %v4732 = vld [vmem:[#allocation28 + $0x1480] sm:$0xff]
    %v4733 = vld [vmem:[#allocation28 + $0x1488] sm:$0xff]
    %v4734 = vld [vmem:[#allocation28 + $0x1490] sm:$0xff]
    %v4735 = vld [vmem:[#allocation28 + $0x1498] sm:$0xff]
    %v4736 = vld [vmem:[#allocation28 + $0x14a0] sm:$0xff]
    %v4737 = vld [vmem:[#allocation28 + $0x14a8] sm:$0xff]
    %v4738 = vld [vmem:[#allocation28 + $0x14b0] sm:$0xff]
    %v4739 = vld [vmem:[#allocation28 + $0x14b8] sm:$0xff]
    %v4740 = vld [vmem:[#allocation28 + $0x14c0] sm:$0xff]
    %v4741 = vld [vmem:[#allocation28 + $0x14c8] sm:$0xff]
    %v4742 = vld [vmem:[#allocation28 + $0x14d0] sm:$0xff]
    %v4743 = vld [vmem:[#allocation28 + $0x14d8] sm:$0xff]
    %v4744 = vld [vmem:[#allocation28 + $0x14e0] sm:$0xff]
    %v4745 = vld [vmem:[#allocation28 + $0x14e8] sm:$0xff]
    %v4746 = vld [vmem:[#allocation28 + $0x14f0] sm:$0xff]
    %v4747 = vld [vmem:[#allocation28 + $0x14f8] sm:$0xff]
    %v4748 = vld [vmem:[#allocation28 + $0x1500] sm:$0xff]
    %v4749 = vld [vmem:[#allocation28 + $0x1508] sm:$0xff]
    %v4750 = vld [vmem:[#allocation28 + $0x1510] sm:$0xff]
    %v4751 = vld [vmem:[#allocation28 + $0x1518] sm:$0xff]
    %v4752 = vld [vmem:[#allocation28 + $0x1520] sm:$0xff]
    %v4753 = vld [vmem:[#allocation28 + $0x1528] sm:$0xff]
    %v4754 = vld [vmem:[#allocation28 + $0x1530] sm:$0xff]
    %v4755 = vld [vmem:[#allocation28 + $0x1538] sm:$0xff]
    %v4756 = vld [vmem:[#allocation28 + $0x1540] sm:$0xff]
    %v4757 = vld [vmem:[#allocation28 + $0x1548] sm:$0xff]
    %v4758 = vld [vmem:[#allocation28 + $0x1550] sm:$0xff]
    %v4759 = vld [vmem:[#allocation28 + $0x1558] sm:$0xff]
    %v4760 = vld [vmem:[#allocation28 + $0x1560] sm:$0xff]
    %v4761 = vld [vmem:[#allocation28 + $0x1568] sm:$0xff]
    %v4762 = vld [vmem:[#allocation28 + $0x1570] sm:$0xff]
    %v4763 = vld [vmem:[#allocation28 + $0x1578] sm:$0xff]
    %v4764 = vld [vmem:[#allocation28 + $0x1580] sm:$0xff]
    %v4765 = vld [vmem:[#allocation28 + $0x1588] sm:$0xff]
    %v4766 = vld [vmem:[#allocation28 + $0x1590] sm:$0xff]
    %v4767 = vld [vmem:[#allocation28 + $0x1598] sm:$0xff]
    %v4768 = vld [vmem:[#allocation28 + $0x15a0] sm:$0xff]
    %v4769 = vld [vmem:[#allocation28 + $0x15a8] sm:$0xff]
    %v4770 = vld [vmem:[#allocation28 + $0x15b0] sm:$0xff]
    %v4771 = vld [vmem:[#allocation28 + $0x15b8] sm:$0xff]
    %v4772 = vld [vmem:[#allocation28 + $0x15c0] sm:$0xff]
    %v4773 = vld [vmem:[#allocation28 + $0x15c8] sm:$0xff]
    %v4774 = vld [vmem:[#allocation28 + $0x15d0] sm:$0xff]
    %v4775 = vld [vmem:[#allocation28 + $0x15d8] sm:$0xff]
    %v4776 = vld [vmem:[#allocation28 + $0x15e0] sm:$0xff]
    %v4777 = vld [vmem:[#allocation28 + $0x15e8] sm:$0xff]
    %v4778 = vld [vmem:[#allocation28 + $0x15f0] sm:$0xff]
    %v4779 = vld [vmem:[#allocation28 + $0x15f8] sm:$0xff]
    %v4780 = vld [vmem:[#allocation28 + $0x1600] sm:$0xff]
    %v4781 = vld [vmem:[#allocation28 + $0x1608] sm:$0xff]
    %v4782 = vld [vmem:[#allocation28 + $0x1610] sm:$0xff]
    %v4783 = vld [vmem:[#allocation28 + $0x1618] sm:$0xff]
    %v4784 = vld [vmem:[#allocation28 + $0x1620] sm:$0xff]
    %v4785 = vld [vmem:[#allocation28 + $0x1628] sm:$0xff]
    %v4786 = vld [vmem:[#allocation28 + $0x1630] sm:$0xff]
    %v4787 = vld [vmem:[#allocation28 + $0x1638] sm:$0xff]
    %v4788 = vld [vmem:[#allocation28 + $0x1640] sm:$0xff]
    %v4789 = vld [vmem:[#allocation28 + $0x1648] sm:$0xff]
    %v4790 = vld [vmem:[#allocation28 + $0x1650] sm:$0xff]
    %v4791 = vld [vmem:[#allocation28 + $0x1658] sm:$0xff]
    %v4792 = vld [vmem:[#allocation28 + $0x1660] sm:$0xff]
    %v4793 = vld [vmem:[#allocation28 + $0x1668] sm:$0xff]
    %v4794 = vld [vmem:[#allocation28 + $0x1670] sm:$0xff]
    %v4795 = vld [vmem:[#allocation28 + $0x1678] sm:$0xff]
    %v4796 = vld [vmem:[#allocation28 + $0x1680] sm:$0xff]
    %v4797 = vld [vmem:[#allocation28 + $0x1688] sm:$0xff]
    %v4798 = vld [vmem:[#allocation28 + $0x1690] sm:$0xff]
    %v4799 = vld [vmem:[#allocation28 + $0x1698] sm:$0xff]
    %v4800 = vld [vmem:[#allocation28 + $0x16a0] sm:$0xff]
    %v4801 = vld [vmem:[#allocation28 + $0x16a8] sm:$0xff]
    %v4802 = vld [vmem:[#allocation28 + $0x16b0] sm:$0xff]
    %v4803 = vld [vmem:[#allocation28 + $0x16b8] sm:$0xff]
    %v4804 = vld [vmem:[#allocation28 + $0x16c0] sm:$0xff]
    %v4805 = vld [vmem:[#allocation28 + $0x16c8] sm:$0xff]
    %v4806 = vld [vmem:[#allocation28 + $0x16d0] sm:$0xff]
    %v4807 = vld [vmem:[#allocation28 + $0x16d8] sm:$0xff]
    %v4808 = vld [vmem:[#allocation28 + $0x16e0] sm:$0xff]
    %v4809 = vld [vmem:[#allocation28 + $0x16e8] sm:$0xff]
    %v4810 = vld [vmem:[#allocation28 + $0x16f0] sm:$0xff]
    %v4811 = vld [vmem:[#allocation28 + $0x16f8] sm:$0xff]
    %v4812 = vld [vmem:[#allocation28 + $0x1700] sm:$0xff]
    %v4813 = vld [vmem:[#allocation28 + $0x1708] sm:$0xff]
    %v4814 = vld [vmem:[#allocation28 + $0x1710] sm:$0xff]
    %v4815 = vld [vmem:[#allocation28 + $0x1718] sm:$0xff]
    %v4816 = vld [vmem:[#allocation28 + $0x1720] sm:$0xff]
    %v4817 = vld [vmem:[#allocation28 + $0x1728] sm:$0xff]
    %v4818 = vld [vmem:[#allocation28 + $0x1730] sm:$0xff]
    %v4819 = vld [vmem:[#allocation28 + $0x1738] sm:$0xff]
    %v4820 = vld [vmem:[#allocation28 + $0x1740] sm:$0xff]
    %v4821 = vld [vmem:[#allocation28 + $0x1748] sm:$0xff]
    %v4822 = vld [vmem:[#allocation28 + $0x1750] sm:$0xff]
    %v4823 = vld [vmem:[#allocation28 + $0x1758] sm:$0xff]
    %v4824 = vld [vmem:[#allocation28 + $0x1760] sm:$0xff]
    %v4825 = vld [vmem:[#allocation28 + $0x1768] sm:$0xff]
    %v4826 = vld [vmem:[#allocation28 + $0x1770] sm:$0xff]
    %v4827 = vld [vmem:[#allocation28 + $0x1778] sm:$0xff]
    %v4828 = vld [vmem:[#allocation28 + $0x1780] sm:$0xff]
    %v4829 = vld [vmem:[#allocation28 + $0x1788] sm:$0xff]
    %v4830 = vld [vmem:[#allocation28 + $0x1790] sm:$0xff]
    %v4831 = vld [vmem:[#allocation28 + $0x1798] sm:$0xff]
    %v4832 = vld [vmem:[#allocation28 + $0x17a0] sm:$0xff]
    %v4833 = vld [vmem:[#allocation28 + $0x17a8] sm:$0xff]
    %v4834 = vld [vmem:[#allocation28 + $0x17b0] sm:$0xff]
    %v4835 = vld [vmem:[#allocation28 + $0x17b8] sm:$0xff]
    %v4836 = vld [vmem:[#allocation28 + $0x17c0] sm:$0xff]
    %v4837 = vld [vmem:[#allocation28 + $0x17c8] sm:$0xff]
    %v4838 = vld [vmem:[#allocation28 + $0x17d0] sm:$0xff]
    %v4839 = vld [vmem:[#allocation28 + $0x17d8] sm:$0xff]
    %v4840 = vld [vmem:[#allocation28 + $0x17e0] sm:$0xff]
    %v4841 = vld [vmem:[#allocation28 + $0x17e8] sm:$0xff]
    %v4842 = vld [vmem:[#allocation28 + $0x17f0] sm:$0xff]
    %v4843 = vld [vmem:[#allocation28 + $0x17f8] sm:$0xff]
    %v4844 = vld [vmem:[#allocation29] sm:$0x3]
    %v4846 = vperm.slane %v4844, 0
    %v4847 = vperm.slane %v4844, 1
    %4850 = vmatpush.msra.mxu0 %v4106
    %4851 = vmatpush.msra.mxu0 %v4104
    %4852 = vmatpush.msra.mxu0 %v4102
    %4853 = vmatpush.msra.mxu0 %v4100
    %4854 = vmatpush.msra.mxu0 %v4098
    %4855 = vmatpush.msra.mxu0 %v4096
    %4856 = vmatpush.msra.mxu0 %v4094
    %4857 = vmatpush.msra.mxu0 %v4092
    %4858 = vmatpush.msra.mxu0 %v4090
    %4859 = vmatpush.msra.mxu0 %v4088
    %4860 = vmatpush.msra.mxu0 %v4086
    %4861 = vmatpush.msra.mxu0 %v4084
    %4862 = vmatpush.msra.mxu0 %v4082
    %4863 = vmatpush.msra.mxu0 %v4080
    %4864 = vmatpush.msra.mxu0 %v4078
    %4865 = vmatpush.msra.mxu0 %v4076
    %4866 = vmatmul.f32.gmra.mxu0 %v4016
    %v4867 = vpop.f32.mrf.mxu0
    %v4868 = vadd.f32 %v4846, %v4867
    %4869 = vdwg.mxu0
    %4870 = vmatpush.msra.mxu0 %v4138
    %4871 = vmatpush.msra.mxu0 %v4136
    %4872 = vmatpush.msra.mxu0 %v4134
    %4873 = vmatpush.msra.mxu0 %v4132
    %4874 = vmatpush.msra.mxu0 %v4130
    %4875 = vmatpush.msra.mxu0 %v4128
    %4876 = vmatpush.msra.mxu0 %v4126
    %4877 = vmatpush.msra.mxu0 %v4124
    %4878 = vmatpush.msra.mxu0 %v4122
    %4879 = vmatpush.msra.mxu0 %v4120
    %4880 = vmatpush.msra.mxu0 %v4118
    %4881 = vmatpush.msra.mxu0 %v4116
    %4882 = vmatpush.msra.mxu0 %v4114
    %4883 = vmatpush.msra.mxu0 %v4112
    %4884 = vmatpush.msra.mxu0 %v4110
    %4885 = vmatpush.msra.mxu0 %v4108
    %4886 = vmatmul.f32.gmra.mxu0 %v4017
    %v4887 = vpop.f32.mrf.mxu0
    %v4888 = vadd.f32 %v4868, %v4887
    %4889 = vdwg.mxu0
    %4890 = vmatpush.msra.mxu0 %v4170
    %4891 = vmatpush.msra.mxu0 %v4168
    %4892 = vmatpush.msra.mxu0 %v4166
    %4893 = vmatpush.msra.mxu0 %v4164
    %4894 = vmatpush.msra.mxu0 %v4162
    %4895 = vmatpush.msra.mxu0 %v4160
    %4896 = vmatpush.msra.mxu0 %v4158
    %4897 = vmatpush.msra.mxu0 %v4156
    %4898 = vmatpush.msra.mxu0 %v4154
    %4899 = vmatpush.msra.mxu0 %v4152
    %4900 = vmatpush.msra.mxu0 %v4150
    %4901 = vmatpush.msra.mxu0 %v4148
    %4902 = vmatpush.msra.mxu0 %v4146
    %4903 = vmatpush.msra.mxu0 %v4144
    %4904 = vmatpush.msra.mxu0 %v4142
    %4905 = vmatpush.msra.mxu0 %v4140
    %4906 = vmatmul.f32.gmra.mxu0 %v4022
    %v4907 = vpop.f32.mrf.mxu0
    %v4908 = vadd.f32 %v4888, %v4907
    %4909 = vdwg.mxu0
    %4910 = vmatpush.msra.mxu0 %v4202
    %4911 = vmatpush.msra.mxu0 %v4200
    %4912 = vmatpush.msra.mxu0 %v4198
    %4913 = vmatpush.msra.mxu0 %v4196
    %4914 = vmatpush.msra.mxu0 %v4194
    %4915 = vmatpush.msra.mxu0 %v4192
    %4916 = vmatpush.msra.mxu0 %v4190
    %4917 = vmatpush.msra.mxu0 %v4188
    %4918 = vmatpush.msra.mxu0 %v4186
    %4919 = vmatpush.msra.mxu0 %v4184
    %4920 = vmatpush.msra.mxu0 %v4182
    %4921 = vmatpush.msra.mxu0 %v4180
    %4922 = vmatpush.msra.mxu0 %v4178
    %4923 = vmatpush.msra.mxu0 %v4176
    %4924 = vmatpush.msra.mxu0 %v4174
    %4925 = vmatpush.msra.mxu0 %v4172
    %4926 = vmatmul.f32.gmra.mxu0 %v4023
    %v4927 = vpop.f32.mrf.mxu0
    %v4928 = vadd.f32 %v4908, %v4927
    %4929 = vdwg.mxu0
    %4930 = vmatpush.msra.mxu0 %v4234
    %4931 = vmatpush.msra.mxu0 %v4232
    %4932 = vmatpush.msra.mxu0 %v4230
    %4933 = vmatpush.msra.mxu0 %v4228
    %4934 = vmatpush.msra.mxu0 %v4226
    %4935 = vmatpush.msra.mxu0 %v4224
    %4936 = vmatpush.msra.mxu0 %v4222
    %4937 = vmatpush.msra.mxu0 %v4220
    %4938 = vmatpush.msra.mxu0 %v4218
    %4939 = vmatpush.msra.mxu0 %v4216
    %4940 = vmatpush.msra.mxu0 %v4214
    %4941 = vmatpush.msra.mxu0 %v4212
    %4942 = vmatpush.msra.mxu0 %v4210
    %4943 = vmatpush.msra.mxu0 %v4208
    %4944 = vmatpush.msra.mxu0 %v4206
    %4945 = vmatpush.msra.mxu0 %v4204
    %4946 = vmatmul.f32.gmra.mxu0 %v4026
    %v4947 = vpop.f32.mrf.mxu0
    %v4948 = vadd.f32 %v4928, %v4947
    %4949 = vdwg.mxu0
    %4950 = vmatpush.msra.mxu0 %v4266
    %4951 = vmatpush.msra.mxu0 %v4264
    %4952 = vmatpush.msra.mxu0 %v4262
    %4953 = vmatpush.msra.mxu0 %v4260
    %4954 = vmatpush.msra.mxu0 %v4258
    %4955 = vmatpush.msra.mxu0 %v4256
    %4956 = vmatpush.msra.mxu0 %v4254
    %4957 = vmatpush.msra.mxu0 %v4252
    %4958 = vmatpush.msra.mxu0 %v4250
    %4959 = vmatpush.msra.mxu0 %v4248
    %4960 = vmatpush.msra.mxu0 %v4246
    %4961 = vmatpush.msra.mxu0 %v4244
    %4962 = vmatpush.msra.mxu0 %v4242
    %4963 = vmatpush.msra.mxu0 %v4240
    %4964 = vmatpush.msra.mxu0 %v4238
    %4965 = vmatpush.msra.mxu0 %v4236
    %4966 = vmatmul.f32.gmra.mxu0 %v4027
    %v4967 = vpop.f32.mrf.mxu0
    %v4968 = vadd.f32 %v4948, %v4967
    %4969 = vdwg.mxu0
    %4970 = vmatpush.msra.mxu0 %v4298
    %4971 = vmatpush.msra.mxu0 %v4296
    %4972 = vmatpush.msra.mxu0 %v4294
    %4973 = vmatpush.msra.mxu0 %v4292
    %4974 = vmatpush.msra.mxu0 %v4290
    %4975 = vmatpush.msra.mxu0 %v4288
    %4976 = vmatpush.msra.mxu0 %v4286
    %4977 = vmatpush.msra.mxu0 %v4284
    %4978 = vmatpush.msra.mxu0 %v4282
    %4979 = vmatpush.msra.mxu0 %v4280
    %4980 = vmatpush.msra.mxu0 %v4278
    %4981 = vmatpush.msra.mxu0 %v4276
    %4982 = vmatpush.msra.mxu0 %v4274
    %4983 = vmatpush.msra.mxu0 %v4272
    %4984 = vmatpush.msra.mxu0 %v4270
    %4985 = vmatpush.msra.mxu0 %v4268
    %4986 = vmatmul.f32.gmra.mxu0 %v4030
    %v4987 = vpop.f32.mrf.mxu0
    %v4988 = vadd.f32 %v4968, %v4987
    %4989 = vdwg.mxu0
    %4990 = vmatpush.msra.mxu0 %v4330
    %4991 = vmatpush.msra.mxu0 %v4328
    %4992 = vmatpush.msra.mxu0 %v4326
    %4993 = vmatpush.msra.mxu0 %v4324
    %4994 = vmatpush.msra.mxu0 %v4322
    %4995 = vmatpush.msra.mxu0 %v4320
    %4996 = vmatpush.msra.mxu0 %v4318
    %4997 = vmatpush.msra.mxu0 %v4316
    %4998 = vmatpush.msra.mxu0 %v4314
    %4999 = vmatpush.msra.mxu0 %v4312
    %5000 = vmatpush.msra.mxu0 %v4310
    %5001 = vmatpush.msra.mxu0 %v4308
    %5002 = vmatpush.msra.mxu0 %v4306
    %5003 = vmatpush.msra.mxu0 %v4304
    %5004 = vmatpush.msra.mxu0 %v4302
    %5005 = vmatpush.msra.mxu0 %v4300
    %5006 = vmatmul.f32.gmra.mxu0 %v4031
    %v5007 = vpop.f32.mrf.mxu0
    %v5008 = vadd.f32 %v4988, %v5007
    %5009 = vdwg.mxu0
    %5010 = vmatpush.msra.mxu0 %v4362
    %5011 = vmatpush.msra.mxu0 %v4360
    %5012 = vmatpush.msra.mxu0 %v4358
    %5013 = vmatpush.msra.mxu0 %v4356
    %5014 = vmatpush.msra.mxu0 %v4354
    %5015 = vmatpush.msra.mxu0 %v4352
    %5016 = vmatpush.msra.mxu0 %v4350
    %5017 = vmatpush.msra.mxu0 %v4348
    %5018 = vmatpush.msra.mxu0 %v4346
    %5019 = vmatpush.msra.mxu0 %v4344
    %5020 = vmatpush.msra.mxu0 %v4342
    %5021 = vmatpush.msra.mxu0 %v4340
    %5022 = vmatpush.msra.mxu0 %v4338
    %5023 = vmatpush.msra.mxu0 %v4336
    %5024 = vmatpush.msra.mxu0 %v4334
    %5025 = vmatpush.msra.mxu0 %v4332
    %5026 = vmatmul.f32.gmra.mxu0 %v4034
    %v5027 = vpop.f32.mrf.mxu0
    %v5028 = vadd.f32 %v5008, %v5027
    %5029 = vdwg.mxu0
    %5030 = vmatpush.msra.mxu0 %v4394
    %5031 = vmatpush.msra.mxu0 %v4392
    %5032 = vmatpush.msra.mxu0 %v4390
    %5033 = vmatpush.msra.mxu0 %v4388
    %5034 = vmatpush.msra.mxu0 %v4386
    %5035 = vmatpush.msra.mxu0 %v4384
    %5036 = vmatpush.msra.mxu0 %v4382
    %5037 = vmatpush.msra.mxu0 %v4380
    %5038 = vmatpush.msra.mxu0 %v4378
    %5039 = vmatpush.msra.mxu0 %v4376
    %5040 = vmatpush.msra.mxu0 %v4374
    %5041 = vmatpush.msra.mxu0 %v4372
    %5042 = vmatpush.msra.mxu0 %v4370
    %5043 = vmatpush.msra.mxu0 %v4368
    %5044 = vmatpush.msra.mxu0 %v4366
    %5045 = vmatpush.msra.mxu0 %v4364
    %5046 = vmatmul.f32.gmra.mxu0 %v4035
    %v5047 = vpop.f32.mrf.mxu0
    %v5048 = vadd.f32 %v5028, %v5047
    %5049 = vdwg.mxu0
    %5050 = vmatpush.msra.mxu0 %v4426
    %5051 = vmatpush.msra.mxu0 %v4424
    %5052 = vmatpush.msra.mxu0 %v4422
    %5053 = vmatpush.msra.mxu0 %v4420
    %5054 = vmatpush.msra.mxu0 %v4418
    %5055 = vmatpush.msra.mxu0 %v4416
    %5056 = vmatpush.msra.mxu0 %v4414
    %5057 = vmatpush.msra.mxu0 %v4412
    %5058 = vmatpush.msra.mxu0 %v4410
    %5059 = vmatpush.msra.mxu0 %v4408
    %5060 = vmatpush.msra.mxu0 %v4406
    %5061 = vmatpush.msra.mxu0 %v4404
    %5062 = vmatpush.msra.mxu0 %v4402
    %5063 = vmatpush.msra.mxu0 %v4400
    %5064 = vmatpush.msra.mxu0 %v4398
    %5065 = vmatpush.msra.mxu0 %v4396
    %5066 = vmatmul.f32.gmra.mxu0 %v4042
    %v5067 = vpop.f32.mrf.mxu0
    %v5068 = vadd.f32 %v5048, %v5067
    %5069 = vdwg.mxu0
    %5070 = vmatpush.msra.mxu0 %v4458
    %5071 = vmatpush.msra.mxu0 %v4456
    %5072 = vmatpush.msra.mxu0 %v4454
    %5073 = vmatpush.msra.mxu0 %v4452
    %5074 = vmatpush.msra.mxu0 %v4450
    %5075 = vmatpush.msra.mxu0 %v4448
    %5076 = vmatpush.msra.mxu0 %v4446
    %5077 = vmatpush.msra.mxu0 %v4444
    %5078 = vmatpush.msra.mxu0 %v4442
    %5079 = vmatpush.msra.mxu0 %v4440
    %5080 = vmatpush.msra.mxu0 %v4438
    %5081 = vmatpush.msra.mxu0 %v4436
    %5082 = vmatpush.msra.mxu0 %v4434
    %5083 = vmatpush.msra.mxu0 %v4432
    %5084 = vmatpush.msra.mxu0 %v4430
    %5085 = vmatpush.msra.mxu0 %v4428
    %5086 = vmatmul.f32.gmra.mxu0 %v4045
    %v5087 = vpop.f32.mrf.mxu0
    %v5088 = vadd.f32 %v5068, %v5087
    %5089 = vdwg.mxu0
    %5090 = vmatpush.msra.mxu0 %v4490
    %5091 = vmatpush.msra.mxu0 %v4488
    %5092 = vmatpush.msra.mxu0 %v4486
    %5093 = vmatpush.msra.mxu0 %v4484
    %5094 = vmatpush.msra.mxu0 %v4482
    %5095 = vmatpush.msra.mxu0 %v4480
    %5096 = vmatpush.msra.mxu0 %v4478
    %5097 = vmatpush.msra.mxu0 %v4476
    %5098 = vmatpush.msra.mxu0 %v4474
    %5099 = vmatpush.msra.mxu0 %v4472
    %5100 = vmatpush.msra.mxu0 %v4470
    %5101 = vmatpush.msra.mxu0 %v4468
    %5102 = vmatpush.msra.mxu0 %v4466
    %5103 = vmatpush.msra.mxu0 %v4464
    %5104 = vmatpush.msra.mxu0 %v4462
    %5105 = vmatpush.msra.mxu0 %v4460
    %5106 = vmatmul.f32.gmra.mxu0 %v4050
    %v5107 = vpop.f32.mrf.mxu0
    %v5108 = vadd.f32 %v5088, %v5107
    %5109 = vdwg.mxu0
    %5110 = vmatpush.msra.mxu0 %v4522
    %5111 = vmatpush.msra.mxu0 %v4520
    %5112 = vmatpush.msra.mxu0 %v4518
    %5113 = vmatpush.msra.mxu0 %v4516
    %5114 = vmatpush.msra.mxu0 %v4514
    %5115 = vmatpush.msra.mxu0 %v4512
    %5116 = vmatpush.msra.mxu0 %v4510
    %5117 = vmatpush.msra.mxu0 %v4508
    %5118 = vmatpush.msra.mxu0 %v4506
    %5119 = vmatpush.msra.mxu0 %v4504
    %5120 = vmatpush.msra.mxu0 %v4502
    %5121 = vmatpush.msra.mxu0 %v4500
    %5122 = vmatpush.msra.mxu0 %v4498
    %5123 = vmatpush.msra.mxu0 %v4496
    %5124 = vmatpush.msra.mxu0 %v4494
    %5125 = vmatpush.msra.mxu0 %v4492
    %5126 = vmatmul.f32.gmra.mxu0 %v4053
    %v5127 = vpop.f32.mrf.mxu0
    %v5128 = vadd.f32 %v5108, %v5127
    %5129 = vdwg.mxu0
    %5130 = vmatpush.msra.mxu0 %v4554
    %5131 = vmatpush.msra.mxu0 %v4552
    %5132 = vmatpush.msra.mxu0 %v4550
    %5133 = vmatpush.msra.mxu0 %v4548
    %5134 = vmatpush.msra.mxu0 %v4546
    %5135 = vmatpush.msra.mxu0 %v4544
    %5136 = vmatpush.msra.mxu0 %v4542
    %5137 = vmatpush.msra.mxu0 %v4540
    %5138 = vmatpush.msra.mxu0 %v4538
    %5139 = vmatpush.msra.mxu0 %v4536
    %5140 = vmatpush.msra.mxu0 %v4534
    %5141 = vmatpush.msra.mxu0 %v4532
    %5142 = vmatpush.msra.mxu0 %v4530
    %5143 = vmatpush.msra.mxu0 %v4528
    %5144 = vmatpush.msra.mxu0 %v4526
    %5145 = vmatpush.msra.mxu0 %v4524
    %5146 = vmatmul.f32.gmra.mxu0 %v4058
    %v5147 = vpop.f32.mrf.mxu0
    %v5148 = vadd.f32 %v5128, %v5147
    %5149 = vdwg.mxu0
    %5150 = vmatpush.msra.mxu0 %v4586
    %5151 = vmatpush.msra.mxu0 %v4584
    %5152 = vmatpush.msra.mxu0 %v4582
    %5153 = vmatpush.msra.mxu0 %v4580
    %5154 = vmatpush.msra.mxu0 %v4578
    %5155 = vmatpush.msra.mxu0 %v4576
    %5156 = vmatpush.msra.mxu0 %v4574
    %5157 = vmatpush.msra.mxu0 %v4572
    %5158 = vmatpush.msra.mxu0 %v4570
    %5159 = vmatpush.msra.mxu0 %v4568
    %5160 = vmatpush.msra.mxu0 %v4566
    %5161 = vmatpush.msra.mxu0 %v4564
    %5162 = vmatpush.msra.mxu0 %v4562
    %5163 = vmatpush.msra.mxu0 %v4560
    %5164 = vmatpush.msra.mxu0 %v4558
    %5165 = vmatpush.msra.mxu0 %v4556
    %5166 = vmatmul.f32.gmra.mxu0 %v4061
    %v5167 = vpop.f32.mrf.mxu0
    %v5168 = vadd.f32 %v5148, %v5167
    %5169 = vdwg.mxu0
    %5170 = vmatpush.msra.mxu0 %v4618
    %5171 = vmatpush.msra.mxu0 %v4616
    %5172 = vmatpush.msra.mxu0 %v4614
    %5173 = vmatpush.msra.mxu0 %v4612
    %5174 = vmatpush.msra.mxu0 %v4610
    %5175 = vmatpush.msra.mxu0 %v4608
    %5176 = vmatpush.msra.mxu0 %v4606
    %5177 = vmatpush.msra.mxu0 %v4604
    %5178 = vmatpush.msra.mxu0 %v4602
    %5179 = vmatpush.msra.mxu0 %v4600
    %5180 = vmatpush.msra.mxu0 %v4598
    %5181 = vmatpush.msra.mxu0 %v4596
    %5182 = vmatpush.msra.mxu0 %v4594
    %5183 = vmatpush.msra.mxu0 %v4592
    %5184 = vmatpush.msra.mxu0 %v4590
    %5185 = vmatpush.msra.mxu0 %v4588
    %5186 = vmatmul.f32.gmra.mxu0 %v4018
    %v5187 = vpop.f32.mrf.mxu0
    %v5188 = vadd.f32 %v5168, %v5187
    %5189 = vdwg.mxu0
    %5190 = vmatpush.msra.mxu0 %v4650
    %5191 = vmatpush.msra.mxu0 %v4648
    %5192 = vmatpush.msra.mxu0 %v4646
    %5193 = vmatpush.msra.mxu0 %v4644
    %5194 = vmatpush.msra.mxu0 %v4642
    %5195 = vmatpush.msra.mxu0 %v4640
    %5196 = vmatpush.msra.mxu0 %v4638
    %5197 = vmatpush.msra.mxu0 %v4636
    %5198 = vmatpush.msra.mxu0 %v4634
    %5199 = vmatpush.msra.mxu0 %v4632
    %5200 = vmatpush.msra.mxu0 %v4630
    %5201 = vmatpush.msra.mxu0 %v4628
    %5202 = vmatpush.msra.mxu0 %v4626
    %5203 = vmatpush.msra.mxu0 %v4624
    %5204 = vmatpush.msra.mxu0 %v4622
    %5205 = vmatpush.msra.mxu0 %v4620
    %5206 = vmatmul.f32.gmra.mxu0 %v4019
    %v5207 = vpop.f32.mrf.mxu0
    %v5208 = vadd.f32 %v5188, %v5207
    %5209 = vdwg.mxu0
    %5210 = vmatpush.msra.mxu0 %v4682
    %5211 = vmatpush.msra.mxu0 %v4680
    %5212 = vmatpush.msra.mxu0 %v4678
    %5213 = vmatpush.msra.mxu0 %v4676
    %5214 = vmatpush.msra.mxu0 %v4674
    %5215 = vmatpush.msra.mxu0 %v4672
    %5216 = vmatpush.msra.mxu0 %v4670
    %5217 = vmatpush.msra.mxu0 %v4668
    %5218 = vmatpush.msra.mxu0 %v4666
    %5219 = vmatpush.msra.mxu0 %v4664
    %5220 = vmatpush.msra.mxu0 %v4662
    %5221 = vmatpush.msra.mxu0 %v4660
    %5222 = vmatpush.msra.mxu0 %v4658
    %5223 = vmatpush.msra.mxu0 %v4656
    %5224 = vmatpush.msra.mxu0 %v4654
    %5225 = vmatpush.msra.mxu0 %v4652
    %5226 = vmatmul.f32.gmra.mxu0 %v4064
    %v5227 = vpop.f32.mrf.mxu0
    %v5228 = vadd.f32 %v5208, %v5227
    %5229 = vdwg.mxu0
    %5230 = vmatpush.msra.mxu0 %v4714
    %5231 = vmatpush.msra.mxu0 %v4712
    %5232 = vmatpush.msra.mxu0 %v4710
    %5233 = vmatpush.msra.mxu0 %v4708
    %5234 = vmatpush.msra.mxu0 %v4706
    %5235 = vmatpush.msra.mxu0 %v4704
    %5236 = vmatpush.msra.mxu0 %v4702
    %5237 = vmatpush.msra.mxu0 %v4700
    %5238 = vmatpush.msra.mxu0 %v4698
    %5239 = vmatpush.msra.mxu0 %v4696
    %5240 = vmatpush.msra.mxu0 %v4694
    %5241 = vmatpush.msra.mxu0 %v4692
    %5242 = vmatpush.msra.mxu0 %v4690
    %5243 = vmatpush.msra.mxu0 %v4688
    %5244 = vmatpush.msra.mxu0 %v4686
    %5245 = vmatpush.msra.mxu0 %v4684
    %5246 = vmatmul.f32.gmra.mxu0 %v4065
    %v5247 = vpop.f32.mrf.mxu0
    %v5248 = vadd.f32 %v5228, %v5247
    %5249 = vdwg.mxu0
    %5250 = vmatpush.msra.mxu0 %v4746
    %5251 = vmatpush.msra.mxu0 %v4744
    %5252 = vmatpush.msra.mxu0 %v4742
    %5253 = vmatpush.msra.mxu0 %v4740
    %5254 = vmatpush.msra.mxu0 %v4738
    %5255 = vmatpush.msra.mxu0 %v4736
    %5256 = vmatpush.msra.mxu0 %v4734
    %5257 = vmatpush.msra.mxu0 %v4732
    %5258 = vmatpush.msra.mxu0 %v4730
    %5259 = vmatpush.msra.mxu0 %v4728
    %5260 = vmatpush.msra.mxu0 %v4726
    %5261 = vmatpush.msra.mxu0 %v4724
    %5262 = vmatpush.msra.mxu0 %v4722
    %5263 = vmatpush.msra.mxu0 %v4720
    %5264 = vmatpush.msra.mxu0 %v4718
    %5265 = vmatpush.msra.mxu0 %v4716
    %5266 = vmatmul.f32.gmra.mxu0 %v4068
    %v5267 = vpop.f32.mrf.mxu0
    %v5268 = vadd.f32 %v5248, %v5267
    %5269 = vdwg.mxu0
    %5270 = vmatpush.msra.mxu0 %v4778
    %5271 = vmatpush.msra.mxu0 %v4776
    %5272 = vmatpush.msra.mxu0 %v4774
    %5273 = vmatpush.msra.mxu0 %v4772
    %5274 = vmatpush.msra.mxu0 %v4770
    %5275 = vmatpush.msra.mxu0 %v4768
    %5276 = vmatpush.msra.mxu0 %v4766
    %5277 = vmatpush.msra.mxu0 %v4764
    %5278 = vmatpush.msra.mxu0 %v4762
    %5279 = vmatpush.msra.mxu0 %v4760
    %5280 = vmatpush.msra.mxu0 %v4758
    %5281 = vmatpush.msra.mxu0 %v4756
    %5282 = vmatpush.msra.mxu0 %v4754
    %5283 = vmatpush.msra.mxu0 %v4752
    %5284 = vmatpush.msra.mxu0 %v4750
    %5285 = vmatpush.msra.mxu0 %v4748
    %5286 = vmatmul.f32.gmra.mxu0 %v4069
    %v5287 = vpop.f32.mrf.mxu0
    %v5288 = vadd.f32 %v5268, %v5287
    %5289 = vdwg.mxu0
    %5290 = vmatpush.msra.mxu0 %v4810
    %5291 = vmatpush.msra.mxu0 %v4808
    %5292 = vmatpush.msra.mxu0 %v4806
    %5293 = vmatpush.msra.mxu0 %v4804
    %5294 = vmatpush.msra.mxu0 %v4802
    %5295 = vmatpush.msra.mxu0 %v4800
    %5296 = vmatpush.msra.mxu0 %v4798
    %5297 = vmatpush.msra.mxu0 %v4796
    %5298 = vmatpush.msra.mxu0 %v4794
    %5299 = vmatpush.msra.mxu0 %v4792
    %5300 = vmatpush.msra.mxu0 %v4790
    %5301 = vmatpush.msra.mxu0 %v4788
    %5302 = vmatpush.msra.mxu0 %v4786
    %5303 = vmatpush.msra.mxu0 %v4784
    %5304 = vmatpush.msra.mxu0 %v4782
    %5305 = vmatpush.msra.mxu0 %v4780
    %5306 = vmatmul.f32.gmra.mxu0 %v4072
    %v5307 = vpop.f32.mrf.mxu0
    %v5308 = vadd.f32 %v5288, %v5307
    %5309 = vdwg.mxu0
    %5310 = vmatpush.msra.mxu0 %v4842
    %5311 = vmatpush.msra.mxu0 %v4840
    %5312 = vmatpush.msra.mxu0 %v4838
    %5313 = vmatpush.msra.mxu0 %v4836
    %5314 = vmatpush.msra.mxu0 %v4834
    %5315 = vmatpush.msra.mxu0 %v4832
    %5316 = vmatpush.msra.mxu0 %v4830
    %5317 = vmatpush.msra.mxu0 %v4828
    %5318 = vmatpush.msra.mxu0 %v4826
    %5319 = vmatpush.msra.mxu0 %v4824
    %5320 = vmatpush.msra.mxu0 %v4822
    %5321 = vmatpush.msra.mxu0 %v4820
    %5322 = vmatpush.msra.mxu0 %v4818
    %5323 = vmatpush.msra.mxu0 %v4816
    %5324 = vmatpush.msra.mxu0 %v4814
    %5325 = vmatpush.msra.mxu0 %v4812
    %5326 = vmatmul.f32.gmra.mxu0 %v4073
    %v5327 = vpop.f32.mrf.mxu0
    %v5328 = vadd.f32 %v5308, %v5327
    %5329 = vdwg.mxu0
    %5330 = vmatpush.msra.mxu0 %v4107
    %5331 = vmatpush.msra.mxu0 %v4105
    %5332 = vmatpush.msra.mxu0 %v4103
    %5333 = vmatpush.msra.mxu0 %v4101
    %5334 = vmatpush.msra.mxu0 %v4099
    %5335 = vmatpush.msra.mxu0 %v4097
    %5336 = vmatpush.msra.mxu0 %v4095
    %5337 = vmatpush.msra.mxu0 %v4093
    %5338 = vmatpush.msra.mxu0 %v4091
    %5339 = vmatpush.msra.mxu0 %v4089
    %5340 = vmatpush.msra.mxu0 %v4087
    %5341 = vmatpush.msra.mxu0 %v4085
    %5342 = vmatpush.msra.mxu0 %v4083
    %5343 = vmatpush.msra.mxu0 %v4081
    %5344 = vmatpush.msra.mxu0 %v4079
    %5345 = vmatpush.msra.mxu0 %v4077
    %5346 = vmatmul.f32.gmra.mxu0 %v4016
    %v5347 = vpop.f32.mrf.mxu0
    %v5348 = vadd.f32 %v4847, %v5347
    %5349 = vdwg.mxu0
    %5350 = vmatpush.msra.mxu0 %v4139
    %5351 = vmatpush.msra.mxu0 %v4137
    %5352 = vmatpush.msra.mxu0 %v4135
    %5353 = vmatpush.msra.mxu0 %v4133
    %5354 = vmatpush.msra.mxu0 %v4131
    %5355 = vmatpush.msra.mxu0 %v4129
    %5356 = vmatpush.msra.mxu0 %v4127
    %5357 = vmatpush.msra.mxu0 %v4125
    %5358 = vmatpush.msra.mxu0 %v4123
    %5359 = vmatpush.msra.mxu0 %v4121
    %5360 = vmatpush.msra.mxu0 %v4119
    %5361 = vmatpush.msra.mxu0 %v4117
    %5362 = vmatpush.msra.mxu0 %v4115
    %5363 = vmatpush.msra.mxu0 %v4113
    %5364 = vmatpush.msra.mxu0 %v4111
    %5365 = vmatpush.msra.mxu0 %v4109
    %5366 = vmatmul.f32.gmra.mxu0 %v4017
    %v5367 = vpop.f32.mrf.mxu0
    %v5368 = vadd.f32 %v5348, %v5367
    %5369 = vdwg.mxu0
    %5370 = vmatpush.msra.mxu0 %v4171
    %5371 = vmatpush.msra.mxu0 %v4169
    %5372 = vmatpush.msra.mxu0 %v4167
    %5373 = vmatpush.msra.mxu0 %v4165
    %5374 = vmatpush.msra.mxu0 %v4163
    %5375 = vmatpush.msra.mxu0 %v4161
    %5376 = vmatpush.msra.mxu0 %v4159
    %5377 = vmatpush.msra.mxu0 %v4157
    %5378 = vmatpush.msra.mxu0 %v4155
    %5379 = vmatpush.msra.mxu0 %v4153
    %5380 = vmatpush.msra.mxu0 %v4151
    %5381 = vmatpush.msra.mxu0 %v4149
    %5382 = vmatpush.msra.mxu0 %v4147
    %5383 = vmatpush.msra.mxu0 %v4145
    %5384 = vmatpush.msra.mxu0 %v4143
    %5385 = vmatpush.msra.mxu0 %v4141
    %5386 = vmatmul.f32.gmra.mxu0 %v4022
    %v5387 = vpop.f32.mrf.mxu0
    %v5388 = vadd.f32 %v5368, %v5387
    %5389 = vdwg.mxu0
    %5390 = vmatpush.msra.mxu0 %v4203
    %5391 = vmatpush.msra.mxu0 %v4201
    %5392 = vmatpush.msra.mxu0 %v4199
    %5393 = vmatpush.msra.mxu0 %v4197
    %5394 = vmatpush.msra.mxu0 %v4195
    %5395 = vmatpush.msra.mxu0 %v4193
    %5396 = vmatpush.msra.mxu0 %v4191
    %5397 = vmatpush.msra.mxu0 %v4189
    %5398 = vmatpush.msra.mxu0 %v4187
    %5399 = vmatpush.msra.mxu0 %v4185
    %5400 = vmatpush.msra.mxu0 %v4183
    %5401 = vmatpush.msra.mxu0 %v4181
    %5402 = vmatpush.msra.mxu0 %v4179
    %5403 = vmatpush.msra.mxu0 %v4177
    %5404 = vmatpush.msra.mxu0 %v4175
    %5405 = vmatpush.msra.mxu0 %v4173
    %5406 = vmatmul.f32.gmra.mxu0 %v4023
    %v5407 = vpop.f32.mrf.mxu0
    %v5408 = vadd.f32 %v5388, %v5407
    %5409 = vdwg.mxu0
    %5410 = vmatpush.msra.mxu0 %v4235
    %5411 = vmatpush.msra.mxu0 %v4233
    %5412 = vmatpush.msra.mxu0 %v4231
    %5413 = vmatpush.msra.mxu0 %v4229
    %5414 = vmatpush.msra.mxu0 %v4227
    %5415 = vmatpush.msra.mxu0 %v4225
    %5416 = vmatpush.msra.mxu0 %v4223
    %5417 = vmatpush.msra.mxu0 %v4221
    %5418 = vmatpush.msra.mxu0 %v4219
    %5419 = vmatpush.msra.mxu0 %v4217
    %5420 = vmatpush.msra.mxu0 %v4215
    %5421 = vmatpush.msra.mxu0 %v4213
    %5422 = vmatpush.msra.mxu0 %v4211
    %5423 = vmatpush.msra.mxu0 %v4209
    %5424 = vmatpush.msra.mxu0 %v4207
    %5425 = vmatpush.msra.mxu0 %v4205
    %5426 = vmatmul.f32.gmra.mxu0 %v4026
    %v5427 = vpop.f32.mrf.mxu0
    %v5428 = vadd.f32 %v5408, %v5427
    %5429 = vdwg.mxu0
    %5430 = vmatpush.msra.mxu0 %v4267
    %5431 = vmatpush.msra.mxu0 %v4265
    %5432 = vmatpush.msra.mxu0 %v4263
    %5433 = vmatpush.msra.mxu0 %v4261
    %5434 = vmatpush.msra.mxu0 %v4259
    %5435 = vmatpush.msra.mxu0 %v4257
    %5436 = vmatpush.msra.mxu0 %v4255
    %5437 = vmatpush.msra.mxu0 %v4253
    %5438 = vmatpush.msra.mxu0 %v4251
    %5439 = vmatpush.msra.mxu0 %v4249
    %5440 = vmatpush.msra.mxu0 %v4247
    %5441 = vmatpush.msra.mxu0 %v4245
    %5442 = vmatpush.msra.mxu0 %v4243
    %5443 = vmatpush.msra.mxu0 %v4241
    %5444 = vmatpush.msra.mxu0 %v4239
    %5445 = vmatpush.msra.mxu0 %v4237
    %5446 = vmatmul.f32.gmra.mxu0 %v4027
    %v5447 = vpop.f32.mrf.mxu0
    %v5448 = vadd.f32 %v5428, %v5447
    %5449 = vdwg.mxu0
    %5450 = vmatpush.msra.mxu0 %v4299
    %5451 = vmatpush.msra.mxu0 %v4297
    %5452 = vmatpush.msra.mxu0 %v4295
    %5453 = vmatpush.msra.mxu0 %v4293
    %5454 = vmatpush.msra.mxu0 %v4291
    %5455 = vmatpush.msra.mxu0 %v4289
    %5456 = vmatpush.msra.mxu0 %v4287
    %5457 = vmatpush.msra.mxu0 %v4285
    %5458 = vmatpush.msra.mxu0 %v4283
    %5459 = vmatpush.msra.mxu0 %v4281
    %5460 = vmatpush.msra.mxu0 %v4279
    %5461 = vmatpush.msra.mxu0 %v4277
    %5462 = vmatpush.msra.mxu0 %v4275
    %5463 = vmatpush.msra.mxu0 %v4273
    %5464 = vmatpush.msra.mxu0 %v4271
    %5465 = vmatpush.msra.mxu0 %v4269
    %5466 = vmatmul.f32.gmra.mxu0 %v4030
    %v5467 = vpop.f32.mrf.mxu0
    %v5468 = vadd.f32 %v5448, %v5467
    %5469 = vdwg.mxu0
    %5470 = vmatpush.msra.mxu0 %v4331
    %5471 = vmatpush.msra.mxu0 %v4329
    %5472 = vmatpush.msra.mxu0 %v4327
    %5473 = vmatpush.msra.mxu0 %v4325
    %5474 = vmatpush.msra.mxu0 %v4323
    %5475 = vmatpush.msra.mxu0 %v4321
    %5476 = vmatpush.msra.mxu0 %v4319
    %5477 = vmatpush.msra.mxu0 %v4317
    %5478 = vmatpush.msra.mxu0 %v4315
    %5479 = vmatpush.msra.mxu0 %v4313
    %5480 = vmatpush.msra.mxu0 %v4311
    %5481 = vmatpush.msra.mxu0 %v4309
    %5482 = vmatpush.msra.mxu0 %v4307
    %5483 = vmatpush.msra.mxu0 %v4305
    %5484 = vmatpush.msra.mxu0 %v4303
    %5485 = vmatpush.msra.mxu0 %v4301
    %5486 = vmatmul.f32.gmra.mxu0 %v4031
    %v5487 = vpop.f32.mrf.mxu0
    %v5488 = vadd.f32 %v5468, %v5487
    %5489 = vdwg.mxu0
    %5490 = vmatpush.msra.mxu0 %v4363
    %5491 = vmatpush.msra.mxu0 %v4361
    %5492 = vmatpush.msra.mxu0 %v4359
    %5493 = vmatpush.msra.mxu0 %v4357
    %5494 = vmatpush.msra.mxu0 %v4355
    %5495 = vmatpush.msra.mxu0 %v4353
    %5496 = vmatpush.msra.mxu0 %v4351
    %5497 = vmatpush.msra.mxu0 %v4349
    %5498 = vmatpush.msra.mxu0 %v4347
    %5499 = vmatpush.msra.mxu0 %v4345
    %5500 = vmatpush.msra.mxu0 %v4343
    %5501 = vmatpush.msra.mxu0 %v4341
    %5502 = vmatpush.msra.mxu0 %v4339
    %5503 = vmatpush.msra.mxu0 %v4337
    %5504 = vmatpush.msra.mxu0 %v4335
    %5505 = vmatpush.msra.mxu0 %v4333
    %5506 = vmatmul.f32.gmra.mxu0 %v4034
    %v5507 = vpop.f32.mrf.mxu0
    %v5508 = vadd.f32 %v5488, %v5507
    %5509 = vdwg.mxu0
    %5510 = vmatpush.msra.mxu0 %v4395
    %5511 = vmatpush.msra.mxu0 %v4393
    %5512 = vmatpush.msra.mxu0 %v4391
    %5513 = vmatpush.msra.mxu0 %v4389
    %5514 = vmatpush.msra.mxu0 %v4387
    %5515 = vmatpush.msra.mxu0 %v4385
    %5516 = vmatpush.msra.mxu0 %v4383
    %5517 = vmatpush.msra.mxu0 %v4381
    %5518 = vmatpush.msra.mxu0 %v4379
    %5519 = vmatpush.msra.mxu0 %v4377
    %5520 = vmatpush.msra.mxu0 %v4375
    %5521 = vmatpush.msra.mxu0 %v4373
    %5522 = vmatpush.msra.mxu0 %v4371
    %5523 = vmatpush.msra.mxu0 %v4369
    %5524 = vmatpush.msra.mxu0 %v4367
    %5525 = vmatpush.msra.mxu0 %v4365
    %5526 = vmatmul.f32.gmra.mxu0 %v4035
    %v5527 = vpop.f32.mrf.mxu0
    %v5528 = vadd.f32 %v5508, %v5527
    %5529 = vdwg.mxu0
    %5530 = vmatpush.msra.mxu0 %v4427
    %5531 = vmatpush.msra.mxu0 %v4425
    %5532 = vmatpush.msra.mxu0 %v4423
    %5533 = vmatpush.msra.mxu0 %v4421
    %5534 = vmatpush.msra.mxu0 %v4419
    %5535 = vmatpush.msra.mxu0 %v4417
    %5536 = vmatpush.msra.mxu0 %v4415
    %5537 = vmatpush.msra.mxu0 %v4413
    %5538 = vmatpush.msra.mxu0 %v4411
    %5539 = vmatpush.msra.mxu0 %v4409
    %5540 = vmatpush.msra.mxu0 %v4407
    %5541 = vmatpush.msra.mxu0 %v4405
    %5542 = vmatpush.msra.mxu0 %v4403
    %5543 = vmatpush.msra.mxu0 %v4401
    %5544 = vmatpush.msra.mxu0 %v4399
    %5545 = vmatpush.msra.mxu0 %v4397
    %5546 = vmatmul.f32.gmra.mxu0 %v4042
    %v5547 = vpop.f32.mrf.mxu0
    %v5548 = vadd.f32 %v5528, %v5547
    %5549 = vdwg.mxu0
    %5550 = vmatpush.msra.mxu0 %v4459
    %5551 = vmatpush.msra.mxu0 %v4457
    %5552 = vmatpush.msra.mxu0 %v4455
    %5553 = vmatpush.msra.mxu0 %v4453
    %5554 = vmatpush.msra.mxu0 %v4451
    %5555 = vmatpush.msra.mxu0 %v4449
    %5556 = vmatpush.msra.mxu0 %v4447
    %5557 = vmatpush.msra.mxu0 %v4445
    %5558 = vmatpush.msra.mxu0 %v4443
    %5559 = vmatpush.msra.mxu0 %v4441
    %5560 = vmatpush.msra.mxu0 %v4439
    %5561 = vmatpush.msra.mxu0 %v4437
    %5562 = vmatpush.msra.mxu0 %v4435
    %5563 = vmatpush.msra.mxu0 %v4433
    %5564 = vmatpush.msra.mxu0 %v4431
    %5565 = vmatpush.msra.mxu0 %v4429
    %5566 = vmatmul.f32.gmra.mxu0 %v4045
    %v5567 = vpop.f32.mrf.mxu0
    %v5568 = vadd.f32 %v5548, %v5567
    %5569 = vdwg.mxu0
    %5570 = vmatpush.msra.mxu0 %v4491
    %5571 = vmatpush.msra.mxu0 %v4489
    %5572 = vmatpush.msra.mxu0 %v4487
    %5573 = vmatpush.msra.mxu0 %v4485
    %5574 = vmatpush.msra.mxu0 %v4483
    %5575 = vmatpush.msra.mxu0 %v4481
    %5576 = vmatpush.msra.mxu0 %v4479
    %5577 = vmatpush.msra.mxu0 %v4477
    %5578 = vmatpush.msra.mxu0 %v4475
    %5579 = vmatpush.msra.mxu0 %v4473
    %5580 = vmatpush.msra.mxu0 %v4471
    %5581 = vmatpush.msra.mxu0 %v4469
    %5582 = vmatpush.msra.mxu0 %v4467
    %5583 = vmatpush.msra.mxu0 %v4465
    %5584 = vmatpush.msra.mxu0 %v4463
    %5585 = vmatpush.msra.mxu0 %v4461
    %5586 = vmatmul.f32.gmra.mxu0 %v4050
    %v5587 = vpop.f32.mrf.mxu0
    %v5588 = vadd.f32 %v5568, %v5587
    %5589 = vdwg.mxu0
    %5590 = vmatpush.msra.mxu0 %v4523
    %5591 = vmatpush.msra.mxu0 %v4521
    %5592 = vmatpush.msra.mxu0 %v4519
    %5593 = vmatpush.msra.mxu0 %v4517
    %5594 = vmatpush.msra.mxu0 %v4515
    %5595 = vmatpush.msra.mxu0 %v4513
    %5596 = vmatpush.msra.mxu0 %v4511
    %5597 = vmatpush.msra.mxu0 %v4509
    %5598 = vmatpush.msra.mxu0 %v4507
    %5599 = vmatpush.msra.mxu0 %v4505
    %5600 = vmatpush.msra.mxu0 %v4503
    %5601 = vmatpush.msra.mxu0 %v4501
    %5602 = vmatpush.msra.mxu0 %v4499
    %5603 = vmatpush.msra.mxu0 %v4497
    %5604 = vmatpush.msra.mxu0 %v4495
    %5605 = vmatpush.msra.mxu0 %v4493
    %5606 = vmatmul.f32.gmra.mxu0 %v4053
    %v5607 = vpop.f32.mrf.mxu0
    %v5608 = vadd.f32 %v5588, %v5607
    %5609 = vdwg.mxu0
    %5610 = vmatpush.msra.mxu0 %v4555
    %5611 = vmatpush.msra.mxu0 %v4553
    %5612 = vmatpush.msra.mxu0 %v4551
    %5613 = vmatpush.msra.mxu0 %v4549
    %5614 = vmatpush.msra.mxu0 %v4547
    %5615 = vmatpush.msra.mxu0 %v4545
    %5616 = vmatpush.msra.mxu0 %v4543
    %5617 = vmatpush.msra.mxu0 %v4541
    %5618 = vmatpush.msra.mxu0 %v4539
    %5619 = vmatpush.msra.mxu0 %v4537
    %5620 = vmatpush.msra.mxu0 %v4535
    %5621 = vmatpush.msra.mxu0 %v4533
    %5622 = vmatpush.msra.mxu0 %v4531
    %5623 = vmatpush.msra.mxu0 %v4529
    %5624 = vmatpush.msra.mxu0 %v4527
    %5625 = vmatpush.msra.mxu0 %v4525
    %5626 = vmatmul.f32.gmra.mxu0 %v4058
    %v5627 = vpop.f32.mrf.mxu0
    %v5628 = vadd.f32 %v5608, %v5627
    %5629 = vdwg.mxu0
    %5630 = vmatpush.msra.mxu0 %v4587
    %5631 = vmatpush.msra.mxu0 %v4585
    %5632 = vmatpush.msra.mxu0 %v4583
    %5633 = vmatpush.msra.mxu0 %v4581
    %5634 = vmatpush.msra.mxu0 %v4579
    %5635 = vmatpush.msra.mxu0 %v4577
    %5636 = vmatpush.msra.mxu0 %v4575
    %5637 = vmatpush.msra.mxu0 %v4573
    %5638 = vmatpush.msra.mxu0 %v4571
    %5639 = vmatpush.msra.mxu0 %v4569
    %5640 = vmatpush.msra.mxu0 %v4567
    %5641 = vmatpush.msra.mxu0 %v4565
    %5642 = vmatpush.msra.mxu0 %v4563
    %5643 = vmatpush.msra.mxu0 %v4561
    %5644 = vmatpush.msra.mxu0 %v4559
    %5645 = vmatpush.msra.mxu0 %v4557
    %5646 = vmatmul.f32.gmra.mxu0 %v4061
    %v5647 = vpop.f32.mrf.mxu0
    %v5648 = vadd.f32 %v5628, %v5647
    %5649 = vdwg.mxu0
    %5650 = vmatpush.msra.mxu0 %v4619
    %5651 = vmatpush.msra.mxu0 %v4617
    %5652 = vmatpush.msra.mxu0 %v4615
    %5653 = vmatpush.msra.mxu0 %v4613
    %5654 = vmatpush.msra.mxu0 %v4611
    %5655 = vmatpush.msra.mxu0 %v4609
    %5656 = vmatpush.msra.mxu0 %v4607
    %5657 = vmatpush.msra.mxu0 %v4605
    %5658 = vmatpush.msra.mxu0 %v4603
    %5659 = vmatpush.msra.mxu0 %v4601
    %5660 = vmatpush.msra.mxu0 %v4599
    %5661 = vmatpush.msra.mxu0 %v4597
    %5662 = vmatpush.msra.mxu0 %v4595
    %5663 = vmatpush.msra.mxu0 %v4593
    %5664 = vmatpush.msra.mxu0 %v4591
    %5665 = vmatpush.msra.mxu0 %v4589
    %5666 = vmatmul.f32.gmra.mxu0 %v4018
    %v5667 = vpop.f32.mrf.mxu0
    %v5668 = vadd.f32 %v5648, %v5667
    %5669 = vdwg.mxu0
    %5670 = vmatpush.msra.mxu0 %v4651
    %5671 = vmatpush.msra.mxu0 %v4649
    %5672 = vmatpush.msra.mxu0 %v4647
    %5673 = vmatpush.msra.mxu0 %v4645
    %5674 = vmatpush.msra.mxu0 %v4643
    %5675 = vmatpush.msra.mxu0 %v4641
    %5676 = vmatpush.msra.mxu0 %v4639
    %5677 = vmatpush.msra.mxu0 %v4637
    %5678 = vmatpush.msra.mxu0 %v4635
    %5679 = vmatpush.msra.mxu0 %v4633
    %5680 = vmatpush.msra.mxu0 %v4631
    %5681 = vmatpush.msra.mxu0 %v4629
    %5682 = vmatpush.msra.mxu0 %v4627
    %5683 = vmatpush.msra.mxu0 %v4625
    %5684 = vmatpush.msra.mxu0 %v4623
    %5685 = vmatpush.msra.mxu0 %v4621
    %5686 = vmatmul.f32.gmra.mxu0 %v4019
    %v5687 = vpop.f32.mrf.mxu0
    %v5688 = vadd.f32 %v5668, %v5687
    %5689 = vdwg.mxu0
    %5690 = vmatpush.msra.mxu0 %v4683
    %5691 = vmatpush.msra.mxu0 %v4681
    %5692 = vmatpush.msra.mxu0 %v4679
    %5693 = vmatpush.msra.mxu0 %v4677
    %5694 = vmatpush.msra.mxu0 %v4675
    %5695 = vmatpush.msra.mxu0 %v4673
    %5696 = vmatpush.msra.mxu0 %v4671
    %5697 = vmatpush.msra.mxu0 %v4669
    %5698 = vmatpush.msra.mxu0 %v4667
    %5699 = vmatpush.msra.mxu0 %v4665
    %5700 = vmatpush.msra.mxu0 %v4663
    %5701 = vmatpush.msra.mxu0 %v4661
    %5702 = vmatpush.msra.mxu0 %v4659
    %5703 = vmatpush.msra.mxu0 %v4657
    %5704 = vmatpush.msra.mxu0 %v4655
    %5705 = vmatpush.msra.mxu0 %v4653
    %5706 = vmatmul.f32.gmra.mxu0 %v4064
    %v5707 = vpop.f32.mrf.mxu0
    %v5708 = vadd.f32 %v5688, %v5707
    %5709 = vdwg.mxu0
    %5710 = vmatpush.msra.mxu0 %v4715
    %5711 = vmatpush.msra.mxu0 %v4713
    %5712 = vmatpush.msra.mxu0 %v4711
    %5713 = vmatpush.msra.mxu0 %v4709
    %5714 = vmatpush.msra.mxu0 %v4707
    %5715 = vmatpush.msra.mxu0 %v4705
    %5716 = vmatpush.msra.mxu0 %v4703
    %5717 = vmatpush.msra.mxu0 %v4701
    %5718 = vmatpush.msra.mxu0 %v4699
    %5719 = vmatpush.msra.mxu0 %v4697
    %5720 = vmatpush.msra.mxu0 %v4695
    %5721 = vmatpush.msra.mxu0 %v4693
    %5722 = vmatpush.msra.mxu0 %v4691
    %5723 = vmatpush.msra.mxu0 %v4689
    %5724 = vmatpush.msra.mxu0 %v4687
    %5725 = vmatpush.msra.mxu0 %v4685
    %5726 = vmatmul.f32.gmra.mxu0 %v4065
    %v5727 = vpop.f32.mrf.mxu0
    %v5728 = vadd.f32 %v5708, %v5727
    %5729 = vdwg.mxu0
    %5730 = vmatpush.msra.mxu0 %v4747
    %5731 = vmatpush.msra.mxu0 %v4745
    %5732 = vmatpush.msra.mxu0 %v4743
    %5733 = vmatpush.msra.mxu0 %v4741
    %5734 = vmatpush.msra.mxu0 %v4739
    %5735 = vmatpush.msra.mxu0 %v4737
    %5736 = vmatpush.msra.mxu0 %v4735
    %5737 = vmatpush.msra.mxu0 %v4733
    %5738 = vmatpush.msra.mxu0 %v4731
    %5739 = vmatpush.msra.mxu0 %v4729
    %5740 = vmatpush.msra.mxu0 %v4727
    %5741 = vmatpush.msra.mxu0 %v4725
    %5742 = vmatpush.msra.mxu0 %v4723
    %5743 = vmatpush.msra.mxu0 %v4721
    %5744 = vmatpush.msra.mxu0 %v4719
    %5745 = vmatpush.msra.mxu0 %v4717
    %5746 = vmatmul.f32.gmra.mxu0 %v4068
    %v5747 = vpop.f32.mrf.mxu0
    %v5748 = vadd.f32 %v5728, %v5747
    %5749 = vdwg.mxu0
    %5750 = vmatpush.msra.mxu0 %v4779
    %5751 = vmatpush.msra.mxu0 %v4777
    %5752 = vmatpush.msra.mxu0 %v4775
    %5753 = vmatpush.msra.mxu0 %v4773
    %5754 = vmatpush.msra.mxu0 %v4771
    %5755 = vmatpush.msra.mxu0 %v4769
    %5756 = vmatpush.msra.mxu0 %v4767
    %5757 = vmatpush.msra.mxu0 %v4765
    %5758 = vmatpush.msra.mxu0 %v4763
    %5759 = vmatpush.msra.mxu0 %v4761
    %5760 = vmatpush.msra.mxu0 %v4759
    %5761 = vmatpush.msra.mxu0 %v4757
    %5762 = vmatpush.msra.mxu0 %v4755
    %5763 = vmatpush.msra.mxu0 %v4753
    %5764 = vmatpush.msra.mxu0 %v4751
    %5765 = vmatpush.msra.mxu0 %v4749
    %5766 = vmatmul.f32.gmra.mxu0 %v4069
    %v5767 = vpop.f32.mrf.mxu0
    %v5768 = vadd.f32 %v5748, %v5767
    %5769 = vdwg.mxu0
    %5770 = vmatpush.msra.mxu0 %v4811
    %5771 = vmatpush.msra.mxu0 %v4809
    %5772 = vmatpush.msra.mxu0 %v4807
    %5773 = vmatpush.msra.mxu0 %v4805
    %5774 = vmatpush.msra.mxu0 %v4803
    %5775 = vmatpush.msra.mxu0 %v4801
    %5776 = vmatpush.msra.mxu0 %v4799
    %5777 = vmatpush.msra.mxu0 %v4797
    %5778 = vmatpush.msra.mxu0 %v4795
    %5779 = vmatpush.msra.mxu0 %v4793
    %5780 = vmatpush.msra.mxu0 %v4791
    %5781 = vmatpush.msra.mxu0 %v4789
    %5782 = vmatpush.msra.mxu0 %v4787
    %5783 = vmatpush.msra.mxu0 %v4785
    %5784 = vmatpush.msra.mxu0 %v4783
    %5785 = vmatpush.msra.mxu0 %v4781
    %5786 = vmatmul.f32.gmra.mxu0 %v4072
    %v5787 = vpop.f32.mrf.mxu0
    %v5788 = vadd.f32 %v5768, %v5787
    %5789 = vdwg.mxu0
    %5790 = vmatpush.msra.mxu0 %v4843
    %5791 = vmatpush.msra.mxu0 %v4841
    %5792 = vmatpush.msra.mxu0 %v4839
    %5793 = vmatpush.msra.mxu0 %v4837
    %5794 = vmatpush.msra.mxu0 %v4835
    %5795 = vmatpush.msra.mxu0 %v4833
    %5796 = vmatpush.msra.mxu0 %v4831
    %5797 = vmatpush.msra.mxu0 %v4829
    %5798 = vmatpush.msra.mxu0 %v4827
    %5799 = vmatpush.msra.mxu0 %v4825
    %5800 = vmatpush.msra.mxu0 %v4823
    %5801 = vmatpush.msra.mxu0 %v4821
    %5802 = vmatpush.msra.mxu0 %v4819
    %5803 = vmatpush.msra.mxu0 %v4817
    %5804 = vmatpush.msra.mxu0 %v4815
    %5805 = vmatpush.msra.mxu0 %v4813
    %5806 = vmatmul.f32.gmra.mxu0 %v4073
    %v5807 = vpop.f32.mrf.mxu0
    %v5808 = vadd.f32 %v5788, %v5807
    %5809 = vdwg.mxu0
    %v5810 = vmax.f32 %v5328, 0.0
    %v5811 = vmax.f32 %v5808, 0.0
    %v5812 = vsel %vm429, %v5810, 0.0
    %v5813 = vrot.slane %v5812, 4
    %v5814 = vadd.f32 %v5812, %v5813
    %v5815 = vrot.slane %v5814, 2
    %v5816 = vadd.f32 %v5814, %v5815
    %v5817 = vrot.slane %v5816, 1
    %v5818 = vadd.f32 %v5816, %v5817
    %v5819 = vsel %vm429, %v5811, 0.0
    %v5820 = vrot.slane %v5819, 4
    %v5821 = vadd.f32 %v5819, %v5820
    %v5822 = vrot.slane %v5821, 2
    %v5823 = vadd.f32 %v5821, %v5822
    %v5824 = vrot.slane %v5823, 1
    %v5825 = vadd.f32 %v5823, %v5824
    %v5826 = vmul.f32 %v5818, %v3838
    %v5827 = vmul.f32 %v5825, %v3838
    %v5828 = vld [vmem:[%s23] sm:$0xff]
    %v5829 = vld [vmem:[%s23 + $0x8] sm:$0xff]
    %v5830 = vld [vmem:[%s23 + $0x10] sm:$0xff]
    %v5831 = vld [vmem:[%s23 + $0x18] sm:$0xff]
    %v5832 = vld [vmem:[%s23 + $0x20] sm:$0xff]
    %v5833 = vld [vmem:[%s23 + $0x28] sm:$0xff]
    %v5834 = vld [vmem:[%s23 + $0x30] sm:$0xff]
    %v5835 = vld [vmem:[%s23 + $0x38] sm:$0xff]
    %v5836 = vld [vmem:[%s23 + $0x40] sm:$0xff]
    %v5837 = vld [vmem:[%s23 + $0x48] sm:$0xff]
    %v5838 = vld [vmem:[%s23 + $0x50] sm:$0xff]
    %v5839 = vld [vmem:[%s23 + $0x58] sm:$0xff]
    %v5840 = vld [vmem:[%s23 + $0x60] sm:$0xff]
    %v5841 = vld [vmem:[%s23 + $0x68] sm:$0xff]
    %v5842 = vld [vmem:[%s23 + $0x70] sm:$0xff]
    %v5843 = vld [vmem:[%s23 + $0x78] sm:$0xff]
    %v5844 = vld [vmem:[%s23 + $0x80] sm:$0xff]
    %v5845 = vld [vmem:[%s23 + $0x88] sm:$0xff]
    %v5846 = vld [vmem:[%s23 + $0x90] sm:$0xff]
    %v5847 = vld [vmem:[%s23 + $0x98] sm:$0xff]
    %v5848 = vld [vmem:[%s23 + $0xa0] sm:$0xff]
    %v5849 = vld [vmem:[%s23 + $0xa8] sm:$0xff]
    %v5850 = vld [vmem:[%s23 + $0xb0] sm:$0xff]
    %v5851 = vld [vmem:[%s23 + $0xb8] sm:$0xff]
    %v5852 = vld [vmem:[%s23 + $0xc0] sm:$0xff]
    %v5853 = vld [vmem:[%s23 + $0xc8] sm:$0xff]
    %v5854 = vld [vmem:[%s23 + $0xd0] sm:$0xff]
    %v5855 = vld [vmem:[%s23 + $0xd8] sm:$0xff]
    %v5856 = vld [vmem:[%s23 + $0xe0] sm:$0xff]
    %v5857 = vld [vmem:[%s23 + $0xe8] sm:$0xff]
    %v5858 = vld [vmem:[%s23 + $0xf0] sm:$0xff]
    %v5859 = vld [vmem:[%s23 + $0xf8] sm:$0xff]
    %5860 = vmatpush.msra.mxu0 %v5843
    %5861 = vmatpush.msra.mxu0 %v5842
    %5862 = vmatpush.msra.mxu0 %v5841
    %5863 = vmatpush.msra.mxu0 %v5840
    %5864 = vmatpush.msra.mxu0 %v5839
    %5865 = vmatpush.msra.mxu0 %v5838
    %5866 = vmatpush.msra.mxu0 %v5837
    %5867 = vmatpush.msra.mxu0 %v5836
    %5868 = vmatpush.msra.mxu0 %v5835
    %5869 = vmatpush.msra.mxu0 %v5834
    %5870 = vmatpush.msra.mxu0 %v5833
    %5871 = vmatpush.msra.mxu0 %v5832
    %5872 = vmatpush.msra.mxu0 %v5831
    %5873 = vmatpush.msra.mxu0 %v5830
    %5874 = vmatpush.msra.mxu0 %v5829
    %5875 = vmatpush.msra.mxu0 %v5828
    %5876 = vmatmul.f32.gmra.mxu0 %v5826
    %v5877 = vpop.f32.mrf.mxu0
    %v5878 = vadd.f32 0.0, %v5877
    %5879 = vdwg.mxu0
    %5880 = vmatpush.msra.mxu0 %v5859
    %5881 = vmatpush.msra.mxu0 %v5858
    %5882 = vmatpush.msra.mxu0 %v5857
    %5883 = vmatpush.msra.mxu0 %v5856
    %5884 = vmatpush.msra.mxu0 %v5855
    %5885 = vmatpush.msra.mxu0 %v5854
    %5886 = vmatpush.msra.mxu0 %v5853
    %5887 = vmatpush.msra.mxu0 %v5852
    %5888 = vmatpush.msra.mxu0 %v5851
    %5889 = vmatpush.msra.mxu0 %v5850
    %5890 = vmatpush.msra.mxu0 %v5849
    %5891 = vmatpush.msra.mxu0 %v5848
    %5892 = vmatpush.msra.mxu0 %v5847
    %5893 = vmatpush.msra.mxu0 %v5846
    %5894 = vmatpush.msra.mxu0 %v5845
    %5895 = vmatpush.msra.mxu0 %v5844
    %5896 = vmatmul.f32.gmra.mxu0 %v5827
    %v5897 = vpop.f32.mrf.mxu0
    %v5898 = vadd.f32 %v5878, %v5897
    %5899 = vdwg.mxu0
    %v5900 = vmax.f32 %v5898, 0.0
    %v5901 = vld [vmem:[#allocation31] sm:$0xff]
    %v5902 = vld [vmem:[#allocation31 + $0x8] sm:$0xff]
    %v5903 = vld [vmem:[#allocation31 + $0x10] sm:$0xf]
    %v5904 = vld [vmem:[#allocation31 + $0x18] sm:$0xf]
    %v5906 = vsel %vm3918, %v5900, 0
    %v5909 = vsel %vm429, %v5903, 0
    %v5912 = vsel %vm429, %v5904, 0
    %5914 = vmatpush.msra.mxu0 0.0
    %5915 = vmatpush.msra.mxu0 0.0
    %5916 = vmatpush.msra.mxu0 0.0
    %5917 = vmatpush.msra.mxu0 0.0
    %5918 = vmatpush.msra.mxu0 0.0
    %5919 = vmatpush.msra.mxu0 0.0
    %5920 = vmatpush.msra.mxu0 0.0
    %5921 = vmatpush.msra.mxu0 0.0
    %5922 = vmatpush.msra.mxu0 0.0
    %5923 = vmatpush.msra.mxu0 0.0
    %5924 = vmatpush.msra.mxu0 0.0
    %5925 = vmatpush.msra.mxu0 0.0
    %5926 = vmatpush.msra.mxu0 0.0
    %5927 = vmatpush.msra.mxu0 0.0
    %5928 = vmatpush.msra.mxu0 %v5909
    %5929 = vmatpush.msra.mxu0 %v5901
    %5930 = vmatmul.f32.gmra.mxu0 %v5906
    %v5931 = vpop.f32.mrf.mxu0
    %v5932 = vadd.f32 0.0, %v5931
    %5933 = vdwg.mxu0
    %5934 = vmatpush.msra.mxu0 0.0
    %5935 = vmatpush.msra.mxu0 0.0
    %5936 = vmatpush.msra.mxu0 0.0
    %5937 = vmatpush.msra.mxu0 0.0
    %5938 = vmatpush.msra.mxu0 0.0
    %5939 = vmatpush.msra.mxu0 0.0
    %5940 = vmatpush.msra.mxu0 0.0
    %5941 = vmatpush.msra.mxu0 0.0
    %5942 = vmatpush.msra.mxu0 0.0
    %5943 = vmatpush.msra.mxu0 0.0
    %5944 = vmatpush.msra.mxu0 0.0
    %5945 = vmatpush.msra.mxu0 0.0
    %5946 = vmatpush.msra.mxu0 0.0
    %5947 = vmatpush.msra.mxu0 0.0
    %5948 = vmatpush.msra.mxu0 %v5912
    %5949 = vmatpush.msra.mxu0 %v5902
    %5950 = vmatmul.f32.gmra.mxu0 %v5906
    %v5951 = vpop.f32.mrf.mxu0
    %v5952 = vadd.f32 0.0, %v5951
    %5953 = vdwg.mxu0
    %v5954 = vxor.u32 %v5932, 2147483648
    %v5955 = vxor.u32 %v5952, 2147483648
    %v5956 = vmul.f32 %v5954, 1.442695
    %v5957 = vpow.pop %v5956
    %v5958 = vmul.f32 %v5955, 1.442695
    %v5959 = vpow.pop %v5958
    %v5960 = vadd.f32 %v5957, 1.0
    %v5961 = vadd.f32 %v5959, 1.0
    %v5962 = vrcp.pop %v5960
    %v5963 = vmul.f32 %v5960, %v5962
    %v5964 = vsub.f32 1.0, %v5963
    %v5965 = vmul.f32 %v5962, %v5964
    %v5966 = vadd.f32 %v5962, %v5965
    %vm5967 = vweird.f32 %v5960
    %vm5968 = vweird.f32 %v5962
    %vm5969 = vmor %vm5967, %vm5968
    %v5970 = vsel %vm5969, %v5962, %v5966
    %v5971 = vand.u32 2147483647, %v5960
    %vm5972 = vcmp.eq.f32.partialorder %v5971, 8.507059e+37
    %v5973 = vand.u32 %v5960, 2147483648
    %v5974 = vor.u32 1.1754944e-38, %v5973
    %v5975 = vsel %vm5972, %v5974, %v5970
    %v5976 = vmul.f32 1.0, %v5975
    %v5977 = vrcp.pop %v5961
    %v5978 = vmul.f32 %v5961, %v5977
    %v5979 = vsub.f32 1.0, %v5978
    %v5980 = vmul.f32 %v5977, %v5979
    %v5981 = vadd.f32 %v5977, %v5980
    %vm5982 = vweird.f32 %v5961
    %vm5983 = vweird.f32 %v5977
    %vm5984 = vmor %vm5982, %vm5983
    %v5985 = vsel %vm5984, %v5977, %v5981
    %v5986 = vand.u32 2147483647, %v5961
    %vm5987 = vcmp.eq.f32.partialorder %v5986, 8.507059e+37
    %v5988 = vand.u32 %v5961, 2147483648
    %v5989 = vor.u32 1.1754944e-38, %v5988
    %v5990 = vsel %vm5987, %v5989, %v5985
    %v5991 = vmul.f32 1.0, %v5990
    %v5992 = vperm.slane %v5976, 0
    %v5993 = vperm.slane %v5991, 0
    %v5994 = vmul.f32 %v5810, %v5992
    %v5995 = vmul.f32 %v5811, %v5993
    %v5996 = vsel %vm429, %v5994, 0.0
    %v5997 = vrot.slane %v5996, 4
    %v5998 = vadd.f32 %v5996, %v5997
    %v5999 = vrot.slane %v5998, 2
    %v6000 = vadd.f32 %v5998, %v5999
    %v6001 = vrot.slane %v6000, 1
    %v6002 = vadd.f32 %v6000, %v6001
    %v6003 = vsel %vm429, %v5995, 0.0
    %v6004 = vrot.slane %v6003, 4
    %v6005 = vadd.f32 %v6003, %v6004
    %v6006 = vrot.slane %v6005, 2
    %v6007 = vadd.f32 %v6005, %v6006
    %v6008 = vrot.slane %v6007, 1
    %v6009 = vadd.f32 %v6007, %v6008
    %v6010 = vmul.f32 %v6002, %v3838
    %v6011 = vmul.f32 %v6009, %v3838
    %v6012 = vld [vmem:[#allocation32] sm:$0xff]
    %v6013 = vld [vmem:[#allocation32 + $0x8] sm:$0xff]
    %v6014 = vld [vmem:[#allocation32 + $0x10] sm:$0xff]
    %v6015 = vld [vmem:[#allocation32 + $0x18] sm:$0xff]
    %v6016 = vld [vmem:[#allocation32 + $0x20] sm:$0xff]
    %v6017 = vld [vmem:[#allocation32 + $0x28] sm:$0xff]
    %v6018 = vld [vmem:[#allocation32 + $0x30] sm:$0xff]
    %v6019 = vld [vmem:[#allocation32 + $0x38] sm:$0xff]
    %v6020 = vld [vmem:[#allocation32 + $0x40] sm:$0xff]
    %v6021 = vld [vmem:[#allocation32 + $0x48] sm:$0xff]
    %v6022 = vld [vmem:[#allocation32 + $0x50] sm:$0xff]
    %v6023 = vld [vmem:[#allocation32 + $0x58] sm:$0xff]
    %v6024 = vld [vmem:[#allocation32 + $0x60] sm:$0xff]
    %v6025 = vld [vmem:[#allocation32 + $0x68] sm:$0xff]
    %v6026 = vld [vmem:[#allocation32 + $0x70] sm:$0xff]
    %v6027 = vld [vmem:[#allocation32 + $0x78] sm:$0xff]
    %v6028 = vld [vmem:[#allocation32 + $0x80] sm:$0xff]
    %v6029 = vld [vmem:[#allocation32 + $0x88] sm:$0xff]
    %v6030 = vld [vmem:[#allocation32 + $0x90] sm:$0xff]
    %v6031 = vld [vmem:[#allocation32 + $0x98] sm:$0xff]
    %v6032 = vld [vmem:[#allocation32 + $0xa0] sm:$0xff]
    %v6033 = vld [vmem:[#allocation32 + $0xa8] sm:$0xff]
    %v6034 = vld [vmem:[#allocation32 + $0xb0] sm:$0xff]
    %v6035 = vld [vmem:[#allocation32 + $0xb8] sm:$0xff]
    %v6036 = vld [vmem:[#allocation32 + $0xc0] sm:$0xff]
    %v6037 = vld [vmem:[#allocation32 + $0xc8] sm:$0xff]
    %v6038 = vld [vmem:[#allocation32 + $0xd0] sm:$0xff]
    %v6039 = vld [vmem:[#allocation32 + $0xd8] sm:$0xff]
    %v6040 = vld [vmem:[#allocation32 + $0xe0] sm:$0xff]
    %v6041 = vld [vmem:[#allocation32 + $0xe8] sm:$0xff]
    %v6042 = vld [vmem:[#allocation32 + $0xf0] sm:$0xff]
    %v6043 = vld [vmem:[#allocation32 + $0xf8] sm:$0xff]
    %v6044 = vld [vmem:[#allocation34] sm:$0x1]
    %6045 = vmatpush.msra.mxu0 %v6027
    %6046 = vmatpush.msra.mxu0 %v6026
    %6047 = vmatpush.msra.mxu0 %v6025
    %6048 = vmatpush.msra.mxu0 %v6024
    %6049 = vmatpush.msra.mxu0 %v6023
    %6050 = vmatpush.msra.mxu0 %v6022
    %6051 = vmatpush.msra.mxu0 %v6021
    %6052 = vmatpush.msra.mxu0 %v6020
    %6053 = vmatpush.msra.mxu0 %v6019
    %6054 = vmatpush.msra.mxu0 %v6018
    %6055 = vmatpush.msra.mxu0 %v6017
    %6056 = vmatpush.msra.mxu0 %v6016
    %6057 = vmatpush.msra.mxu0 %v6015
    %6058 = vmatpush.msra.mxu0 %v6014
    %6059 = vmatpush.msra.mxu0 %v6013
    %6060 = vmatpush.msra.mxu0 %v6012
    %6061 = vmatmul.f32.gmra.mxu0 %v6010
    %v6062 = vpop.f32.mrf.mxu0
    %v6063 = vadd.f32 %v6044, %v6062
    %6064 = vdwg.mxu0
    %6065 = vmatpush.msra.mxu0 %v6043
    %6066 = vmatpush.msra.mxu0 %v6042
    %6067 = vmatpush.msra.mxu0 %v6041
    %6068 = vmatpush.msra.mxu0 %v6040
    %6069 = vmatpush.msra.mxu0 %v6039
    %6070 = vmatpush.msra.mxu0 %v6038
    %6071 = vmatpush.msra.mxu0 %v6037
    %6072 = vmatpush.msra.mxu0 %v6036
    %6073 = vmatpush.msra.mxu0 %v6035
    %6074 = vmatpush.msra.mxu0 %v6034
    %6075 = vmatpush.msra.mxu0 %v6033
    %6076 = vmatpush.msra.mxu0 %v6032
    %6077 = vmatpush.msra.mxu0 %v6031
    %6078 = vmatpush.msra.mxu0 %v6030
    %6079 = vmatpush.msra.mxu0 %v6029
    %6080 = vmatpush.msra.mxu0 %v6028
    %6081 = vmatmul.f32.gmra.mxu0 %v6011
    %v6082 = vpop.f32.mrf.mxu0
    %v6083 = vadd.f32 %v6063, %v6082
    %6084 = vdwg.mxu0
    %s6085 = scalar_lea.vmem [#allocation2], 16
    %v6086 = vld [vmem:[%s6085] sm:$0xff]
    %v6087 = vld [vmem:[%s6085 + $0x8] sm:$0xff]
    %v6090 = vrot.slane %v6086, 3
    %v6091 = vrot.slane %v6087, 3
    %v6092 = vsel %vm395, %v6090, %v6091
    %v6096 = vsel %vm395, 0.0, %v6090
    %v6097 = vsel %vm395, %v6091, 0.0
    %v6100 = vrot.slane %v6096, 1
    %v6101 = vrot.slane %v6092, 1
    %v6102 = vsel %vm406, %v6100, %v6101
    %v6103 = vrot.slane %v6097, 1
    %v6104 = vsel %vm406, %v6101, %v6103
    %v6107 = vrot.slane %v6096, 2
    %v6108 = vrot.slane %v6092, 2
    %v6109 = vsel %vm414, %v6107, %v6108
    %v6110 = vrot.slane %v6097, 2
    %v6111 = vsel %vm414, %v6108, %v6110
    %v6114 = vrot.slane %v6096, 3
    %v6115 = vrot.slane %v6092, 3
    %v6116 = vsel %vm395, %v6114, %v6115
    %v6117 = vrot.slane %v6097, 3
    %v6118 = vsel %vm395, %v6115, %v6117
    %v6121 = vrot.slane %v6096, 4
    %v6122 = vrot.slane %v6092, 4
    %v6123 = vsel %vm429, %v6121, %v6122
    %v6124 = vrot.slane %v6097, 4
    %v6125 = vsel %vm429, %v6122, %v6124
    %v6128 = vrot.slane %v6096, 5
    %v6129 = vrot.slane %v6092, 5
    %v6130 = vsel %vm437, %v6128, %v6129
    %v6131 = vrot.slane %v6097, 5
    %v6132 = vsel %vm437, %v6129, %v6131
    %v6135 = vrot.slane %v6096, 6
    %v6136 = vrot.slane %v6092, 6
    %v6137 = vsel %vm445, %v6135, %v6136
    %v6138 = vrot.slane %v6097, 6
    %v6139 = vsel %vm445, %v6136, %v6138
    %v6142 = vrot.slane %v6096, 7
    %v6143 = vrot.slane %v6092, 7
    %v6144 = vsel %vm453, %v6142, %v6143
    %v6145 = vrot.slane %v6097, 7
    %v6146 = vsel %vm453, %v6143, %v6145
    %v6149 = vsel %vm406, %v6103, %v462
    %v6151 = vsel %vm414, %v6110, %v465
    %v6153 = vsel %vm395, %v6117, %v468
    %6155 = vmatpush.msra.mxu0 %v486
    %6156 = vmatpush.msra.mxu0 %v485
    %6157 = vmatpush.msra.mxu0 %v484
    %6158 = vmatpush.msra.mxu0 %v483
    %6159 = vmatpush.msra.mxu0 %v482
    %6160 = vmatpush.msra.mxu0 %v481
    %6161 = vmatpush.msra.mxu0 %v480
    %6162 = vmatpush.msra.mxu0 %v479
    %6163 = vmatpush.msra.mxu0 %v478
    %6164 = vmatpush.msra.mxu0 %v477
    %6165 = vmatpush.msra.mxu0 %v476
    %6166 = vmatpush.msra.mxu0 %v475
    %6167 = vmatpush.msra.mxu0 %v474
    %6168 = vmatpush.msra.mxu0 %v473
    %6169 = vmatpush.msra.mxu0 %v472
    %6170 = vmatpush.msra.mxu0 %v471
    %6171 = vmatmul.f32.gmra.mxu0 %v6096
    %v6172 = vpop.f32.mrf.mxu0
    %v6173 = vadd.f32 %v665, %v6172
    %6174 = vmatmul.f32.gmra.mxu0 %v6092
    %v6175 = vpop.f32.mrf.mxu0
    %v6176 = vadd.f32 %v665, %v6175
    %6177 = vdwg.mxu0
    %6178 = vmatpush.msra.mxu0 %v502
    %6179 = vmatpush.msra.mxu0 %v501
    %6180 = vmatpush.msra.mxu0 %v500
    %6181 = vmatpush.msra.mxu0 %v499
    %6182 = vmatpush.msra.mxu0 %v498
    %6183 = vmatpush.msra.mxu0 %v497
    %6184 = vmatpush.msra.mxu0 %v496
    %6185 = vmatpush.msra.mxu0 %v495
    %6186 = vmatpush.msra.mxu0 %v494
    %6187 = vmatpush.msra.mxu0 %v493
    %6188 = vmatpush.msra.mxu0 %v492
    %6189 = vmatpush.msra.mxu0 %v491
    %6190 = vmatpush.msra.mxu0 %v490
    %6191 = vmatpush.msra.mxu0 %v489
    %6192 = vmatpush.msra.mxu0 %v488
    %6193 = vmatpush.msra.mxu0 %v487
    %6194 = vmatmul.f32.gmra.mxu0 %v6102
    %v6195 = vpop.f32.mrf.mxu0
    %v6196 = vadd.f32 %v6173, %v6195
    %6197 = vmatmul.f32.gmra.mxu0 %v6104
    %v6198 = vpop.f32.mrf.mxu0
    %v6199 = vadd.f32 %v6176, %v6198
    %6200 = vdwg.mxu0
    %6201 = vmatpush.msra.mxu0 %v518
    %6202 = vmatpush.msra.mxu0 %v517
    %6203 = vmatpush.msra.mxu0 %v516
    %6204 = vmatpush.msra.mxu0 %v515
    %6205 = vmatpush.msra.mxu0 %v514
    %6206 = vmatpush.msra.mxu0 %v513
    %6207 = vmatpush.msra.mxu0 %v512
    %6208 = vmatpush.msra.mxu0 %v511
    %6209 = vmatpush.msra.mxu0 %v510
    %6210 = vmatpush.msra.mxu0 %v509
    %6211 = vmatpush.msra.mxu0 %v508
    %6212 = vmatpush.msra.mxu0 %v507
    %6213 = vmatpush.msra.mxu0 %v506
    %6214 = vmatpush.msra.mxu0 %v505
    %6215 = vmatpush.msra.mxu0 %v504
    %6216 = vmatpush.msra.mxu0 %v503
    %6217 = vmatmul.f32.gmra.mxu0 %v6109
    %v6218 = vpop.f32.mrf.mxu0
    %v6219 = vadd.f32 %v6196, %v6218
    %6220 = vmatmul.f32.gmra.mxu0 %v6111
    %v6221 = vpop.f32.mrf.mxu0
    %v6222 = vadd.f32 %v6199, %v6221
    %6223 = vdwg.mxu0
    %6224 = vmatpush.msra.mxu0 %v534
    %6225 = vmatpush.msra.mxu0 %v533
    %6226 = vmatpush.msra.mxu0 %v532
    %6227 = vmatpush.msra.mxu0 %v531
    %6228 = vmatpush.msra.mxu0 %v530
    %6229 = vmatpush.msra.mxu0 %v529
    %6230 = vmatpush.msra.mxu0 %v528
    %6231 = vmatpush.msra.mxu0 %v527
    %6232 = vmatpush.msra.mxu0 %v526
    %6233 = vmatpush.msra.mxu0 %v525
    %6234 = vmatpush.msra.mxu0 %v524
    %6235 = vmatpush.msra.mxu0 %v523
    %6236 = vmatpush.msra.mxu0 %v522
    %6237 = vmatpush.msra.mxu0 %v521
    %6238 = vmatpush.msra.mxu0 %v520
    %6239 = vmatpush.msra.mxu0 %v519
    %6240 = vmatmul.f32.gmra.mxu0 %v6116
    %v6241 = vpop.f32.mrf.mxu0
    %v6242 = vadd.f32 %v6219, %v6241
    %6243 = vmatmul.f32.gmra.mxu0 %v6118
    %v6244 = vpop.f32.mrf.mxu0
    %v6245 = vadd.f32 %v6222, %v6244
    %6246 = vdwg.mxu0
    %6247 = vmatpush.msra.mxu0 %v550
    %6248 = vmatpush.msra.mxu0 %v549
    %6249 = vmatpush.msra.mxu0 %v548
    %6250 = vmatpush.msra.mxu0 %v547
    %6251 = vmatpush.msra.mxu0 %v546
    %6252 = vmatpush.msra.mxu0 %v545
    %6253 = vmatpush.msra.mxu0 %v544
    %6254 = vmatpush.msra.mxu0 %v543
    %6255 = vmatpush.msra.mxu0 %v542
    %6256 = vmatpush.msra.mxu0 %v541
    %6257 = vmatpush.msra.mxu0 %v540
    %6258 = vmatpush.msra.mxu0 %v539
    %6259 = vmatpush.msra.mxu0 %v538
    %6260 = vmatpush.msra.mxu0 %v537
    %6261 = vmatpush.msra.mxu0 %v536
    %6262 = vmatpush.msra.mxu0 %v535
    %6263 = vmatmul.f32.gmra.mxu0 %v6123
    %v6264 = vpop.f32.mrf.mxu0
    %v6265 = vadd.f32 %v6242, %v6264
    %6266 = vmatmul.f32.gmra.mxu0 %v6125
    %v6267 = vpop.f32.mrf.mxu0
    %v6268 = vadd.f32 %v6245, %v6267
    %6269 = vdwg.mxu0
    %6270 = vmatpush.msra.mxu0 %v566
    %6271 = vmatpush.msra.mxu0 %v565
    %6272 = vmatpush.msra.mxu0 %v564
    %6273 = vmatpush.msra.mxu0 %v563
    %6274 = vmatpush.msra.mxu0 %v562
    %6275 = vmatpush.msra.mxu0 %v561
    %6276 = vmatpush.msra.mxu0 %v560
    %6277 = vmatpush.msra.mxu0 %v559
    %6278 = vmatpush.msra.mxu0 %v558
    %6279 = vmatpush.msra.mxu0 %v557
    %6280 = vmatpush.msra.mxu0 %v556
    %6281 = vmatpush.msra.mxu0 %v555
    %6282 = vmatpush.msra.mxu0 %v554
    %6283 = vmatpush.msra.mxu0 %v553
    %6284 = vmatpush.msra.mxu0 %v552
    %6285 = vmatpush.msra.mxu0 %v551
    %6286 = vmatmul.f32.gmra.mxu0 %v6130
    %v6287 = vpop.f32.mrf.mxu0
    %v6288 = vadd.f32 %v6265, %v6287
    %6289 = vmatmul.f32.gmra.mxu0 %v6132
    %v6290 = vpop.f32.mrf.mxu0
    %v6291 = vadd.f32 %v6268, %v6290
    %6292 = vdwg.mxu0
    %6293 = vmatpush.msra.mxu0 %v582
    %6294 = vmatpush.msra.mxu0 %v581
    %6295 = vmatpush.msra.mxu0 %v580
    %6296 = vmatpush.msra.mxu0 %v579
    %6297 = vmatpush.msra.mxu0 %v578
    %6298 = vmatpush.msra.mxu0 %v577
    %6299 = vmatpush.msra.mxu0 %v576
    %6300 = vmatpush.msra.mxu0 %v575
    %6301 = vmatpush.msra.mxu0 %v574
    %6302 = vmatpush.msra.mxu0 %v573
    %6303 = vmatpush.msra.mxu0 %v572
    %6304 = vmatpush.msra.mxu0 %v571
    %6305 = vmatpush.msra.mxu0 %v570
    %6306 = vmatpush.msra.mxu0 %v569
    %6307 = vmatpush.msra.mxu0 %v568
    %6308 = vmatpush.msra.mxu0 %v567
    %6309 = vmatmul.f32.gmra.mxu0 %v6137
    %v6310 = vpop.f32.mrf.mxu0
    %v6311 = vadd.f32 %v6288, %v6310
    %6312 = vmatmul.f32.gmra.mxu0 %v6139
    %v6313 = vpop.f32.mrf.mxu0
    %v6314 = vadd.f32 %v6291, %v6313
    %6315 = vdwg.mxu0
    %6316 = vmatpush.msra.mxu0 %v598
    %6317 = vmatpush.msra.mxu0 %v597
    %6318 = vmatpush.msra.mxu0 %v596
    %6319 = vmatpush.msra.mxu0 %v595
    %6320 = vmatpush.msra.mxu0 %v594
    %6321 = vmatpush.msra.mxu0 %v593
    %6322 = vmatpush.msra.mxu0 %v592
    %6323 = vmatpush.msra.mxu0 %v591
    %6324 = vmatpush.msra.mxu0 %v590
    %6325 = vmatpush.msra.mxu0 %v589
    %6326 = vmatpush.msra.mxu0 %v588
    %6327 = vmatpush.msra.mxu0 %v587
    %6328 = vmatpush.msra.mxu0 %v586
    %6329 = vmatpush.msra.mxu0 %v585
    %6330 = vmatpush.msra.mxu0 %v584
    %6331 = vmatpush.msra.mxu0 %v583
    %6332 = vmatmul.f32.gmra.mxu0 %v6144
    %v6333 = vpop.f32.mrf.mxu0
    %v6334 = vadd.f32 %v6311, %v6333
    %6335 = vmatmul.f32.gmra.mxu0 %v6146
    %v6336 = vpop.f32.mrf.mxu0
    %v6337 = vadd.f32 %v6314, %v6336
    %6338 = vdwg.mxu0
    %6339 = vmatpush.msra.mxu0 %v614
    %6340 = vmatpush.msra.mxu0 %v613
    %6341 = vmatpush.msra.mxu0 %v612
    %6342 = vmatpush.msra.mxu0 %v611
    %6343 = vmatpush.msra.mxu0 %v610
    %6344 = vmatpush.msra.mxu0 %v609
    %6345 = vmatpush.msra.mxu0 %v608
    %6346 = vmatpush.msra.mxu0 %v607
    %6347 = vmatpush.msra.mxu0 %v606
    %6348 = vmatpush.msra.mxu0 %v605
    %6349 = vmatpush.msra.mxu0 %v604
    %6350 = vmatpush.msra.mxu0 %v603
    %6351 = vmatpush.msra.mxu0 %v602
    %6352 = vmatpush.msra.mxu0 %v601
    %6353 = vmatpush.msra.mxu0 %v600
    %6354 = vmatpush.msra.mxu0 %v599
    %6355 = vmatmul.f32.gmra.mxu0 %v6092
    %v6356 = vpop.f32.mrf.mxu0
    %v6357 = vadd.f32 %v6334, %v6356
    %6358 = vmatmul.f32.gmra.mxu0 %v6097
    %v6359 = vpop.f32.mrf.mxu0
    %v6360 = vadd.f32 %v6337, %v6359
    %6361 = vdwg.mxu0
    %6362 = vmatpush.msra.mxu0 %v630
    %6363 = vmatpush.msra.mxu0 %v629
    %6364 = vmatpush.msra.mxu0 %v628
    %6365 = vmatpush.msra.mxu0 %v627
    %6366 = vmatpush.msra.mxu0 %v626
    %6367 = vmatpush.msra.mxu0 %v625
    %6368 = vmatpush.msra.mxu0 %v624
    %6369 = vmatpush.msra.mxu0 %v623
    %6370 = vmatpush.msra.mxu0 %v622
    %6371 = vmatpush.msra.mxu0 %v621
    %6372 = vmatpush.msra.mxu0 %v620
    %6373 = vmatpush.msra.mxu0 %v619
    %6374 = vmatpush.msra.mxu0 %v618
    %6375 = vmatpush.msra.mxu0 %v617
    %6376 = vmatpush.msra.mxu0 %v616
    %6377 = vmatpush.msra.mxu0 %v615
    %6378 = vmatmul.f32.gmra.mxu0 %v6104
    %v6379 = vpop.f32.mrf.mxu0
    %v6380 = vadd.f32 %v6357, %v6379
    %6381 = vmatmul.f32.gmra.mxu0 %v6149
    %v6382 = vpop.f32.mrf.mxu0
    %v6383 = vadd.f32 %v6360, %v6382
    %6384 = vdwg.mxu0
    %6385 = vmatpush.msra.mxu0 %v646
    %6386 = vmatpush.msra.mxu0 %v645
    %6387 = vmatpush.msra.mxu0 %v644
    %6388 = vmatpush.msra.mxu0 %v643
    %6389 = vmatpush.msra.mxu0 %v642
    %6390 = vmatpush.msra.mxu0 %v641
    %6391 = vmatpush.msra.mxu0 %v640
    %6392 = vmatpush.msra.mxu0 %v639
    %6393 = vmatpush.msra.mxu0 %v638
    %6394 = vmatpush.msra.mxu0 %v637
    %6395 = vmatpush.msra.mxu0 %v636
    %6396 = vmatpush.msra.mxu0 %v635
    %6397 = vmatpush.msra.mxu0 %v634
    %6398 = vmatpush.msra.mxu0 %v633
    %6399 = vmatpush.msra.mxu0 %v632
    %6400 = vmatpush.msra.mxu0 %v631
    %6401 = vmatmul.f32.gmra.mxu0 %v6111
    %v6402 = vpop.f32.mrf.mxu0
    %v6403 = vadd.f32 %v6380, %v6402
    %6404 = vmatmul.f32.gmra.mxu0 %v6151
    %v6405 = vpop.f32.mrf.mxu0
    %v6406 = vadd.f32 %v6383, %v6405
    %6407 = vdwg.mxu0
    %6408 = vmatpush.msra.mxu0 %v662
    %6409 = vmatpush.msra.mxu0 %v661
    %6410 = vmatpush.msra.mxu0 %v660
    %6411 = vmatpush.msra.mxu0 %v659
    %6412 = vmatpush.msra.mxu0 %v658
    %6413 = vmatpush.msra.mxu0 %v657
    %6414 = vmatpush.msra.mxu0 %v656
    %6415 = vmatpush.msra.mxu0 %v655
    %6416 = vmatpush.msra.mxu0 %v654
    %6417 = vmatpush.msra.mxu0 %v653
    %6418 = vmatpush.msra.mxu0 %v652
    %6419 = vmatpush.msra.mxu0 %v651
    %6420 = vmatpush.msra.mxu0 %v650
    %6421 = vmatpush.msra.mxu0 %v649
    %6422 = vmatpush.msra.mxu0 %v648
    %6423 = vmatpush.msra.mxu0 %v647
    %6424 = vmatmul.f32.gmra.mxu0 %v6118
    %v6425 = vpop.f32.mrf.mxu0
    %v6426 = vadd.f32 %v6403, %v6425
    %6427 = vmatmul.f32.gmra.mxu0 %v6153
    %v6428 = vpop.f32.mrf.mxu0
    %v6429 = vadd.f32 %v6406, %v6428
    %6430 = vdwg.mxu0
    %v6431 = vmax.f32 %v6426, 0.0
    %v6432 = vmax.f32 %v6429, 0.0
    %v6433 = vadd.f32 %v6431, %v6432
    %v6434 = vrot.slane %v6433, 4
    %v6435 = vadd.f32 %v6433, %v6434
    %v6436 = vrot.slane %v6435, 2
    %v6437 = vadd.f32 %v6435, %v6436
    %v6438 = vrot.slane %v6437, 1
    %v6439 = vadd.f32 %v6437, %v6438
    %v6440 = vmul.f32 %v6439, %v958
    %6441 = vmatpush.msra.mxu0 %v975
    %6442 = vmatpush.msra.mxu0 %v974
    %6443 = vmatpush.msra.mxu0 %v973
    %6444 = vmatpush.msra.mxu0 %v972
    %6445 = vmatpush.msra.mxu0 %v971
    %6446 = vmatpush.msra.mxu0 %v970
    %6447 = vmatpush.msra.mxu0 %v969
    %6448 = vmatpush.msra.mxu0 %v968
    %6449 = vmatpush.msra.mxu0 %v967
    %6450 = vmatpush.msra.mxu0 %v966
    %6451 = vmatpush.msra.mxu0 %v965
    %6452 = vmatpush.msra.mxu0 %v964
    %6453 = vmatpush.msra.mxu0 %v963
    %6454 = vmatpush.msra.mxu0 %v962
    %6455 = vmatpush.msra.mxu0 %v961
    %6456 = vmatpush.msra.mxu0 %v960
    %6457 = vmatmul.f32.gmra.mxu0 %v6440
    %v6458 = vpop.f32.mrf.mxu0
    %v6459 = vadd.f32 0.0, %v6458
    %6460 = vdwg.mxu0
    %v6461 = vmax.f32 %v6459, 0.0
    %v6463 = vsel %vm998, %v6461, 0
    %6465 = vmatpush.msra.mxu0 0.0
    %6466 = vmatpush.msra.mxu0 0.0
    %6467 = vmatpush.msra.mxu0 0.0
    %6468 = vmatpush.msra.mxu0 0.0
    %6469 = vmatpush.msra.mxu0 0.0
    %6470 = vmatpush.msra.mxu0 0.0
    %6471 = vmatpush.msra.mxu0 0.0
    %6472 = vmatpush.msra.mxu0 0.0
    %6473 = vmatpush.msra.mxu0 0.0
    %6474 = vmatpush.msra.mxu0 0.0
    %6475 = vmatpush.msra.mxu0 0.0
    %6476 = vmatpush.msra.mxu0 0.0
    %6477 = vmatpush.msra.mxu0 0.0
    %6478 = vmatpush.msra.mxu0 0.0
    %6479 = vmatpush.msra.mxu0 0.0
    %6480 = vmatpush.msra.mxu0 %v1003
    %6481 = vmatmul.f32.gmra.mxu0 %v6463
    %v6482 = vpop.f32.mrf.mxu0
    %v6483 = vadd.f32 0.0, %v6482
    %6484 = vdwg.mxu0
    %v6485 = vxor.u32 %v6483, 2147483648
    %v6486 = vmul.f32 %v6485, 1.442695
    %v6487 = vpow.pop %v6486
    %v6488 = vadd.f32 %v6487, 1.0
    %v6489 = vrcp.pop %v6488
    %v6490 = vmul.f32 %v6488, %v6489
    %v6491 = vsub.f32 1.0, %v6490
    %v6492 = vmul.f32 %v6489, %v6491
    %v6493 = vadd.f32 %v6489, %v6492
    %vm6494 = vweird.f32 %v6488
    %vm6495 = vweird.f32 %v6489
    %vm6496 = vmor %vm6494, %vm6495
    %v6497 = vsel %vm6496, %v6489, %v6493
    %v6498 = vand.u32 2147483647, %v6488
    %vm6499 = vcmp.eq.f32.partialorder %v6498, 8.507059e+37
    %v6500 = vand.u32 %v6488, 2147483648
    %v6501 = vor.u32 1.1754944e-38, %v6500
    %v6502 = vsel %vm6499, %v6501, %v6497
    %v6503 = vmul.f32 1.0, %v6502
    %v6504 = vperm.slane %v6503, 0
    %v6505 = vmul.f32 %v6431, %v6504
    %v6506 = vmul.f32 %v6432, %v6504
    %v6509 = vrot.slane %v6505, 3
    %v6510 = vrot.slane %v6506, 3
    %v6511 = vsel %vm395, %v6509, %v6510
    %v6515 = vsel %vm395, 0.0, %v6509
    %v6516 = vsel %vm395, %v6510, 0.0
    %v6519 = vrot.slane %v6515, 1
    %v6520 = vrot.slane %v6511, 1
    %v6521 = vsel %vm406, %v6519, %v6520
    %v6522 = vrot.slane %v6516, 1
    %v6523 = vsel %vm406, %v6520, %v6522
    %v6526 = vrot.slane %v6515, 2
    %v6527 = vrot.slane %v6511, 2
    %v6528 = vsel %vm414, %v6526, %v6527
    %v6529 = vrot.slane %v6516, 2
    %v6530 = vsel %vm414, %v6527, %v6529
    %v6533 = vrot.slane %v6515, 3
    %v6534 = vrot.slane %v6511, 3
    %v6535 = vsel %vm395, %v6533, %v6534
    %v6536 = vrot.slane %v6516, 3
    %v6537 = vsel %vm395, %v6534, %v6536
    %v6540 = vrot.slane %v6515, 4
    %v6541 = vrot.slane %v6511, 4
    %v6542 = vsel %vm429, %v6540, %v6541
    %v6543 = vrot.slane %v6516, 4
    %v6544 = vsel %vm429, %v6541, %v6543
    %v6547 = vrot.slane %v6515, 5
    %v6548 = vrot.slane %v6511, 5
    %v6549 = vsel %vm437, %v6547, %v6548
    %v6550 = vrot.slane %v6516, 5
    %v6551 = vsel %vm437, %v6548, %v6550
    %v6554 = vrot.slane %v6515, 6
    %v6555 = vrot.slane %v6511, 6
    %v6556 = vsel %vm445, %v6554, %v6555
    %v6557 = vrot.slane %v6516, 6
    %v6558 = vsel %vm445, %v6555, %v6557
    %v6561 = vrot.slane %v6515, 7
    %v6562 = vrot.slane %v6511, 7
    %v6563 = vsel %vm453, %v6561, %v6562
    %v6564 = vrot.slane %v6516, 7
    %v6565 = vsel %vm453, %v6562, %v6564
    %v6568 = vsel %vm406, %v6522, %v462
    %v6570 = vsel %vm414, %v6529, %v465
    %v6572 = vsel %vm395, %v6536, %v468
    %6574 = vmatpush.msra.mxu0 %v1129
    %6575 = vmatpush.msra.mxu0 %v1128
    %6576 = vmatpush.msra.mxu0 %v1127
    %6577 = vmatpush.msra.mxu0 %v1126
    %6578 = vmatpush.msra.mxu0 %v1125
    %6579 = vmatpush.msra.mxu0 %v1124
    %6580 = vmatpush.msra.mxu0 %v1123
    %6581 = vmatpush.msra.mxu0 %v1122
    %6582 = vmatpush.msra.mxu0 %v1121
    %6583 = vmatpush.msra.mxu0 %v1120
    %6584 = vmatpush.msra.mxu0 %v1119
    %6585 = vmatpush.msra.mxu0 %v1118
    %6586 = vmatpush.msra.mxu0 %v1117
    %6587 = vmatpush.msra.mxu0 %v1116
    %6588 = vmatpush.msra.mxu0 %v1115
    %6589 = vmatpush.msra.mxu0 %v1114
    %6590 = vmatmul.f32.gmra.mxu0 %v6515
    %v6591 = vpop.f32.mrf.mxu0
    %v6592 = vadd.f32 %v1308, %v6591
    %6593 = vmatmul.f32.gmra.mxu0 %v6511
    %v6594 = vpop.f32.mrf.mxu0
    %v6595 = vadd.f32 %v1308, %v6594
    %6596 = vdwg.mxu0
    %6597 = vmatpush.msra.mxu0 %v1145
    %6598 = vmatpush.msra.mxu0 %v1144
    %6599 = vmatpush.msra.mxu0 %v1143
    %6600 = vmatpush.msra.mxu0 %v1142
    %6601 = vmatpush.msra.mxu0 %v1141
    %6602 = vmatpush.msra.mxu0 %v1140
    %6603 = vmatpush.msra.mxu0 %v1139
    %6604 = vmatpush.msra.mxu0 %v1138
    %6605 = vmatpush.msra.mxu0 %v1137
    %6606 = vmatpush.msra.mxu0 %v1136
    %6607 = vmatpush.msra.mxu0 %v1135
    %6608 = vmatpush.msra.mxu0 %v1134
    %6609 = vmatpush.msra.mxu0 %v1133
    %6610 = vmatpush.msra.mxu0 %v1132
    %6611 = vmatpush.msra.mxu0 %v1131
    %6612 = vmatpush.msra.mxu0 %v1130
    %6613 = vmatmul.f32.gmra.mxu0 %v6521
    %v6614 = vpop.f32.mrf.mxu0
    %v6615 = vadd.f32 %v6592, %v6614
    %6616 = vmatmul.f32.gmra.mxu0 %v6523
    %v6617 = vpop.f32.mrf.mxu0
    %v6618 = vadd.f32 %v6595, %v6617
    %6619 = vdwg.mxu0
    %6620 = vmatpush.msra.mxu0 %v1161
    %6621 = vmatpush.msra.mxu0 %v1160
    %6622 = vmatpush.msra.mxu0 %v1159
    %6623 = vmatpush.msra.mxu0 %v1158
    %6624 = vmatpush.msra.mxu0 %v1157
    %6625 = vmatpush.msra.mxu0 %v1156
    %6626 = vmatpush.msra.mxu0 %v1155
    %6627 = vmatpush.msra.mxu0 %v1154
    %6628 = vmatpush.msra.mxu0 %v1153
    %6629 = vmatpush.msra.mxu0 %v1152
    %6630 = vmatpush.msra.mxu0 %v1151
    %6631 = vmatpush.msra.mxu0 %v1150
    %6632 = vmatpush.msra.mxu0 %v1149
    %6633 = vmatpush.msra.mxu0 %v1148
    %6634 = vmatpush.msra.mxu0 %v1147
    %6635 = vmatpush.msra.mxu0 %v1146
    %6636 = vmatmul.f32.gmra.mxu0 %v6528
    %v6637 = vpop.f32.mrf.mxu0
    %v6638 = vadd.f32 %v6615, %v6637
    %6639 = vmatmul.f32.gmra.mxu0 %v6530
    %v6640 = vpop.f32.mrf.mxu0
    %v6641 = vadd.f32 %v6618, %v6640
    %6642 = vdwg.mxu0
    %6643 = vmatpush.msra.mxu0 %v1177
    %6644 = vmatpush.msra.mxu0 %v1176
    %6645 = vmatpush.msra.mxu0 %v1175
    %6646 = vmatpush.msra.mxu0 %v1174
    %6647 = vmatpush.msra.mxu0 %v1173
    %6648 = vmatpush.msra.mxu0 %v1172
    %6649 = vmatpush.msra.mxu0 %v1171
    %6650 = vmatpush.msra.mxu0 %v1170
    %6651 = vmatpush.msra.mxu0 %v1169
    %6652 = vmatpush.msra.mxu0 %v1168
    %6653 = vmatpush.msra.mxu0 %v1167
    %6654 = vmatpush.msra.mxu0 %v1166
    %6655 = vmatpush.msra.mxu0 %v1165
    %6656 = vmatpush.msra.mxu0 %v1164
    %6657 = vmatpush.msra.mxu0 %v1163
    %6658 = vmatpush.msra.mxu0 %v1162
    %6659 = vmatmul.f32.gmra.mxu0 %v6535
    %v6660 = vpop.f32.mrf.mxu0
    %v6661 = vadd.f32 %v6638, %v6660
    %6662 = vmatmul.f32.gmra.mxu0 %v6537
    %v6663 = vpop.f32.mrf.mxu0
    %v6664 = vadd.f32 %v6641, %v6663
    %6665 = vdwg.mxu0
    %6666 = vmatpush.msra.mxu0 %v1193
    %6667 = vmatpush.msra.mxu0 %v1192
    %6668 = vmatpush.msra.mxu0 %v1191
    %6669 = vmatpush.msra.mxu0 %v1190
    %6670 = vmatpush.msra.mxu0 %v1189
    %6671 = vmatpush.msra.mxu0 %v1188
    %6672 = vmatpush.msra.mxu0 %v1187
    %6673 = vmatpush.msra.mxu0 %v1186
    %6674 = vmatpush.msra.mxu0 %v1185
    %6675 = vmatpush.msra.mxu0 %v1184
    %6676 = vmatpush.msra.mxu0 %v1183
    %6677 = vmatpush.msra.mxu0 %v1182
    %6678 = vmatpush.msra.mxu0 %v1181
    %6679 = vmatpush.msra.mxu0 %v1180
    %6680 = vmatpush.msra.mxu0 %v1179
    %6681 = vmatpush.msra.mxu0 %v1178
    %6682 = vmatmul.f32.gmra.mxu0 %v6542
    %v6683 = vpop.f32.mrf.mxu0
    %v6684 = vadd.f32 %v6661, %v6683
    %6685 = vmatmul.f32.gmra.mxu0 %v6544
    %v6686 = vpop.f32.mrf.mxu0
    %v6687 = vadd.f32 %v6664, %v6686
    %6688 = vdwg.mxu0
    %6689 = vmatpush.msra.mxu0 %v1209
    %6690 = vmatpush.msra.mxu0 %v1208
    %6691 = vmatpush.msra.mxu0 %v1207
    %6692 = vmatpush.msra.mxu0 %v1206
    %6693 = vmatpush.msra.mxu0 %v1205
    %6694 = vmatpush.msra.mxu0 %v1204
    %6695 = vmatpush.msra.mxu0 %v1203
    %6696 = vmatpush.msra.mxu0 %v1202
    %6697 = vmatpush.msra.mxu0 %v1201
    %6698 = vmatpush.msra.mxu0 %v1200
    %6699 = vmatpush.msra.mxu0 %v1199
    %6700 = vmatpush.msra.mxu0 %v1198
    %6701 = vmatpush.msra.mxu0 %v1197
    %6702 = vmatpush.msra.mxu0 %v1196
    %6703 = vmatpush.msra.mxu0 %v1195
    %6704 = vmatpush.msra.mxu0 %v1194
    %6705 = vmatmul.f32.gmra.mxu0 %v6549
    %v6706 = vpop.f32.mrf.mxu0
    %v6707 = vadd.f32 %v6684, %v6706
    %6708 = vmatmul.f32.gmra.mxu0 %v6551
    %v6709 = vpop.f32.mrf.mxu0
    %v6710 = vadd.f32 %v6687, %v6709
    %6711 = vdwg.mxu0
    %6712 = vmatpush.msra.mxu0 %v1225
    %6713 = vmatpush.msra.mxu0 %v1224
    %6714 = vmatpush.msra.mxu0 %v1223
    %6715 = vmatpush.msra.mxu0 %v1222
    %6716 = vmatpush.msra.mxu0 %v1221
    %6717 = vmatpush.msra.mxu0 %v1220
    %6718 = vmatpush.msra.mxu0 %v1219
    %6719 = vmatpush.msra.mxu0 %v1218
    %6720 = vmatpush.msra.mxu0 %v1217
    %6721 = vmatpush.msra.mxu0 %v1216
    %6722 = vmatpush.msra.mxu0 %v1215
    %6723 = vmatpush.msra.mxu0 %v1214
    %6724 = vmatpush.msra.mxu0 %v1213
    %6725 = vmatpush.msra.mxu0 %v1212
    %6726 = vmatpush.msra.mxu0 %v1211
    %6727 = vmatpush.msra.mxu0 %v1210
    %6728 = vmatmul.f32.gmra.mxu0 %v6556
    %v6729 = vpop.f32.mrf.mxu0
    %v6730 = vadd.f32 %v6707, %v6729
    %6731 = vmatmul.f32.gmra.mxu0 %v6558
    %v6732 = vpop.f32.mrf.mxu0
    %v6733 = vadd.f32 %v6710, %v6732
    %6734 = vdwg.mxu0
    %6735 = vmatpush.msra.mxu0 %v1241
    %6736 = vmatpush.msra.mxu0 %v1240
    %6737 = vmatpush.msra.mxu0 %v1239
    %6738 = vmatpush.msra.mxu0 %v1238
    %6739 = vmatpush.msra.mxu0 %v1237
    %6740 = vmatpush.msra.mxu0 %v1236
    %6741 = vmatpush.msra.mxu0 %v1235
    %6742 = vmatpush.msra.mxu0 %v1234
    %6743 = vmatpush.msra.mxu0 %v1233
    %6744 = vmatpush.msra.mxu0 %v1232
    %6745 = vmatpush.msra.mxu0 %v1231
    %6746 = vmatpush.msra.mxu0 %v1230
    %6747 = vmatpush.msra.mxu0 %v1229
    %6748 = vmatpush.msra.mxu0 %v1228
    %6749 = vmatpush.msra.mxu0 %v1227
    %6750 = vmatpush.msra.mxu0 %v1226
    %6751 = vmatmul.f32.gmra.mxu0 %v6563
    %v6752 = vpop.f32.mrf.mxu0
    %v6753 = vadd.f32 %v6730, %v6752
    %6754 = vmatmul.f32.gmra.mxu0 %v6565
    %v6755 = vpop.f32.mrf.mxu0
    %v6756 = vadd.f32 %v6733, %v6755
    %6757 = vdwg.mxu0
    %6758 = vmatpush.msra.mxu0 %v1257
    %6759 = vmatpush.msra.mxu0 %v1256
    %6760 = vmatpush.msra.mxu0 %v1255
    %6761 = vmatpush.msra.mxu0 %v1254
    %6762 = vmatpush.msra.mxu0 %v1253
    %6763 = vmatpush.msra.mxu0 %v1252
    %6764 = vmatpush.msra.mxu0 %v1251
    %6765 = vmatpush.msra.mxu0 %v1250
    %6766 = vmatpush.msra.mxu0 %v1249
    %6767 = vmatpush.msra.mxu0 %v1248
    %6768 = vmatpush.msra.mxu0 %v1247
    %6769 = vmatpush.msra.mxu0 %v1246
    %6770 = vmatpush.msra.mxu0 %v1245
    %6771 = vmatpush.msra.mxu0 %v1244
    %6772 = vmatpush.msra.mxu0 %v1243
    %6773 = vmatpush.msra.mxu0 %v1242
    %6774 = vmatmul.f32.gmra.mxu0 %v6511
    %v6775 = vpop.f32.mrf.mxu0
    %v6776 = vadd.f32 %v6753, %v6775
    %6777 = vmatmul.f32.gmra.mxu0 %v6516
    %v6778 = vpop.f32.mrf.mxu0
    %v6779 = vadd.f32 %v6756, %v6778
    %6780 = vdwg.mxu0
    %6781 = vmatpush.msra.mxu0 %v1273
    %6782 = vmatpush.msra.mxu0 %v1272
    %6783 = vmatpush.msra.mxu0 %v1271
    %6784 = vmatpush.msra.mxu0 %v1270
    %6785 = vmatpush.msra.mxu0 %v1269
    %6786 = vmatpush.msra.mxu0 %v1268
    %6787 = vmatpush.msra.mxu0 %v1267
    %6788 = vmatpush.msra.mxu0 %v1266
    %6789 = vmatpush.msra.mxu0 %v1265
    %6790 = vmatpush.msra.mxu0 %v1264
    %6791 = vmatpush.msra.mxu0 %v1263
    %6792 = vmatpush.msra.mxu0 %v1262
    %6793 = vmatpush.msra.mxu0 %v1261
    %6794 = vmatpush.msra.mxu0 %v1260
    %6795 = vmatpush.msra.mxu0 %v1259
    %6796 = vmatpush.msra.mxu0 %v1258
    %6797 = vmatmul.f32.gmra.mxu0 %v6523
    %v6798 = vpop.f32.mrf.mxu0
    %v6799 = vadd.f32 %v6776, %v6798
    %6800 = vmatmul.f32.gmra.mxu0 %v6568
    %v6801 = vpop.f32.mrf.mxu0
    %v6802 = vadd.f32 %v6779, %v6801
    %6803 = vdwg.mxu0
    %6804 = vmatpush.msra.mxu0 %v1289
    %6805 = vmatpush.msra.mxu0 %v1288
    %6806 = vmatpush.msra.mxu0 %v1287
    %6807 = vmatpush.msra.mxu0 %v1286
    %6808 = vmatpush.msra.mxu0 %v1285
    %6809 = vmatpush.msra.mxu0 %v1284
    %6810 = vmatpush.msra.mxu0 %v1283
    %6811 = vmatpush.msra.mxu0 %v1282
    %6812 = vmatpush.msra.mxu0 %v1281
    %6813 = vmatpush.msra.mxu0 %v1280
    %6814 = vmatpush.msra.mxu0 %v1279
    %6815 = vmatpush.msra.mxu0 %v1278
    %6816 = vmatpush.msra.mxu0 %v1277
    %6817 = vmatpush.msra.mxu0 %v1276
    %6818 = vmatpush.msra.mxu0 %v1275
    %6819 = vmatpush.msra.mxu0 %v1274
    %6820 = vmatmul.f32.gmra.mxu0 %v6530
    %v6821 = vpop.f32.mrf.mxu0
    %v6822 = vadd.f32 %v6799, %v6821
    %6823 = vmatmul.f32.gmra.mxu0 %v6570
    %v6824 = vpop.f32.mrf.mxu0
    %v6825 = vadd.f32 %v6802, %v6824
    %6826 = vdwg.mxu0
    %6827 = vmatpush.msra.mxu0 %v1305
    %6828 = vmatpush.msra.mxu0 %v1304
    %6829 = vmatpush.msra.mxu0 %v1303
    %6830 = vmatpush.msra.mxu0 %v1302
    %6831 = vmatpush.msra.mxu0 %v1301
    %6832 = vmatpush.msra.mxu0 %v1300
    %6833 = vmatpush.msra.mxu0 %v1299
    %6834 = vmatpush.msra.mxu0 %v1298
    %6835 = vmatpush.msra.mxu0 %v1297
    %6836 = vmatpush.msra.mxu0 %v1296
    %6837 = vmatpush.msra.mxu0 %v1295
    %6838 = vmatpush.msra.mxu0 %v1294
    %6839 = vmatpush.msra.mxu0 %v1293
    %6840 = vmatpush.msra.mxu0 %v1292
    %6841 = vmatpush.msra.mxu0 %v1291
    %6842 = vmatpush.msra.mxu0 %v1290
    %6843 = vmatmul.f32.gmra.mxu0 %v6537
    %v6844 = vpop.f32.mrf.mxu0
    %v6845 = vadd.f32 %v6822, %v6844
    %6846 = vmatmul.f32.gmra.mxu0 %v6572
    %v6847 = vpop.f32.mrf.mxu0
    %v6848 = vadd.f32 %v6825, %v6847
    %6849 = vdwg.mxu0
    %v6850 = vmax.f32 %v6845, 0.0
    %v6851 = vmax.f32 %v6848, 0.0
    %v6852 = vadd.f32 %v6850, %v6851
    %v6853 = vrot.slane %v6852, 4
    %v6854 = vadd.f32 %v6852, %v6853
    %v6855 = vrot.slane %v6854, 2
    %v6856 = vadd.f32 %v6854, %v6855
    %v6857 = vrot.slane %v6856, 1
    %v6858 = vadd.f32 %v6856, %v6857
    %v6859 = vmul.f32 %v6858, %v958
    %6860 = vmatpush.msra.mxu0 %v1611
    %6861 = vmatpush.msra.mxu0 %v1610
    %6862 = vmatpush.msra.mxu0 %v1609
    %6863 = vmatpush.msra.mxu0 %v1608
    %6864 = vmatpush.msra.mxu0 %v1607
    %6865 = vmatpush.msra.mxu0 %v1606
    %6866 = vmatpush.msra.mxu0 %v1605
    %6867 = vmatpush.msra.mxu0 %v1604
    %6868 = vmatpush.msra.mxu0 %v1603
    %6869 = vmatpush.msra.mxu0 %v1602
    %6870 = vmatpush.msra.mxu0 %v1601
    %6871 = vmatpush.msra.mxu0 %v1600
    %6872 = vmatpush.msra.mxu0 %v1599
    %6873 = vmatpush.msra.mxu0 %v1598
    %6874 = vmatpush.msra.mxu0 %v1597
    %6875 = vmatpush.msra.mxu0 %v1596
    %6876 = vmatmul.f32.gmra.mxu0 %v6859
    %v6877 = vpop.f32.mrf.mxu0
    %v6878 = vadd.f32 0.0, %v6877
    %6879 = vdwg.mxu0
    %v6880 = vmax.f32 %v6878, 0.0
    %v6882 = vsel %vm998, %v6880, 0
    %6884 = vmatpush.msra.mxu0 0.0
    %6885 = vmatpush.msra.mxu0 0.0
    %6886 = vmatpush.msra.mxu0 0.0
    %6887 = vmatpush.msra.mxu0 0.0
    %6888 = vmatpush.msra.mxu0 0.0
    %6889 = vmatpush.msra.mxu0 0.0
    %6890 = vmatpush.msra.mxu0 0.0
    %6891 = vmatpush.msra.mxu0 0.0
    %6892 = vmatpush.msra.mxu0 0.0
    %6893 = vmatpush.msra.mxu0 0.0
    %6894 = vmatpush.msra.mxu0 0.0
    %6895 = vmatpush.msra.mxu0 0.0
    %6896 = vmatpush.msra.mxu0 0.0
    %6897 = vmatpush.msra.mxu0 0.0
    %6898 = vmatpush.msra.mxu0 0.0
    %6899 = vmatpush.msra.mxu0 %v1638
    %6900 = vmatmul.f32.gmra.mxu0 %v6882
    %v6901 = vpop.f32.mrf.mxu0
    %v6902 = vadd.f32 0.0, %v6901
    %6903 = vdwg.mxu0
    %v6904 = vxor.u32 %v6902, 2147483648
    %v6905 = vmul.f32 %v6904, 1.442695
    %v6906 = vpow.pop %v6905
    %v6907 = vadd.f32 %v6906, 1.0
    %v6908 = vrcp.pop %v6907
    %v6909 = vmul.f32 %v6907, %v6908
    %v6910 = vsub.f32 1.0, %v6909
    %v6911 = vmul.f32 %v6908, %v6910
    %v6912 = vadd.f32 %v6908, %v6911
    %vm6913 = vweird.f32 %v6907
    %vm6914 = vweird.f32 %v6908
    %vm6915 = vmor %vm6913, %vm6914
    %v6916 = vsel %vm6915, %v6908, %v6912
    %v6917 = vand.u32 2147483647, %v6907
    %vm6918 = vcmp.eq.f32.partialorder %v6917, 8.507059e+37
    %v6919 = vand.u32 %v6907, 2147483648
    %v6920 = vor.u32 1.1754944e-38, %v6919
    %v6921 = vsel %vm6918, %v6920, %v6916
    %v6922 = vmul.f32 1.0, %v6921
    %v6923 = vperm.slane %v6922, 0
    %v6924 = vmul.f32 %v6850, %v6923
    %v6925 = vmul.f32 %v6851, %v6923
    %v6928 = vrot.slane %v6924, 7
    %v6929 = vrot.slane %v6925, 7
    %v6930 = vsel %vm453, %v6928, %v6929
    %v6934 = vsel %vm453, 0.0, %v6928
    %v6935 = vsel %vm453, %v6929, 0.0
    %v6938 = vrot.slane %v6934, 1
    %v6939 = vrot.slane %v6930, 1
    %v6940 = vsel %vm406, %v6938, %v6939
    %v6941 = vrot.slane %v6935, 1
    %v6942 = vsel %vm406, %v6939, %v6941
    %v6945 = vmax.f32 %v6934, %v6940
    %v6946 = vmax.f32 %v6930, %v6942
    %v6947 = vrot.slane %v6934, 2
    %v6948 = vrot.slane %v6930, 2
    %v6949 = vsel %vm414, %v6947, %v6948
    %v6950 = vrot.slane %v6935, 2
    %v6951 = vsel %vm414, %v6948, %v6950
    %v6954 = vmax.f32 %v6945, %v6949
    %v6955 = vmax.f32 %v6946, %v6951
    %v6958 = vrot.slane %v6954, 2
    %v6959 = vrot.slane %v6954, 4
    %v6960 = vrot.slane %v6954, 6
    %v6961 = vrot.slane %v6955, 2
    %v6962 = vrot.slane %v6955, 4
    %v6963 = vrot.slane %v6955, 6
    %v6964 = vperm.slane %v6954, 0
    %v6965 = vperm.slane %v6958, 0
    %v6966 = vperm.slane %v6959, 0
    %v6967 = vperm.slane %v6960, 0
    %v6968 = vperm.slane %v6955, 0
    %v6969 = vperm.slane %v6961, 0
    %v6970 = vperm.slane %v6962, 0
    %v6971 = vperm.slane %v6963, 0
    %v6972 = vsel %vm1728, %v6965, %v6964
    %v6973 = vsel %vm1730, %v6966, %v6972
    %v6974 = vsel %vm1732, %v6968, %v6967
    %v6975 = vsel %vm1734, %v6969, %v6974
    %v6976 = vsel %vm1736, %v6970, %v6975
    %v6977 = vsel %vm1738, %v6971, %v6976
    %v6980 = vsel %vm395, 0.0, %v6973
    %v6981 = vsel %vm395, %v6977, 0.0
    %v6984 = vrot.slane %v6980, 1
    %v6985 = vrot.slane %v6981, 1
    %v6986 = vsel %vm406, %v6984, %v6985
    %v6988 = vrot.slane %v6980, 2
    %v6989 = vrot.slane %v6981, 2
    %v6990 = vsel %vm414, %v6988, %v6989
    %v6992 = vrot.slane %v6980, 3
    %v6993 = vrot.slane %v6981, 3
    %v6994 = vsel %vm395, %v6992, %v6993
    %v6996 = vrot.slane %v6980, 4
    %v6997 = vrot.slane %v6981, 4
    %v6998 = vsel %vm429, %v6996, %v6997
    %v7000 = vrot.slane %v6980, 5
    %v7001 = vrot.slane %v6981, 5
    %v7002 = vsel %vm437, %v7000, %v7001
    %v7004 = vrot.slane %v6980, 6
    %v7005 = vrot.slane %v6981, 6
    %v7006 = vsel %vm445, %v7004, %v7005
    %v7008 = vrot.slane %v6980, 7
    %v7009 = vrot.slane %v6981, 7
    %v7010 = vsel %vm453, %v7008, %v7009
    %v7012 = vsel %vm406, %v6985, %v462
    %v7014 = vsel %vm414, %v6989, %v465
    %v7016 = vsel %vm395, %v6993, %v468
    %7018 = vmatpush.msra.mxu0 %v1795
    %7019 = vmatpush.msra.mxu0 %v1794
    %7020 = vmatpush.msra.mxu0 %v1793
    %7021 = vmatpush.msra.mxu0 %v1792
    %7022 = vmatpush.msra.mxu0 %v1791
    %7023 = vmatpush.msra.mxu0 %v1790
    %7024 = vmatpush.msra.mxu0 %v1789
    %7025 = vmatpush.msra.mxu0 %v1788
    %7026 = vmatpush.msra.mxu0 %v1787
    %7027 = vmatpush.msra.mxu0 %v1786
    %7028 = vmatpush.msra.mxu0 %v1785
    %7029 = vmatpush.msra.mxu0 %v1784
    %7030 = vmatpush.msra.mxu0 %v1783
    %7031 = vmatpush.msra.mxu0 %v1782
    %7032 = vmatpush.msra.mxu0 %v1781
    %7033 = vmatpush.msra.mxu0 %v1780
    %7034 = vmatmul.f32.gmra.mxu0 %v6980
    %v7035 = vpop.f32.mrf.mxu0
    %v7036 = vadd.f32 %v1974, %v7035
    %7037 = vdwg.mxu0
    %7038 = vmatpush.msra.mxu0 %v1811
    %7039 = vmatpush.msra.mxu0 %v1810
    %7040 = vmatpush.msra.mxu0 %v1809
    %7041 = vmatpush.msra.mxu0 %v1808
    %7042 = vmatpush.msra.mxu0 %v1807
    %7043 = vmatpush.msra.mxu0 %v1806
    %7044 = vmatpush.msra.mxu0 %v1805
    %7045 = vmatpush.msra.mxu0 %v1804
    %7046 = vmatpush.msra.mxu0 %v1803
    %7047 = vmatpush.msra.mxu0 %v1802
    %7048 = vmatpush.msra.mxu0 %v1801
    %7049 = vmatpush.msra.mxu0 %v1800
    %7050 = vmatpush.msra.mxu0 %v1799
    %7051 = vmatpush.msra.mxu0 %v1798
    %7052 = vmatpush.msra.mxu0 %v1797
    %7053 = vmatpush.msra.mxu0 %v1796
    %7054 = vmatmul.f32.gmra.mxu0 %v6986
    %v7055 = vpop.f32.mrf.mxu0
    %v7056 = vadd.f32 %v7036, %v7055
    %7057 = vdwg.mxu0
    %7058 = vmatpush.msra.mxu0 %v1827
    %7059 = vmatpush.msra.mxu0 %v1826
    %7060 = vmatpush.msra.mxu0 %v1825
    %7061 = vmatpush.msra.mxu0 %v1824
    %7062 = vmatpush.msra.mxu0 %v1823
    %7063 = vmatpush.msra.mxu0 %v1822
    %7064 = vmatpush.msra.mxu0 %v1821
    %7065 = vmatpush.msra.mxu0 %v1820
    %7066 = vmatpush.msra.mxu0 %v1819
    %7067 = vmatpush.msra.mxu0 %v1818
    %7068 = vmatpush.msra.mxu0 %v1817
    %7069 = vmatpush.msra.mxu0 %v1816
    %7070 = vmatpush.msra.mxu0 %v1815
    %7071 = vmatpush.msra.mxu0 %v1814
    %7072 = vmatpush.msra.mxu0 %v1813
    %7073 = vmatpush.msra.mxu0 %v1812
    %7074 = vmatmul.f32.gmra.mxu0 %v6990
    %v7075 = vpop.f32.mrf.mxu0
    %v7076 = vadd.f32 %v7056, %v7075
    %7077 = vdwg.mxu0
    %7078 = vmatpush.msra.mxu0 %v1843
    %7079 = vmatpush.msra.mxu0 %v1842
    %7080 = vmatpush.msra.mxu0 %v1841
    %7081 = vmatpush.msra.mxu0 %v1840
    %7082 = vmatpush.msra.mxu0 %v1839
    %7083 = vmatpush.msra.mxu0 %v1838
    %7084 = vmatpush.msra.mxu0 %v1837
    %7085 = vmatpush.msra.mxu0 %v1836
    %7086 = vmatpush.msra.mxu0 %v1835
    %7087 = vmatpush.msra.mxu0 %v1834
    %7088 = vmatpush.msra.mxu0 %v1833
    %7089 = vmatpush.msra.mxu0 %v1832
    %7090 = vmatpush.msra.mxu0 %v1831
    %7091 = vmatpush.msra.mxu0 %v1830
    %7092 = vmatpush.msra.mxu0 %v1829
    %7093 = vmatpush.msra.mxu0 %v1828
    %7094 = vmatmul.f32.gmra.mxu0 %v6994
    %v7095 = vpop.f32.mrf.mxu0
    %v7096 = vadd.f32 %v7076, %v7095
    %7097 = vdwg.mxu0
    %7098 = vmatpush.msra.mxu0 %v1859
    %7099 = vmatpush.msra.mxu0 %v1858
    %7100 = vmatpush.msra.mxu0 %v1857
    %7101 = vmatpush.msra.mxu0 %v1856
    %7102 = vmatpush.msra.mxu0 %v1855
    %7103 = vmatpush.msra.mxu0 %v1854
    %7104 = vmatpush.msra.mxu0 %v1853
    %7105 = vmatpush.msra.mxu0 %v1852
    %7106 = vmatpush.msra.mxu0 %v1851
    %7107 = vmatpush.msra.mxu0 %v1850
    %7108 = vmatpush.msra.mxu0 %v1849
    %7109 = vmatpush.msra.mxu0 %v1848
    %7110 = vmatpush.msra.mxu0 %v1847
    %7111 = vmatpush.msra.mxu0 %v1846
    %7112 = vmatpush.msra.mxu0 %v1845
    %7113 = vmatpush.msra.mxu0 %v1844
    %7114 = vmatmul.f32.gmra.mxu0 %v6998
    %v7115 = vpop.f32.mrf.mxu0
    %v7116 = vadd.f32 %v7096, %v7115
    %7117 = vdwg.mxu0
    %7118 = vmatpush.msra.mxu0 %v1875
    %7119 = vmatpush.msra.mxu0 %v1874
    %7120 = vmatpush.msra.mxu0 %v1873
    %7121 = vmatpush.msra.mxu0 %v1872
    %7122 = vmatpush.msra.mxu0 %v1871
    %7123 = vmatpush.msra.mxu0 %v1870
    %7124 = vmatpush.msra.mxu0 %v1869
    %7125 = vmatpush.msra.mxu0 %v1868
    %7126 = vmatpush.msra.mxu0 %v1867
    %7127 = vmatpush.msra.mxu0 %v1866
    %7128 = vmatpush.msra.mxu0 %v1865
    %7129 = vmatpush.msra.mxu0 %v1864
    %7130 = vmatpush.msra.mxu0 %v1863
    %7131 = vmatpush.msra.mxu0 %v1862
    %7132 = vmatpush.msra.mxu0 %v1861
    %7133 = vmatpush.msra.mxu0 %v1860
    %7134 = vmatmul.f32.gmra.mxu0 %v7002
    %v7135 = vpop.f32.mrf.mxu0
    %v7136 = vadd.f32 %v7116, %v7135
    %7137 = vdwg.mxu0
    %7138 = vmatpush.msra.mxu0 %v1891
    %7139 = vmatpush.msra.mxu0 %v1890
    %7140 = vmatpush.msra.mxu0 %v1889
    %7141 = vmatpush.msra.mxu0 %v1888
    %7142 = vmatpush.msra.mxu0 %v1887
    %7143 = vmatpush.msra.mxu0 %v1886
    %7144 = vmatpush.msra.mxu0 %v1885
    %7145 = vmatpush.msra.mxu0 %v1884
    %7146 = vmatpush.msra.mxu0 %v1883
    %7147 = vmatpush.msra.mxu0 %v1882
    %7148 = vmatpush.msra.mxu0 %v1881
    %7149 = vmatpush.msra.mxu0 %v1880
    %7150 = vmatpush.msra.mxu0 %v1879
    %7151 = vmatpush.msra.mxu0 %v1878
    %7152 = vmatpush.msra.mxu0 %v1877
    %7153 = vmatpush.msra.mxu0 %v1876
    %7154 = vmatmul.f32.gmra.mxu0 %v7006
    %v7155 = vpop.f32.mrf.mxu0
    %v7156 = vadd.f32 %v7136, %v7155
    %7157 = vdwg.mxu0
    %7158 = vmatpush.msra.mxu0 %v1907
    %7159 = vmatpush.msra.mxu0 %v1906
    %7160 = vmatpush.msra.mxu0 %v1905
    %7161 = vmatpush.msra.mxu0 %v1904
    %7162 = vmatpush.msra.mxu0 %v1903
    %7163 = vmatpush.msra.mxu0 %v1902
    %7164 = vmatpush.msra.mxu0 %v1901
    %7165 = vmatpush.msra.mxu0 %v1900
    %7166 = vmatpush.msra.mxu0 %v1899
    %7167 = vmatpush.msra.mxu0 %v1898
    %7168 = vmatpush.msra.mxu0 %v1897
    %7169 = vmatpush.msra.mxu0 %v1896
    %7170 = vmatpush.msra.mxu0 %v1895
    %7171 = vmatpush.msra.mxu0 %v1894
    %7172 = vmatpush.msra.mxu0 %v1893
    %7173 = vmatpush.msra.mxu0 %v1892
    %7174 = vmatmul.f32.gmra.mxu0 %v7010
    %v7175 = vpop.f32.mrf.mxu0
    %v7176 = vadd.f32 %v7156, %v7175
    %7177 = vdwg.mxu0
    %7178 = vmatpush.msra.mxu0 %v1923
    %7179 = vmatpush.msra.mxu0 %v1922
    %7180 = vmatpush.msra.mxu0 %v1921
    %7181 = vmatpush.msra.mxu0 %v1920
    %7182 = vmatpush.msra.mxu0 %v1919
    %7183 = vmatpush.msra.mxu0 %v1918
    %7184 = vmatpush.msra.mxu0 %v1917
    %7185 = vmatpush.msra.mxu0 %v1916
    %7186 = vmatpush.msra.mxu0 %v1915
    %7187 = vmatpush.msra.mxu0 %v1914
    %7188 = vmatpush.msra.mxu0 %v1913
    %7189 = vmatpush.msra.mxu0 %v1912
    %7190 = vmatpush.msra.mxu0 %v1911
    %7191 = vmatpush.msra.mxu0 %v1910
    %7192 = vmatpush.msra.mxu0 %v1909
    %7193 = vmatpush.msra.mxu0 %v1908
    %7194 = vmatmul.f32.gmra.mxu0 %v6981
    %v7195 = vpop.f32.mrf.mxu0
    %v7196 = vadd.f32 %v7176, %v7195
    %7197 = vdwg.mxu0
    %7198 = vmatpush.msra.mxu0 %v1939
    %7199 = vmatpush.msra.mxu0 %v1938
    %7200 = vmatpush.msra.mxu0 %v1937
    %7201 = vmatpush.msra.mxu0 %v1936
    %7202 = vmatpush.msra.mxu0 %v1935
    %7203 = vmatpush.msra.mxu0 %v1934
    %7204 = vmatpush.msra.mxu0 %v1933
    %7205 = vmatpush.msra.mxu0 %v1932
    %7206 = vmatpush.msra.mxu0 %v1931
    %7207 = vmatpush.msra.mxu0 %v1930
    %7208 = vmatpush.msra.mxu0 %v1929
    %7209 = vmatpush.msra.mxu0 %v1928
    %7210 = vmatpush.msra.mxu0 %v1927
    %7211 = vmatpush.msra.mxu0 %v1926
    %7212 = vmatpush.msra.mxu0 %v1925
    %7213 = vmatpush.msra.mxu0 %v1924
    %7214 = vmatmul.f32.gmra.mxu0 %v7012
    %v7215 = vpop.f32.mrf.mxu0
    %v7216 = vadd.f32 %v7196, %v7215
    %7217 = vdwg.mxu0
    %7218 = vmatpush.msra.mxu0 %v1955
    %7219 = vmatpush.msra.mxu0 %v1954
    %7220 = vmatpush.msra.mxu0 %v1953
    %7221 = vmatpush.msra.mxu0 %v1952
    %7222 = vmatpush.msra.mxu0 %v1951
    %7223 = vmatpush.msra.mxu0 %v1950
    %7224 = vmatpush.msra.mxu0 %v1949
    %7225 = vmatpush.msra.mxu0 %v1948
    %7226 = vmatpush.msra.mxu0 %v1947
    %7227 = vmatpush.msra.mxu0 %v1946
    %7228 = vmatpush.msra.mxu0 %v1945
    %7229 = vmatpush.msra.mxu0 %v1944
    %7230 = vmatpush.msra.mxu0 %v1943
    %7231 = vmatpush.msra.mxu0 %v1942
    %7232 = vmatpush.msra.mxu0 %v1941
    %7233 = vmatpush.msra.mxu0 %v1940
    %7234 = vmatmul.f32.gmra.mxu0 %v7014
    %v7235 = vpop.f32.mrf.mxu0
    %v7236 = vadd.f32 %v7216, %v7235
    %7237 = vdwg.mxu0
    %7238 = vmatpush.msra.mxu0 %v1971
    %7239 = vmatpush.msra.mxu0 %v1970
    %7240 = vmatpush.msra.mxu0 %v1969
    %7241 = vmatpush.msra.mxu0 %v1968
    %7242 = vmatpush.msra.mxu0 %v1967
    %7243 = vmatpush.msra.mxu0 %v1966
    %7244 = vmatpush.msra.mxu0 %v1965
    %7245 = vmatpush.msra.mxu0 %v1964
    %7246 = vmatpush.msra.mxu0 %v1963
    %7247 = vmatpush.msra.mxu0 %v1962
    %7248 = vmatpush.msra.mxu0 %v1961
    %7249 = vmatpush.msra.mxu0 %v1960
    %7250 = vmatpush.msra.mxu0 %v1959
    %7251 = vmatpush.msra.mxu0 %v1958
    %7252 = vmatpush.msra.mxu0 %v1957
    %7253 = vmatpush.msra.mxu0 %v1956
    %7254 = vmatmul.f32.gmra.mxu0 %v7016
    %v7255 = vpop.f32.mrf.mxu0
    %v7256 = vadd.f32 %v7236, %v7255
    %7257 = vdwg.mxu0
    %v7258 = vmax.f32 %v7256, 0.0
    %v7259 = vrot.slane %v7258, 4
    %v7260 = vadd.f32 %v7258, %v7259
    %v7261 = vrot.slane %v7260, 2
    %v7262 = vadd.f32 %v7260, %v7261
    %v7263 = vrot.slane %v7262, 1
    %v7264 = vadd.f32 %v7262, %v7263
    %v7265 = vmul.f32 %v7264, %v2229
    %7266 = vmatpush.msra.mxu0 %v2246
    %7267 = vmatpush.msra.mxu0 %v2245
    %7268 = vmatpush.msra.mxu0 %v2244
    %7269 = vmatpush.msra.mxu0 %v2243
    %7270 = vmatpush.msra.mxu0 %v2242
    %7271 = vmatpush.msra.mxu0 %v2241
    %7272 = vmatpush.msra.mxu0 %v2240
    %7273 = vmatpush.msra.mxu0 %v2239
    %7274 = vmatpush.msra.mxu0 %v2238
    %7275 = vmatpush.msra.mxu0 %v2237
    %7276 = vmatpush.msra.mxu0 %v2236
    %7277 = vmatpush.msra.mxu0 %v2235
    %7278 = vmatpush.msra.mxu0 %v2234
    %7279 = vmatpush.msra.mxu0 %v2233
    %7280 = vmatpush.msra.mxu0 %v2232
    %7281 = vmatpush.msra.mxu0 %v2231
    %7282 = vmatmul.f32.gmra.mxu0 %v7265
    %v7283 = vpop.f32.mrf.mxu0
    %v7284 = vadd.f32 0.0, %v7283
    %7285 = vdwg.mxu0
    %v7286 = vmax.f32 %v7284, 0.0
    %v7288 = vsel %vm2269, %v7286, 0
    %7290 = vmatpush.msra.mxu0 0.0
    %7291 = vmatpush.msra.mxu0 0.0
    %7292 = vmatpush.msra.mxu0 0.0
    %7293 = vmatpush.msra.mxu0 0.0
    %7294 = vmatpush.msra.mxu0 0.0
    %7295 = vmatpush.msra.mxu0 0.0
    %7296 = vmatpush.msra.mxu0 0.0
    %7297 = vmatpush.msra.mxu0 0.0
    %7298 = vmatpush.msra.mxu0 0.0
    %7299 = vmatpush.msra.mxu0 0.0
    %7300 = vmatpush.msra.mxu0 0.0
    %7301 = vmatpush.msra.mxu0 0.0
    %7302 = vmatpush.msra.mxu0 0.0
    %7303 = vmatpush.msra.mxu0 0.0
    %7304 = vmatpush.msra.mxu0 0.0
    %7305 = vmatpush.msra.mxu0 %v2274
    %7306 = vmatmul.f32.gmra.mxu0 %v7288
    %v7307 = vpop.f32.mrf.mxu0
    %v7308 = vadd.f32 0.0, %v7307
    %7309 = vdwg.mxu0
    %v7310 = vxor.u32 %v7308, 2147483648
    %v7311 = vmul.f32 %v7310, 1.442695
    %v7312 = vpow.pop %v7311
    %v7313 = vadd.f32 %v7312, 1.0
    %v7314 = vrcp.pop %v7313
    %v7315 = vmul.f32 %v7313, %v7314
    %v7316 = vsub.f32 1.0, %v7315
    %v7317 = vmul.f32 %v7314, %v7316
    %v7318 = vadd.f32 %v7314, %v7317
    %vm7319 = vweird.f32 %v7313
    %vm7320 = vweird.f32 %v7314
    %vm7321 = vmor %vm7319, %vm7320
    %v7322 = vsel %vm7321, %v7314, %v7318
    %v7323 = vand.u32 2147483647, %v7313
    %vm7324 = vcmp.eq.f32.partialorder %v7323, 8.507059e+37
    %v7325 = vand.u32 %v7313, 2147483648
    %v7326 = vor.u32 1.1754944e-38, %v7325
    %v7327 = vsel %vm7324, %v7326, %v7322
    %v7328 = vmul.f32 1.0, %v7327
    %v7329 = vperm.slane %v7328, 0
    %v7330 = vmul.f32 %v7258, %v7329
    %v7332 = vrot.slane %v7330, 3
    %v7334 = vsel %vm395, 0.0, %v7332
    %v7335 = vsel %vm395, %v7332, 0.0
    %v7338 = vrot.slane %v7334, 1
    %v7339 = vrot.slane %v7335, 1
    %v7340 = vsel %vm406, %v7338, %v7339
    %v7342 = vrot.slane %v7334, 2
    %v7343 = vrot.slane %v7335, 2
    %v7344 = vsel %vm414, %v7342, %v7343
    %v7346 = vrot.slane %v7334, 3
    %v7347 = vrot.slane %v7335, 3
    %v7348 = vsel %vm395, %v7346, %v7347
    %v7350 = vrot.slane %v7334, 4
    %v7351 = vrot.slane %v7335, 4
    %v7352 = vsel %vm429, %v7350, %v7351
    %v7354 = vrot.slane %v7334, 5
    %v7355 = vrot.slane %v7335, 5
    %v7356 = vsel %vm437, %v7354, %v7355
    %v7358 = vrot.slane %v7334, 6
    %v7359 = vrot.slane %v7335, 6
    %v7360 = vsel %vm445, %v7358, %v7359
    %v7362 = vrot.slane %v7334, 7
    %v7363 = vrot.slane %v7335, 7
    %v7364 = vsel %vm453, %v7362, %v7363
    %v7366 = vsel %vm406, %v7339, %v462
    %v7368 = vsel %vm414, %v7343, %v465
    %v7370 = vsel %vm395, %v7347, %v468
    %7372 = vmatpush.msra.mxu0 %v2373
    %7373 = vmatpush.msra.mxu0 %v2372
    %7374 = vmatpush.msra.mxu0 %v2371
    %7375 = vmatpush.msra.mxu0 %v2370
    %7376 = vmatpush.msra.mxu0 %v2369
    %7377 = vmatpush.msra.mxu0 %v2368
    %7378 = vmatpush.msra.mxu0 %v2367
    %7379 = vmatpush.msra.mxu0 %v2366
    %7380 = vmatpush.msra.mxu0 %v2365
    %7381 = vmatpush.msra.mxu0 %v2364
    %7382 = vmatpush.msra.mxu0 %v2363
    %7383 = vmatpush.msra.mxu0 %v2362
    %7384 = vmatpush.msra.mxu0 %v2361
    %7385 = vmatpush.msra.mxu0 %v2360
    %7386 = vmatpush.msra.mxu0 %v2359
    %7387 = vmatpush.msra.mxu0 %v2358
    %7388 = vmatmul.f32.gmra.mxu0 %v7334
    %v7389 = vpop.f32.mrf.mxu0
    %v7390 = vadd.f32 %v2552, %v7389
    %7391 = vdwg.mxu0
    %7392 = vmatpush.msra.mxu0 %v2389
    %7393 = vmatpush.msra.mxu0 %v2388
    %7394 = vmatpush.msra.mxu0 %v2387
    %7395 = vmatpush.msra.mxu0 %v2386
    %7396 = vmatpush.msra.mxu0 %v2385
    %7397 = vmatpush.msra.mxu0 %v2384
    %7398 = vmatpush.msra.mxu0 %v2383
    %7399 = vmatpush.msra.mxu0 %v2382
    %7400 = vmatpush.msra.mxu0 %v2381
    %7401 = vmatpush.msra.mxu0 %v2380
    %7402 = vmatpush.msra.mxu0 %v2379
    %7403 = vmatpush.msra.mxu0 %v2378
    %7404 = vmatpush.msra.mxu0 %v2377
    %7405 = vmatpush.msra.mxu0 %v2376
    %7406 = vmatpush.msra.mxu0 %v2375
    %7407 = vmatpush.msra.mxu0 %v2374
    %7408 = vmatmul.f32.gmra.mxu0 %v7340
    %v7409 = vpop.f32.mrf.mxu0
    %v7410 = vadd.f32 %v7390, %v7409
    %7411 = vdwg.mxu0
    %7412 = vmatpush.msra.mxu0 %v2405
    %7413 = vmatpush.msra.mxu0 %v2404
    %7414 = vmatpush.msra.mxu0 %v2403
    %7415 = vmatpush.msra.mxu0 %v2402
    %7416 = vmatpush.msra.mxu0 %v2401
    %7417 = vmatpush.msra.mxu0 %v2400
    %7418 = vmatpush.msra.mxu0 %v2399
    %7419 = vmatpush.msra.mxu0 %v2398
    %7420 = vmatpush.msra.mxu0 %v2397
    %7421 = vmatpush.msra.mxu0 %v2396
    %7422 = vmatpush.msra.mxu0 %v2395
    %7423 = vmatpush.msra.mxu0 %v2394
    %7424 = vmatpush.msra.mxu0 %v2393
    %7425 = vmatpush.msra.mxu0 %v2392
    %7426 = vmatpush.msra.mxu0 %v2391
    %7427 = vmatpush.msra.mxu0 %v2390
    %7428 = vmatmul.f32.gmra.mxu0 %v7344
    %v7429 = vpop.f32.mrf.mxu0
    %v7430 = vadd.f32 %v7410, %v7429
    %7431 = vdwg.mxu0
    %7432 = vmatpush.msra.mxu0 %v2421
    %7433 = vmatpush.msra.mxu0 %v2420
    %7434 = vmatpush.msra.mxu0 %v2419
    %7435 = vmatpush.msra.mxu0 %v2418
    %7436 = vmatpush.msra.mxu0 %v2417
    %7437 = vmatpush.msra.mxu0 %v2416
    %7438 = vmatpush.msra.mxu0 %v2415
    %7439 = vmatpush.msra.mxu0 %v2414
    %7440 = vmatpush.msra.mxu0 %v2413
    %7441 = vmatpush.msra.mxu0 %v2412
    %7442 = vmatpush.msra.mxu0 %v2411
    %7443 = vmatpush.msra.mxu0 %v2410
    %7444 = vmatpush.msra.mxu0 %v2409
    %7445 = vmatpush.msra.mxu0 %v2408
    %7446 = vmatpush.msra.mxu0 %v2407
    %7447 = vmatpush.msra.mxu0 %v2406
    %7448 = vmatmul.f32.gmra.mxu0 %v7348
    %v7449 = vpop.f32.mrf.mxu0
    %v7450 = vadd.f32 %v7430, %v7449
    %7451 = vdwg.mxu0
    %7452 = vmatpush.msra.mxu0 %v2437
    %7453 = vmatpush.msra.mxu0 %v2436
    %7454 = vmatpush.msra.mxu0 %v2435
    %7455 = vmatpush.msra.mxu0 %v2434
    %7456 = vmatpush.msra.mxu0 %v2433
    %7457 = vmatpush.msra.mxu0 %v2432
    %7458 = vmatpush.msra.mxu0 %v2431
    %7459 = vmatpush.msra.mxu0 %v2430
    %7460 = vmatpush.msra.mxu0 %v2429
    %7461 = vmatpush.msra.mxu0 %v2428
    %7462 = vmatpush.msra.mxu0 %v2427
    %7463 = vmatpush.msra.mxu0 %v2426
    %7464 = vmatpush.msra.mxu0 %v2425
    %7465 = vmatpush.msra.mxu0 %v2424
    %7466 = vmatpush.msra.mxu0 %v2423
    %7467 = vmatpush.msra.mxu0 %v2422
    %7468 = vmatmul.f32.gmra.mxu0 %v7352
    %v7469 = vpop.f32.mrf.mxu0
    %v7470 = vadd.f32 %v7450, %v7469
    %7471 = vdwg.mxu0
    %7472 = vmatpush.msra.mxu0 %v2453
    %7473 = vmatpush.msra.mxu0 %v2452
    %7474 = vmatpush.msra.mxu0 %v2451
    %7475 = vmatpush.msra.mxu0 %v2450
    %7476 = vmatpush.msra.mxu0 %v2449
    %7477 = vmatpush.msra.mxu0 %v2448
    %7478 = vmatpush.msra.mxu0 %v2447
    %7479 = vmatpush.msra.mxu0 %v2446
    %7480 = vmatpush.msra.mxu0 %v2445
    %7481 = vmatpush.msra.mxu0 %v2444
    %7482 = vmatpush.msra.mxu0 %v2443
    %7483 = vmatpush.msra.mxu0 %v2442
    %7484 = vmatpush.msra.mxu0 %v2441
    %7485 = vmatpush.msra.mxu0 %v2440
    %7486 = vmatpush.msra.mxu0 %v2439
    %7487 = vmatpush.msra.mxu0 %v2438
    %7488 = vmatmul.f32.gmra.mxu0 %v7356
    %v7489 = vpop.f32.mrf.mxu0
    %v7490 = vadd.f32 %v7470, %v7489
    %7491 = vdwg.mxu0
    %7492 = vmatpush.msra.mxu0 %v2469
    %7493 = vmatpush.msra.mxu0 %v2468
    %7494 = vmatpush.msra.mxu0 %v2467
    %7495 = vmatpush.msra.mxu0 %v2466
    %7496 = vmatpush.msra.mxu0 %v2465
    %7497 = vmatpush.msra.mxu0 %v2464
    %7498 = vmatpush.msra.mxu0 %v2463
    %7499 = vmatpush.msra.mxu0 %v2462
    %7500 = vmatpush.msra.mxu0 %v2461
    %7501 = vmatpush.msra.mxu0 %v2460
    %7502 = vmatpush.msra.mxu0 %v2459
    %7503 = vmatpush.msra.mxu0 %v2458
    %7504 = vmatpush.msra.mxu0 %v2457
    %7505 = vmatpush.msra.mxu0 %v2456
    %7506 = vmatpush.msra.mxu0 %v2455
    %7507 = vmatpush.msra.mxu0 %v2454
    %7508 = vmatmul.f32.gmra.mxu0 %v7360
    %v7509 = vpop.f32.mrf.mxu0
    %v7510 = vadd.f32 %v7490, %v7509
    %7511 = vdwg.mxu0
    %7512 = vmatpush.msra.mxu0 %v2485
    %7513 = vmatpush.msra.mxu0 %v2484
    %7514 = vmatpush.msra.mxu0 %v2483
    %7515 = vmatpush.msra.mxu0 %v2482
    %7516 = vmatpush.msra.mxu0 %v2481
    %7517 = vmatpush.msra.mxu0 %v2480
    %7518 = vmatpush.msra.mxu0 %v2479
    %7519 = vmatpush.msra.mxu0 %v2478
    %7520 = vmatpush.msra.mxu0 %v2477
    %7521 = vmatpush.msra.mxu0 %v2476
    %7522 = vmatpush.msra.mxu0 %v2475
    %7523 = vmatpush.msra.mxu0 %v2474
    %7524 = vmatpush.msra.mxu0 %v2473
    %7525 = vmatpush.msra.mxu0 %v2472
    %7526 = vmatpush.msra.mxu0 %v2471
    %7527 = vmatpush.msra.mxu0 %v2470
    %7528 = vmatmul.f32.gmra.mxu0 %v7364
    %v7529 = vpop.f32.mrf.mxu0
    %v7530 = vadd.f32 %v7510, %v7529
    %7531 = vdwg.mxu0
    %7532 = vmatpush.msra.mxu0 %v2501
    %7533 = vmatpush.msra.mxu0 %v2500
    %7534 = vmatpush.msra.mxu0 %v2499
    %7535 = vmatpush.msra.mxu0 %v2498
    %7536 = vmatpush.msra.mxu0 %v2497
    %7537 = vmatpush.msra.mxu0 %v2496
    %7538 = vmatpush.msra.mxu0 %v2495
    %7539 = vmatpush.msra.mxu0 %v2494
    %7540 = vmatpush.msra.mxu0 %v2493
    %7541 = vmatpush.msra.mxu0 %v2492
    %7542 = vmatpush.msra.mxu0 %v2491
    %7543 = vmatpush.msra.mxu0 %v2490
    %7544 = vmatpush.msra.mxu0 %v2489
    %7545 = vmatpush.msra.mxu0 %v2488
    %7546 = vmatpush.msra.mxu0 %v2487
    %7547 = vmatpush.msra.mxu0 %v2486
    %7548 = vmatmul.f32.gmra.mxu0 %v7335
    %v7549 = vpop.f32.mrf.mxu0
    %v7550 = vadd.f32 %v7530, %v7549
    %7551 = vdwg.mxu0
    %7552 = vmatpush.msra.mxu0 %v2517
    %7553 = vmatpush.msra.mxu0 %v2516
    %7554 = vmatpush.msra.mxu0 %v2515
    %7555 = vmatpush.msra.mxu0 %v2514
    %7556 = vmatpush.msra.mxu0 %v2513
    %7557 = vmatpush.msra.mxu0 %v2512
    %7558 = vmatpush.msra.mxu0 %v2511
    %7559 = vmatpush.msra.mxu0 %v2510
    %7560 = vmatpush.msra.mxu0 %v2509
    %7561 = vmatpush.msra.mxu0 %v2508
    %7562 = vmatpush.msra.mxu0 %v2507
    %7563 = vmatpush.msra.mxu0 %v2506
    %7564 = vmatpush.msra.mxu0 %v2505
    %7565 = vmatpush.msra.mxu0 %v2504
    %7566 = vmatpush.msra.mxu0 %v2503
    %7567 = vmatpush.msra.mxu0 %v2502
    %7568 = vmatmul.f32.gmra.mxu0 %v7366
    %v7569 = vpop.f32.mrf.mxu0
    %v7570 = vadd.f32 %v7550, %v7569
    %7571 = vdwg.mxu0
    %7572 = vmatpush.msra.mxu0 %v2533
    %7573 = vmatpush.msra.mxu0 %v2532
    %7574 = vmatpush.msra.mxu0 %v2531
    %7575 = vmatpush.msra.mxu0 %v2530
    %7576 = vmatpush.msra.mxu0 %v2529
    %7577 = vmatpush.msra.mxu0 %v2528
    %7578 = vmatpush.msra.mxu0 %v2527
    %7579 = vmatpush.msra.mxu0 %v2526
    %7580 = vmatpush.msra.mxu0 %v2525
    %7581 = vmatpush.msra.mxu0 %v2524
    %7582 = vmatpush.msra.mxu0 %v2523
    %7583 = vmatpush.msra.mxu0 %v2522
    %7584 = vmatpush.msra.mxu0 %v2521
    %7585 = vmatpush.msra.mxu0 %v2520
    %7586 = vmatpush.msra.mxu0 %v2519
    %7587 = vmatpush.msra.mxu0 %v2518
    %7588 = vmatmul.f32.gmra.mxu0 %v7368
    %v7589 = vpop.f32.mrf.mxu0
    %v7590 = vadd.f32 %v7570, %v7589
    %7591 = vdwg.mxu0
    %7592 = vmatpush.msra.mxu0 %v2549
    %7593 = vmatpush.msra.mxu0 %v2548
    %7594 = vmatpush.msra.mxu0 %v2547
    %7595 = vmatpush.msra.mxu0 %v2546
    %7596 = vmatpush.msra.mxu0 %v2545
    %7597 = vmatpush.msra.mxu0 %v2544
    %7598 = vmatpush.msra.mxu0 %v2543
    %7599 = vmatpush.msra.mxu0 %v2542
    %7600 = vmatpush.msra.mxu0 %v2541
    %7601 = vmatpush.msra.mxu0 %v2540
    %7602 = vmatpush.msra.mxu0 %v2539
    %7603 = vmatpush.msra.mxu0 %v2538
    %7604 = vmatpush.msra.mxu0 %v2537
    %7605 = vmatpush.msra.mxu0 %v2536
    %7606 = vmatpush.msra.mxu0 %v2535
    %7607 = vmatpush.msra.mxu0 %v2534
    %7608 = vmatmul.f32.gmra.mxu0 %v7370
    %v7609 = vpop.f32.mrf.mxu0
    %v7610 = vadd.f32 %v7590, %v7609
    %7611 = vdwg.mxu0
    %v7612 = vmax.f32 %v7610, 0.0
    %v7613 = vrot.slane %v7612, 4
    %v7614 = vadd.f32 %v7612, %v7613
    %v7615 = vrot.slane %v7614, 2
    %v7616 = vadd.f32 %v7614, %v7615
    %v7617 = vrot.slane %v7616, 1
    %v7618 = vadd.f32 %v7616, %v7617
    %v7619 = vmul.f32 %v7618, %v2229
    %7620 = vmatpush.msra.mxu0 %v2817
    %7621 = vmatpush.msra.mxu0 %v2816
    %7622 = vmatpush.msra.mxu0 %v2815
    %7623 = vmatpush.msra.mxu0 %v2814
    %7624 = vmatpush.msra.mxu0 %v2813
    %7625 = vmatpush.msra.mxu0 %v2812
    %7626 = vmatpush.msra.mxu0 %v2811
    %7627 = vmatpush.msra.mxu0 %v2810
    %7628 = vmatpush.msra.mxu0 %v2809
    %7629 = vmatpush.msra.mxu0 %v2808
    %7630 = vmatpush.msra.mxu0 %v2807
    %7631 = vmatpush.msra.mxu0 %v2806
    %7632 = vmatpush.msra.mxu0 %v2805
    %7633 = vmatpush.msra.mxu0 %v2804
    %7634 = vmatpush.msra.mxu0 %v2803
    %7635 = vmatpush.msra.mxu0 %v2802
    %7636 = vmatmul.f32.gmra.mxu0 %v7619
    %v7637 = vpop.f32.mrf.mxu0
    %v7638 = vadd.f32 0.0, %v7637
    %7639 = vdwg.mxu0
    %v7640 = vmax.f32 %v7638, 0.0
    %v7642 = vsel %vm2269, %v7640, 0
    %7644 = vmatpush.msra.mxu0 0.0
    %7645 = vmatpush.msra.mxu0 0.0
    %7646 = vmatpush.msra.mxu0 0.0
    %7647 = vmatpush.msra.mxu0 0.0
    %7648 = vmatpush.msra.mxu0 0.0
    %7649 = vmatpush.msra.mxu0 0.0
    %7650 = vmatpush.msra.mxu0 0.0
    %7651 = vmatpush.msra.mxu0 0.0
    %7652 = vmatpush.msra.mxu0 0.0
    %7653 = vmatpush.msra.mxu0 0.0
    %7654 = vmatpush.msra.mxu0 0.0
    %7655 = vmatpush.msra.mxu0 0.0
    %7656 = vmatpush.msra.mxu0 0.0
    %7657 = vmatpush.msra.mxu0 0.0
    %7658 = vmatpush.msra.mxu0 0.0
    %7659 = vmatpush.msra.mxu0 %v2844
    %7660 = vmatmul.f32.gmra.mxu0 %v7642
    %v7661 = vpop.f32.mrf.mxu0
    %v7662 = vadd.f32 0.0, %v7661
    %7663 = vdwg.mxu0
    %v7664 = vxor.u32 %v7662, 2147483648
    %v7665 = vmul.f32 %v7664, 1.442695
    %v7666 = vpow.pop %v7665
    %v7667 = vadd.f32 %v7666, 1.0
    %v7668 = vrcp.pop %v7667
    %v7669 = vmul.f32 %v7667, %v7668
    %v7670 = vsub.f32 1.0, %v7669
    %v7671 = vmul.f32 %v7668, %v7670
    %v7672 = vadd.f32 %v7668, %v7671
    %vm7673 = vweird.f32 %v7667
    %vm7674 = vweird.f32 %v7668
    %vm7675 = vmor %vm7673, %vm7674
    %v7676 = vsel %vm7675, %v7668, %v7672
    %v7677 = vand.u32 2147483647, %v7667
    %vm7678 = vcmp.eq.f32.partialorder %v7677, 8.507059e+37
    %v7679 = vand.u32 %v7667, 2147483648
    %v7680 = vor.u32 1.1754944e-38, %v7679
    %v7681 = vsel %vm7678, %v7680, %v7676
    %v7682 = vmul.f32 1.0, %v7681
    %v7683 = vperm.slane %v7682, 0
    %v7684 = vmul.f32 %v7612, %v7683
    %v7686 = vrot.slane %v7684, 7
    %v7688 = vsel %vm453, 0.0, %v7686
    %v7689 = vsel %vm453, %v7686, 0.0
    %v7692 = vrot.slane %v7688, 1
    %v7693 = vrot.slane %v7689, 1
    %v7694 = vsel %vm406, %v7692, %v7693
    %v7696 = vmax.f32 %v7688, %v7694
    %v7697 = vrot.slane %v7688, 2
    %v7698 = vrot.slane %v7689, 2
    %v7699 = vsel %vm414, %v7697, %v7698
    %v7701 = vmax.f32 %v7696, %v7699
    %v7703 = vrot.slane %v7701, 2
    %v7704 = vrot.slane %v7701, 4
    %v7705 = vrot.slane %v7701, 6
    %v7706 = vperm.slane %v7701, 0
    %v7707 = vperm.slane %v7703, 0
    %v7708 = vperm.slane %v7704, 0
    %v7709 = vperm.slane %v7705, 0
    %v7710 = vsel %vm1728, %v7707, %v7706
    %v7711 = vsel %vm1730, %v7708, %v7710
    %v7714 = vsel %vm395, 0.0, %v7711
    %v7715 = vsel %vm453, %v7709, 0.0
    %v7717 = vrot.slane %v7714, 1
    %v7719 = vrot.slane %v7714, 2
    %v7721 = vrot.slane %v7714, 3
    %v7723 = vrot.slane %v7714, 4
    %v7726 = vrot.slane %v7714, 5
    %v7727 = vrot.slane %v7715, 5
    %v7728 = vsel %vm437, %v7726, %v7727
    %v7730 = vrot.slane %v7714, 6
    %v7731 = vrot.slane %v7715, 6
    %v7732 = vsel %vm445, %v7730, %v7731
    %v7734 = vrot.slane %v7714, 7
    %v7735 = vrot.slane %v7715, 7
    %v7736 = vsel %vm453, %v7734, %v7735
    %v7738 = vrot.slane %v7715, 1
    %v7740 = vrot.slane %v7715, 2
    %v7742 = vrot.slane %v7715, 3
    %7744 = vmatpush.msra.mxu0 %v2976
    %7745 = vmatpush.msra.mxu0 %v2974
    %7746 = vmatpush.msra.mxu0 %v2972
    %7747 = vmatpush.msra.mxu0 %v2970
    %7748 = vmatpush.msra.mxu0 %v2968
    %7749 = vmatpush.msra.mxu0 %v2966
    %7750 = vmatpush.msra.mxu0 %v2964
    %7751 = vmatpush.msra.mxu0 %v2962
    %7752 = vmatpush.msra.mxu0 %v2960
    %7753 = vmatpush.msra.mxu0 %v2958
    %7754 = vmatpush.msra.mxu0 %v2956
    %7755 = vmatpush.msra.mxu0 %v2954
    %7756 = vmatpush.msra.mxu0 %v2952
    %7757 = vmatpush.msra.mxu0 %v2950
    %7758 = vmatpush.msra.mxu0 %v2948
    %7759 = vmatpush.msra.mxu0 %v2946
    %7760 = vmatmul.f32.gmra.mxu0 %v7714
    %v7761 = vpop.f32.mrf.mxu0
    %v7762 = vadd.f32 %v3332, %v7761
    %7763 = vdwg.mxu0
    %7764 = vmatpush.msra.mxu0 %v3008
    %7765 = vmatpush.msra.mxu0 %v3006
    %7766 = vmatpush.msra.mxu0 %v3004
    %7767 = vmatpush.msra.mxu0 %v3002
    %7768 = vmatpush.msra.mxu0 %v3000
    %7769 = vmatpush.msra.mxu0 %v2998
    %7770 = vmatpush.msra.mxu0 %v2996
    %7771 = vmatpush.msra.mxu0 %v2994
    %7772 = vmatpush.msra.mxu0 %v2992
    %7773 = vmatpush.msra.mxu0 %v2990
    %7774 = vmatpush.msra.mxu0 %v2988
    %7775 = vmatpush.msra.mxu0 %v2986
    %7776 = vmatpush.msra.mxu0 %v2984
    %7777 = vmatpush.msra.mxu0 %v2982
    %7778 = vmatpush.msra.mxu0 %v2980
    %7779 = vmatpush.msra.mxu0 %v2978
    %7780 = vmatmul.f32.gmra.mxu0 %v7717
    %v7781 = vpop.f32.mrf.mxu0
    %v7782 = vadd.f32 %v7762, %v7781
    %7783 = vdwg.mxu0
    %7784 = vmatpush.msra.mxu0 %v3040
    %7785 = vmatpush.msra.mxu0 %v3038
    %7786 = vmatpush.msra.mxu0 %v3036
    %7787 = vmatpush.msra.mxu0 %v3034
    %7788 = vmatpush.msra.mxu0 %v3032
    %7789 = vmatpush.msra.mxu0 %v3030
    %7790 = vmatpush.msra.mxu0 %v3028
    %7791 = vmatpush.msra.mxu0 %v3026
    %7792 = vmatpush.msra.mxu0 %v3024
    %7793 = vmatpush.msra.mxu0 %v3022
    %7794 = vmatpush.msra.mxu0 %v3020
    %7795 = vmatpush.msra.mxu0 %v3018
    %7796 = vmatpush.msra.mxu0 %v3016
    %7797 = vmatpush.msra.mxu0 %v3014
    %7798 = vmatpush.msra.mxu0 %v3012
    %7799 = vmatpush.msra.mxu0 %v3010
    %7800 = vmatmul.f32.gmra.mxu0 %v7719
    %v7801 = vpop.f32.mrf.mxu0
    %v7802 = vadd.f32 %v7782, %v7801
    %7803 = vdwg.mxu0
    %7804 = vmatpush.msra.mxu0 %v3072
    %7805 = vmatpush.msra.mxu0 %v3070
    %7806 = vmatpush.msra.mxu0 %v3068
    %7807 = vmatpush.msra.mxu0 %v3066
    %7808 = vmatpush.msra.mxu0 %v3064
    %7809 = vmatpush.msra.mxu0 %v3062
    %7810 = vmatpush.msra.mxu0 %v3060
    %7811 = vmatpush.msra.mxu0 %v3058
    %7812 = vmatpush.msra.mxu0 %v3056
    %7813 = vmatpush.msra.mxu0 %v3054
    %7814 = vmatpush.msra.mxu0 %v3052
    %7815 = vmatpush.msra.mxu0 %v3050
    %7816 = vmatpush.msra.mxu0 %v3048
    %7817 = vmatpush.msra.mxu0 %v3046
    %7818 = vmatpush.msra.mxu0 %v3044
    %7819 = vmatpush.msra.mxu0 %v3042
    %7820 = vmatmul.f32.gmra.mxu0 %v7721
    %v7821 = vpop.f32.mrf.mxu0
    %v7822 = vadd.f32 %v7802, %v7821
    %7823 = vdwg.mxu0
    %7824 = vmatpush.msra.mxu0 %v3104
    %7825 = vmatpush.msra.mxu0 %v3102
    %7826 = vmatpush.msra.mxu0 %v3100
    %7827 = vmatpush.msra.mxu0 %v3098
    %7828 = vmatpush.msra.mxu0 %v3096
    %7829 = vmatpush.msra.mxu0 %v3094
    %7830 = vmatpush.msra.mxu0 %v3092
    %7831 = vmatpush.msra.mxu0 %v3090
    %7832 = vmatpush.msra.mxu0 %v3088
    %7833 = vmatpush.msra.mxu0 %v3086
    %7834 = vmatpush.msra.mxu0 %v3084
    %7835 = vmatpush.msra.mxu0 %v3082
    %7836 = vmatpush.msra.mxu0 %v3080
    %7837 = vmatpush.msra.mxu0 %v3078
    %7838 = vmatpush.msra.mxu0 %v3076
    %7839 = vmatpush.msra.mxu0 %v3074
    %7840 = vmatmul.f32.gmra.mxu0 %v7723
    %v7841 = vpop.f32.mrf.mxu0
    %v7842 = vadd.f32 %v7822, %v7841
    %7843 = vdwg.mxu0
    %7844 = vmatpush.msra.mxu0 %v3136
    %7845 = vmatpush.msra.mxu0 %v3134
    %7846 = vmatpush.msra.mxu0 %v3132
    %7847 = vmatpush.msra.mxu0 %v3130
    %7848 = vmatpush.msra.mxu0 %v3128
    %7849 = vmatpush.msra.mxu0 %v3126
    %7850 = vmatpush.msra.mxu0 %v3124
    %7851 = vmatpush.msra.mxu0 %v3122
    %7852 = vmatpush.msra.mxu0 %v3120
    %7853 = vmatpush.msra.mxu0 %v3118
    %7854 = vmatpush.msra.mxu0 %v3116
    %7855 = vmatpush.msra.mxu0 %v3114
    %7856 = vmatpush.msra.mxu0 %v3112
    %7857 = vmatpush.msra.mxu0 %v3110
    %7858 = vmatpush.msra.mxu0 %v3108
    %7859 = vmatpush.msra.mxu0 %v3106
    %7860 = vmatmul.f32.gmra.mxu0 %v7728
    %v7861 = vpop.f32.mrf.mxu0
    %v7862 = vadd.f32 %v7842, %v7861
    %7863 = vdwg.mxu0
    %7864 = vmatpush.msra.mxu0 %v3168
    %7865 = vmatpush.msra.mxu0 %v3166
    %7866 = vmatpush.msra.mxu0 %v3164
    %7867 = vmatpush.msra.mxu0 %v3162
    %7868 = vmatpush.msra.mxu0 %v3160
    %7869 = vmatpush.msra.mxu0 %v3158
    %7870 = vmatpush.msra.mxu0 %v3156
    %7871 = vmatpush.msra.mxu0 %v3154
    %7872 = vmatpush.msra.mxu0 %v3152
    %7873 = vmatpush.msra.mxu0 %v3150
    %7874 = vmatpush.msra.mxu0 %v3148
    %7875 = vmatpush.msra.mxu0 %v3146
    %7876 = vmatpush.msra.mxu0 %v3144
    %7877 = vmatpush.msra.mxu0 %v3142
    %7878 = vmatpush.msra.mxu0 %v3140
    %7879 = vmatpush.msra.mxu0 %v3138
    %7880 = vmatmul.f32.gmra.mxu0 %v7732
    %v7881 = vpop.f32.mrf.mxu0
    %v7882 = vadd.f32 %v7862, %v7881
    %7883 = vdwg.mxu0
    %7884 = vmatpush.msra.mxu0 %v3200
    %7885 = vmatpush.msra.mxu0 %v3198
    %7886 = vmatpush.msra.mxu0 %v3196
    %7887 = vmatpush.msra.mxu0 %v3194
    %7888 = vmatpush.msra.mxu0 %v3192
    %7889 = vmatpush.msra.mxu0 %v3190
    %7890 = vmatpush.msra.mxu0 %v3188
    %7891 = vmatpush.msra.mxu0 %v3186
    %7892 = vmatpush.msra.mxu0 %v3184
    %7893 = vmatpush.msra.mxu0 %v3182
    %7894 = vmatpush.msra.mxu0 %v3180
    %7895 = vmatpush.msra.mxu0 %v3178
    %7896 = vmatpush.msra.mxu0 %v3176
    %7897 = vmatpush.msra.mxu0 %v3174
    %7898 = vmatpush.msra.mxu0 %v3172
    %7899 = vmatpush.msra.mxu0 %v3170
    %7900 = vmatmul.f32.gmra.mxu0 %v7736
    %v7901 = vpop.f32.mrf.mxu0
    %v7902 = vadd.f32 %v7882, %v7901
    %7903 = vdwg.mxu0
    %7904 = vmatpush.msra.mxu0 %v3232
    %7905 = vmatpush.msra.mxu0 %v3230
    %7906 = vmatpush.msra.mxu0 %v3228
    %7907 = vmatpush.msra.mxu0 %v3226
    %7908 = vmatpush.msra.mxu0 %v3224
    %7909 = vmatpush.msra.mxu0 %v3222
    %7910 = vmatpush.msra.mxu0 %v3220
    %7911 = vmatpush.msra.mxu0 %v3218
    %7912 = vmatpush.msra.mxu0 %v3216
    %7913 = vmatpush.msra.mxu0 %v3214
    %7914 = vmatpush.msra.mxu0 %v3212
    %7915 = vmatpush.msra.mxu0 %v3210
    %7916 = vmatpush.msra.mxu0 %v3208
    %7917 = vmatpush.msra.mxu0 %v3206
    %7918 = vmatpush.msra.mxu0 %v3204
    %7919 = vmatpush.msra.mxu0 %v3202
    %7920 = vmatmul.f32.gmra.mxu0 %v7715
    %v7921 = vpop.f32.mrf.mxu0
    %v7922 = vadd.f32 %v7902, %v7921
    %7923 = vdwg.mxu0
    %7924 = vmatpush.msra.mxu0 %v3264
    %7925 = vmatpush.msra.mxu0 %v3262
    %7926 = vmatpush.msra.mxu0 %v3260
    %7927 = vmatpush.msra.mxu0 %v3258
    %7928 = vmatpush.msra.mxu0 %v3256
    %7929 = vmatpush.msra.mxu0 %v3254
    %7930 = vmatpush.msra.mxu0 %v3252
    %7931 = vmatpush.msra.mxu0 %v3250
    %7932 = vmatpush.msra.mxu0 %v3248
    %7933 = vmatpush.msra.mxu0 %v3246
    %7934 = vmatpush.msra.mxu0 %v3244
    %7935 = vmatpush.msra.mxu0 %v3242
    %7936 = vmatpush.msra.mxu0 %v3240
    %7937 = vmatpush.msra.mxu0 %v3238
    %7938 = vmatpush.msra.mxu0 %v3236
    %7939 = vmatpush.msra.mxu0 %v3234
    %7940 = vmatmul.f32.gmra.mxu0 %v7738
    %v7941 = vpop.f32.mrf.mxu0
    %v7942 = vadd.f32 %v7922, %v7941
    %7943 = vdwg.mxu0
    %7944 = vmatpush.msra.mxu0 %v3296
    %7945 = vmatpush.msra.mxu0 %v3294
    %7946 = vmatpush.msra.mxu0 %v3292
    %7947 = vmatpush.msra.mxu0 %v3290
    %7948 = vmatpush.msra.mxu0 %v3288
    %7949 = vmatpush.msra.mxu0 %v3286
    %7950 = vmatpush.msra.mxu0 %v3284
    %7951 = vmatpush.msra.mxu0 %v3282
    %7952 = vmatpush.msra.mxu0 %v3280
    %7953 = vmatpush.msra.mxu0 %v3278
    %7954 = vmatpush.msra.mxu0 %v3276
    %7955 = vmatpush.msra.mxu0 %v3274
    %7956 = vmatpush.msra.mxu0 %v3272
    %7957 = vmatpush.msra.mxu0 %v3270
    %7958 = vmatpush.msra.mxu0 %v3268
    %7959 = vmatpush.msra.mxu0 %v3266
    %7960 = vmatmul.f32.gmra.mxu0 %v7740
    %v7961 = vpop.f32.mrf.mxu0
    %v7962 = vadd.f32 %v7942, %v7961
    %7963 = vdwg.mxu0
    %7964 = vmatpush.msra.mxu0 %v3328
    %7965 = vmatpush.msra.mxu0 %v3326
    %7966 = vmatpush.msra.mxu0 %v3324
    %7967 = vmatpush.msra.mxu0 %v3322
    %7968 = vmatpush.msra.mxu0 %v3320
    %7969 = vmatpush.msra.mxu0 %v3318
    %7970 = vmatpush.msra.mxu0 %v3316
    %7971 = vmatpush.msra.mxu0 %v3314
    %7972 = vmatpush.msra.mxu0 %v3312
    %7973 = vmatpush.msra.mxu0 %v3310
    %7974 = vmatpush.msra.mxu0 %v3308
    %7975 = vmatpush.msra.mxu0 %v3306
    %7976 = vmatpush.msra.mxu0 %v3304
    %7977 = vmatpush.msra.mxu0 %v3302
    %7978 = vmatpush.msra.mxu0 %v3300
    %7979 = vmatpush.msra.mxu0 %v3298
    %7980 = vmatmul.f32.gmra.mxu0 %v7742
    %v7981 = vpop.f32.mrf.mxu0
    %v7982 = vadd.f32 %v7962, %v7981
    %7983 = vdwg.mxu0
    %7984 = vmatpush.msra.mxu0 %v2977
    %7985 = vmatpush.msra.mxu0 %v2975
    %7986 = vmatpush.msra.mxu0 %v2973
    %7987 = vmatpush.msra.mxu0 %v2971
    %7988 = vmatpush.msra.mxu0 %v2969
    %7989 = vmatpush.msra.mxu0 %v2967
    %7990 = vmatpush.msra.mxu0 %v2965
    %7991 = vmatpush.msra.mxu0 %v2963
    %7992 = vmatpush.msra.mxu0 %v2961
    %7993 = vmatpush.msra.mxu0 %v2959
    %7994 = vmatpush.msra.mxu0 %v2957
    %7995 = vmatpush.msra.mxu0 %v2955
    %7996 = vmatpush.msra.mxu0 %v2953
    %7997 = vmatpush.msra.mxu0 %v2951
    %7998 = vmatpush.msra.mxu0 %v2949
    %7999 = vmatpush.msra.mxu0 %v2947
    %8000 = vmatmul.f32.gmra.mxu0 %v7714
    %v8001 = vpop.f32.mrf.mxu0
    %v8002 = vadd.f32 %v3333, %v8001
    %8003 = vdwg.mxu0
    %8004 = vmatpush.msra.mxu0 %v3009
    %8005 = vmatpush.msra.mxu0 %v3007
    %8006 = vmatpush.msra.mxu0 %v3005
    %8007 = vmatpush.msra.mxu0 %v3003
    %8008 = vmatpush.msra.mxu0 %v3001
    %8009 = vmatpush.msra.mxu0 %v2999
    %8010 = vmatpush.msra.mxu0 %v2997
    %8011 = vmatpush.msra.mxu0 %v2995
    %8012 = vmatpush.msra.mxu0 %v2993
    %8013 = vmatpush.msra.mxu0 %v2991
    %8014 = vmatpush.msra.mxu0 %v2989
    %8015 = vmatpush.msra.mxu0 %v2987
    %8016 = vmatpush.msra.mxu0 %v2985
    %8017 = vmatpush.msra.mxu0 %v2983
    %8018 = vmatpush.msra.mxu0 %v2981
    %8019 = vmatpush.msra.mxu0 %v2979
    %8020 = vmatmul.f32.gmra.mxu0 %v7717
    %v8021 = vpop.f32.mrf.mxu0
    %v8022 = vadd.f32 %v8002, %v8021
    %8023 = vdwg.mxu0
    %8024 = vmatpush.msra.mxu0 %v3041
    %8025 = vmatpush.msra.mxu0 %v3039
    %8026 = vmatpush.msra.mxu0 %v3037
    %8027 = vmatpush.msra.mxu0 %v3035
    %8028 = vmatpush.msra.mxu0 %v3033
    %8029 = vmatpush.msra.mxu0 %v3031
    %8030 = vmatpush.msra.mxu0 %v3029
    %8031 = vmatpush.msra.mxu0 %v3027
    %8032 = vmatpush.msra.mxu0 %v3025
    %8033 = vmatpush.msra.mxu0 %v3023
    %8034 = vmatpush.msra.mxu0 %v3021
    %8035 = vmatpush.msra.mxu0 %v3019
    %8036 = vmatpush.msra.mxu0 %v3017
    %8037 = vmatpush.msra.mxu0 %v3015
    %8038 = vmatpush.msra.mxu0 %v3013
    %8039 = vmatpush.msra.mxu0 %v3011
    %8040 = vmatmul.f32.gmra.mxu0 %v7719
    %v8041 = vpop.f32.mrf.mxu0
    %v8042 = vadd.f32 %v8022, %v8041
    %8043 = vdwg.mxu0
    %8044 = vmatpush.msra.mxu0 %v3073
    %8045 = vmatpush.msra.mxu0 %v3071
    %8046 = vmatpush.msra.mxu0 %v3069
    %8047 = vmatpush.msra.mxu0 %v3067
    %8048 = vmatpush.msra.mxu0 %v3065
    %8049 = vmatpush.msra.mxu0 %v3063
    %8050 = vmatpush.msra.mxu0 %v3061
    %8051 = vmatpush.msra.mxu0 %v3059
    %8052 = vmatpush.msra.mxu0 %v3057
    %8053 = vmatpush.msra.mxu0 %v3055
    %8054 = vmatpush.msra.mxu0 %v3053
    %8055 = vmatpush.msra.mxu0 %v3051
    %8056 = vmatpush.msra.mxu0 %v3049
    %8057 = vmatpush.msra.mxu0 %v3047
    %8058 = vmatpush.msra.mxu0 %v3045
    %8059 = vmatpush.msra.mxu0 %v3043
    %8060 = vmatmul.f32.gmra.mxu0 %v7721
    %v8061 = vpop.f32.mrf.mxu0
    %v8062 = vadd.f32 %v8042, %v8061
    %8063 = vdwg.mxu0
    %8064 = vmatpush.msra.mxu0 %v3105
    %8065 = vmatpush.msra.mxu0 %v3103
    %8066 = vmatpush.msra.mxu0 %v3101
    %8067 = vmatpush.msra.mxu0 %v3099
    %8068 = vmatpush.msra.mxu0 %v3097
    %8069 = vmatpush.msra.mxu0 %v3095
    %8070 = vmatpush.msra.mxu0 %v3093
    %8071 = vmatpush.msra.mxu0 %v3091
    %8072 = vmatpush.msra.mxu0 %v3089
    %8073 = vmatpush.msra.mxu0 %v3087
    %8074 = vmatpush.msra.mxu0 %v3085
    %8075 = vmatpush.msra.mxu0 %v3083
    %8076 = vmatpush.msra.mxu0 %v3081
    %8077 = vmatpush.msra.mxu0 %v3079
    %8078 = vmatpush.msra.mxu0 %v3077
    %8079 = vmatpush.msra.mxu0 %v3075
    %8080 = vmatmul.f32.gmra.mxu0 %v7723
    %v8081 = vpop.f32.mrf.mxu0
    %v8082 = vadd.f32 %v8062, %v8081
    %8083 = vdwg.mxu0
    %8084 = vmatpush.msra.mxu0 %v3137
    %8085 = vmatpush.msra.mxu0 %v3135
    %8086 = vmatpush.msra.mxu0 %v3133
    %8087 = vmatpush.msra.mxu0 %v3131
    %8088 = vmatpush.msra.mxu0 %v3129
    %8089 = vmatpush.msra.mxu0 %v3127
    %8090 = vmatpush.msra.mxu0 %v3125
    %8091 = vmatpush.msra.mxu0 %v3123
    %8092 = vmatpush.msra.mxu0 %v3121
    %8093 = vmatpush.msra.mxu0 %v3119
    %8094 = vmatpush.msra.mxu0 %v3117
    %8095 = vmatpush.msra.mxu0 %v3115
    %8096 = vmatpush.msra.mxu0 %v3113
    %8097 = vmatpush.msra.mxu0 %v3111
    %8098 = vmatpush.msra.mxu0 %v3109
    %8099 = vmatpush.msra.mxu0 %v3107
    %8100 = vmatmul.f32.gmra.mxu0 %v7728
    %v8101 = vpop.f32.mrf.mxu0
    %v8102 = vadd.f32 %v8082, %v8101
    %8103 = vdwg.mxu0
    %8104 = vmatpush.msra.mxu0 %v3169
    %8105 = vmatpush.msra.mxu0 %v3167
    %8106 = vmatpush.msra.mxu0 %v3165
    %8107 = vmatpush.msra.mxu0 %v3163
    %8108 = vmatpush.msra.mxu0 %v3161
    %8109 = vmatpush.msra.mxu0 %v3159
    %8110 = vmatpush.msra.mxu0 %v3157
    %8111 = vmatpush.msra.mxu0 %v3155
    %8112 = vmatpush.msra.mxu0 %v3153
    %8113 = vmatpush.msra.mxu0 %v3151
    %8114 = vmatpush.msra.mxu0 %v3149
    %8115 = vmatpush.msra.mxu0 %v3147
    %8116 = vmatpush.msra.mxu0 %v3145
    %8117 = vmatpush.msra.mxu0 %v3143
    %8118 = vmatpush.msra.mxu0 %v3141
    %8119 = vmatpush.msra.mxu0 %v3139
    %8120 = vmatmul.f32.gmra.mxu0 %v7732
    %v8121 = vpop.f32.mrf.mxu0
    %v8122 = vadd.f32 %v8102, %v8121
    %8123 = vdwg.mxu0
    %8124 = vmatpush.msra.mxu0 %v3201
    %8125 = vmatpush.msra.mxu0 %v3199
    %8126 = vmatpush.msra.mxu0 %v3197
    %8127 = vmatpush.msra.mxu0 %v3195
    %8128 = vmatpush.msra.mxu0 %v3193
    %8129 = vmatpush.msra.mxu0 %v3191
    %8130 = vmatpush.msra.mxu0 %v3189
    %8131 = vmatpush.msra.mxu0 %v3187
    %8132 = vmatpush.msra.mxu0 %v3185
    %8133 = vmatpush.msra.mxu0 %v3183
    %8134 = vmatpush.msra.mxu0 %v3181
    %8135 = vmatpush.msra.mxu0 %v3179
    %8136 = vmatpush.msra.mxu0 %v3177
    %8137 = vmatpush.msra.mxu0 %v3175
    %8138 = vmatpush.msra.mxu0 %v3173
    %8139 = vmatpush.msra.mxu0 %v3171
    %8140 = vmatmul.f32.gmra.mxu0 %v7736
    %v8141 = vpop.f32.mrf.mxu0
    %v8142 = vadd.f32 %v8122, %v8141
    %8143 = vdwg.mxu0
    %8144 = vmatpush.msra.mxu0 %v3233
    %8145 = vmatpush.msra.mxu0 %v3231
    %8146 = vmatpush.msra.mxu0 %v3229
    %8147 = vmatpush.msra.mxu0 %v3227
    %8148 = vmatpush.msra.mxu0 %v3225
    %8149 = vmatpush.msra.mxu0 %v3223
    %8150 = vmatpush.msra.mxu0 %v3221
    %8151 = vmatpush.msra.mxu0 %v3219
    %8152 = vmatpush.msra.mxu0 %v3217
    %8153 = vmatpush.msra.mxu0 %v3215
    %8154 = vmatpush.msra.mxu0 %v3213
    %8155 = vmatpush.msra.mxu0 %v3211
    %8156 = vmatpush.msra.mxu0 %v3209
    %8157 = vmatpush.msra.mxu0 %v3207
    %8158 = vmatpush.msra.mxu0 %v3205
    %8159 = vmatpush.msra.mxu0 %v3203
    %8160 = vmatmul.f32.gmra.mxu0 %v7715
    %v8161 = vpop.f32.mrf.mxu0
    %v8162 = vadd.f32 %v8142, %v8161
    %8163 = vdwg.mxu0
    %8164 = vmatpush.msra.mxu0 %v3265
    %8165 = vmatpush.msra.mxu0 %v3263
    %8166 = vmatpush.msra.mxu0 %v3261
    %8167 = vmatpush.msra.mxu0 %v3259
    %8168 = vmatpush.msra.mxu0 %v3257
    %8169 = vmatpush.msra.mxu0 %v3255
    %8170 = vmatpush.msra.mxu0 %v3253
    %8171 = vmatpush.msra.mxu0 %v3251
    %8172 = vmatpush.msra.mxu0 %v3249
    %8173 = vmatpush.msra.mxu0 %v3247
    %8174 = vmatpush.msra.mxu0 %v3245
    %8175 = vmatpush.msra.mxu0 %v3243
    %8176 = vmatpush.msra.mxu0 %v3241
    %8177 = vmatpush.msra.mxu0 %v3239
    %8178 = vmatpush.msra.mxu0 %v3237
    %8179 = vmatpush.msra.mxu0 %v3235
    %8180 = vmatmul.f32.gmra.mxu0 %v7738
    %v8181 = vpop.f32.mrf.mxu0
    %v8182 = vadd.f32 %v8162, %v8181
    %8183 = vdwg.mxu0
    %8184 = vmatpush.msra.mxu0 %v3297
    %8185 = vmatpush.msra.mxu0 %v3295
    %8186 = vmatpush.msra.mxu0 %v3293
    %8187 = vmatpush.msra.mxu0 %v3291
    %8188 = vmatpush.msra.mxu0 %v3289
    %8189 = vmatpush.msra.mxu0 %v3287
    %8190 = vmatpush.msra.mxu0 %v3285
    %8191 = vmatpush.msra.mxu0 %v3283
    %8192 = vmatpush.msra.mxu0 %v3281
    %8193 = vmatpush.msra.mxu0 %v3279
    %8194 = vmatpush.msra.mxu0 %v3277
    %8195 = vmatpush.msra.mxu0 %v3275
    %8196 = vmatpush.msra.mxu0 %v3273
    %8197 = vmatpush.msra.mxu0 %v3271
    %8198 = vmatpush.msra.mxu0 %v3269
    %8199 = vmatpush.msra.mxu0 %v3267
    %8200 = vmatmul.f32.gmra.mxu0 %v7740
    %v8201 = vpop.f32.mrf.mxu0
    %v8202 = vadd.f32 %v8182, %v8201
    %8203 = vdwg.mxu0
    %8204 = vmatpush.msra.mxu0 %v3329
    %8205 = vmatpush.msra.mxu0 %v3327
    %8206 = vmatpush.msra.mxu0 %v3325
    %8207 = vmatpush.msra.mxu0 %v3323
    %8208 = vmatpush.msra.mxu0 %v3321
    %8209 = vmatpush.msra.mxu0 %v3319
    %8210 = vmatpush.msra.mxu0 %v3317
    %8211 = vmatpush.msra.mxu0 %v3315
    %8212 = vmatpush.msra.mxu0 %v3313
    %8213 = vmatpush.msra.mxu0 %v3311
    %8214 = vmatpush.msra.mxu0 %v3309
    %8215 = vmatpush.msra.mxu0 %v3307
    %8216 = vmatpush.msra.mxu0 %v3305
    %8217 = vmatpush.msra.mxu0 %v3303
    %8218 = vmatpush.msra.mxu0 %v3301
    %8219 = vmatpush.msra.mxu0 %v3299
    %8220 = vmatmul.f32.gmra.mxu0 %v7742
    %v8221 = vpop.f32.mrf.mxu0
    %v8222 = vadd.f32 %v8202, %v8221
    %8223 = vdwg.mxu0
    %v8224 = vmax.f32 %v7982, 0.0
    %v8225 = vmax.f32 %v8222, 0.0
    %v8226 = vsel %vm429, %v8224, 0.0
    %v8227 = vrot.slane %v8226, 4
    %v8228 = vadd.f32 %v8226, %v8227
    %v8229 = vrot.slane %v8228, 2
    %v8230 = vadd.f32 %v8228, %v8229
    %v8231 = vrot.slane %v8230, 1
    %v8232 = vadd.f32 %v8230, %v8231
    %v8233 = vsel %vm429, %v8225, 0.0
    %v8234 = vrot.slane %v8233, 4
    %v8235 = vadd.f32 %v8233, %v8234
    %v8236 = vrot.slane %v8235, 2
    %v8237 = vadd.f32 %v8235, %v8236
    %v8238 = vrot.slane %v8237, 1
    %v8239 = vadd.f32 %v8237, %v8238
    %v8240 = vmul.f32 %v8232, %v3838
    %v8241 = vmul.f32 %v8239, %v3838
    %8242 = vmatpush.msra.mxu0 %v3856
    %8243 = vmatpush.msra.mxu0 %v3855
    %8244 = vmatpush.msra.mxu0 %v3854
    %8245 = vmatpush.msra.mxu0 %v3853
    %8246 = vmatpush.msra.mxu0 %v3852
    %8247 = vmatpush.msra.mxu0 %v3851
    %8248 = vmatpush.msra.mxu0 %v3850
    %8249 = vmatpush.msra.mxu0 %v3849
    %8250 = vmatpush.msra.mxu0 %v3848
    %8251 = vmatpush.msra.mxu0 %v3847
    %8252 = vmatpush.msra.mxu0 %v3846
    %8253 = vmatpush.msra.mxu0 %v3845
    %8254 = vmatpush.msra.mxu0 %v3844
    %8255 = vmatpush.msra.mxu0 %v3843
    %8256 = vmatpush.msra.mxu0 %v3842
    %8257 = vmatpush.msra.mxu0 %v3841
    %8258 = vmatmul.f32.gmra.mxu0 %v8240
    %v8259 = vpop.f32.mrf.mxu0
    %v8260 = vadd.f32 0.0, %v8259
    %8261 = vdwg.mxu0
    %8262 = vmatpush.msra.mxu0 %v3872
    %8263 = vmatpush.msra.mxu0 %v3871
    %8264 = vmatpush.msra.mxu0 %v3870
    %8265 = vmatpush.msra.mxu0 %v3869
    %8266 = vmatpush.msra.mxu0 %v3868
    %8267 = vmatpush.msra.mxu0 %v3867
    %8268 = vmatpush.msra.mxu0 %v3866
    %8269 = vmatpush.msra.mxu0 %v3865
    %8270 = vmatpush.msra.mxu0 %v3864
    %8271 = vmatpush.msra.mxu0 %v3863
    %8272 = vmatpush.msra.mxu0 %v3862
    %8273 = vmatpush.msra.mxu0 %v3861
    %8274 = vmatpush.msra.mxu0 %v3860
    %8275 = vmatpush.msra.mxu0 %v3859
    %8276 = vmatpush.msra.mxu0 %v3858
    %8277 = vmatpush.msra.mxu0 %v3857
    %8278 = vmatmul.f32.gmra.mxu0 %v8241
    %v8279 = vpop.f32.mrf.mxu0
    %v8280 = vadd.f32 %v8260, %v8279
    %8281 = vdwg.mxu0
    %v8282 = vmax.f32 %v8280, 0.0
    %v8284 = vsel %vm3918, %v8282, 0
    %8286 = vmatpush.msra.mxu0 0.0
    %8287 = vmatpush.msra.mxu0 0.0
    %8288 = vmatpush.msra.mxu0 0.0
    %8289 = vmatpush.msra.mxu0 0.0
    %8290 = vmatpush.msra.mxu0 0.0
    %8291 = vmatpush.msra.mxu0 0.0
    %8292 = vmatpush.msra.mxu0 0.0
    %8293 = vmatpush.msra.mxu0 0.0
    %8294 = vmatpush.msra.mxu0 0.0
    %8295 = vmatpush.msra.mxu0 0.0
    %8296 = vmatpush.msra.mxu0 0.0
    %8297 = vmatpush.msra.mxu0 0.0
    %8298 = vmatpush.msra.mxu0 0.0
    %8299 = vmatpush.msra.mxu0 0.0
    %8300 = vmatpush.msra.mxu0 %v3923
    %8301 = vmatpush.msra.mxu0 %v3914
    %8302 = vmatmul.f32.gmra.mxu0 %v8284
    %v8303 = vpop.f32.mrf.mxu0
    %v8304 = vadd.f32 0.0, %v8303
    %8305 = vdwg.mxu0
    %8306 = vmatpush.msra.mxu0 0.0
    %8307 = vmatpush.msra.mxu0 0.0
    %8308 = vmatpush.msra.mxu0 0.0
    %8309 = vmatpush.msra.mxu0 0.0
    %8310 = vmatpush.msra.mxu0 0.0
    %8311 = vmatpush.msra.mxu0 0.0
    %8312 = vmatpush.msra.mxu0 0.0
    %8313 = vmatpush.msra.mxu0 0.0
    %8314 = vmatpush.msra.mxu0 0.0
    %8315 = vmatpush.msra.mxu0 0.0
    %8316 = vmatpush.msra.mxu0 0.0
    %8317 = vmatpush.msra.mxu0 0.0
    %8318 = vmatpush.msra.mxu0 0.0
    %8319 = vmatpush.msra.mxu0 0.0
    %8320 = vmatpush.msra.mxu0 %v3926
    %8321 = vmatpush.msra.mxu0 %v3915
    %8322 = vmatmul.f32.gmra.mxu0 %v8284
    %v8323 = vpop.f32.mrf.mxu0
    %v8324 = vadd.f32 0.0, %v8323
    %8325 = vdwg.mxu0
    %v8326 = vxor.u32 %v8304, 2147483648
    %v8327 = vxor.u32 %v8324, 2147483648
    %v8328 = vmul.f32 %v8326, 1.442695
    %v8329 = vpow.pop %v8328
    %v8330 = vmul.f32 %v8327, 1.442695
    %v8331 = vpow.pop %v8330
    %v8332 = vadd.f32 %v8329, 1.0
    %v8333 = vadd.f32 %v8331, 1.0
    %v8334 = vrcp.pop %v8332
    %v8335 = vmul.f32 %v8332, %v8334
    %v8336 = vsub.f32 1.0, %v8335
    %v8337 = vmul.f32 %v8334, %v8336
    %v8338 = vadd.f32 %v8334, %v8337
    %vm8339 = vweird.f32 %v8332
    %vm8340 = vweird.f32 %v8334
    %vm8341 = vmor %vm8339, %vm8340
    %v8342 = vsel %vm8341, %v8334, %v8338
    %v8343 = vand.u32 2147483647, %v8332
    %vm8344 = vcmp.eq.f32.partialorder %v8343, 8.507059e+37
    %v8345 = vand.u32 %v8332, 2147483648
    %v8346 = vor.u32 1.1754944e-38, %v8345
    %v8347 = vsel %vm8344, %v8346, %v8342
    %v8348 = vmul.f32 1.0, %v8347
    %v8349 = vrcp.pop %v8333
    %v8350 = vmul.f32 %v8333, %v8349
    %v8351 = vsub.f32 1.0, %v8350
    %v8352 = vmul.f32 %v8349, %v8351
    %v8353 = vadd.f32 %v8349, %v8352
    %vm8354 = vweird.f32 %v8333
    %vm8355 = vweird.f32 %v8349
    %vm8356 = vmor %vm8354, %vm8355
    %v8357 = vsel %vm8356, %v8349, %v8353
    %v8358 = vand.u32 2147483647, %v8333
    %vm8359 = vcmp.eq.f32.partialorder %v8358, 8.507059e+37
    %v8360 = vand.u32 %v8333, 2147483648
    %v8361 = vor.u32 1.1754944e-38, %v8360
    %v8362 = vsel %vm8359, %v8361, %v8357
    %v8363 = vmul.f32 1.0, %v8362
    %v8364 = vperm.slane %v8348, 0
    %v8365 = vperm.slane %v8363, 0
    %v8366 = vmul.f32 %v8224, %v8364
    %v8367 = vmul.f32 %v8225, %v8365
    %v8370 = vrot.slane %v8366, 3
    %v8371 = vrot.slane %v8367, 3
    %v8374 = vsel %vm395, 0.0, %v8370
    %v8375 = vsel %vm395, 0.0, %v8371
    %v8376 = vsel %vm453, %v8370, 0.0
    %v8377 = vsel %vm453, %v8371, 0.0
    %v8380 = vrot.slane %v8374, 1
    %v8381 = vrot.slane %v8375, 1
    %v8384 = vrot.slane %v8374, 2
    %v8385 = vrot.slane %v8375, 2
    %v8388 = vrot.slane %v8374, 3
    %v8389 = vrot.slane %v8375, 3
    %v8392 = vrot.slane %v8374, 4
    %v8393 = vrot.slane %v8375, 4
    %v8398 = vrot.slane %v8374, 5
    %v8399 = vrot.slane %v8376, 5
    %v8400 = vsel %vm437, %v8398, %v8399
    %v8401 = vrot.slane %v8375, 5
    %v8402 = vrot.slane %v8377, 5
    %v8403 = vsel %vm437, %v8401, %v8402
    %v8406 = vrot.slane %v8374, 6
    %v8407 = vrot.slane %v8376, 6
    %v8408 = vsel %vm445, %v8406, %v8407
    %v8409 = vrot.slane %v8375, 6
    %v8410 = vrot.slane %v8377, 6
    %v8411 = vsel %vm445, %v8409, %v8410
    %v8414 = vrot.slane %v8374, 7
    %v8415 = vrot.slane %v8376, 7
    %v8416 = vsel %vm453, %v8414, %v8415
    %v8417 = vrot.slane %v8375, 7
    %v8418 = vrot.slane %v8377, 7
    %v8419 = vsel %vm453, %v8417, %v8418
    %v8422 = vrot.slane %v8376, 1
    %v8423 = vrot.slane %v8377, 1
    %v8426 = vrot.slane %v8376, 2
    %v8427 = vrot.slane %v8377, 2
    %v8430 = vrot.slane %v8376, 3
    %v8431 = vrot.slane %v8377, 3
    %8434 = vmatpush.msra.mxu0 %v4106
    %8435 = vmatpush.msra.mxu0 %v4104
    %8436 = vmatpush.msra.mxu0 %v4102
    %8437 = vmatpush.msra.mxu0 %v4100
    %8438 = vmatpush.msra.mxu0 %v4098
    %8439 = vmatpush.msra.mxu0 %v4096
    %8440 = vmatpush.msra.mxu0 %v4094
    %8441 = vmatpush.msra.mxu0 %v4092
    %8442 = vmatpush.msra.mxu0 %v4090
    %8443 = vmatpush.msra.mxu0 %v4088
    %8444 = vmatpush.msra.mxu0 %v4086
    %8445 = vmatpush.msra.mxu0 %v4084
    %8446 = vmatpush.msra.mxu0 %v4082
    %8447 = vmatpush.msra.mxu0 %v4080
    %8448 = vmatpush.msra.mxu0 %v4078
    %8449 = vmatpush.msra.mxu0 %v4076
    %8450 = vmatmul.f32.gmra.mxu0 %v8374
    %v8451 = vpop.f32.mrf.mxu0
    %v8452 = vadd.f32 %v4846, %v8451
    %8453 = vdwg.mxu0
    %8454 = vmatpush.msra.mxu0 %v4138
    %8455 = vmatpush.msra.mxu0 %v4136
    %8456 = vmatpush.msra.mxu0 %v4134
    %8457 = vmatpush.msra.mxu0 %v4132
    %8458 = vmatpush.msra.mxu0 %v4130
    %8459 = vmatpush.msra.mxu0 %v4128
    %8460 = vmatpush.msra.mxu0 %v4126
    %8461 = vmatpush.msra.mxu0 %v4124
    %8462 = vmatpush.msra.mxu0 %v4122
    %8463 = vmatpush.msra.mxu0 %v4120
    %8464 = vmatpush.msra.mxu0 %v4118
    %8465 = vmatpush.msra.mxu0 %v4116
    %8466 = vmatpush.msra.mxu0 %v4114
    %8467 = vmatpush.msra.mxu0 %v4112
    %8468 = vmatpush.msra.mxu0 %v4110
    %8469 = vmatpush.msra.mxu0 %v4108
    %8470 = vmatmul.f32.gmra.mxu0 %v8375
    %v8471 = vpop.f32.mrf.mxu0
    %v8472 = vadd.f32 %v8452, %v8471
    %8473 = vdwg.mxu0
    %8474 = vmatpush.msra.mxu0 %v4170
    %8475 = vmatpush.msra.mxu0 %v4168
    %8476 = vmatpush.msra.mxu0 %v4166
    %8477 = vmatpush.msra.mxu0 %v4164
    %8478 = vmatpush.msra.mxu0 %v4162
    %8479 = vmatpush.msra.mxu0 %v4160
    %8480 = vmatpush.msra.mxu0 %v4158
    %8481 = vmatpush.msra.mxu0 %v4156
    %8482 = vmatpush.msra.mxu0 %v4154
    %8483 = vmatpush.msra.mxu0 %v4152
    %8484 = vmatpush.msra.mxu0 %v4150
    %8485 = vmatpush.msra.mxu0 %v4148
    %8486 = vmatpush.msra.mxu0 %v4146
    %8487 = vmatpush.msra.mxu0 %v4144
    %8488 = vmatpush.msra.mxu0 %v4142
    %8489 = vmatpush.msra.mxu0 %v4140
    %8490 = vmatmul.f32.gmra.mxu0 %v8380
    %v8491 = vpop.f32.mrf.mxu0
    %v8492 = vadd.f32 %v8472, %v8491
    %8493 = vdwg.mxu0
    %8494 = vmatpush.msra.mxu0 %v4202
    %8495 = vmatpush.msra.mxu0 %v4200
    %8496 = vmatpush.msra.mxu0 %v4198
    %8497 = vmatpush.msra.mxu0 %v4196
    %8498 = vmatpush.msra.mxu0 %v4194
    %8499 = vmatpush.msra.mxu0 %v4192
    %8500 = vmatpush.msra.mxu0 %v4190
    %8501 = vmatpush.msra.mxu0 %v4188
    %8502 = vmatpush.msra.mxu0 %v4186
    %8503 = vmatpush.msra.mxu0 %v4184
    %8504 = vmatpush.msra.mxu0 %v4182
    %8505 = vmatpush.msra.mxu0 %v4180
    %8506 = vmatpush.msra.mxu0 %v4178
    %8507 = vmatpush.msra.mxu0 %v4176
    %8508 = vmatpush.msra.mxu0 %v4174
    %8509 = vmatpush.msra.mxu0 %v4172
    %8510 = vmatmul.f32.gmra.mxu0 %v8381
    %v8511 = vpop.f32.mrf.mxu0
    %v8512 = vadd.f32 %v8492, %v8511
    %8513 = vdwg.mxu0
    %8514 = vmatpush.msra.mxu0 %v4234
    %8515 = vmatpush.msra.mxu0 %v4232
    %8516 = vmatpush.msra.mxu0 %v4230
    %8517 = vmatpush.msra.mxu0 %v4228
    %8518 = vmatpush.msra.mxu0 %v4226
    %8519 = vmatpush.msra.mxu0 %v4224
    %8520 = vmatpush.msra.mxu0 %v4222
    %8521 = vmatpush.msra.mxu0 %v4220
    %8522 = vmatpush.msra.mxu0 %v4218
    %8523 = vmatpush.msra.mxu0 %v4216
    %8524 = vmatpush.msra.mxu0 %v4214
    %8525 = vmatpush.msra.mxu0 %v4212
    %8526 = vmatpush.msra.mxu0 %v4210
    %8527 = vmatpush.msra.mxu0 %v4208
    %8528 = vmatpush.msra.mxu0 %v4206
    %8529 = vmatpush.msra.mxu0 %v4204
    %8530 = vmatmul.f32.gmra.mxu0 %v8384
    %v8531 = vpop.f32.mrf.mxu0
    %v8532 = vadd.f32 %v8512, %v8531
    %8533 = vdwg.mxu0
    %8534 = vmatpush.msra.mxu0 %v4266
    %8535 = vmatpush.msra.mxu0 %v4264
    %8536 = vmatpush.msra.mxu0 %v4262
    %8537 = vmatpush.msra.mxu0 %v4260
    %8538 = vmatpush.msra.mxu0 %v4258
    %8539 = vmatpush.msra.mxu0 %v4256
    %8540 = vmatpush.msra.mxu0 %v4254
    %8541 = vmatpush.msra.mxu0 %v4252
    %8542 = vmatpush.msra.mxu0 %v4250
    %8543 = vmatpush.msra.mxu0 %v4248
    %8544 = vmatpush.msra.mxu0 %v4246
    %8545 = vmatpush.msra.mxu0 %v4244
    %8546 = vmatpush.msra.mxu0 %v4242
    %8547 = vmatpush.msra.mxu0 %v4240
    %8548 = vmatpush.msra.mxu0 %v4238
    %8549 = vmatpush.msra.mxu0 %v4236
    %8550 = vmatmul.f32.gmra.mxu0 %v8385
    %v8551 = vpop.f32.mrf.mxu0
    %v8552 = vadd.f32 %v8532, %v8551
    %8553 = vdwg.mxu0
    %8554 = vmatpush.msra.mxu0 %v4298
    %8555 = vmatpush.msra.mxu0 %v4296
    %8556 = vmatpush.msra.mxu0 %v4294
    %8557 = vmatpush.msra.mxu0 %v4292
    %8558 = vmatpush.msra.mxu0 %v4290
    %8559 = vmatpush.msra.mxu0 %v4288
    %8560 = vmatpush.msra.mxu0 %v4286
    %8561 = vmatpush.msra.mxu0 %v4284
    %8562 = vmatpush.msra.mxu0 %v4282
    %8563 = vmatpush.msra.mxu0 %v4280
    %8564 = vmatpush.msra.mxu0 %v4278
    %8565 = vmatpush.msra.mxu0 %v4276
    %8566 = vmatpush.msra.mxu0 %v4274
    %8567 = vmatpush.msra.mxu0 %v4272
    %8568 = vmatpush.msra.mxu0 %v4270
    %8569 = vmatpush.msra.mxu0 %v4268
    %8570 = vmatmul.f32.gmra.mxu0 %v8388
    %v8571 = vpop.f32.mrf.mxu0
    %v8572 = vadd.f32 %v8552, %v8571
    %8573 = vdwg.mxu0
    %8574 = vmatpush.msra.mxu0 %v4330
    %8575 = vmatpush.msra.mxu0 %v4328
    %8576 = vmatpush.msra.mxu0 %v4326
    %8577 = vmatpush.msra.mxu0 %v4324
    %8578 = vmatpush.msra.mxu0 %v4322
    %8579 = vmatpush.msra.mxu0 %v4320
    %8580 = vmatpush.msra.mxu0 %v4318
    %8581 = vmatpush.msra.mxu0 %v4316
    %8582 = vmatpush.msra.mxu0 %v4314
    %8583 = vmatpush.msra.mxu0 %v4312
    %8584 = vmatpush.msra.mxu0 %v4310
    %8585 = vmatpush.msra.mxu0 %v4308
    %8586 = vmatpush.msra.mxu0 %v4306
    %8587 = vmatpush.msra.mxu0 %v4304
    %8588 = vmatpush.msra.mxu0 %v4302
    %8589 = vmatpush.msra.mxu0 %v4300
    %8590 = vmatmul.f32.gmra.mxu0 %v8389
    %v8591 = vpop.f32.mrf.mxu0
    %v8592 = vadd.f32 %v8572, %v8591
    %8593 = vdwg.mxu0
    %8594 = vmatpush.msra.mxu0 %v4362
    %8595 = vmatpush.msra.mxu0 %v4360
    %8596 = vmatpush.msra.mxu0 %v4358
    %8597 = vmatpush.msra.mxu0 %v4356
    %8598 = vmatpush.msra.mxu0 %v4354
    %8599 = vmatpush.msra.mxu0 %v4352
    %8600 = vmatpush.msra.mxu0 %v4350
    %8601 = vmatpush.msra.mxu0 %v4348
    %8602 = vmatpush.msra.mxu0 %v4346
    %8603 = vmatpush.msra.mxu0 %v4344
    %8604 = vmatpush.msra.mxu0 %v4342
    %8605 = vmatpush.msra.mxu0 %v4340
    %8606 = vmatpush.msra.mxu0 %v4338
    %8607 = vmatpush.msra.mxu0 %v4336
    %8608 = vmatpush.msra.mxu0 %v4334
    %8609 = vmatpush.msra.mxu0 %v4332
    %8610 = vmatmul.f32.gmra.mxu0 %v8392
    %v8611 = vpop.f32.mrf.mxu0
    %v8612 = vadd.f32 %v8592, %v8611
    %8613 = vdwg.mxu0
    %8614 = vmatpush.msra.mxu0 %v4394
    %8615 = vmatpush.msra.mxu0 %v4392
    %8616 = vmatpush.msra.mxu0 %v4390
    %8617 = vmatpush.msra.mxu0 %v4388
    %8618 = vmatpush.msra.mxu0 %v4386
    %8619 = vmatpush.msra.mxu0 %v4384
    %8620 = vmatpush.msra.mxu0 %v4382
    %8621 = vmatpush.msra.mxu0 %v4380
    %8622 = vmatpush.msra.mxu0 %v4378
    %8623 = vmatpush.msra.mxu0 %v4376
    %8624 = vmatpush.msra.mxu0 %v4374
    %8625 = vmatpush.msra.mxu0 %v4372
    %8626 = vmatpush.msra.mxu0 %v4370
    %8627 = vmatpush.msra.mxu0 %v4368
    %8628 = vmatpush.msra.mxu0 %v4366
    %8629 = vmatpush.msra.mxu0 %v4364
    %8630 = vmatmul.f32.gmra.mxu0 %v8393
    %v8631 = vpop.f32.mrf.mxu0
    %v8632 = vadd.f32 %v8612, %v8631
    %8633 = vdwg.mxu0
    %8634 = vmatpush.msra.mxu0 %v4426
    %8635 = vmatpush.msra.mxu0 %v4424
    %8636 = vmatpush.msra.mxu0 %v4422
    %8637 = vmatpush.msra.mxu0 %v4420
    %8638 = vmatpush.msra.mxu0 %v4418
    %8639 = vmatpush.msra.mxu0 %v4416
    %8640 = vmatpush.msra.mxu0 %v4414
    %8641 = vmatpush.msra.mxu0 %v4412
    %8642 = vmatpush.msra.mxu0 %v4410
    %8643 = vmatpush.msra.mxu0 %v4408
    %8644 = vmatpush.msra.mxu0 %v4406
    %8645 = vmatpush.msra.mxu0 %v4404
    %8646 = vmatpush.msra.mxu0 %v4402
    %8647 = vmatpush.msra.mxu0 %v4400
    %8648 = vmatpush.msra.mxu0 %v4398
    %8649 = vmatpush.msra.mxu0 %v4396
    %8650 = vmatmul.f32.gmra.mxu0 %v8400
    %v8651 = vpop.f32.mrf.mxu0
    %v8652 = vadd.f32 %v8632, %v8651
    %8653 = vdwg.mxu0
    %8654 = vmatpush.msra.mxu0 %v4458
    %8655 = vmatpush.msra.mxu0 %v4456
    %8656 = vmatpush.msra.mxu0 %v4454
    %8657 = vmatpush.msra.mxu0 %v4452
    %8658 = vmatpush.msra.mxu0 %v4450
    %8659 = vmatpush.msra.mxu0 %v4448
    %8660 = vmatpush.msra.mxu0 %v4446
    %8661 = vmatpush.msra.mxu0 %v4444
    %8662 = vmatpush.msra.mxu0 %v4442
    %8663 = vmatpush.msra.mxu0 %v4440
    %8664 = vmatpush.msra.mxu0 %v4438
    %8665 = vmatpush.msra.mxu0 %v4436
    %8666 = vmatpush.msra.mxu0 %v4434
    %8667 = vmatpush.msra.mxu0 %v4432
    %8668 = vmatpush.msra.mxu0 %v4430
    %8669 = vmatpush.msra.mxu0 %v4428
    %8670 = vmatmul.f32.gmra.mxu0 %v8403
    %v8671 = vpop.f32.mrf.mxu0
    %v8672 = vadd.f32 %v8652, %v8671
    %8673 = vdwg.mxu0
    %8674 = vmatpush.msra.mxu0 %v4490
    %8675 = vmatpush.msra.mxu0 %v4488
    %8676 = vmatpush.msra.mxu0 %v4486
    %8677 = vmatpush.msra.mxu0 %v4484
    %8678 = vmatpush.msra.mxu0 %v4482
    %8679 = vmatpush.msra.mxu0 %v4480
    %8680 = vmatpush.msra.mxu0 %v4478
    %8681 = vmatpush.msra.mxu0 %v4476
    %8682 = vmatpush.msra.mxu0 %v4474
    %8683 = vmatpush.msra.mxu0 %v4472
    %8684 = vmatpush.msra.mxu0 %v4470
    %8685 = vmatpush.msra.mxu0 %v4468
    %8686 = vmatpush.msra.mxu0 %v4466
    %8687 = vmatpush.msra.mxu0 %v4464
    %8688 = vmatpush.msra.mxu0 %v4462
    %8689 = vmatpush.msra.mxu0 %v4460
    %8690 = vmatmul.f32.gmra.mxu0 %v8408
    %v8691 = vpop.f32.mrf.mxu0
    %v8692 = vadd.f32 %v8672, %v8691
    %8693 = vdwg.mxu0
    %8694 = vmatpush.msra.mxu0 %v4522
    %8695 = vmatpush.msra.mxu0 %v4520
    %8696 = vmatpush.msra.mxu0 %v4518
    %8697 = vmatpush.msra.mxu0 %v4516
    %8698 = vmatpush.msra.mxu0 %v4514
    %8699 = vmatpush.msra.mxu0 %v4512
    %8700 = vmatpush.msra.mxu0 %v4510
    %8701 = vmatpush.msra.mxu0 %v4508
    %8702 = vmatpush.msra.mxu0 %v4506
    %8703 = vmatpush.msra.mxu0 %v4504
    %8704 = vmatpush.msra.mxu0 %v4502
    %8705 = vmatpush.msra.mxu0 %v4500
    %8706 = vmatpush.msra.mxu0 %v4498
    %8707 = vmatpush.msra.mxu0 %v4496
    %8708 = vmatpush.msra.mxu0 %v4494
    %8709 = vmatpush.msra.mxu0 %v4492
    %8710 = vmatmul.f32.gmra.mxu0 %v8411
    %v8711 = vpop.f32.mrf.mxu0
    %v8712 = vadd.f32 %v8692, %v8711
    %8713 = vdwg.mxu0
    %8714 = vmatpush.msra.mxu0 %v4554
    %8715 = vmatpush.msra.mxu0 %v4552
    %8716 = vmatpush.msra.mxu0 %v4550
    %8717 = vmatpush.msra.mxu0 %v4548
    %8718 = vmatpush.msra.mxu0 %v4546
    %8719 = vmatpush.msra.mxu0 %v4544
    %8720 = vmatpush.msra.mxu0 %v4542
    %8721 = vmatpush.msra.mxu0 %v4540
    %8722 = vmatpush.msra.mxu0 %v4538
    %8723 = vmatpush.msra.mxu0 %v4536
    %8724 = vmatpush.msra.mxu0 %v4534
    %8725 = vmatpush.msra.mxu0 %v4532
    %8726 = vmatpush.msra.mxu0 %v4530
    %8727 = vmatpush.msra.mxu0 %v4528
    %8728 = vmatpush.msra.mxu0 %v4526
    %8729 = vmatpush.msra.mxu0 %v4524
    %8730 = vmatmul.f32.gmra.mxu0 %v8416
    %v8731 = vpop.f32.mrf.mxu0
    %v8732 = vadd.f32 %v8712, %v8731
    %8733 = vdwg.mxu0
    %8734 = vmatpush.msra.mxu0 %v4586
    %8735 = vmatpush.msra.mxu0 %v4584
    %8736 = vmatpush.msra.mxu0 %v4582
    %8737 = vmatpush.msra.mxu0 %v4580
    %8738 = vmatpush.msra.mxu0 %v4578
    %8739 = vmatpush.msra.mxu0 %v4576
    %8740 = vmatpush.msra.mxu0 %v4574
    %8741 = vmatpush.msra.mxu0 %v4572
    %8742 = vmatpush.msra.mxu0 %v4570
    %8743 = vmatpush.msra.mxu0 %v4568
    %8744 = vmatpush.msra.mxu0 %v4566
    %8745 = vmatpush.msra.mxu0 %v4564
    %8746 = vmatpush.msra.mxu0 %v4562
    %8747 = vmatpush.msra.mxu0 %v4560
    %8748 = vmatpush.msra.mxu0 %v4558
    %8749 = vmatpush.msra.mxu0 %v4556
    %8750 = vmatmul.f32.gmra.mxu0 %v8419
    %v8751 = vpop.f32.mrf.mxu0
    %v8752 = vadd.f32 %v8732, %v8751
    %8753 = vdwg.mxu0
    %8754 = vmatpush.msra.mxu0 %v4618
    %8755 = vmatpush.msra.mxu0 %v4616
    %8756 = vmatpush.msra.mxu0 %v4614
    %8757 = vmatpush.msra.mxu0 %v4612
    %8758 = vmatpush.msra.mxu0 %v4610
    %8759 = vmatpush.msra.mxu0 %v4608
    %8760 = vmatpush.msra.mxu0 %v4606
    %8761 = vmatpush.msra.mxu0 %v4604
    %8762 = vmatpush.msra.mxu0 %v4602
    %8763 = vmatpush.msra.mxu0 %v4600
    %8764 = vmatpush.msra.mxu0 %v4598
    %8765 = vmatpush.msra.mxu0 %v4596
    %8766 = vmatpush.msra.mxu0 %v4594
    %8767 = vmatpush.msra.mxu0 %v4592
    %8768 = vmatpush.msra.mxu0 %v4590
    %8769 = vmatpush.msra.mxu0 %v4588
    %8770 = vmatmul.f32.gmra.mxu0 %v8376
    %v8771 = vpop.f32.mrf.mxu0
    %v8772 = vadd.f32 %v8752, %v8771
    %8773 = vdwg.mxu0
    %8774 = vmatpush.msra.mxu0 %v4650
    %8775 = vmatpush.msra.mxu0 %v4648
    %8776 = vmatpush.msra.mxu0 %v4646
    %8777 = vmatpush.msra.mxu0 %v4644
    %8778 = vmatpush.msra.mxu0 %v4642
    %8779 = vmatpush.msra.mxu0 %v4640
    %8780 = vmatpush.msra.mxu0 %v4638
    %8781 = vmatpush.msra.mxu0 %v4636
    %8782 = vmatpush.msra.mxu0 %v4634
    %8783 = vmatpush.msra.mxu0 %v4632
    %8784 = vmatpush.msra.mxu0 %v4630
    %8785 = vmatpush.msra.mxu0 %v4628
    %8786 = vmatpush.msra.mxu0 %v4626
    %8787 = vmatpush.msra.mxu0 %v4624
    %8788 = vmatpush.msra.mxu0 %v4622
    %8789 = vmatpush.msra.mxu0 %v4620
    %8790 = vmatmul.f32.gmra.mxu0 %v8377
    %v8791 = vpop.f32.mrf.mxu0
    %v8792 = vadd.f32 %v8772, %v8791
    %8793 = vdwg.mxu0
    %8794 = vmatpush.msra.mxu0 %v4682
    %8795 = vmatpush.msra.mxu0 %v4680
    %8796 = vmatpush.msra.mxu0 %v4678
    %8797 = vmatpush.msra.mxu0 %v4676
    %8798 = vmatpush.msra.mxu0 %v4674
    %8799 = vmatpush.msra.mxu0 %v4672
    %8800 = vmatpush.msra.mxu0 %v4670
    %8801 = vmatpush.msra.mxu0 %v4668
    %8802 = vmatpush.msra.mxu0 %v4666
    %8803 = vmatpush.msra.mxu0 %v4664
    %8804 = vmatpush.msra.mxu0 %v4662
    %8805 = vmatpush.msra.mxu0 %v4660
    %8806 = vmatpush.msra.mxu0 %v4658
    %8807 = vmatpush.msra.mxu0 %v4656
    %8808 = vmatpush.msra.mxu0 %v4654
    %8809 = vmatpush.msra.mxu0 %v4652
    %8810 = vmatmul.f32.gmra.mxu0 %v8422
    %v8811 = vpop.f32.mrf.mxu0
    %v8812 = vadd.f32 %v8792, %v8811
    %8813 = vdwg.mxu0
    %8814 = vmatpush.msra.mxu0 %v4714
    %8815 = vmatpush.msra.mxu0 %v4712
    %8816 = vmatpush.msra.mxu0 %v4710
    %8817 = vmatpush.msra.mxu0 %v4708
    %8818 = vmatpush.msra.mxu0 %v4706
    %8819 = vmatpush.msra.mxu0 %v4704
    %8820 = vmatpush.msra.mxu0 %v4702
    %8821 = vmatpush.msra.mxu0 %v4700
    %8822 = vmatpush.msra.mxu0 %v4698
    %8823 = vmatpush.msra.mxu0 %v4696
    %8824 = vmatpush.msra.mxu0 %v4694
    %8825 = vmatpush.msra.mxu0 %v4692
    %8826 = vmatpush.msra.mxu0 %v4690
    %8827 = vmatpush.msra.mxu0 %v4688
    %8828 = vmatpush.msra.mxu0 %v4686
    %8829 = vmatpush.msra.mxu0 %v4684
    %8830 = vmatmul.f32.gmra.mxu0 %v8423
    %v8831 = vpop.f32.mrf.mxu0
    %v8832 = vadd.f32 %v8812, %v8831
    %8833 = vdwg.mxu0
    %8834 = vmatpush.msra.mxu0 %v4746
    %8835 = vmatpush.msra.mxu0 %v4744
    %8836 = vmatpush.msra.mxu0 %v4742
    %8837 = vmatpush.msra.mxu0 %v4740
    %8838 = vmatpush.msra.mxu0 %v4738
    %8839 = vmatpush.msra.mxu0 %v4736
    %8840 = vmatpush.msra.mxu0 %v4734
    %8841 = vmatpush.msra.mxu0 %v4732
    %8842 = vmatpush.msra.mxu0 %v4730
    %8843 = vmatpush.msra.mxu0 %v4728
    %8844 = vmatpush.msra.mxu0 %v4726
    %8845 = vmatpush.msra.mxu0 %v4724
    %8846 = vmatpush.msra.mxu0 %v4722
    %8847 = vmatpush.msra.mxu0 %v4720
    %8848 = vmatpush.msra.mxu0 %v4718
    %8849 = vmatpush.msra.mxu0 %v4716
    %8850 = vmatmul.f32.gmra.mxu0 %v8426
    %v8851 = vpop.f32.mrf.mxu0
    %v8852 = vadd.f32 %v8832, %v8851
    %8853 = vdwg.mxu0
    %8854 = vmatpush.msra.mxu0 %v4778
    %8855 = vmatpush.msra.mxu0 %v4776
    %8856 = vmatpush.msra.mxu0 %v4774
    %8857 = vmatpush.msra.mxu0 %v4772
    %8858 = vmatpush.msra.mxu0 %v4770
    %8859 = vmatpush.msra.mxu0 %v4768
    %8860 = vmatpush.msra.mxu0 %v4766
    %8861 = vmatpush.msra.mxu0 %v4764
    %8862 = vmatpush.msra.mxu0 %v4762
    %8863 = vmatpush.msra.mxu0 %v4760
    %8864 = vmatpush.msra.mxu0 %v4758
    %8865 = vmatpush.msra.mxu0 %v4756
    %8866 = vmatpush.msra.mxu0 %v4754
    %8867 = vmatpush.msra.mxu0 %v4752
    %8868 = vmatpush.msra.mxu0 %v4750
    %8869 = vmatpush.msra.mxu0 %v4748
    %8870 = vmatmul.f32.gmra.mxu0 %v8427
    %v8871 = vpop.f32.mrf.mxu0
    %v8872 = vadd.f32 %v8852, %v8871
    %8873 = vdwg.mxu0
    %8874 = vmatpush.msra.mxu0 %v4810
    %8875 = vmatpush.msra.mxu0 %v4808
    %8876 = vmatpush.msra.mxu0 %v4806
    %8877 = vmatpush.msra.mxu0 %v4804
    %8878 = vmatpush.msra.mxu0 %v4802
    %8879 = vmatpush.msra.mxu0 %v4800
    %8880 = vmatpush.msra.mxu0 %v4798
    %8881 = vmatpush.msra.mxu0 %v4796
    %8882 = vmatpush.msra.mxu0 %v4794
    %8883 = vmatpush.msra.mxu0 %v4792
    %8884 = vmatpush.msra.mxu0 %v4790
    %8885 = vmatpush.msra.mxu0 %v4788
    %8886 = vmatpush.msra.mxu0 %v4786
    %8887 = vmatpush.msra.mxu0 %v4784
    %8888 = vmatpush.msra.mxu0 %v4782
    %8889 = vmatpush.msra.mxu0 %v4780
    %8890 = vmatmul.f32.gmra.mxu0 %v8430
    %v8891 = vpop.f32.mrf.mxu0
    %v8892 = vadd.f32 %v8872, %v8891
    %8893 = vdwg.mxu0
    %8894 = vmatpush.msra.mxu0 %v4842
    %8895 = vmatpush.msra.mxu0 %v4840
    %8896 = vmatpush.msra.mxu0 %v4838
    %8897 = vmatpush.msra.mxu0 %v4836
    %8898 = vmatpush.msra.mxu0 %v4834
    %8899 = vmatpush.msra.mxu0 %v4832
    %8900 = vmatpush.msra.mxu0 %v4830
    %8901 = vmatpush.msra.mxu0 %v4828
    %8902 = vmatpush.msra.mxu0 %v4826
    %8903 = vmatpush.msra.mxu0 %v4824
    %8904 = vmatpush.msra.mxu0 %v4822
    %8905 = vmatpush.msra.mxu0 %v4820
    %8906 = vmatpush.msra.mxu0 %v4818
    %8907 = vmatpush.msra.mxu0 %v4816
    %8908 = vmatpush.msra.mxu0 %v4814
    %8909 = vmatpush.msra.mxu0 %v4812
    %8910 = vmatmul.f32.gmra.mxu0 %v8431
    %v8911 = vpop.f32.mrf.mxu0
    %v8912 = vadd.f32 %v8892, %v8911
    %8913 = vdwg.mxu0
    %8914 = vmatpush.msra.mxu0 %v4107
    %8915 = vmatpush.msra.mxu0 %v4105
    %8916 = vmatpush.msra.mxu0 %v4103
    %8917 = vmatpush.msra.mxu0 %v4101
    %8918 = vmatpush.msra.mxu0 %v4099
    %8919 = vmatpush.msra.mxu0 %v4097
    %8920 = vmatpush.msra.mxu0 %v4095
    %8921 = vmatpush.msra.mxu0 %v4093
    %8922 = vmatpush.msra.mxu0 %v4091
    %8923 = vmatpush.msra.mxu0 %v4089
    %8924 = vmatpush.msra.mxu0 %v4087
    %8925 = vmatpush.msra.mxu0 %v4085
    %8926 = vmatpush.msra.mxu0 %v4083
    %8927 = vmatpush.msra.mxu0 %v4081
    %8928 = vmatpush.msra.mxu0 %v4079
    %8929 = vmatpush.msra.mxu0 %v4077
    %8930 = vmatmul.f32.gmra.mxu0 %v8374
    %v8931 = vpop.f32.mrf.mxu0
    %v8932 = vadd.f32 %v4847, %v8931
    %8933 = vdwg.mxu0
    %8934 = vmatpush.msra.mxu0 %v4139
    %8935 = vmatpush.msra.mxu0 %v4137
    %8936 = vmatpush.msra.mxu0 %v4135
    %8937 = vmatpush.msra.mxu0 %v4133
    %8938 = vmatpush.msra.mxu0 %v4131
    %8939 = vmatpush.msra.mxu0 %v4129
    %8940 = vmatpush.msra.mxu0 %v4127
    %8941 = vmatpush.msra.mxu0 %v4125
    %8942 = vmatpush.msra.mxu0 %v4123
    %8943 = vmatpush.msra.mxu0 %v4121
    %8944 = vmatpush.msra.mxu0 %v4119
    %8945 = vmatpush.msra.mxu0 %v4117
    %8946 = vmatpush.msra.mxu0 %v4115
    %8947 = vmatpush.msra.mxu0 %v4113
    %8948 = vmatpush.msra.mxu0 %v4111
    %8949 = vmatpush.msra.mxu0 %v4109
    %8950 = vmatmul.f32.gmra.mxu0 %v8375
    %v8951 = vpop.f32.mrf.mxu0
    %v8952 = vadd.f32 %v8932, %v8951
    %8953 = vdwg.mxu0
    %8954 = vmatpush.msra.mxu0 %v4171
    %8955 = vmatpush.msra.mxu0 %v4169
    %8956 = vmatpush.msra.mxu0 %v4167
    %8957 = vmatpush.msra.mxu0 %v4165
    %8958 = vmatpush.msra.mxu0 %v4163
    %8959 = vmatpush.msra.mxu0 %v4161
    %8960 = vmatpush.msra.mxu0 %v4159
    %8961 = vmatpush.msra.mxu0 %v4157
    %8962 = vmatpush.msra.mxu0 %v4155
    %8963 = vmatpush.msra.mxu0 %v4153
    %8964 = vmatpush.msra.mxu0 %v4151
    %8965 = vmatpush.msra.mxu0 %v4149
    %8966 = vmatpush.msra.mxu0 %v4147
    %8967 = vmatpush.msra.mxu0 %v4145
    %8968 = vmatpush.msra.mxu0 %v4143
    %8969 = vmatpush.msra.mxu0 %v4141
    %8970 = vmatmul.f32.gmra.mxu0 %v8380
    %v8971 = vpop.f32.mrf.mxu0
    %v8972 = vadd.f32 %v8952, %v8971
    %8973 = vdwg.mxu0
    %8974 = vmatpush.msra.mxu0 %v4203
    %8975 = vmatpush.msra.mxu0 %v4201
    %8976 = vmatpush.msra.mxu0 %v4199
    %8977 = vmatpush.msra.mxu0 %v4197
    %8978 = vmatpush.msra.mxu0 %v4195
    %8979 = vmatpush.msra.mxu0 %v4193
    %8980 = vmatpush.msra.mxu0 %v4191
    %8981 = vmatpush.msra.mxu0 %v4189
    %8982 = vmatpush.msra.mxu0 %v4187
    %8983 = vmatpush.msra.mxu0 %v4185
    %8984 = vmatpush.msra.mxu0 %v4183
    %8985 = vmatpush.msra.mxu0 %v4181
    %8986 = vmatpush.msra.mxu0 %v4179
    %8987 = vmatpush.msra.mxu0 %v4177
    %8988 = vmatpush.msra.mxu0 %v4175
    %8989 = vmatpush.msra.mxu0 %v4173
    %8990 = vmatmul.f32.gmra.mxu0 %v8381
    %v8991 = vpop.f32.mrf.mxu0
    %v8992 = vadd.f32 %v8972, %v8991
    %8993 = vdwg.mxu0
    %8994 = vmatpush.msra.mxu0 %v4235
    %8995 = vmatpush.msra.mxu0 %v4233
    %8996 = vmatpush.msra.mxu0 %v4231
    %8997 = vmatpush.msra.mxu0 %v4229
    %8998 = vmatpush.msra.mxu0 %v4227
    %8999 = vmatpush.msra.mxu0 %v4225
    %9000 = vmatpush.msra.mxu0 %v4223
    %9001 = vmatpush.msra.mxu0 %v4221
    %9002 = vmatpush.msra.mxu0 %v4219
    %9003 = vmatpush.msra.mxu0 %v4217
    %9004 = vmatpush.msra.mxu0 %v4215
    %9005 = vmatpush.msra.mxu0 %v4213
    %9006 = vmatpush.msra.mxu0 %v4211
    %9007 = vmatpush.msra.mxu0 %v4209
    %9008 = vmatpush.msra.mxu0 %v4207
    %9009 = vmatpush.msra.mxu0 %v4205
    %9010 = vmatmul.f32.gmra.mxu0 %v8384
    %v9011 = vpop.f32.mrf.mxu0
    %v9012 = vadd.f32 %v8992, %v9011
    %9013 = vdwg.mxu0
    %9014 = vmatpush.msra.mxu0 %v4267
    %9015 = vmatpush.msra.mxu0 %v4265
    %9016 = vmatpush.msra.mxu0 %v4263
    %9017 = vmatpush.msra.mxu0 %v4261
    %9018 = vmatpush.msra.mxu0 %v4259
    %9019 = vmatpush.msra.mxu0 %v4257
    %9020 = vmatpush.msra.mxu0 %v4255
    %9021 = vmatpush.msra.mxu0 %v4253
    %9022 = vmatpush.msra.mxu0 %v4251
    %9023 = vmatpush.msra.mxu0 %v4249
    %9024 = vmatpush.msra.mxu0 %v4247
    %9025 = vmatpush.msra.mxu0 %v4245
    %9026 = vmatpush.msra.mxu0 %v4243
    %9027 = vmatpush.msra.mxu0 %v4241
    %9028 = vmatpush.msra.mxu0 %v4239
    %9029 = vmatpush.msra.mxu0 %v4237
    %9030 = vmatmul.f32.gmra.mxu0 %v8385
    %v9031 = vpop.f32.mrf.mxu0
    %v9032 = vadd.f32 %v9012, %v9031
    %9033 = vdwg.mxu0
    %9034 = vmatpush.msra.mxu0 %v4299
    %9035 = vmatpush.msra.mxu0 %v4297
    %9036 = vmatpush.msra.mxu0 %v4295
    %9037 = vmatpush.msra.mxu0 %v4293
    %9038 = vmatpush.msra.mxu0 %v4291
    %9039 = vmatpush.msra.mxu0 %v4289
    %9040 = vmatpush.msra.mxu0 %v4287
    %9041 = vmatpush.msra.mxu0 %v4285
    %9042 = vmatpush.msra.mxu0 %v4283
    %9043 = vmatpush.msra.mxu0 %v4281
    %9044 = vmatpush.msra.mxu0 %v4279
    %9045 = vmatpush.msra.mxu0 %v4277
    %9046 = vmatpush.msra.mxu0 %v4275
    %9047 = vmatpush.msra.mxu0 %v4273
    %9048 = vmatpush.msra.mxu0 %v4271
    %9049 = vmatpush.msra.mxu0 %v4269
    %9050 = vmatmul.f32.gmra.mxu0 %v8388
    %v9051 = vpop.f32.mrf.mxu0
    %v9052 = vadd.f32 %v9032, %v9051
    %9053 = vdwg.mxu0
    %9054 = vmatpush.msra.mxu0 %v4331
    %9055 = vmatpush.msra.mxu0 %v4329
    %9056 = vmatpush.msra.mxu0 %v4327
    %9057 = vmatpush.msra.mxu0 %v4325
    %9058 = vmatpush.msra.mxu0 %v4323
    %9059 = vmatpush.msra.mxu0 %v4321
    %9060 = vmatpush.msra.mxu0 %v4319
    %9061 = vmatpush.msra.mxu0 %v4317
    %9062 = vmatpush.msra.mxu0 %v4315
    %9063 = vmatpush.msra.mxu0 %v4313
    %9064 = vmatpush.msra.mxu0 %v4311
    %9065 = vmatpush.msra.mxu0 %v4309
    %9066 = vmatpush.msra.mxu0 %v4307
    %9067 = vmatpush.msra.mxu0 %v4305
    %9068 = vmatpush.msra.mxu0 %v4303
    %9069 = vmatpush.msra.mxu0 %v4301
    %9070 = vmatmul.f32.gmra.mxu0 %v8389
    %v9071 = vpop.f32.mrf.mxu0
    %v9072 = vadd.f32 %v9052, %v9071
    %9073 = vdwg.mxu0
    %9074 = vmatpush.msra.mxu0 %v4363
    %9075 = vmatpush.msra.mxu0 %v4361
    %9076 = vmatpush.msra.mxu0 %v4359
    %9077 = vmatpush.msra.mxu0 %v4357
    %9078 = vmatpush.msra.mxu0 %v4355
    %9079 = vmatpush.msra.mxu0 %v4353
    %9080 = vmatpush.msra.mxu0 %v4351
    %9081 = vmatpush.msra.mxu0 %v4349
    %9082 = vmatpush.msra.mxu0 %v4347
    %9083 = vmatpush.msra.mxu0 %v4345
    %9084 = vmatpush.msra.mxu0 %v4343
    %9085 = vmatpush.msra.mxu0 %v4341
    %9086 = vmatpush.msra.mxu0 %v4339
    %9087 = vmatpush.msra.mxu0 %v4337
    %9088 = vmatpush.msra.mxu0 %v4335
    %9089 = vmatpush.msra.mxu0 %v4333
    %9090 = vmatmul.f32.gmra.mxu0 %v8392
    %v9091 = vpop.f32.mrf.mxu0
    %v9092 = vadd.f32 %v9072, %v9091
    %9093 = vdwg.mxu0
    %9094 = vmatpush.msra.mxu0 %v4395
    %9095 = vmatpush.msra.mxu0 %v4393
    %9096 = vmatpush.msra.mxu0 %v4391
    %9097 = vmatpush.msra.mxu0 %v4389
    %9098 = vmatpush.msra.mxu0 %v4387
    %9099 = vmatpush.msra.mxu0 %v4385
    %9100 = vmatpush.msra.mxu0 %v4383
    %9101 = vmatpush.msra.mxu0 %v4381
    %9102 = vmatpush.msra.mxu0 %v4379
    %9103 = vmatpush.msra.mxu0 %v4377
    %9104 = vmatpush.msra.mxu0 %v4375
    %9105 = vmatpush.msra.mxu0 %v4373
    %9106 = vmatpush.msra.mxu0 %v4371
    %9107 = vmatpush.msra.mxu0 %v4369
    %9108 = vmatpush.msra.mxu0 %v4367
    %9109 = vmatpush.msra.mxu0 %v4365
    %9110 = vmatmul.f32.gmra.mxu0 %v8393
    %v9111 = vpop.f32.mrf.mxu0
    %v9112 = vadd.f32 %v9092, %v9111
    %9113 = vdwg.mxu0
    %9114 = vmatpush.msra.mxu0 %v4427
    %9115 = vmatpush.msra.mxu0 %v4425
    %9116 = vmatpush.msra.mxu0 %v4423
    %9117 = vmatpush.msra.mxu0 %v4421
    %9118 = vmatpush.msra.mxu0 %v4419
    %9119 = vmatpush.msra.mxu0 %v4417
    %9120 = vmatpush.msra.mxu0 %v4415
    %9121 = vmatpush.msra.mxu0 %v4413
    %9122 = vmatpush.msra.mxu0 %v4411
    %9123 = vmatpush.msra.mxu0 %v4409
    %9124 = vmatpush.msra.mxu0 %v4407
    %9125 = vmatpush.msra.mxu0 %v4405
    %9126 = vmatpush.msra.mxu0 %v4403
    %9127 = vmatpush.msra.mxu0 %v4401
    %9128 = vmatpush.msra.mxu0 %v4399
    %9129 = vmatpush.msra.mxu0 %v4397
    %9130 = vmatmul.f32.gmra.mxu0 %v8400
    %v9131 = vpop.f32.mrf.mxu0
    %v9132 = vadd.f32 %v9112, %v9131
    %9133 = vdwg.mxu0
    %9134 = vmatpush.msra.mxu0 %v4459
    %9135 = vmatpush.msra.mxu0 %v4457
    %9136 = vmatpush.msra.mxu0 %v4455
    %9137 = vmatpush.msra.mxu0 %v4453
    %9138 = vmatpush.msra.mxu0 %v4451
    %9139 = vmatpush.msra.mxu0 %v4449
    %9140 = vmatpush.msra.mxu0 %v4447
    %9141 = vmatpush.msra.mxu0 %v4445
    %9142 = vmatpush.msra.mxu0 %v4443
    %9143 = vmatpush.msra.mxu0 %v4441
    %9144 = vmatpush.msra.mxu0 %v4439
    %9145 = vmatpush.msra.mxu0 %v4437
    %9146 = vmatpush.msra.mxu0 %v4435
    %9147 = vmatpush.msra.mxu0 %v4433
    %9148 = vmatpush.msra.mxu0 %v4431
    %9149 = vmatpush.msra.mxu0 %v4429
    %9150 = vmatmul.f32.gmra.mxu0 %v8403
    %v9151 = vpop.f32.mrf.mxu0
    %v9152 = vadd.f32 %v9132, %v9151
    %9153 = vdwg.mxu0
    %9154 = vmatpush.msra.mxu0 %v4491
    %9155 = vmatpush.msra.mxu0 %v4489
    %9156 = vmatpush.msra.mxu0 %v4487
    %9157 = vmatpush.msra.mxu0 %v4485
    %9158 = vmatpush.msra.mxu0 %v4483
    %9159 = vmatpush.msra.mxu0 %v4481
    %9160 = vmatpush.msra.mxu0 %v4479
    %9161 = vmatpush.msra.mxu0 %v4477
    %9162 = vmatpush.msra.mxu0 %v4475
    %9163 = vmatpush.msra.mxu0 %v4473
    %9164 = vmatpush.msra.mxu0 %v4471
    %9165 = vmatpush.msra.mxu0 %v4469
    %9166 = vmatpush.msra.mxu0 %v4467
    %9167 = vmatpush.msra.mxu0 %v4465
    %9168 = vmatpush.msra.mxu0 %v4463
    %9169 = vmatpush.msra.mxu0 %v4461
    %9170 = vmatmul.f32.gmra.mxu0 %v8408
    %v9171 = vpop.f32.mrf.mxu0
    %v9172 = vadd.f32 %v9152, %v9171
    %9173 = vdwg.mxu0
    %9174 = vmatpush.msra.mxu0 %v4523
    %9175 = vmatpush.msra.mxu0 %v4521
    %9176 = vmatpush.msra.mxu0 %v4519
    %9177 = vmatpush.msra.mxu0 %v4517
    %9178 = vmatpush.msra.mxu0 %v4515
    %9179 = vmatpush.msra.mxu0 %v4513
    %9180 = vmatpush.msra.mxu0 %v4511
    %9181 = vmatpush.msra.mxu0 %v4509
    %9182 = vmatpush.msra.mxu0 %v4507
    %9183 = vmatpush.msra.mxu0 %v4505
    %9184 = vmatpush.msra.mxu0 %v4503
    %9185 = vmatpush.msra.mxu0 %v4501
    %9186 = vmatpush.msra.mxu0 %v4499
    %9187 = vmatpush.msra.mxu0 %v4497
    %9188 = vmatpush.msra.mxu0 %v4495
    %9189 = vmatpush.msra.mxu0 %v4493
    %9190 = vmatmul.f32.gmra.mxu0 %v8411
    %v9191 = vpop.f32.mrf.mxu0
    %v9192 = vadd.f32 %v9172, %v9191
    %9193 = vdwg.mxu0
    %9194 = vmatpush.msra.mxu0 %v4555
    %9195 = vmatpush.msra.mxu0 %v4553
    %9196 = vmatpush.msra.mxu0 %v4551
    %9197 = vmatpush.msra.mxu0 %v4549
    %9198 = vmatpush.msra.mxu0 %v4547
    %9199 = vmatpush.msra.mxu0 %v4545
    %9200 = vmatpush.msra.mxu0 %v4543
    %9201 = vmatpush.msra.mxu0 %v4541
    %9202 = vmatpush.msra.mxu0 %v4539
    %9203 = vmatpush.msra.mxu0 %v4537
    %9204 = vmatpush.msra.mxu0 %v4535
    %9205 = vmatpush.msra.mxu0 %v4533
    %9206 = vmatpush.msra.mxu0 %v4531
    %9207 = vmatpush.msra.mxu0 %v4529
    %9208 = vmatpush.msra.mxu0 %v4527
    %9209 = vmatpush.msra.mxu0 %v4525
    %9210 = vmatmul.f32.gmra.mxu0 %v8416
    %v9211 = vpop.f32.mrf.mxu0
    %v9212 = vadd.f32 %v9192, %v9211
    %9213 = vdwg.mxu0
    %9214 = vmatpush.msra.mxu0 %v4587
    %9215 = vmatpush.msra.mxu0 %v4585
    %9216 = vmatpush.msra.mxu0 %v4583
    %9217 = vmatpush.msra.mxu0 %v4581
    %9218 = vmatpush.msra.mxu0 %v4579
    %9219 = vmatpush.msra.mxu0 %v4577
    %9220 = vmatpush.msra.mxu0 %v4575
    %9221 = vmatpush.msra.mxu0 %v4573
    %9222 = vmatpush.msra.mxu0 %v4571
    %9223 = vmatpush.msra.mxu0 %v4569
    %9224 = vmatpush.msra.mxu0 %v4567
    %9225 = vmatpush.msra.mxu0 %v4565
    %9226 = vmatpush.msra.mxu0 %v4563
    %9227 = vmatpush.msra.mxu0 %v4561
    %9228 = vmatpush.msra.mxu0 %v4559
    %9229 = vmatpush.msra.mxu0 %v4557
    %9230 = vmatmul.f32.gmra.mxu0 %v8419
    %v9231 = vpop.f32.mrf.mxu0
    %v9232 = vadd.f32 %v9212, %v9231
    %9233 = vdwg.mxu0
    %9234 = vmatpush.msra.mxu0 %v4619
    %9235 = vmatpush.msra.mxu0 %v4617
    %9236 = vmatpush.msra.mxu0 %v4615
    %9237 = vmatpush.msra.mxu0 %v4613
    %9238 = vmatpush.msra.mxu0 %v4611
    %9239 = vmatpush.msra.mxu0 %v4609
    %9240 = vmatpush.msra.mxu0 %v4607
    %9241 = vmatpush.msra.mxu0 %v4605
    %9242 = vmatpush.msra.mxu0 %v4603
    %9243 = vmatpush.msra.mxu0 %v4601
    %9244 = vmatpush.msra.mxu0 %v4599
    %9245 = vmatpush.msra.mxu0 %v4597
    %9246 = vmatpush.msra.mxu0 %v4595
    %9247 = vmatpush.msra.mxu0 %v4593
    %9248 = vmatpush.msra.mxu0 %v4591
    %9249 = vmatpush.msra.mxu0 %v4589
    %9250 = vmatmul.f32.gmra.mxu0 %v8376
    %v9251 = vpop.f32.mrf.mxu0
    %v9252 = vadd.f32 %v9232, %v9251
    %9253 = vdwg.mxu0
    %9254 = vmatpush.msra.mxu0 %v4651
    %9255 = vmatpush.msra.mxu0 %v4649
    %9256 = vmatpush.msra.mxu0 %v4647
    %9257 = vmatpush.msra.mxu0 %v4645
    %9258 = vmatpush.msra.mxu0 %v4643
    %9259 = vmatpush.msra.mxu0 %v4641
    %9260 = vmatpush.msra.mxu0 %v4639
    %9261 = vmatpush.msra.mxu0 %v4637
    %9262 = vmatpush.msra.mxu0 %v4635
    %9263 = vmatpush.msra.mxu0 %v4633
    %9264 = vmatpush.msra.mxu0 %v4631
    %9265 = vmatpush.msra.mxu0 %v4629
    %9266 = vmatpush.msra.mxu0 %v4627
    %9267 = vmatpush.msra.mxu0 %v4625
    %9268 = vmatpush.msra.mxu0 %v4623
    %9269 = vmatpush.msra.mxu0 %v4621
    %9270 = vmatmul.f32.gmra.mxu0 %v8377
    %v9271 = vpop.f32.mrf.mxu0
    %v9272 = vadd.f32 %v9252, %v9271
    %9273 = vdwg.mxu0
    %9274 = vmatpush.msra.mxu0 %v4683
    %9275 = vmatpush.msra.mxu0 %v4681
    %9276 = vmatpush.msra.mxu0 %v4679
    %9277 = vmatpush.msra.mxu0 %v4677
    %9278 = vmatpush.msra.mxu0 %v4675
    %9279 = vmatpush.msra.mxu0 %v4673
    %9280 = vmatpush.msra.mxu0 %v4671
    %9281 = vmatpush.msra.mxu0 %v4669
    %9282 = vmatpush.msra.mxu0 %v4667
    %9283 = vmatpush.msra.mxu0 %v4665
    %9284 = vmatpush.msra.mxu0 %v4663
    %9285 = vmatpush.msra.mxu0 %v4661
    %9286 = vmatpush.msra.mxu0 %v4659
    %9287 = vmatpush.msra.mxu0 %v4657
    %9288 = vmatpush.msra.mxu0 %v4655
    %9289 = vmatpush.msra.mxu0 %v4653
    %9290 = vmatmul.f32.gmra.mxu0 %v8422
    %v9291 = vpop.f32.mrf.mxu0
    %v9292 = vadd.f32 %v9272, %v9291
    %9293 = vdwg.mxu0
    %9294 = vmatpush.msra.mxu0 %v4715
    %9295 = vmatpush.msra.mxu0 %v4713
    %9296 = vmatpush.msra.mxu0 %v4711
    %9297 = vmatpush.msra.mxu0 %v4709
    %9298 = vmatpush.msra.mxu0 %v4707
    %9299 = vmatpush.msra.mxu0 %v4705
    %9300 = vmatpush.msra.mxu0 %v4703
    %9301 = vmatpush.msra.mxu0 %v4701
    %9302 = vmatpush.msra.mxu0 %v4699
    %9303 = vmatpush.msra.mxu0 %v4697
    %9304 = vmatpush.msra.mxu0 %v4695
    %9305 = vmatpush.msra.mxu0 %v4693
    %9306 = vmatpush.msra.mxu0 %v4691
    %9307 = vmatpush.msra.mxu0 %v4689
    %9308 = vmatpush.msra.mxu0 %v4687
    %9309 = vmatpush.msra.mxu0 %v4685
    %9310 = vmatmul.f32.gmra.mxu0 %v8423
    %v9311 = vpop.f32.mrf.mxu0
    %v9312 = vadd.f32 %v9292, %v9311
    %9313 = vdwg.mxu0
    %9314 = vmatpush.msra.mxu0 %v4747
    %9315 = vmatpush.msra.mxu0 %v4745
    %9316 = vmatpush.msra.mxu0 %v4743
    %9317 = vmatpush.msra.mxu0 %v4741
    %9318 = vmatpush.msra.mxu0 %v4739
    %9319 = vmatpush.msra.mxu0 %v4737
    %9320 = vmatpush.msra.mxu0 %v4735
    %9321 = vmatpush.msra.mxu0 %v4733
    %9322 = vmatpush.msra.mxu0 %v4731
    %9323 = vmatpush.msra.mxu0 %v4729
    %9324 = vmatpush.msra.mxu0 %v4727
    %9325 = vmatpush.msra.mxu0 %v4725
    %9326 = vmatpush.msra.mxu0 %v4723
    %9327 = vmatpush.msra.mxu0 %v4721
    %9328 = vmatpush.msra.mxu0 %v4719
    %9329 = vmatpush.msra.mxu0 %v4717
    %9330 = vmatmul.f32.gmra.mxu0 %v8426
    %v9331 = vpop.f32.mrf.mxu0
    %v9332 = vadd.f32 %v9312, %v9331
    %9333 = vdwg.mxu0
    %9334 = vmatpush.msra.mxu0 %v4779
    %9335 = vmatpush.msra.mxu0 %v4777
    %9336 = vmatpush.msra.mxu0 %v4775
    %9337 = vmatpush.msra.mxu0 %v4773
    %9338 = vmatpush.msra.mxu0 %v4771
    %9339 = vmatpush.msra.mxu0 %v4769
    %9340 = vmatpush.msra.mxu0 %v4767
    %9341 = vmatpush.msra.mxu0 %v4765
    %9342 = vmatpush.msra.mxu0 %v4763
    %9343 = vmatpush.msra.mxu0 %v4761
    %9344 = vmatpush.msra.mxu0 %v4759
    %9345 = vmatpush.msra.mxu0 %v4757
    %9346 = vmatpush.msra.mxu0 %v4755
    %9347 = vmatpush.msra.mxu0 %v4753
    %9348 = vmatpush.msra.mxu0 %v4751
    %9349 = vmatpush.msra.mxu0 %v4749
    %9350 = vmatmul.f32.gmra.mxu0 %v8427
    %v9351 = vpop.f32.mrf.mxu0
    %v9352 = vadd.f32 %v9332, %v9351
    %9353 = vdwg.mxu0
    %9354 = vmatpush.msra.mxu0 %v4811
    %9355 = vmatpush.msra.mxu0 %v4809
    %9356 = vmatpush.msra.mxu0 %v4807
    %9357 = vmatpush.msra.mxu0 %v4805
    %9358 = vmatpush.msra.mxu0 %v4803
    %9359 = vmatpush.msra.mxu0 %v4801
    %9360 = vmatpush.msra.mxu0 %v4799
    %9361 = vmatpush.msra.mxu0 %v4797
    %9362 = vmatpush.msra.mxu0 %v4795
    %9363 = vmatpush.msra.mxu0 %v4793
    %9364 = vmatpush.msra.mxu0 %v4791
    %9365 = vmatpush.msra.mxu0 %v4789
    %9366 = vmatpush.msra.mxu0 %v4787
    %9367 = vmatpush.msra.mxu0 %v4785
    %9368 = vmatpush.msra.mxu0 %v4783
    %9369 = vmatpush.msra.mxu0 %v4781
    %9370 = vmatmul.f32.gmra.mxu0 %v8430
    %v9371 = vpop.f32.mrf.mxu0
    %v9372 = vadd.f32 %v9352, %v9371
    %9373 = vdwg.mxu0
    %9374 = vmatpush.msra.mxu0 %v4843
    %9375 = vmatpush.msra.mxu0 %v4841
    %9376 = vmatpush.msra.mxu0 %v4839
    %9377 = vmatpush.msra.mxu0 %v4837
    %9378 = vmatpush.msra.mxu0 %v4835
    %9379 = vmatpush.msra.mxu0 %v4833
    %9380 = vmatpush.msra.mxu0 %v4831
    %9381 = vmatpush.msra.mxu0 %v4829
    %9382 = vmatpush.msra.mxu0 %v4827
    %9383 = vmatpush.msra.mxu0 %v4825
    %9384 = vmatpush.msra.mxu0 %v4823
    %9385 = vmatpush.msra.mxu0 %v4821
    %9386 = vmatpush.msra.mxu0 %v4819
    %9387 = vmatpush.msra.mxu0 %v4817
    %9388 = vmatpush.msra.mxu0 %v4815
    %9389 = vmatpush.msra.mxu0 %v4813
    %9390 = vmatmul.f32.gmra.mxu0 %v8431
    %v9391 = vpop.f32.mrf.mxu0
    %v9392 = vadd.f32 %v9372, %v9391
    %9393 = vdwg.mxu0
    %v9394 = vmax.f32 %v8912, 0.0
    %v9395 = vmax.f32 %v9392, 0.0
    %v9396 = vsel %vm429, %v9394, 0.0
    %v9397 = vrot.slane %v9396, 4
    %v9398 = vadd.f32 %v9396, %v9397
    %v9399 = vrot.slane %v9398, 2
    %v9400 = vadd.f32 %v9398, %v9399
    %v9401 = vrot.slane %v9400, 1
    %v9402 = vadd.f32 %v9400, %v9401
    %v9403 = vsel %vm429, %v9395, 0.0
    %v9404 = vrot.slane %v9403, 4
    %v9405 = vadd.f32 %v9403, %v9404
    %v9406 = vrot.slane %v9405, 2
    %v9407 = vadd.f32 %v9405, %v9406
    %v9408 = vrot.slane %v9407, 1
    %v9409 = vadd.f32 %v9407, %v9408
    %v9410 = vmul.f32 %v9402, %v3838
    %v9411 = vmul.f32 %v9409, %v3838
    %9412 = vmatpush.msra.mxu0 %v5843
    %9413 = vmatpush.msra.mxu0 %v5842
    %9414 = vmatpush.msra.mxu0 %v5841
    %9415 = vmatpush.msra.mxu0 %v5840
    %9416 = vmatpush.msra.mxu0 %v5839
    %9417 = vmatpush.msra.mxu0 %v5838
    %9418 = vmatpush.msra.mxu0 %v5837
    %9419 = vmatpush.msra.mxu0 %v5836
    %9420 = vmatpush.msra.mxu0 %v5835
    %9421 = vmatpush.msra.mxu0 %v5834
    %9422 = vmatpush.msra.mxu0 %v5833
    %9423 = vmatpush.msra.mxu0 %v5832
    %9424 = vmatpush.msra.mxu0 %v5831
    %9425 = vmatpush.msra.mxu0 %v5830
    %9426 = vmatpush.msra.mxu0 %v5829
    %9427 = vmatpush.msra.mxu0 %v5828
    %9428 = vmatmul.f32.gmra.mxu0 %v9410
    %v9429 = vpop.f32.mrf.mxu0
    %v9430 = vadd.f32 0.0, %v9429
    %9431 = vdwg.mxu0
    %9432 = vmatpush.msra.mxu0 %v5859
    %9433 = vmatpush.msra.mxu0 %v5858
    %9434 = vmatpush.msra.mxu0 %v5857
    %9435 = vmatpush.msra.mxu0 %v5856
    %9436 = vmatpush.msra.mxu0 %v5855
    %9437 = vmatpush.msra.mxu0 %v5854
    %9438 = vmatpush.msra.mxu0 %v5853
    %9439 = vmatpush.msra.mxu0 %v5852
    %9440 = vmatpush.msra.mxu0 %v5851
    %9441 = vmatpush.msra.mxu0 %v5850
    %9442 = vmatpush.msra.mxu0 %v5849
    %9443 = vmatpush.msra.mxu0 %v5848
    %9444 = vmatpush.msra.mxu0 %v5847
    %9445 = vmatpush.msra.mxu0 %v5846
    %9446 = vmatpush.msra.mxu0 %v5845
    %9447 = vmatpush.msra.mxu0 %v5844
    %9448 = vmatmul.f32.gmra.mxu0 %v9411
    %v9449 = vpop.f32.mrf.mxu0
    %v9450 = vadd.f32 %v9430, %v9449
    %9451 = vdwg.mxu0
    %v9452 = vmax.f32 %v9450, 0.0
    %v9454 = vsel %vm3918, %v9452, 0
    %9456 = vmatpush.msra.mxu0 0.0
    %9457 = vmatpush.msra.mxu0 0.0
    %9458 = vmatpush.msra.mxu0 0.0
    %9459 = vmatpush.msra.mxu0 0.0
    %9460 = vmatpush.msra.mxu0 0.0
    %9461 = vmatpush.msra.mxu0 0.0
    %9462 = vmatpush.msra.mxu0 0.0
    %9463 = vmatpush.msra.mxu0 0.0
    %9464 = vmatpush.msra.mxu0 0.0
    %9465 = vmatpush.msra.mxu0 0.0
    %9466 = vmatpush.msra.mxu0 0.0
    %9467 = vmatpush.msra.mxu0 0.0
    %9468 = vmatpush.msra.mxu0 0.0
    %9469 = vmatpush.msra.mxu0 0.0
    %9470 = vmatpush.msra.mxu0 %v5909
    %9471 = vmatpush.msra.mxu0 %v5901
    %9472 = vmatmul.f32.gmra.mxu0 %v9454
    %v9473 = vpop.f32.mrf.mxu0
    %v9474 = vadd.f32 0.0, %v9473
    %9475 = vdwg.mxu0
    %9476 = vmatpush.msra.mxu0 0.0
    %9477 = vmatpush.msra.mxu0 0.0
    %9478 = vmatpush.msra.mxu0 0.0
    %9479 = vmatpush.msra.mxu0 0.0
    %9480 = vmatpush.msra.mxu0 0.0
    %9481 = vmatpush.msra.mxu0 0.0
    %9482 = vmatpush.msra.mxu0 0.0
    %9483 = vmatpush.msra.mxu0 0.0
    %9484 = vmatpush.msra.mxu0 0.0
    %9485 = vmatpush.msra.mxu0 0.0
    %9486 = vmatpush.msra.mxu0 0.0
    %9487 = vmatpush.msra.mxu0 0.0
    %9488 = vmatpush.msra.mxu0 0.0
    %9489 = vmatpush.msra.mxu0 0.0
    %9490 = vmatpush.msra.mxu0 %v5912
    %9491 = vmatpush.msra.mxu0 %v5902
    %9492 = vmatmul.f32.gmra.mxu0 %v9454
    %v9493 = vpop.f32.mrf.mxu0
    %v9494 = vadd.f32 0.0, %v9493
    %9495 = vdwg.mxu0
    %v9496 = vxor.u32 %v9474, 2147483648
    %v9497 = vxor.u32 %v9494, 2147483648
    %v9498 = vmul.f32 %v9496, 1.442695
    %v9499 = vpow.pop %v9498
    %v9500 = vmul.f32 %v9497, 1.442695
    %v9501 = vpow.pop %v9500
    %v9502 = vadd.f32 %v9499, 1.0
    %v9503 = vadd.f32 %v9501, 1.0
    %v9504 = vrcp.pop %v9502
    %v9505 = vmul.f32 %v9502, %v9504
    %v9506 = vsub.f32 1.0, %v9505
    %v9507 = vmul.f32 %v9504, %v9506
    %v9508 = vadd.f32 %v9504, %v9507
    %vm9509 = vweird.f32 %v9502
    %vm9510 = vweird.f32 %v9504
    %vm9511 = vmor %vm9509, %vm9510
    %v9512 = vsel %vm9511, %v9504, %v9508
    %v9513 = vand.u32 2147483647, %v9502
    %vm9514 = vcmp.eq.f32.partialorder %v9513, 8.507059e+37
    %v9515 = vand.u32 %v9502, 2147483648
    %v9516 = vor.u32 1.1754944e-38, %v9515
    %v9517 = vsel %vm9514, %v9516, %v9512
    %v9518 = vmul.f32 1.0, %v9517
    %v9519 = vrcp.pop %v9503
    %v9520 = vmul.f32 %v9503, %v9519
    %v9521 = vsub.f32 1.0, %v9520
    %v9522 = vmul.f32 %v9519, %v9521
    %v9523 = vadd.f32 %v9519, %v9522
    %vm9524 = vweird.f32 %v9503
    %vm9525 = vweird.f32 %v9519
    %vm9526 = vmor %vm9524, %vm9525
    %v9527 = vsel %vm9526, %v9519, %v9523
    %v9528 = vand.u32 2147483647, %v9503
    %vm9529 = vcmp.eq.f32.partialorder %v9528, 8.507059e+37
    %v9530 = vand.u32 %v9503, 2147483648
    %v9531 = vor.u32 1.1754944e-38, %v9530
    %v9532 = vsel %vm9529, %v9531, %v9527
    %v9533 = vmul.f32 1.0, %v9532
    %v9534 = vperm.slane %v9518, 0
    %v9535 = vperm.slane %v9533, 0
    %v9536 = vmul.f32 %v9394, %v9534
    %v9537 = vmul.f32 %v9395, %v9535
    %v9538 = vsel %vm429, %v9536, 0.0
    %v9539 = vrot.slane %v9538, 4
    %v9540 = vadd.f32 %v9538, %v9539
    %v9541 = vrot.slane %v9540, 2
    %v9542 = vadd.f32 %v9540, %v9541
    %v9543 = vrot.slane %v9542, 1
    %v9544 = vadd.f32 %v9542, %v9543
    %v9545 = vsel %vm429, %v9537, 0.0
    %v9546 = vrot.slane %v9545, 4
    %v9547 = vadd.f32 %v9545, %v9546
    %v9548 = vrot.slane %v9547, 2
    %v9549 = vadd.f32 %v9547, %v9548
    %v9550 = vrot.slane %v9549, 1
    %v9551 = vadd.f32 %v9549, %v9550
    %v9552 = vmul.f32 %v9544, %v3838
    %v9553 = vmul.f32 %v9551, %v3838
    %9554 = vmatpush.msra.mxu0 %v6027
    %9555 = vmatpush.msra.mxu0 %v6026
    %9556 = vmatpush.msra.mxu0 %v6025
    %9557 = vmatpush.msra.mxu0 %v6024
    %9558 = vmatpush.msra.mxu0 %v6023
    %9559 = vmatpush.msra.mxu0 %v6022
    %9560 = vmatpush.msra.mxu0 %v6021
    %9561 = vmatpush.msra.mxu0 %v6020
    %9562 = vmatpush.msra.mxu0 %v6019
    %9563 = vmatpush.msra.mxu0 %v6018
    %9564 = vmatpush.msra.mxu0 %v6017
    %9565 = vmatpush.msra.mxu0 %v6016
    %9566 = vmatpush.msra.mxu0 %v6015
    %9567 = vmatpush.msra.mxu0 %v6014
    %9568 = vmatpush.msra.mxu0 %v6013
    %9569 = vmatpush.msra.mxu0 %v6012
    %9570 = vmatmul.f32.gmra.mxu0 %v9552
    %v9571 = vpop.f32.mrf.mxu0
    %v9572 = vadd.f32 %v6044, %v9571
    %9573 = vdwg.mxu0
    %9574 = vmatpush.msra.mxu0 %v6043
    %9575 = vmatpush.msra.mxu0 %v6042
    %9576 = vmatpush.msra.mxu0 %v6041
    %9577 = vmatpush.msra.mxu0 %v6040
    %9578 = vmatpush.msra.mxu0 %v6039
    %9579 = vmatpush.msra.mxu0 %v6038
    %9580 = vmatpush.msra.mxu0 %v6037
    %9581 = vmatpush.msra.mxu0 %v6036
    %9582 = vmatpush.msra.mxu0 %v6035
    %9583 = vmatpush.msra.mxu0 %v6034
    %9584 = vmatpush.msra.mxu0 %v6033
    %9585 = vmatpush.msra.mxu0 %v6032
    %9586 = vmatpush.msra.mxu0 %v6031
    %9587 = vmatpush.msra.mxu0 %v6030
    %9588 = vmatpush.msra.mxu0 %v6029
    %9589 = vmatpush.msra.mxu0 %v6028
    %9590 = vmatmul.f32.gmra.mxu0 %v9553
    %v9591 = vpop.f32.mrf.mxu0
    %v9592 = vadd.f32 %v9572, %v9591
    %9593 = vdwg.mxu0
    %v9595 = vrot.slane %v9592, 7
    %v9597 = vsel %vm453, %v6083, %v9595
    %9598 = vst [vmem:[#allocation35] sm:$0x3] %v9597
    // Predicated region
    $region194: #{tpu_custom_call.1} parent=1 // pred_check
      _
    $region195: #{tpu_custom_call.1} parent=1 // pred_check_branch
      %9600 = sbr.rel (0) target = $region197
    $region196: #{tpu_custom_call.1} parent=1 // pred_region
      %9602 = vsyncadd [#allocation4], 0
      %s9604 = sshll.u32 [#allocation35], 4
      %s9605 = int_to_ptr.vmem [resolvable:$true] %s9604
      %s9606 = sshll.u32 %s27, 4
      %s9607 = int_to_ptr.hbm [resolvable:$true] %s9606
      %9609 = dma.vmem_to_hbm [thread:$0]  %s9605, 32, %s9607, [#allocation4]
    $region197: #{tpu_custom_call.1} parent=1 // pred_fallthru
      _
    // Predicated region
    $region198: #{tpu_custom_call.1} parent=1 // pred_check
      _
    $region199: #{tpu_custom_call.1} parent=1 // pred_check_branch
      %9611 = sbr.rel (0) target = $region201
    $region200: #{tpu_custom_call.1} parent=1 // pred_region
      %9613 = dma.done [#allocation4], 32
    $region201: #{tpu_custom_call.1} parent=1 // pred_fallthru
      _
    %9614 = vsyncpa [#allocation3], 1
    %9615 = vsyncpa [#allocation6], 1
    %9616 = vsyncpa [#allocation9], 1
    %9617 = vsyncpa [#allocation12], 1
    %9618 = vsyncpa [#allocation15], 1
    %9619 = vsyncpa [#allocation18], 1
    %9620 = vsyncpa [#allocation21], 1
    %9621 = vsyncpa [#allocation24], 1
    %9622 = vsyncpa [#allocation27], 1
    %9623 = vsyncpa [#allocation30], 1
    %9624 = vsyncpa [#allocation33], 1
    %9625 = vsyncpa [#allocation4], 1

</llo_original>
